<compile_context>
chip_gen: v7x
topology: tpu7x:2x2x1
jax: 0.10.0
libtpu: 0.0.40
codegen_flags: <defaults>
</compile_context>

<pallas_src>
import jax
import jax.numpy as jnp
from jax.experimental import pallas as pl
from jax.experimental.pallas import tpu as pltpu

_KSIZES = [(3, 3), (2, 2), (4, 4), (4, 1), (1, 4)]
_C_IN, _H, _W = 12, 4, 4
_D_IN = _C_IN * _H * _W          # 192
_C_OUT = 128
_BN_EPS = 1e-5


# ----------------------------- Pallas kernel --------------------------------

def _simplenet_kernel(x_ref,
                      wc_ref, bc_ref,      # folded conv stage   (192 -> 2816)
                      w1_ref, b1_ref,      # fc1 + BN folded     (2816 -> 1024)
                      w3_ref, b3_ref,      # fc3 + BN folded     (1024 -> 256)
                      w4_ref, b4_ref,      # fc4 + BN folded     (256 -> 4)
                      o_ref):
    def layer(h, w_ref, b_ref):
        # bf16 inputs on the MXU, f32 accumulation, f32 bias + ReLU on the VPU.
        y = jnp.dot(h.astype(w_ref.dtype), w_ref[...],
                    preferred_element_type=jnp.float32) + b_ref[...]
        return jnp.maximum(y, 0.0)

    h = layer(x_ref[...], wc_ref, bc_ref)    # all 5 conv branches + ReLU + concat
    h = layer(h, w1_ref, b1_ref)             # fc1 + BN + ReLU
    h = layer(h, w3_ref, b3_ref)             # fc3 + BN + ReLU
    h = layer(h, w4_ref, b4_ref)             # fc4 + BN + ReLU

    # softmax over dim=1 (last axis), computed in f32
    z = h - jnp.max(h, axis=-1, keepdims=True)
    e = jnp.exp(z)
    o_ref[...] = e / jnp.sum(e, axis=-1, keepdims=True)


_VMEM_SPEC = pl.BlockSpec(memory_space=pltpu.MemorySpace.VMEM)
_CPARAMS = pltpu.CompilerParams(vmem_limit_bytes=32 << 20)


def simplenet_forward(x, fused_params):
    """x: (B, 12, 4, 4) float32 NCHW -> (B, 4) softmax probabilities."""
    b = x.shape[0]
    x_flat = x.reshape(b, _D_IN)             # (B, 192), (C, H, W) flattening order
    args = (x_flat,) + tuple(fused_params)
    return pl.pallas_call(
        _simplenet_kernel,
        out_shape=jax.ShapeDtypeStruct((b, 4), jnp.float32),
        in_specs=[_VMEM_SPEC] * len(args),
        out_specs=_VMEM_SPEC,
        compiler_params=_CPARAMS,
    )(*args)


# --------------------- host-side parameter preparation ----------------------

def _im2col(x, kh, kw):
    """x: (B, C, H, W) -> (B, P, C*kh*kw), patch flattened in (C, kh, kw) order."""
    b, c, h, w = x.shape
    oh, ow = h - kh + 1, w - kw + 1
    cols = []
    for i in range(oh):
        for j in range(ow):
            cols.append(x[:, :, i:i + kh, j:j + kw].reshape(b, c * kh * kw))
    return jnp.stack(cols, axis=1)  # (B, oh*ow, C*kh*kw)


def prepare_params(raw):
    """Fold im2col into conv weights, fold BN into linears, cast weights to bf16.

    Returns (wc, bc, w1, b1, w3, b3, w4, b4) ready for the fused kernel.
    """
    # --- conv stage: build W_all (192, 2816), b_all (1, 2816) via basis trick.
    # Conv+bias is affine in x, so column blocks are the (bias-free) branch
    # responses to the 192 basis boards, flattened channel-major like torch
    # .view(B, -1), concatenated in branch order conv1..conv5.
    eye = jnp.eye(_D_IN, dtype=jnp.float32).reshape(_D_IN, _C_IN, _H, _W)
    w_cols, b_cols = [], []
    for (kh, kw), (w, bias) in zip(_KSIZES, raw["convs"]):
        patches = _im2col(eye, kh, kw)                    # (192, P, K)
        p, k = patches.shape[1], patches.shape[2]
        w_mat = w.reshape(_C_OUT, k).T                    # (K, 128), (C,kh,kw) order
        # (192, P, K) @ (K, 128) -> (192, 128, P) -> channel-major flatten
        cols = jnp.einsum("rpk,kc->rcp", patches, w_mat).reshape(_D_IN, _C_OUT * p)
        w_cols.append(cols)
        b_cols.append(jnp.repeat(bias, p))                # bias[c] at col c*P + p
    wc = jnp.concatenate(w_cols, axis=1)                  # (192, 2816)
    bc = jnp.concatenate(b_cols)[None, :]                 # (1, 2816)

    # --- fold inference BatchNorm into each Linear.
    def fold_bn(w, b, gamma, beta, rmean, rvar):
        s = gamma * jax.lax.rsqrt(rvar + _BN_EPS)         # (1, d_out)
        return w * s, (b - rmean) * s + beta

    w1, b1 = fold_bn(*raw["mlp"][0:6])
    w3, b3 = fold_bn(*raw["mlp"][6:12])
    w4, b4 = fold_bn(*raw["mlp"][12:18])

    bf = lambda a: a.astype(jnp.bfloat16)
    return (bf(wc), bc.astype(jnp.float32),
            bf(w1), b1.astype(jnp.float32),
            bf(w3), b3.astype(jnp.float32),
            bf(w4), b4.astype(jnp.float32))


# --------------------------- deterministic params ----------------------------

def make_params():
    key = jax.random.PRNGKey(0)
    keys = iter(jax.random.split(key, 40))

    def nrm(shape, scale):
        return jax.random.normal(next(keys), shape, dtype=jnp.float32) * scale

    convs = []
    for kh, kw in _KSIZES:
        w = nrm((_C_OUT, _C_IN, kh, kw), 0.05)            # torch Conv2d weight layout
        bias = nrm((_C_OUT,), 0.05)
        convs.append((w, bias))

    def fc_bn(d_in, d_out):
        w = nrm((d_in, d_out), 0.02)                      # == torch Linear weight.T
        b = nrm((1, d_out), 0.02)
        gamma = 1.0 + nrm((1, d_out), 0.01)
        beta = nrm((1, d_out), 0.01)
        rmean = nrm((1, d_out), 0.01)
        rvar = 1.0 + jnp.abs(nrm((1, d_out), 0.01))
        return (w, b, gamma, beta, rmean, rvar)

    mlp = fc_bn(2 * 2 * 128 + 9 * 128 + 1 * 128 + 8 * 128, 1024) \
        + fc_bn(1024, 256) + fc_bn(256, 4)
    return {"convs": convs, "mlp": mlp}


# ----------------------------------- main ------------------------------------

if __name__ == "__main__":
    raw_params = make_params()
    fused_params = prepare_params(raw_params)             # done once, host-side

    # 2048 board encoding: batch=2, 12 channels, 4x4 board.
    x = jax.random.normal(jax.random.PRNGKey(0), (2, _C_IN, _H, _W), dtype=jnp.float32)

    fwd = jax.jit(lambda xx: simplenet_forward(xx, fused_params))
    out = jax.block_until_ready(fwd(x))

    assert out.shape == (2, 4)
    assert bool(jnp.all(jnp.isfinite(out)))
    # softmax rows sum to 1
    assert bool(jnp.all(jnp.abs(jnp.sum(out, axis=1) - 1.0) < 1e-5))
    print("KERNEL_OK")
</pallas_src>

<mosaic_0001>
module attributes {stable_mosaic.version = 11 : i64} {
  func.func @_simplenet_kernel(%arg0: memref<2x192xf32, #tpu.memory_space<vmem>>, %arg1: memref<192x2816xbf16, #tpu.memory_space<vmem>>, %arg2: memref<1x2816xf32, #tpu.memory_space<vmem>>, %arg3: memref<2816x1024xbf16, #tpu.memory_space<vmem>>, %arg4: memref<1x1024xf32, #tpu.memory_space<vmem>>, %arg5: memref<1024x256xbf16, #tpu.memory_space<vmem>>, %arg6: memref<1x256xf32, #tpu.memory_space<vmem>>, %arg7: memref<256x4xbf16, #tpu.memory_space<vmem>>, %arg8: memref<1x4xf32, #tpu.memory_space<vmem>>, %arg9: memref<2x4xf32, #tpu.memory_space<vmem>>) attributes {dimension_semantics = [], scalar_prefetch = 0 : i64, scratch_operands = 0 : i64, tpu.core_type = #tpu.core_type<tc>} {
    %c0 = arith.constant 0 : index
    %c0_0 = arith.constant 0 : index
    %0 = vector.load %arg0[%c0, %c0_0] : memref<2x192xf32, #tpu.memory_space<vmem>>, vector<2x192xf32>
    %1 = arith.truncf %0 : vector<2x192xf32> to vector<2x192xbf16>
    %c0_1 = arith.constant 0 : index
    %c0_2 = arith.constant 0 : index
    %2 = vector.load %arg1[%c0_1, %c0_2] : memref<192x2816xbf16, #tpu.memory_space<vmem>>, vector<192x2816xbf16>
    %cst = arith.constant dense<0.000000e+00> : vector<2x2816xf32>
    %3 = tpu.matmul %1, %2, %cst {dimension_numbers = #tpu.dot_dimension_numbers<[1], [0], [0], [1], [0, 0, 1, 1], [], []>} : vector<2x192xbf16>, vector<192x2816xbf16>, vector<2x2816xf32> -> vector<2x2816xf32>
    %c0_3 = arith.constant 0 : index
    %c0_4 = arith.constant 0 : index
    %4 = vector.load %arg2[%c0_3, %c0_4] : memref<1x2816xf32, #tpu.memory_space<vmem>>, vector<1x2816xf32>
    %5 = vector.broadcast %4 : vector<1x2816xf32> to vector<2x2816xf32>
    %6 = arith.addf %3, %5 : vector<2x2816xf32>
    %cst_5 = arith.constant 0.000000e+00 : f32
    %7 = vector.broadcast %cst_5 : f32 to vector<2x2816xf32>
    %8 = arith.maximumf %6, %7 : vector<2x2816xf32>
    %9 = arith.truncf %8 : vector<2x2816xf32> to vector<2x2816xbf16>
    %c0_6 = arith.constant 0 : index
    %c0_7 = arith.constant 0 : index
    %10 = vector.load %arg3[%c0_6, %c0_7] : memref<2816x1024xbf16, #tpu.memory_space<vmem>>, vector<2816x1024xbf16>
    %cst_8 = arith.constant dense<0.000000e+00> : vector<2x1024xf32>
    %11 = tpu.matmul %9, %10, %cst_8 {dimension_numbers = #tpu.dot_dimension_numbers<[1], [0], [0], [1], [0, 0, 1, 1], [], []>} : vector<2x2816xbf16>, vector<2816x1024xbf16>, vector<2x1024xf32> -> vector<2x1024xf32>
    %c0_9 = arith.constant 0 : index
    %c0_10 = arith.constant 0 : index
    %12 = vector.load %arg4[%c0_9, %c0_10] : memref<1x1024xf32, #tpu.memory_space<vmem>>, vector<1x1024xf32>
    %13 = vector.broadcast %12 : vector<1x1024xf32> to vector<2x1024xf32>
    %14 = arith.addf %11, %13 : vector<2x1024xf32>
    %cst_11 = arith.constant 0.000000e+00 : f32
    %15 = vector.broadcast %cst_11 : f32 to vector<2x1024xf32>
    %16 = arith.maximumf %14, %15 : vector<2x1024xf32>
    %17 = arith.truncf %16 : vector<2x1024xf32> to vector<2x1024xbf16>
    %c0_12 = arith.constant 0 : index
    %c0_13 = arith.constant 0 : index
    %18 = vector.load %arg5[%c0_12, %c0_13] : memref<1024x256xbf16, #tpu.memory_space<vmem>>, vector<1024x256xbf16>
    %cst_14 = arith.constant dense<0.000000e+00> : vector<2x256xf32>
    %19 = tpu.matmul %17, %18, %cst_14 {dimension_numbers = #tpu.dot_dimension_numbers<[1], [0], [0], [1], [0, 0, 1, 1], [], []>} : vector<2x1024xbf16>, vector<1024x256xbf16>, vector<2x256xf32> -> vector<2x256xf32>
    %c0_15 = arith.constant 0 : index
    %c0_16 = arith.constant 0 : index
    %20 = vector.load %arg6[%c0_15, %c0_16] : memref<1x256xf32, #tpu.memory_space<vmem>>, vector<1x256xf32>
    %21 = vector.broadcast %20 : vector<1x256xf32> to vector<2x256xf32>
    %22 = arith.addf %19, %21 : vector<2x256xf32>
    %cst_17 = arith.constant 0.000000e+00 : f32
    %23 = vector.broadcast %cst_17 : f32 to vector<2x256xf32>
    %24 = arith.maximumf %22, %23 : vector<2x256xf32>
    %25 = arith.truncf %24 : vector<2x256xf32> to vector<2x256xbf16>
    %c0_18 = arith.constant 0 : index
    %c0_19 = arith.constant 0 : index
    %26 = vector.load %arg7[%c0_18, %c0_19] : memref<256x4xbf16, #tpu.memory_space<vmem>>, vector<256x4xbf16>
    %cst_20 = arith.constant dense<0.000000e+00> : vector<2x4xf32>
    %27 = tpu.matmul %25, %26, %cst_20 {dimension_numbers = #tpu.dot_dimension_numbers<[1], [0], [0], [1], [0, 0, 1, 1], [], []>} : vector<2x256xbf16>, vector<256x4xbf16>, vector<2x4xf32> -> vector<2x4xf32>
    %c0_21 = arith.constant 0 : index
    %c0_22 = arith.constant 0 : index
    %28 = vector.load %arg8[%c0_21, %c0_22] : memref<1x4xf32, #tpu.memory_space<vmem>>, vector<1x4xf32>
    %29 = vector.broadcast %28 : vector<1x4xf32> to vector<2x4xf32>
    %30 = arith.addf %27, %29 : vector<2x4xf32>
    %cst_23 = arith.constant 0.000000e+00 : f32
    %31 = vector.broadcast %cst_23 : f32 to vector<2x4xf32>
    %32 = arith.maximumf %30, %31 : vector<2x4xf32>
    %cst_24 = arith.constant dense<0xFF800000> : vector<2xf32>
    %33 = vector.multi_reduction <maximumf>, %32, %cst_24 [1] : vector<2x4xf32> to vector<2xf32>
    %34 = vector.shape_cast %33 : vector<2xf32> to vector<2x1xf32>
    %35 = vector.broadcast %34 : vector<2x1xf32> to vector<2x4xf32>
    %36 = arith.subf %32, %35 : vector<2x4xf32>
    %37 = math.exp %36 : vector<2x4xf32>
    %cst_25 = arith.constant dense<0.000000e+00> : vector<2xf32>
    %38 = vector.multi_reduction <add>, %37, %cst_25 [1] : vector<2x4xf32> to vector<2xf32>
    %39 = vector.shape_cast %38 : vector<2xf32> to vector<2x1xf32>
    %40 = vector.broadcast %39 : vector<2x1xf32> to vector<2x4xf32>
    %41 = arith.divf %37, %40 : vector<2x4xf32>
    %c0_26 = arith.constant 0 : index
    %c0_27 = arith.constant 0 : index
    %42 = vector.load %arg9[%c0_26, %c0_27] : memref<2x4xf32, #tpu.memory_space<vmem>>, vector<2x4xf32>
    tpu.vector_store %arg9[%c0_26, %c0_27], %41 {strides = array<i32>} : memref<2x4xf32, #tpu.memory_space<vmem>>, vector<2x4xf32>,
    return
  }
}

</mosaic_0001>

<llo_original>
// kernel: _lambda_.1
$region0: #{_lambda_.1}
  #allocation0 [shape = 'u32[]', space=smem, size = 0x4, offset = 0x4, fixed_abs, tag = 'smem constant byte address 0x4 - core index']
  #allocation1 [shape = 'u32[144,128]{1,0:T(1,128)}', space=vmem, size = 0x12000, scoped, tag = 'internal scratch']
  %s0 = inlined_call_operand.vmem [shape: f32[2,192], index: 0, kind: input, shape index: {}]
  %s1 = inlined_call_operand.vmem [shape: bf16[192,2816], index: 1, kind: input, shape index: {}]
  %s2 = inlined_call_operand.vmem [shape: f32[1,2816], index: 2, kind: input, shape index: {}]
  %s3 = inlined_call_operand.vmem [shape: bf16[2816,1024], index: 3, kind: input, shape index: {}]
  %s4 = inlined_call_operand.vmem [shape: f32[1,1024], index: 4, kind: input, shape index: {}]
  %s5 = inlined_call_operand.vmem [shape: bf16[1024,256], index: 5, kind: input, shape index: {}]
  %s6 = inlined_call_operand.vmem [shape: f32[1,256], index: 6, kind: input, shape index: {}]
  %s7 = inlined_call_operand.vmem [shape: bf16[256,4], index: 7, kind: input, shape index: {}]
  %s8 = inlined_call_operand.vmem [shape: f32[1,4], index: 8, kind: input, shape index: {}]
  %s9 = inlined_call_operand.hbm [shape: f32[2,4], index: 9, kind: output, shape index: {}]
  %s10 = sld [smem:[#allocation0]]
  $region46: #{_lambda_.1} parent=0
    _
  %s12 = ssub.s32 1, %s10
  %s13 = scalar_select 0, %s12, %s10
  $region1: #{_lambda_.1} parent=0
    #allocation2 [shape = 'u8[1024]{0}', space=vmem, size = 0x400, scoped, tag = 'output window, operand 0, single buffered']
    #allocation3 [shape = 's32[1]{0}', space=sflag, size = 0x4, scoped, tag = 'scoped memory for _lambda_.1']
    %14 = vsyncpa [#allocation3], 0
    // Predicated region
    $region2: #{_lambda_.1} parent=1 // pred_check
      _
    $region3: #{_lambda_.1} parent=1 // pred_check_branch
      %16 = sbr.rel (0) target = $region5
    $region4: #{_lambda_.1} parent=1 // pred_region
      _
    $region5: #{_lambda_.1} parent=1 // pred_fallthru
      _
    // Predicated region
    $region6: #{_lambda_.1} parent=1 // pred_check
      _
    $region7: #{_lambda_.1} parent=1 // pred_check_branch
      %18 = sbr.rel (0) target = $region9
    $region8: #{_lambda_.1} parent=1 // pred_region
      _
    $region9: #{_lambda_.1} parent=1 // pred_fallthru
      _
    // Predicated region
    $region10: #{_lambda_.1} parent=1 // pred_check
      _
    $region11: #{_lambda_.1} parent=1 // pred_check_branch
      %20 = sbr.rel (0) target = $region13
    $region12: #{_lambda_.1} parent=1 // pred_region
      _
    $region13: #{_lambda_.1} parent=1 // pred_fallthru
      _
    // Predicated region
    $region14: #{_lambda_.1} parent=1 // pred_check
      _
    $region15: #{_lambda_.1} parent=1 // pred_check_branch
      %22 = sbr.rel (0) target = $region17
    $region16: #{_lambda_.1} parent=1 // pred_region
      _
    $region17: #{_lambda_.1} parent=1 // pred_fallthru
      _
    // Predicated region
    $region18: #{_lambda_.1} parent=1 // pred_check
      _
    $region19: #{_lambda_.1} parent=1 // pred_check_branch
      %24 = sbr.rel (0) target = $region21
    $region20: #{_lambda_.1} parent=1 // pred_region
      _
    $region21: #{_lambda_.1} parent=1 // pred_fallthru
      _
    // Predicated region
    $region22: #{_lambda_.1} parent=1 // pred_check
      _
    $region23: #{_lambda_.1} parent=1 // pred_check_branch
      %26 = sbr.rel (0) target = $region25
    $region24: #{_lambda_.1} parent=1 // pred_region
      _
    $region25: #{_lambda_.1} parent=1 // pred_fallthru
      _
    // Predicated region
    $region26: #{_lambda_.1} parent=1 // pred_check
      _
    $region27: #{_lambda_.1} parent=1 // pred_check_branch
      %28 = sbr.rel (0) target = $region29
    $region28: #{_lambda_.1} parent=1 // pred_region
      _
    $region29: #{_lambda_.1} parent=1 // pred_fallthru
      _
    // Predicated region
    $region30: #{_lambda_.1} parent=1 // pred_check
      _
    $region31: #{_lambda_.1} parent=1 // pred_check_branch
      %30 = sbr.rel (0) target = $region33
    $region32: #{_lambda_.1} parent=1 // pred_region
      _
    $region33: #{_lambda_.1} parent=1 // pred_fallthru
      _
    // Predicated region
    $region34: #{_lambda_.1} parent=1 // pred_check
      _
    $region35: #{_lambda_.1} parent=1 // pred_check_branch
      %32 = sbr.rel (0) target = $region37
    $region36: #{_lambda_.1} parent=1 // pred_region
      _
    $region37: #{_lambda_.1} parent=1 // pred_fallthru
      _
    %v34 = vld [vmem:[%s0] sm:$0xf]
    %v37 = vunpack.c.l.s4 1983009808
    %v38 = vunpack.c.0.s8 %v37
    %v39 = vlaneseq
    %v40 = vshrl.u32 %v39, 7
    %v41 = vsub.s32 %v38, %v40
    %v42 = vrot.slane %v34, %v41
    %v43 = vcombine.high %v42, %v42
    %v46 = vpack.c.bf16 %v42, %v42
    %v47 = vpack.c.bf16 %v43, %v43
    %v48 = vld [vmem:[%s1] sm:$0xff]
    %v49 = vld [vmem:[%s1 + $0x8] sm:$0xff]
    %v50 = vld [vmem:[%s1 + $0x10] sm:$0xff]
    %v51 = vld [vmem:[%s1 + $0x18] sm:$0xff]
    %v52 = vld [vmem:[%s1 + $0x20] sm:$0xff]
    %v53 = vld [vmem:[%s1 + $0x28] sm:$0xff]
    %v54 = vld [vmem:[%s1 + $0x30] sm:$0xff]
    %v55 = vld [vmem:[%s1 + $0x38] sm:$0xff]
    %v56 = vld [vmem:[%s1 + $0x40] sm:$0xff]
    %v57 = vld [vmem:[%s1 + $0x48] sm:$0xff]
    %v58 = vld [vmem:[%s1 + $0x50] sm:$0xff]
    %v59 = vld [vmem:[%s1 + $0x58] sm:$0xff]
    %v60 = vld [vmem:[%s1 + $0x60] sm:$0xff]
    %v61 = vld [vmem:[%s1 + $0x68] sm:$0xff]
    %v62 = vld [vmem:[%s1 + $0x70] sm:$0xff]
    %v63 = vld [vmem:[%s1 + $0x78] sm:$0xff]
    %v64 = vld [vmem:[%s1 + $0x80] sm:$0xff]
    %v65 = vld [vmem:[%s1 + $0x88] sm:$0xff]
    %v66 = vld [vmem:[%s1 + $0x90] sm:$0xff]
    %v67 = vld [vmem:[%s1 + $0x98] sm:$0xff]
    %v68 = vld [vmem:[%s1 + $0xa0] sm:$0xff]
    %v69 = vld [vmem:[%s1 + $0xa8] sm:$0xff]
    %v70 = vld [vmem:[%s1 + $0xb0] sm:$0xff]
    %v71 = vld [vmem:[%s1 + $0xb8] sm:$0xff]
    %v72 = vld [vmem:[%s1 + $0xc0] sm:$0xff]
    %v73 = vld [vmem:[%s1 + $0xc8] sm:$0xff]
    %v74 = vld [vmem:[%s1 + $0xd0] sm:$0xff]
    %v75 = vld [vmem:[%s1 + $0xd8] sm:$0xff]
    %v76 = vld [vmem:[%s1 + $0xe0] sm:$0xff]
    %v77 = vld [vmem:[%s1 + $0xe8] sm:$0xff]
    %v78 = vld [vmem:[%s1 + $0xf0] sm:$0xff]
    %v79 = vld [vmem:[%s1 + $0xf8] sm:$0xff]
    %v80 = vld [vmem:[%s1 + $0x100] sm:$0xff]
    %v81 = vld [vmem:[%s1 + $0x108] sm:$0xff]
    %v82 = vld [vmem:[%s1 + $0x110] sm:$0xff]
    %v83 = vld [vmem:[%s1 + $0x118] sm:$0xff]
    %v84 = vld [vmem:[%s1 + $0x120] sm:$0xff]
    %v85 = vld [vmem:[%s1 + $0x128] sm:$0xff]
    %v86 = vld [vmem:[%s1 + $0x130] sm:$0xff]
    %v87 = vld [vmem:[%s1 + $0x138] sm:$0xff]
    %v88 = vld [vmem:[%s1 + $0x140] sm:$0xff]
    %v89 = vld [vmem:[%s1 + $0x148] sm:$0xff]
    %v90 = vld [vmem:[%s1 + $0x150] sm:$0xff]
    %v91 = vld [vmem:[%s1 + $0x158] sm:$0xff]
    %v92 = vld [vmem:[%s1 + $0x160] sm:$0xff]
    %v93 = vld [vmem:[%s1 + $0x168] sm:$0xff]
    %v94 = vld [vmem:[%s1 + $0x170] sm:$0xff]
    %v95 = vld [vmem:[%s1 + $0x178] sm:$0xff]
    %v96 = vld [vmem:[%s1 + $0x180] sm:$0xff]
    %v97 = vld [vmem:[%s1 + $0x188] sm:$0xff]
    %v98 = vld [vmem:[%s1 + $0x190] sm:$0xff]
    %v99 = vld [vmem:[%s1 + $0x198] sm:$0xff]
    %v100 = vld [vmem:[%s1 + $0x1a0] sm:$0xff]
    %v101 = vld [vmem:[%s1 + $0x1a8] sm:$0xff]
    %v102 = vld [vmem:[%s1 + $0x1b0] sm:$0xff]
    %v103 = vld [vmem:[%s1 + $0x1b8] sm:$0xff]
    %v104 = vld [vmem:[%s1 + $0x1c0] sm:$0xff]
    %v105 = vld [vmem:[%s1 + $0x1c8] sm:$0xff]
    %v106 = vld [vmem:[%s1 + $0x1d0] sm:$0xff]
    %v107 = vld [vmem:[%s1 + $0x1d8] sm:$0xff]
    %v108 = vld [vmem:[%s1 + $0x1e0] sm:$0xff]
    %v109 = vld [vmem:[%s1 + $0x1e8] sm:$0xff]
    %v110 = vld [vmem:[%s1 + $0x1f0] sm:$0xff]
    %v111 = vld [vmem:[%s1 + $0x1f8] sm:$0xff]
    %v112 = vld [vmem:[%s1 + $0x200] sm:$0xff]
    %v113 = vld [vmem:[%s1 + $0x208] sm:$0xff]
    %v114 = vld [vmem:[%s1 + $0x210] sm:$0xff]
    %v115 = vld [vmem:[%s1 + $0x218] sm:$0xff]
    %v116 = vld [vmem:[%s1 + $0x220] sm:$0xff]
    %v117 = vld [vmem:[%s1 + $0x228] sm:$0xff]
    %v118 = vld [vmem:[%s1 + $0x230] sm:$0xff]
    %v119 = vld [vmem:[%s1 + $0x238] sm:$0xff]
    %v120 = vld [vmem:[%s1 + $0x240] sm:$0xff]
    %v121 = vld [vmem:[%s1 + $0x248] sm:$0xff]
    %v122 = vld [vmem:[%s1 + $0x250] sm:$0xff]
    %v123 = vld [vmem:[%s1 + $0x258] sm:$0xff]
    %v124 = vld [vmem:[%s1 + $0x260] sm:$0xff]
    %v125 = vld [vmem:[%s1 + $0x268] sm:$0xff]
    %v126 = vld [vmem:[%s1 + $0x270] sm:$0xff]
    %v127 = vld [vmem:[%s1 + $0x278] sm:$0xff]
    %v128 = vld [vmem:[%s1 + $0x280] sm:$0xff]
    %v129 = vld [vmem:[%s1 + $0x288] sm:$0xff]
    %v130 = vld [vmem:[%s1 + $0x290] sm:$0xff]
    %v131 = vld [vmem:[%s1 + $0x298] sm:$0xff]
    %v132 = vld [vmem:[%s1 + $0x2a0] sm:$0xff]
    %v133 = vld [vmem:[%s1 + $0x2a8] sm:$0xff]
    %v134 = vld [vmem:[%s1 + $0x2b0] sm:$0xff]
    %v135 = vld [vmem:[%s1 + $0x2b8] sm:$0xff]
    %v136 = vld [vmem:[%s1 + $0x2c0] sm:$0xff]
    %v137 = vld [vmem:[%s1 + $0x2c8] sm:$0xff]
    %v138 = vld [vmem:[%s1 + $0x2d0] sm:$0xff]
    %v139 = vld [vmem:[%s1 + $0x2d8] sm:$0xff]
    %v140 = vld [vmem:[%s1 + $0x2e0] sm:$0xff]
    %v141 = vld [vmem:[%s1 + $0x2e8] sm:$0xff]
    %v142 = vld [vmem:[%s1 + $0x2f0] sm:$0xff]
    %v143 = vld [vmem:[%s1 + $0x2f8] sm:$0xff]
    %v144 = vld [vmem:[%s1 + $0x300] sm:$0xff]
    %v145 = vld [vmem:[%s1 + $0x308] sm:$0xff]
    %v146 = vld [vmem:[%s1 + $0x310] sm:$0xff]
    %v147 = vld [vmem:[%s1 + $0x318] sm:$0xff]
    %v148 = vld [vmem:[%s1 + $0x320] sm:$0xff]
    %v149 = vld [vmem:[%s1 + $0x328] sm:$0xff]
    %v150 = vld [vmem:[%s1 + $0x330] sm:$0xff]
    %v151 = vld [vmem:[%s1 + $0x338] sm:$0xff]
    %v152 = vld [vmem:[%s1 + $0x340] sm:$0xff]
    %v153 = vld [vmem:[%s1 + $0x348] sm:$0xff]
    %v154 = vld [vmem:[%s1 + $0x350] sm:$0xff]
    %v155 = vld [vmem:[%s1 + $0x358] sm:$0xff]
    %v156 = vld [vmem:[%s1 + $0x360] sm:$0xff]
    %v157 = vld [vmem:[%s1 + $0x368] sm:$0xff]
    %v158 = vld [vmem:[%s1 + $0x370] sm:$0xff]
    %v159 = vld [vmem:[%s1 + $0x378] sm:$0xff]
    %v160 = vld [vmem:[%s1 + $0x380] sm:$0xff]
    %v161 = vld [vmem:[%s1 + $0x388] sm:$0xff]
    %v162 = vld [vmem:[%s1 + $0x390] sm:$0xff]
    %v163 = vld [vmem:[%s1 + $0x398] sm:$0xff]
    %v164 = vld [vmem:[%s1 + $0x3a0] sm:$0xff]
    %v165 = vld [vmem:[%s1 + $0x3a8] sm:$0xff]
    %v166 = vld [vmem:[%s1 + $0x3b0] sm:$0xff]
    %v167 = vld [vmem:[%s1 + $0x3b8] sm:$0xff]
    %v168 = vld [vmem:[%s1 + $0x3c0] sm:$0xff]
    %v169 = vld [vmem:[%s1 + $0x3c8] sm:$0xff]
    %v170 = vld [vmem:[%s1 + $0x3d0] sm:$0xff]
    %v171 = vld [vmem:[%s1 + $0x3d8] sm:$0xff]
    %v172 = vld [vmem:[%s1 + $0x3e0] sm:$0xff]
    %v173 = vld [vmem:[%s1 + $0x3e8] sm:$0xff]
    %v174 = vld [vmem:[%s1 + $0x3f0] sm:$0xff]
    %v175 = vld [vmem:[%s1 + $0x3f8] sm:$0xff]
    %v176 = vld [vmem:[%s1 + $0x400] sm:$0xff]
    %v177 = vld [vmem:[%s1 + $0x408] sm:$0xff]
    %v178 = vld [vmem:[%s1 + $0x410] sm:$0xff]
    %v179 = vld [vmem:[%s1 + $0x418] sm:$0xff]
    %v180 = vld [vmem:[%s1 + $0x420] sm:$0xff]
    %v181 = vld [vmem:[%s1 + $0x428] sm:$0xff]
    %v182 = vld [vmem:[%s1 + $0x430] sm:$0xff]
    %v183 = vld [vmem:[%s1 + $0x438] sm:$0xff]
    %v184 = vld [vmem:[%s1 + $0x440] sm:$0xff]
    %v185 = vld [vmem:[%s1 + $0x448] sm:$0xff]
    %v186 = vld [vmem:[%s1 + $0x450] sm:$0xff]
    %v187 = vld [vmem:[%s1 + $0x458] sm:$0xff]
    %v188 = vld [vmem:[%s1 + $0x460] sm:$0xff]
    %v189 = vld [vmem:[%s1 + $0x468] sm:$0xff]
    %v190 = vld [vmem:[%s1 + $0x470] sm:$0xff]
    %v191 = vld [vmem:[%s1 + $0x478] sm:$0xff]
    %v192 = vld [vmem:[%s1 + $0x480] sm:$0xff]
    %v193 = vld [vmem:[%s1 + $0x488] sm:$0xff]
    %v194 = vld [vmem:[%s1 + $0x490] sm:$0xff]
    %v195 = vld [vmem:[%s1 + $0x498] sm:$0xff]
    %v196 = vld [vmem:[%s1 + $0x4a0] sm:$0xff]
    %v197 = vld [vmem:[%s1 + $0x4a8] sm:$0xff]
    %v198 = vld [vmem:[%s1 + $0x4b0] sm:$0xff]
    %v199 = vld [vmem:[%s1 + $0x4b8] sm:$0xff]
    %v200 = vld [vmem:[%s1 + $0x4c0] sm:$0xff]
    %v201 = vld [vmem:[%s1 + $0x4c8] sm:$0xff]
    %v202 = vld [vmem:[%s1 + $0x4d0] sm:$0xff]
    %v203 = vld [vmem:[%s1 + $0x4d8] sm:$0xff]
    %v204 = vld [vmem:[%s1 + $0x4e0] sm:$0xff]
    %v205 = vld [vmem:[%s1 + $0x4e8] sm:$0xff]
    %v206 = vld [vmem:[%s1 + $0x4f0] sm:$0xff]
    %v207 = vld [vmem:[%s1 + $0x4f8] sm:$0xff]
    %v208 = vld [vmem:[%s1 + $0x500] sm:$0xff]
    %v209 = vld [vmem:[%s1 + $0x508] sm:$0xff]
    %v210 = vld [vmem:[%s1 + $0x510] sm:$0xff]
    %v211 = vld [vmem:[%s1 + $0x518] sm:$0xff]
    %v212 = vld [vmem:[%s1 + $0x520] sm:$0xff]
    %v213 = vld [vmem:[%s1 + $0x528] sm:$0xff]
    %v214 = vld [vmem:[%s1 + $0x530] sm:$0xff]
    %v215 = vld [vmem:[%s1 + $0x538] sm:$0xff]
    %v216 = vld [vmem:[%s1 + $0x540] sm:$0xff]
    %v217 = vld [vmem:[%s1 + $0x548] sm:$0xff]
    %v218 = vld [vmem:[%s1 + $0x550] sm:$0xff]
    %v219 = vld [vmem:[%s1 + $0x558] sm:$0xff]
    %v220 = vld [vmem:[%s1 + $0x560] sm:$0xff]
    %v221 = vld [vmem:[%s1 + $0x568] sm:$0xff]
    %v222 = vld [vmem:[%s1 + $0x570] sm:$0xff]
    %v223 = vld [vmem:[%s1 + $0x578] sm:$0xff]
    %v224 = vld [vmem:[%s1 + $0x580] sm:$0xff]
    %v225 = vld [vmem:[%s1 + $0x588] sm:$0xff]
    %v226 = vld [vmem:[%s1 + $0x590] sm:$0xff]
    %v227 = vld [vmem:[%s1 + $0x598] sm:$0xff]
    %v228 = vld [vmem:[%s1 + $0x5a0] sm:$0xff]
    %v229 = vld [vmem:[%s1 + $0x5a8] sm:$0xff]
    %v230 = vld [vmem:[%s1 + $0x5b0] sm:$0xff]
    %v231 = vld [vmem:[%s1 + $0x5b8] sm:$0xff]
    %v232 = vld [vmem:[%s1 + $0x5c0] sm:$0xff]
    %v233 = vld [vmem:[%s1 + $0x5c8] sm:$0xff]
    %v234 = vld [vmem:[%s1 + $0x5d0] sm:$0xff]
    %v235 = vld [vmem:[%s1 + $0x5d8] sm:$0xff]
    %v236 = vld [vmem:[%s1 + $0x5e0] sm:$0xff]
    %v237 = vld [vmem:[%s1 + $0x5e8] sm:$0xff]
    %v238 = vld [vmem:[%s1 + $0x5f0] sm:$0xff]
    %v239 = vld [vmem:[%s1 + $0x5f8] sm:$0xff]
    %v240 = vld [vmem:[%s1 + $0x600] sm:$0xff]
    %v241 = vld [vmem:[%s1 + $0x608] sm:$0xff]
    %v242 = vld [vmem:[%s1 + $0x610] sm:$0xff]
    %v243 = vld [vmem:[%s1 + $0x618] sm:$0xff]
    %v244 = vld [vmem:[%s1 + $0x620] sm:$0xff]
    %v245 = vld [vmem:[%s1 + $0x628] sm:$0xff]
    %v246 = vld [vmem:[%s1 + $0x630] sm:$0xff]
    %v247 = vld [vmem:[%s1 + $0x638] sm:$0xff]
    %v248 = vld [vmem:[%s1 + $0x640] sm:$0xff]
    %v249 = vld [vmem:[%s1 + $0x648] sm:$0xff]
    %v250 = vld [vmem:[%s1 + $0x650] sm:$0xff]
    %v251 = vld [vmem:[%s1 + $0x658] sm:$0xff]
    %v252 = vld [vmem:[%s1 + $0x660] sm:$0xff]
    %v253 = vld [vmem:[%s1 + $0x668] sm:$0xff]
    %v254 = vld [vmem:[%s1 + $0x670] sm:$0xff]
    %v255 = vld [vmem:[%s1 + $0x678] sm:$0xff]
    %v256 = vld [vmem:[%s1 + $0x680] sm:$0xff]
    %v257 = vld [vmem:[%s1 + $0x688] sm:$0xff]
    %v258 = vld [vmem:[%s1 + $0x690] sm:$0xff]
    %v259 = vld [vmem:[%s1 + $0x698] sm:$0xff]
    %v260 = vld [vmem:[%s1 + $0x6a0] sm:$0xff]
    %v261 = vld [vmem:[%s1 + $0x6a8] sm:$0xff]
    %v262 = vld [vmem:[%s1 + $0x6b0] sm:$0xff]
    %v263 = vld [vmem:[%s1 + $0x6b8] sm:$0xff]
    %v264 = vld [vmem:[%s1 + $0x6c0] sm:$0xff]
    %v265 = vld [vmem:[%s1 + $0x6c8] sm:$0xff]
    %v266 = vld [vmem:[%s1 + $0x6d0] sm:$0xff]
    %v267 = vld [vmem:[%s1 + $0x6d8] sm:$0xff]
    %v268 = vld [vmem:[%s1 + $0x6e0] sm:$0xff]
    %v269 = vld [vmem:[%s1 + $0x6e8] sm:$0xff]
    %v270 = vld [vmem:[%s1 + $0x6f0] sm:$0xff]
    %v271 = vld [vmem:[%s1 + $0x6f8] sm:$0xff]
    %v272 = vld [vmem:[%s1 + $0x700] sm:$0xff]
    %v273 = vld [vmem:[%s1 + $0x708] sm:$0xff]
    %v274 = vld [vmem:[%s1 + $0x710] sm:$0xff]
    %v275 = vld [vmem:[%s1 + $0x718] sm:$0xff]
    %v276 = vld [vmem:[%s1 + $0x720] sm:$0xff]
    %v277 = vld [vmem:[%s1 + $0x728] sm:$0xff]
    %v278 = vld [vmem:[%s1 + $0x730] sm:$0xff]
    %v279 = vld [vmem:[%s1 + $0x738] sm:$0xff]
    %v280 = vld [vmem:[%s1 + $0x740] sm:$0xff]
    %v281 = vld [vmem:[%s1 + $0x748] sm:$0xff]
    %v282 = vld [vmem:[%s1 + $0x750] sm:$0xff]
    %v283 = vld [vmem:[%s1 + $0x758] sm:$0xff]
    %v284 = vld [vmem:[%s1 + $0x760] sm:$0xff]
    %v285 = vld [vmem:[%s1 + $0x768] sm:$0xff]
    %v286 = vld [vmem:[%s1 + $0x770] sm:$0xff]
    %v287 = vld [vmem:[%s1 + $0x778] sm:$0xff]
    %v288 = vld [vmem:[%s1 + $0x780] sm:$0xff]
    %v289 = vld [vmem:[%s1 + $0x788] sm:$0xff]
    %v290 = vld [vmem:[%s1 + $0x790] sm:$0xff]
    %v291 = vld [vmem:[%s1 + $0x798] sm:$0xff]
    %v292 = vld [vmem:[%s1 + $0x7a0] sm:$0xff]
    %v293 = vld [vmem:[%s1 + $0x7a8] sm:$0xff]
    %v294 = vld [vmem:[%s1 + $0x7b0] sm:$0xff]
    %v295 = vld [vmem:[%s1 + $0x7b8] sm:$0xff]
    %v296 = vld [vmem:[%s1 + $0x7c0] sm:$0xff]
    %v297 = vld [vmem:[%s1 + $0x7c8] sm:$0xff]
    %v298 = vld [vmem:[%s1 + $0x7d0] sm:$0xff]
    %v299 = vld [vmem:[%s1 + $0x7d8] sm:$0xff]
    %v300 = vld [vmem:[%s1 + $0x7e0] sm:$0xff]
    %v301 = vld [vmem:[%s1 + $0x7e8] sm:$0xff]
    %v302 = vld [vmem:[%s1 + $0x7f0] sm:$0xff]
    %v303 = vld [vmem:[%s1 + $0x7f8] sm:$0xff]
    %v304 = vld [vmem:[%s1 + $0x800] sm:$0xff]
    %v305 = vld [vmem:[%s1 + $0x808] sm:$0xff]
    %v306 = vld [vmem:[%s1 + $0x810] sm:$0xff]
    %v307 = vld [vmem:[%s1 + $0x818] sm:$0xff]
    %v308 = vld [vmem:[%s1 + $0x820] sm:$0xff]
    %v309 = vld [vmem:[%s1 + $0x828] sm:$0xff]
    %v310 = vld [vmem:[%s1 + $0x830] sm:$0xff]
    %v311 = vld [vmem:[%s1 + $0x838] sm:$0xff]
    %v312 = vld [vmem:[%s2] sm:$0xff]
    %v313 = vld [vmem:[%s2 + $0x8] sm:$0xff]
    %v314 = vld [vmem:[%s2 + $0x10] sm:$0x3f]
    %v318 = vlaneseq
    %v319 = vshrl.u32 %v318, 7
    %v320 = vsub.s32 0, %v319
    %v321 = vrot.slane %v312, %v320
    %v322 = vlaneseq
    %v323 = vshrl.u32 %v322, 7
    %v324 = vsub.s32 1, %v323
    %v325 = vrot.slane %v312, %v324
    %v326 = vlaneseq
    %v327 = vshrl.u32 %v326, 7
    %v328 = vsub.s32 2, %v327
    %v329 = vrot.slane %v312, %v328
    %v330 = vlaneseq
    %v331 = vshrl.u32 %v330, 7
    %v332 = vsub.s32 3, %v331
    %v333 = vrot.slane %v312, %v332
    %v334 = vlaneseq
    %v335 = vshrl.u32 %v334, 7
    %v336 = vsub.s32 4, %v335
    %v337 = vrot.slane %v312, %v336
    %v338 = vlaneseq
    %v339 = vshrl.u32 %v338, 7
    %v340 = vsub.s32 5, %v339
    %v341 = vrot.slane %v312, %v340
    %v342 = vlaneseq
    %v343 = vshrl.u32 %v342, 7
    %v344 = vsub.s32 6, %v343
    %v345 = vrot.slane %v312, %v344
    %v346 = vlaneseq
    %v347 = vshrl.u32 %v346, 7
    %v348 = vsub.s32 7, %v347
    %v349 = vrot.slane %v312, %v348
    %v350 = vlaneseq
    %v351 = vshrl.u32 %v350, 7
    %v352 = vsub.s32 0, %v351
    %v353 = vrot.slane %v313, %v352
    %v354 = vlaneseq
    %v355 = vshrl.u32 %v354, 7
    %v356 = vsub.s32 1, %v355
    %v357 = vrot.slane %v313, %v356
    %v358 = vlaneseq
    %v359 = vshrl.u32 %v358, 7
    %v360 = vsub.s32 2, %v359
    %v361 = vrot.slane %v313, %v360
    %v362 = vlaneseq
    %v363 = vshrl.u32 %v362, 7
    %v364 = vsub.s32 3, %v363
    %v365 = vrot.slane %v313, %v364
    %v366 = vlaneseq
    %v367 = vshrl.u32 %v366, 7
    %v368 = vsub.s32 4, %v367
    %v369 = vrot.slane %v313, %v368
    %v370 = vlaneseq
    %v371 = vshrl.u32 %v370, 7
    %v372 = vsub.s32 5, %v371
    %v373 = vrot.slane %v313, %v372
    %v374 = vlaneseq
    %v375 = vshrl.u32 %v374, 7
    %v376 = vsub.s32 6, %v375
    %v377 = vrot.slane %v313, %v376
    %v378 = vlaneseq
    %v379 = vshrl.u32 %v378, 7
    %v380 = vsub.s32 7, %v379
    %v381 = vrot.slane %v313, %v380
    %v382 = vlaneseq
    %v383 = vshrl.u32 %v382, 7
    %v384 = vsub.s32 0, %v383
    %v385 = vrot.slane %v314, %v384
    %v386 = vlaneseq
    %v387 = vshrl.u32 %v386, 7
    %v388 = vsub.s32 1, %v387
    %v389 = vrot.slane %v314, %v388
    %v390 = vlaneseq
    %v391 = vshrl.u32 %v390, 7
    %v392 = vsub.s32 2, %v391
    %v393 = vrot.slane %v314, %v392
    %v394 = vlaneseq
    %v395 = vshrl.u32 %v394, 7
    %v396 = vsub.s32 3, %v395
    %v397 = vrot.slane %v314, %v396
    %v398 = vlaneseq
    %v399 = vshrl.u32 %v398, 7
    %v400 = vsub.s32 4, %v399
    %v401 = vrot.slane %v314, %v400
    %v402 = vlaneseq
    %v403 = vshrl.u32 %v402, 7
    %v404 = vsub.s32 5, %v403
    %v405 = vrot.slane %v314, %v404
    %v692 = vunpack.c.l.b16 %v48
    %v693 = vunpack.c.h.b16 %v48
    %v694 = vunpack.c.l.b16 %v49
    %v695 = vunpack.c.h.b16 %v49
    %v696 = vunpack.c.l.b16 %v50
    %v697 = vunpack.c.h.b16 %v50
    %v698 = vunpack.c.l.b16 %v51
    %v699 = vunpack.c.h.b16 %v51
    %v700 = vunpack.c.l.b16 %v52
    %v701 = vunpack.c.h.b16 %v52
    %v702 = vunpack.c.l.b16 %v53
    %v703 = vunpack.c.h.b16 %v53
    %v704 = vunpack.c.l.b16 %v54
    %v705 = vunpack.c.h.b16 %v54
    %v706 = vunpack.c.l.b16 %v55
    %v707 = vunpack.c.h.b16 %v55
    %v708 = vunpack.c.l.b16 %v56
    %v709 = vunpack.c.h.b16 %v56
    %v710 = vunpack.c.l.b16 %v57
    %v711 = vunpack.c.h.b16 %v57
    %v712 = vunpack.c.l.b16 %v58
    %v713 = vunpack.c.h.b16 %v58
    %v714 = vunpack.c.l.b16 %v59
    %v715 = vunpack.c.h.b16 %v59
    %v716 = vunpack.c.l.b16 %v60
    %v717 = vunpack.c.h.b16 %v60
    %v718 = vunpack.c.l.b16 %v61
    %v719 = vunpack.c.h.b16 %v61
    %v720 = vunpack.c.l.b16 %v62
    %v721 = vunpack.c.h.b16 %v62
    %v722 = vunpack.c.l.b16 %v63
    %v723 = vunpack.c.h.b16 %v63
    %v724 = vunpack.c.l.b16 %v64
    %v725 = vunpack.c.h.b16 %v64
    %v726 = vunpack.c.l.b16 %v65
    %v727 = vunpack.c.h.b16 %v65
    %v728 = vunpack.c.l.b16 %v66
    %v729 = vunpack.c.h.b16 %v66
    %v730 = vunpack.c.l.b16 %v67
    %v731 = vunpack.c.h.b16 %v67
    %v732 = vunpack.c.l.b16 %v68
    %v733 = vunpack.c.h.b16 %v68
    %v734 = vunpack.c.l.b16 %v69
    %v735 = vunpack.c.h.b16 %v69
    %v736 = vunpack.c.l.b16 %v70
    %v737 = vunpack.c.h.b16 %v70
    %v738 = vunpack.c.l.b16 %v71
    %v739 = vunpack.c.h.b16 %v71
    %v740 = vunpack.c.l.b16 %v72
    %v741 = vunpack.c.h.b16 %v72
    %v742 = vunpack.c.l.b16 %v73
    %v743 = vunpack.c.h.b16 %v73
    %v744 = vunpack.c.l.b16 %v74
    %v745 = vunpack.c.h.b16 %v74
    %v746 = vunpack.c.l.b16 %v75
    %v747 = vunpack.c.h.b16 %v75
    %v748 = vunpack.c.l.b16 %v76
    %v749 = vunpack.c.h.b16 %v76
    %v750 = vunpack.c.l.b16 %v77
    %v751 = vunpack.c.h.b16 %v77
    %v752 = vunpack.c.l.b16 %v78
    %v753 = vunpack.c.h.b16 %v78
    %v754 = vunpack.c.l.b16 %v79
    %v755 = vunpack.c.h.b16 %v79
    %v756 = vunpack.c.l.b16 %v80
    %v757 = vunpack.c.h.b16 %v80
    %v758 = vunpack.c.l.b16 %v81
    %v759 = vunpack.c.h.b16 %v81
    %v760 = vunpack.c.l.b16 %v82
    %v761 = vunpack.c.h.b16 %v82
    %v762 = vunpack.c.l.b16 %v83
    %v763 = vunpack.c.h.b16 %v83
    %v764 = vunpack.c.l.b16 %v84
    %v765 = vunpack.c.h.b16 %v84
    %v766 = vunpack.c.l.b16 %v85
    %v767 = vunpack.c.h.b16 %v85
    %v768 = vunpack.c.l.b16 %v86
    %v769 = vunpack.c.h.b16 %v86
    %v770 = vunpack.c.l.b16 %v87
    %v771 = vunpack.c.h.b16 %v87
    %v772 = vunpack.c.l.b16 %v88
    %v773 = vunpack.c.h.b16 %v88
    %v774 = vunpack.c.l.b16 %v89
    %v775 = vunpack.c.h.b16 %v89
    %v776 = vunpack.c.l.b16 %v90
    %v777 = vunpack.c.h.b16 %v90
    %v778 = vunpack.c.l.b16 %v91
    %v779 = vunpack.c.h.b16 %v91
    %v780 = vunpack.c.l.b16 %v92
    %v781 = vunpack.c.h.b16 %v92
    %v782 = vunpack.c.l.b16 %v93
    %v783 = vunpack.c.h.b16 %v93
    %v784 = vunpack.c.l.b16 %v94
    %v785 = vunpack.c.h.b16 %v94
    %v786 = vunpack.c.l.b16 %v95
    %v787 = vunpack.c.h.b16 %v95
    %v788 = vunpack.c.l.b16 %v96
    %v789 = vunpack.c.h.b16 %v96
    %v790 = vunpack.c.l.b16 %v97
    %v791 = vunpack.c.h.b16 %v97
    %v792 = vunpack.c.l.b16 %v98
    %v793 = vunpack.c.h.b16 %v98
    %v794 = vunpack.c.l.b16 %v99
    %v795 = vunpack.c.h.b16 %v99
    %v796 = vunpack.c.l.b16 %v100
    %v797 = vunpack.c.h.b16 %v100
    %v798 = vunpack.c.l.b16 %v101
    %v799 = vunpack.c.h.b16 %v101
    %v800 = vunpack.c.l.b16 %v102
    %v801 = vunpack.c.h.b16 %v102
    %v802 = vunpack.c.l.b16 %v103
    %v803 = vunpack.c.h.b16 %v103
    %v804 = vunpack.c.l.b16 %v104
    %v805 = vunpack.c.h.b16 %v104
    %v806 = vunpack.c.l.b16 %v105
    %v807 = vunpack.c.h.b16 %v105
    %v808 = vunpack.c.l.b16 %v106
    %v809 = vunpack.c.h.b16 %v106
    %v810 = vunpack.c.l.b16 %v107
    %v811 = vunpack.c.h.b16 %v107
    %v812 = vunpack.c.l.b16 %v108
    %v813 = vunpack.c.h.b16 %v108
    %v814 = vunpack.c.l.b16 %v109
    %v815 = vunpack.c.h.b16 %v109
    %v816 = vunpack.c.l.b16 %v110
    %v817 = vunpack.c.h.b16 %v110
    %v818 = vunpack.c.l.b16 %v111
    %v819 = vunpack.c.h.b16 %v111
    %v820 = vunpack.c.l.b16 %v112
    %v821 = vunpack.c.h.b16 %v112
    %v822 = vunpack.c.l.b16 %v113
    %v823 = vunpack.c.h.b16 %v113
    %v824 = vunpack.c.l.b16 %v114
    %v825 = vunpack.c.h.b16 %v114
    %v826 = vunpack.c.l.b16 %v115
    %v827 = vunpack.c.h.b16 %v115
    %v828 = vunpack.c.l.b16 %v116
    %v829 = vunpack.c.h.b16 %v116
    %v830 = vunpack.c.l.b16 %v117
    %v831 = vunpack.c.h.b16 %v117
    %v832 = vunpack.c.l.b16 %v118
    %v833 = vunpack.c.h.b16 %v118
    %v834 = vunpack.c.l.b16 %v119
    %v835 = vunpack.c.h.b16 %v119
    %v836 = vunpack.c.l.b16 %v120
    %v837 = vunpack.c.h.b16 %v120
    %v838 = vunpack.c.l.b16 %v121
    %v839 = vunpack.c.h.b16 %v121
    %v840 = vunpack.c.l.b16 %v122
    %v841 = vunpack.c.h.b16 %v122
    %v842 = vunpack.c.l.b16 %v123
    %v843 = vunpack.c.h.b16 %v123
    %v844 = vunpack.c.l.b16 %v124
    %v845 = vunpack.c.h.b16 %v124
    %v846 = vunpack.c.l.b16 %v125
    %v847 = vunpack.c.h.b16 %v125
    %v848 = vunpack.c.l.b16 %v126
    %v849 = vunpack.c.h.b16 %v126
    %v850 = vunpack.c.l.b16 %v127
    %v851 = vunpack.c.h.b16 %v127
    %v852 = vunpack.c.l.b16 %v128
    %v853 = vunpack.c.h.b16 %v128
    %v854 = vunpack.c.l.b16 %v129
    %v855 = vunpack.c.h.b16 %v129
    %v856 = vunpack.c.l.b16 %v130
    %v857 = vunpack.c.h.b16 %v130
    %v858 = vunpack.c.l.b16 %v131
    %v859 = vunpack.c.h.b16 %v131
    %v860 = vunpack.c.l.b16 %v132
    %v861 = vunpack.c.h.b16 %v132
    %v862 = vunpack.c.l.b16 %v133
    %v863 = vunpack.c.h.b16 %v133
    %v864 = vunpack.c.l.b16 %v134
    %v865 = vunpack.c.h.b16 %v134
    %v866 = vunpack.c.l.b16 %v135
    %v867 = vunpack.c.h.b16 %v135
    %v868 = vunpack.c.l.b16 %v136
    %v869 = vunpack.c.h.b16 %v136
    %v870 = vunpack.c.l.b16 %v137
    %v871 = vunpack.c.h.b16 %v137
    %v872 = vunpack.c.l.b16 %v138
    %v873 = vunpack.c.h.b16 %v138
    %v874 = vunpack.c.l.b16 %v139
    %v875 = vunpack.c.h.b16 %v139
    %v876 = vunpack.c.l.b16 %v140
    %v877 = vunpack.c.h.b16 %v140
    %v878 = vunpack.c.l.b16 %v141
    %v879 = vunpack.c.h.b16 %v141
    %v880 = vunpack.c.l.b16 %v142
    %v881 = vunpack.c.h.b16 %v142
    %v882 = vunpack.c.l.b16 %v143
    %v883 = vunpack.c.h.b16 %v143
    %v884 = vunpack.c.l.b16 %v144
    %v885 = vunpack.c.h.b16 %v144
    %v886 = vunpack.c.l.b16 %v145
    %v887 = vunpack.c.h.b16 %v145
    %v888 = vunpack.c.l.b16 %v146
    %v889 = vunpack.c.h.b16 %v146
    %v890 = vunpack.c.l.b16 %v147
    %v891 = vunpack.c.h.b16 %v147
    %v892 = vunpack.c.l.b16 %v148
    %v893 = vunpack.c.h.b16 %v148
    %v894 = vunpack.c.l.b16 %v149
    %v895 = vunpack.c.h.b16 %v149
    %v896 = vunpack.c.l.b16 %v150
    %v897 = vunpack.c.h.b16 %v150
    %v898 = vunpack.c.l.b16 %v151
    %v899 = vunpack.c.h.b16 %v151
    %v900 = vunpack.c.l.b16 %v152
    %v901 = vunpack.c.h.b16 %v152
    %v902 = vunpack.c.l.b16 %v153
    %v903 = vunpack.c.h.b16 %v153
    %v904 = vunpack.c.l.b16 %v154
    %v905 = vunpack.c.h.b16 %v154
    %v906 = vunpack.c.l.b16 %v155
    %v907 = vunpack.c.h.b16 %v155
    %v908 = vunpack.c.l.b16 %v156
    %v909 = vunpack.c.h.b16 %v156
    %v910 = vunpack.c.l.b16 %v157
    %v911 = vunpack.c.h.b16 %v157
    %v912 = vunpack.c.l.b16 %v158
    %v913 = vunpack.c.h.b16 %v158
    %v914 = vunpack.c.l.b16 %v159
    %v915 = vunpack.c.h.b16 %v159
    %v916 = vunpack.c.l.b16 %v160
    %v917 = vunpack.c.h.b16 %v160
    %v918 = vunpack.c.l.b16 %v161
    %v919 = vunpack.c.h.b16 %v161
    %v920 = vunpack.c.l.b16 %v162
    %v921 = vunpack.c.h.b16 %v162
    %v922 = vunpack.c.l.b16 %v163
    %v923 = vunpack.c.h.b16 %v163
    %v924 = vunpack.c.l.b16 %v164
    %v925 = vunpack.c.h.b16 %v164
    %v926 = vunpack.c.l.b16 %v165
    %v927 = vunpack.c.h.b16 %v165
    %v928 = vunpack.c.l.b16 %v166
    %v929 = vunpack.c.h.b16 %v166
    %v930 = vunpack.c.l.b16 %v167
    %v931 = vunpack.c.h.b16 %v167
    %v932 = vunpack.c.l.b16 %v168
    %v933 = vunpack.c.h.b16 %v168
    %v934 = vunpack.c.l.b16 %v169
    %v935 = vunpack.c.h.b16 %v169
    %v936 = vunpack.c.l.b16 %v170
    %v937 = vunpack.c.h.b16 %v170
    %v938 = vunpack.c.l.b16 %v171
    %v939 = vunpack.c.h.b16 %v171
    %v940 = vunpack.c.l.b16 %v172
    %v941 = vunpack.c.h.b16 %v172
    %v942 = vunpack.c.l.b16 %v173
    %v943 = vunpack.c.h.b16 %v173
    %v944 = vunpack.c.l.b16 %v174
    %v945 = vunpack.c.h.b16 %v174
    %v946 = vunpack.c.l.b16 %v175
    %v947 = vunpack.c.h.b16 %v175
    %v948 = vunpack.c.l.b16 %v176
    %v949 = vunpack.c.h.b16 %v176
    %v950 = vunpack.c.l.b16 %v177
    %v951 = vunpack.c.h.b16 %v177
    %v952 = vunpack.c.l.b16 %v178
    %v953 = vunpack.c.h.b16 %v178
    %v954 = vunpack.c.l.b16 %v179
    %v955 = vunpack.c.h.b16 %v179
    %v956 = vunpack.c.l.b16 %v180
    %v957 = vunpack.c.h.b16 %v180
    %v958 = vunpack.c.l.b16 %v181
    %v959 = vunpack.c.h.b16 %v181
    %v960 = vunpack.c.l.b16 %v182
    %v961 = vunpack.c.h.b16 %v182
    %v962 = vunpack.c.l.b16 %v183
    %v963 = vunpack.c.h.b16 %v183
    %v964 = vunpack.c.l.b16 %v184
    %v965 = vunpack.c.h.b16 %v184
    %v966 = vunpack.c.l.b16 %v185
    %v967 = vunpack.c.h.b16 %v185
    %v968 = vunpack.c.l.b16 %v186
    %v969 = vunpack.c.h.b16 %v186
    %v970 = vunpack.c.l.b16 %v187
    %v971 = vunpack.c.h.b16 %v187
    %v972 = vunpack.c.l.b16 %v188
    %v973 = vunpack.c.h.b16 %v188
    %v974 = vunpack.c.l.b16 %v189
    %v975 = vunpack.c.h.b16 %v189
    %v976 = vunpack.c.l.b16 %v190
    %v977 = vunpack.c.h.b16 %v190
    %v978 = vunpack.c.l.b16 %v191
    %v979 = vunpack.c.h.b16 %v191
    %v980 = vunpack.c.l.b16 %v192
    %v981 = vunpack.c.h.b16 %v192
    %v982 = vunpack.c.l.b16 %v193
    %v983 = vunpack.c.h.b16 %v193
    %v984 = vunpack.c.l.b16 %v194
    %v985 = vunpack.c.h.b16 %v194
    %v986 = vunpack.c.l.b16 %v195
    %v987 = vunpack.c.h.b16 %v195
    %v988 = vunpack.c.l.b16 %v196
    %v989 = vunpack.c.h.b16 %v196
    %v990 = vunpack.c.l.b16 %v197
    %v991 = vunpack.c.h.b16 %v197
    %v992 = vunpack.c.l.b16 %v198
    %v993 = vunpack.c.h.b16 %v198
    %v994 = vunpack.c.l.b16 %v199
    %v995 = vunpack.c.h.b16 %v199
    %v996 = vunpack.c.l.b16 %v200
    %v997 = vunpack.c.h.b16 %v200
    %v998 = vunpack.c.l.b16 %v201
    %v999 = vunpack.c.h.b16 %v201
    %v1000 = vunpack.c.l.b16 %v202
    %v1001 = vunpack.c.h.b16 %v202
    %v1002 = vunpack.c.l.b16 %v203
    %v1003 = vunpack.c.h.b16 %v203
    %v1004 = vunpack.c.l.b16 %v204
    %v1005 = vunpack.c.h.b16 %v204
    %v1006 = vunpack.c.l.b16 %v205
    %v1007 = vunpack.c.h.b16 %v205
    %v1008 = vunpack.c.l.b16 %v206
    %v1009 = vunpack.c.h.b16 %v206
    %v1010 = vunpack.c.l.b16 %v207
    %v1011 = vunpack.c.h.b16 %v207
    %v1012 = vunpack.c.l.b16 %v208
    %v1013 = vunpack.c.h.b16 %v208
    %v1014 = vunpack.c.l.b16 %v209
    %v1015 = vunpack.c.h.b16 %v209
    %v1016 = vunpack.c.l.b16 %v210
    %v1017 = vunpack.c.h.b16 %v210
    %v1018 = vunpack.c.l.b16 %v211
    %v1019 = vunpack.c.h.b16 %v211
    %v1020 = vunpack.c.l.b16 %v212
    %v1021 = vunpack.c.h.b16 %v212
    %v1022 = vunpack.c.l.b16 %v213
    %v1023 = vunpack.c.h.b16 %v213
    %v1024 = vunpack.c.l.b16 %v214
    %v1025 = vunpack.c.h.b16 %v214
    %v1026 = vunpack.c.l.b16 %v215
    %v1027 = vunpack.c.h.b16 %v215
    %v1028 = vunpack.c.l.b16 %v216
    %v1029 = vunpack.c.h.b16 %v216
    %v1030 = vunpack.c.l.b16 %v217
    %v1031 = vunpack.c.h.b16 %v217
    %v1032 = vunpack.c.l.b16 %v218
    %v1033 = vunpack.c.h.b16 %v218
    %v1034 = vunpack.c.l.b16 %v219
    %v1035 = vunpack.c.h.b16 %v219
    %v1036 = vunpack.c.l.b16 %v220
    %v1037 = vunpack.c.h.b16 %v220
    %v1038 = vunpack.c.l.b16 %v221
    %v1039 = vunpack.c.h.b16 %v221
    %v1040 = vunpack.c.l.b16 %v222
    %v1041 = vunpack.c.h.b16 %v222
    %v1042 = vunpack.c.l.b16 %v223
    %v1043 = vunpack.c.h.b16 %v223
    %v1044 = vunpack.c.l.b16 %v224
    %v1045 = vunpack.c.h.b16 %v224
    %v1046 = vunpack.c.l.b16 %v225
    %v1047 = vunpack.c.h.b16 %v225
    %v1048 = vunpack.c.l.b16 %v226
    %v1049 = vunpack.c.h.b16 %v226
    %v1050 = vunpack.c.l.b16 %v227
    %v1051 = vunpack.c.h.b16 %v227
    %v1052 = vunpack.c.l.b16 %v228
    %v1053 = vunpack.c.h.b16 %v228
    %v1054 = vunpack.c.l.b16 %v229
    %v1055 = vunpack.c.h.b16 %v229
    %v1056 = vunpack.c.l.b16 %v230
    %v1057 = vunpack.c.h.b16 %v230
    %v1058 = vunpack.c.l.b16 %v231
    %v1059 = vunpack.c.h.b16 %v231
    %v1060 = vunpack.c.l.b16 %v232
    %v1061 = vunpack.c.h.b16 %v232
    %v1062 = vunpack.c.l.b16 %v233
    %v1063 = vunpack.c.h.b16 %v233
    %v1064 = vunpack.c.l.b16 %v234
    %v1065 = vunpack.c.h.b16 %v234
    %v1066 = vunpack.c.l.b16 %v235
    %v1067 = vunpack.c.h.b16 %v235
    %v1068 = vunpack.c.l.b16 %v236
    %v1069 = vunpack.c.h.b16 %v236
    %v1070 = vunpack.c.l.b16 %v237
    %v1071 = vunpack.c.h.b16 %v237
    %v1072 = vunpack.c.l.b16 %v238
    %v1073 = vunpack.c.h.b16 %v238
    %v1074 = vunpack.c.l.b16 %v239
    %v1075 = vunpack.c.h.b16 %v239
    %v1076 = vunpack.c.l.b16 %v240
    %v1077 = vunpack.c.h.b16 %v240
    %v1078 = vunpack.c.l.b16 %v241
    %v1079 = vunpack.c.h.b16 %v241
    %v1080 = vunpack.c.l.b16 %v242
    %v1081 = vunpack.c.h.b16 %v242
    %v1082 = vunpack.c.l.b16 %v243
    %v1083 = vunpack.c.h.b16 %v243
    %v1084 = vunpack.c.l.b16 %v244
    %v1085 = vunpack.c.h.b16 %v244
    %v1086 = vunpack.c.l.b16 %v245
    %v1087 = vunpack.c.h.b16 %v245
    %v1088 = vunpack.c.l.b16 %v246
    %v1089 = vunpack.c.h.b16 %v246
    %v1090 = vunpack.c.l.b16 %v247
    %v1091 = vunpack.c.h.b16 %v247
    %v1092 = vunpack.c.l.b16 %v248
    %v1093 = vunpack.c.h.b16 %v248
    %v1094 = vunpack.c.l.b16 %v249
    %v1095 = vunpack.c.h.b16 %v249
    %v1096 = vunpack.c.l.b16 %v250
    %v1097 = vunpack.c.h.b16 %v250
    %v1098 = vunpack.c.l.b16 %v251
    %v1099 = vunpack.c.h.b16 %v251
    %v1100 = vunpack.c.l.b16 %v252
    %v1101 = vunpack.c.h.b16 %v252
    %v1102 = vunpack.c.l.b16 %v253
    %v1103 = vunpack.c.h.b16 %v253
    %v1104 = vunpack.c.l.b16 %v254
    %v1105 = vunpack.c.h.b16 %v254
    %v1106 = vunpack.c.l.b16 %v255
    %v1107 = vunpack.c.h.b16 %v255
    %v1108 = vunpack.c.l.b16 %v256
    %v1109 = vunpack.c.h.b16 %v256
    %v1110 = vunpack.c.l.b16 %v257
    %v1111 = vunpack.c.h.b16 %v257
    %v1112 = vunpack.c.l.b16 %v258
    %v1113 = vunpack.c.h.b16 %v258
    %v1114 = vunpack.c.l.b16 %v259
    %v1115 = vunpack.c.h.b16 %v259
    %v1116 = vunpack.c.l.b16 %v260
    %v1117 = vunpack.c.h.b16 %v260
    %v1118 = vunpack.c.l.b16 %v261
    %v1119 = vunpack.c.h.b16 %v261
    %v1120 = vunpack.c.l.b16 %v262
    %v1121 = vunpack.c.h.b16 %v262
    %v1122 = vunpack.c.l.b16 %v263
    %v1123 = vunpack.c.h.b16 %v263
    %v1124 = vunpack.c.l.b16 %v264
    %v1125 = vunpack.c.h.b16 %v264
    %v1126 = vunpack.c.l.b16 %v265
    %v1127 = vunpack.c.h.b16 %v265
    %v1128 = vunpack.c.l.b16 %v266
    %v1129 = vunpack.c.h.b16 %v266
    %v1130 = vunpack.c.l.b16 %v267
    %v1131 = vunpack.c.h.b16 %v267
    %v1132 = vunpack.c.l.b16 %v268
    %v1133 = vunpack.c.h.b16 %v268
    %v1134 = vunpack.c.l.b16 %v269
    %v1135 = vunpack.c.h.b16 %v269
    %v1136 = vunpack.c.l.b16 %v270
    %v1137 = vunpack.c.h.b16 %v270
    %v1138 = vunpack.c.l.b16 %v271
    %v1139 = vunpack.c.h.b16 %v271
    %v1140 = vunpack.c.l.b16 %v272
    %v1141 = vunpack.c.h.b16 %v272
    %v1142 = vunpack.c.l.b16 %v273
    %v1143 = vunpack.c.h.b16 %v273
    %v1144 = vunpack.c.l.b16 %v274
    %v1145 = vunpack.c.h.b16 %v274
    %v1146 = vunpack.c.l.b16 %v275
    %v1147 = vunpack.c.h.b16 %v275
    %v1148 = vunpack.c.l.b16 %v276
    %v1149 = vunpack.c.h.b16 %v276
    %v1150 = vunpack.c.l.b16 %v277
    %v1151 = vunpack.c.h.b16 %v277
    %v1152 = vunpack.c.l.b16 %v278
    %v1153 = vunpack.c.h.b16 %v278
    %v1154 = vunpack.c.l.b16 %v279
    %v1155 = vunpack.c.h.b16 %v279
    %v1156 = vunpack.c.l.b16 %v280
    %v1157 = vunpack.c.h.b16 %v280
    %v1158 = vunpack.c.l.b16 %v281
    %v1159 = vunpack.c.h.b16 %v281
    %v1160 = vunpack.c.l.b16 %v282
    %v1161 = vunpack.c.h.b16 %v282
    %v1162 = vunpack.c.l.b16 %v283
    %v1163 = vunpack.c.h.b16 %v283
    %v1164 = vunpack.c.l.b16 %v284
    %v1165 = vunpack.c.h.b16 %v284
    %v1166 = vunpack.c.l.b16 %v285
    %v1167 = vunpack.c.h.b16 %v285
    %v1168 = vunpack.c.l.b16 %v286
    %v1169 = vunpack.c.h.b16 %v286
    %v1170 = vunpack.c.l.b16 %v287
    %v1171 = vunpack.c.h.b16 %v287
    %v1172 = vunpack.c.l.b16 %v288
    %v1173 = vunpack.c.h.b16 %v288
    %v1174 = vunpack.c.l.b16 %v289
    %v1175 = vunpack.c.h.b16 %v289
    %v1176 = vunpack.c.l.b16 %v290
    %v1177 = vunpack.c.h.b16 %v290
    %v1178 = vunpack.c.l.b16 %v291
    %v1179 = vunpack.c.h.b16 %v291
    %v1180 = vunpack.c.l.b16 %v292
    %v1181 = vunpack.c.h.b16 %v292
    %v1182 = vunpack.c.l.b16 %v293
    %v1183 = vunpack.c.h.b16 %v293
    %v1184 = vunpack.c.l.b16 %v294
    %v1185 = vunpack.c.h.b16 %v294
    %v1186 = vunpack.c.l.b16 %v295
    %v1187 = vunpack.c.h.b16 %v295
    %v1188 = vunpack.c.l.b16 %v296
    %v1189 = vunpack.c.h.b16 %v296
    %v1190 = vunpack.c.l.b16 %v297
    %v1191 = vunpack.c.h.b16 %v297
    %v1192 = vunpack.c.l.b16 %v298
    %v1193 = vunpack.c.h.b16 %v298
    %v1194 = vunpack.c.l.b16 %v299
    %v1195 = vunpack.c.h.b16 %v299
    %v1196 = vunpack.c.l.b16 %v300
    %v1197 = vunpack.c.h.b16 %v300
    %v1198 = vunpack.c.l.b16 %v301
    %v1199 = vunpack.c.h.b16 %v301
    %v1200 = vunpack.c.l.b16 %v302
    %v1201 = vunpack.c.h.b16 %v302
    %v1202 = vunpack.c.l.b16 %v303
    %v1203 = vunpack.c.h.b16 %v303
    %v1204 = vunpack.c.l.b16 %v304
    %v1205 = vunpack.c.h.b16 %v304
    %v1206 = vunpack.c.l.b16 %v305
    %v1207 = vunpack.c.h.b16 %v305
    %v1208 = vunpack.c.l.b16 %v306
    %v1209 = vunpack.c.h.b16 %v306
    %v1210 = vunpack.c.l.b16 %v307
    %v1211 = vunpack.c.h.b16 %v307
    %v1212 = vunpack.c.l.b16 %v308
    %v1213 = vunpack.c.h.b16 %v308
    %v1214 = vunpack.c.l.b16 %v309
    %v1215 = vunpack.c.h.b16 %v309
    %v1216 = vunpack.c.l.b16 %v310
    %v1217 = vunpack.c.h.b16 %v310
    %v1218 = vunpack.c.l.b16 %v311
    %v1219 = vunpack.c.h.b16 %v311
    %v1220 = vpack.c.b16 %v714, %v692
    %v1221 = vpack.c.b16 %v715, %v693
    %v1222 = vpack.c.b16 %v716, %v694
    %v1223 = vpack.c.b16 %v717, %v695
    %v1224 = vpack.c.b16 %v718, %v696
    %v1225 = vpack.c.b16 %v719, %v697
    %v1226 = vpack.c.b16 %v720, %v698
    %v1227 = vpack.c.b16 %v721, %v699
    %v1228 = vpack.c.b16 %v722, %v700
    %v1229 = vpack.c.b16 %v723, %v701
    %v1230 = vpack.c.b16 %v724, %v702
    %v1231 = vpack.c.b16 %v725, %v703
    %v1232 = vpack.c.b16 %v726, %v704
    %v1233 = vpack.c.b16 %v727, %v705
    %v1234 = vpack.c.b16 %v728, %v706
    %v1235 = vpack.c.b16 %v729, %v707
    %v1236 = vpack.c.b16 %v730, %v708
    %v1237 = vpack.c.b16 %v731, %v709
    %v1238 = vpack.c.b16 %v732, %v710
    %v1239 = vpack.c.b16 %v733, %v711
    %v1240 = vpack.c.b16 %v734, %v712
    %v1241 = vpack.c.b16 %v735, %v713
    %v1242 = vpack.c.b16 %v758, %v736
    %v1243 = vpack.c.b16 %v759, %v737
    %v1244 = vpack.c.b16 %v760, %v738
    %v1245 = vpack.c.b16 %v761, %v739
    %v1246 = vpack.c.b16 %v762, %v740
    %v1247 = vpack.c.b16 %v763, %v741
    %v1248 = vpack.c.b16 %v764, %v742
    %v1249 = vpack.c.b16 %v765, %v743
    %v1250 = vpack.c.b16 %v766, %v744
    %v1251 = vpack.c.b16 %v767, %v745
    %v1252 = vpack.c.b16 %v768, %v746
    %v1253 = vpack.c.b16 %v769, %v747
    %v1254 = vpack.c.b16 %v770, %v748
    %v1255 = vpack.c.b16 %v771, %v749
    %v1256 = vpack.c.b16 %v772, %v750
    %v1257 = vpack.c.b16 %v773, %v751
    %v1258 = vpack.c.b16 %v774, %v752
    %v1259 = vpack.c.b16 %v775, %v753
    %v1260 = vpack.c.b16 %v776, %v754
    %v1261 = vpack.c.b16 %v777, %v755
    %v1262 = vpack.c.b16 %v778, %v756
    %v1263 = vpack.c.b16 %v779, %v757
    %v1264 = vpack.c.b16 %v802, %v780
    %v1265 = vpack.c.b16 %v803, %v781
    %v1266 = vpack.c.b16 %v804, %v782
    %v1267 = vpack.c.b16 %v805, %v783
    %v1268 = vpack.c.b16 %v806, %v784
    %v1269 = vpack.c.b16 %v807, %v785
    %v1270 = vpack.c.b16 %v808, %v786
    %v1271 = vpack.c.b16 %v809, %v787
    %v1272 = vpack.c.b16 %v810, %v788
    %v1273 = vpack.c.b16 %v811, %v789
    %v1274 = vpack.c.b16 %v812, %v790
    %v1275 = vpack.c.b16 %v813, %v791
    %v1276 = vpack.c.b16 %v814, %v792
    %v1277 = vpack.c.b16 %v815, %v793
    %v1278 = vpack.c.b16 %v816, %v794
    %v1279 = vpack.c.b16 %v817, %v795
    %v1280 = vpack.c.b16 %v818, %v796
    %v1281 = vpack.c.b16 %v819, %v797
    %v1282 = vpack.c.b16 %v820, %v798
    %v1283 = vpack.c.b16 %v821, %v799
    %v1284 = vpack.c.b16 %v822, %v800
    %v1285 = vpack.c.b16 %v823, %v801
    %v1286 = vpack.c.b16 %v846, %v824
    %v1287 = vpack.c.b16 %v847, %v825
    %v1288 = vpack.c.b16 %v848, %v826
    %v1289 = vpack.c.b16 %v849, %v827
    %v1290 = vpack.c.b16 %v850, %v828
    %v1291 = vpack.c.b16 %v851, %v829
    %v1292 = vpack.c.b16 %v852, %v830
    %v1293 = vpack.c.b16 %v853, %v831
    %v1294 = vpack.c.b16 %v854, %v832
    %v1295 = vpack.c.b16 %v855, %v833
    %v1296 = vpack.c.b16 %v856, %v834
    %v1297 = vpack.c.b16 %v857, %v835
    %v1298 = vpack.c.b16 %v858, %v836
    %v1299 = vpack.c.b16 %v859, %v837
    %v1300 = vpack.c.b16 %v860, %v838
    %v1301 = vpack.c.b16 %v861, %v839
    %v1302 = vpack.c.b16 %v862, %v840
    %v1303 = vpack.c.b16 %v863, %v841
    %v1304 = vpack.c.b16 %v864, %v842
    %v1305 = vpack.c.b16 %v865, %v843
    %v1306 = vpack.c.b16 %v866, %v844
    %v1307 = vpack.c.b16 %v867, %v845
    %v1308 = vpack.c.b16 %v890, %v868
    %v1309 = vpack.c.b16 %v891, %v869
    %v1310 = vpack.c.b16 %v892, %v870
    %v1311 = vpack.c.b16 %v893, %v871
    %v1312 = vpack.c.b16 %v894, %v872
    %v1313 = vpack.c.b16 %v895, %v873
    %v1314 = vpack.c.b16 %v896, %v874
    %v1315 = vpack.c.b16 %v897, %v875
    %v1316 = vpack.c.b16 %v898, %v876
    %v1317 = vpack.c.b16 %v899, %v877
    %v1318 = vpack.c.b16 %v900, %v878
    %v1319 = vpack.c.b16 %v901, %v879
    %v1320 = vpack.c.b16 %v902, %v880
    %v1321 = vpack.c.b16 %v903, %v881
    %v1322 = vpack.c.b16 %v904, %v882
    %v1323 = vpack.c.b16 %v905, %v883
    %v1324 = vpack.c.b16 %v906, %v884
    %v1325 = vpack.c.b16 %v907, %v885
    %v1326 = vpack.c.b16 %v908, %v886
    %v1327 = vpack.c.b16 %v909, %v887
    %v1328 = vpack.c.b16 %v910, %v888
    %v1329 = vpack.c.b16 %v911, %v889
    %v1330 = vpack.c.b16 %v934, %v912
    %v1331 = vpack.c.b16 %v935, %v913
    %v1332 = vpack.c.b16 %v936, %v914
    %v1333 = vpack.c.b16 %v937, %v915
    %v1334 = vpack.c.b16 %v938, %v916
    %v1335 = vpack.c.b16 %v939, %v917
    %v1336 = vpack.c.b16 %v940, %v918
    %v1337 = vpack.c.b16 %v941, %v919
    %v1338 = vpack.c.b16 %v942, %v920
    %v1339 = vpack.c.b16 %v943, %v921
    %v1340 = vpack.c.b16 %v944, %v922
    %v1341 = vpack.c.b16 %v945, %v923
    %v1342 = vpack.c.b16 %v946, %v924
    %v1343 = vpack.c.b16 %v947, %v925
    %v1344 = vpack.c.b16 %v948, %v926
    %v1345 = vpack.c.b16 %v949, %v927
    %v1346 = vpack.c.b16 %v950, %v928
    %v1347 = vpack.c.b16 %v951, %v929
    %v1348 = vpack.c.b16 %v952, %v930
    %v1349 = vpack.c.b16 %v953, %v931
    %v1350 = vpack.c.b16 %v954, %v932
    %v1351 = vpack.c.b16 %v955, %v933
    %v1352 = vpack.c.b16 %v978, %v956
    %v1353 = vpack.c.b16 %v979, %v957
    %v1354 = vpack.c.b16 %v980, %v958
    %v1355 = vpack.c.b16 %v981, %v959
    %v1356 = vpack.c.b16 %v982, %v960
    %v1357 = vpack.c.b16 %v983, %v961
    %v1358 = vpack.c.b16 %v984, %v962
    %v1359 = vpack.c.b16 %v985, %v963
    %v1360 = vpack.c.b16 %v986, %v964
    %v1361 = vpack.c.b16 %v987, %v965
    %v1362 = vpack.c.b16 %v988, %v966
    %v1363 = vpack.c.b16 %v989, %v967
    %v1364 = vpack.c.b16 %v990, %v968
    %v1365 = vpack.c.b16 %v991, %v969
    %v1366 = vpack.c.b16 %v992, %v970
    %v1367 = vpack.c.b16 %v993, %v971
    %v1368 = vpack.c.b16 %v994, %v972
    %v1369 = vpack.c.b16 %v995, %v973
    %v1370 = vpack.c.b16 %v996, %v974
    %v1371 = vpack.c.b16 %v997, %v975
    %v1372 = vpack.c.b16 %v998, %v976
    %v1373 = vpack.c.b16 %v999, %v977
    %v1374 = vpack.c.b16 %v1022, %v1000
    %v1375 = vpack.c.b16 %v1023, %v1001
    %v1376 = vpack.c.b16 %v1024, %v1002
    %v1377 = vpack.c.b16 %v1025, %v1003
    %v1378 = vpack.c.b16 %v1026, %v1004
    %v1379 = vpack.c.b16 %v1027, %v1005
    %v1380 = vpack.c.b16 %v1028, %v1006
    %v1381 = vpack.c.b16 %v1029, %v1007
    %v1382 = vpack.c.b16 %v1030, %v1008
    %v1383 = vpack.c.b16 %v1031, %v1009
    %v1384 = vpack.c.b16 %v1032, %v1010
    %v1385 = vpack.c.b16 %v1033, %v1011
    %v1386 = vpack.c.b16 %v1034, %v1012
    %v1387 = vpack.c.b16 %v1035, %v1013
    %v1388 = vpack.c.b16 %v1036, %v1014
    %v1389 = vpack.c.b16 %v1037, %v1015
    %v1390 = vpack.c.b16 %v1038, %v1016
    %v1391 = vpack.c.b16 %v1039, %v1017
    %v1392 = vpack.c.b16 %v1040, %v1018
    %v1393 = vpack.c.b16 %v1041, %v1019
    %v1394 = vpack.c.b16 %v1042, %v1020
    %v1395 = vpack.c.b16 %v1043, %v1021
    %v1396 = vpack.c.b16 %v1066, %v1044
    %v1397 = vpack.c.b16 %v1067, %v1045
    %v1398 = vpack.c.b16 %v1068, %v1046
    %v1399 = vpack.c.b16 %v1069, %v1047
    %v1400 = vpack.c.b16 %v1070, %v1048
    %v1401 = vpack.c.b16 %v1071, %v1049
    %v1402 = vpack.c.b16 %v1072, %v1050
    %v1403 = vpack.c.b16 %v1073, %v1051
    %v1404 = vpack.c.b16 %v1074, %v1052
    %v1405 = vpack.c.b16 %v1075, %v1053
    %v1406 = vpack.c.b16 %v1076, %v1054
    %v1407 = vpack.c.b16 %v1077, %v1055
    %v1408 = vpack.c.b16 %v1078, %v1056
    %v1409 = vpack.c.b16 %v1079, %v1057
    %v1410 = vpack.c.b16 %v1080, %v1058
    %v1411 = vpack.c.b16 %v1081, %v1059
    %v1412 = vpack.c.b16 %v1082, %v1060
    %v1413 = vpack.c.b16 %v1083, %v1061
    %v1414 = vpack.c.b16 %v1084, %v1062
    %v1415 = vpack.c.b16 %v1085, %v1063
    %v1416 = vpack.c.b16 %v1086, %v1064
    %v1417 = vpack.c.b16 %v1087, %v1065
    %v1418 = vpack.c.b16 %v1110, %v1088
    %v1419 = vpack.c.b16 %v1111, %v1089
    %v1420 = vpack.c.b16 %v1112, %v1090
    %v1421 = vpack.c.b16 %v1113, %v1091
    %v1422 = vpack.c.b16 %v1114, %v1092
    %v1423 = vpack.c.b16 %v1115, %v1093
    %v1424 = vpack.c.b16 %v1116, %v1094
    %v1425 = vpack.c.b16 %v1117, %v1095
    %v1426 = vpack.c.b16 %v1118, %v1096
    %v1427 = vpack.c.b16 %v1119, %v1097
    %v1428 = vpack.c.b16 %v1120, %v1098
    %v1429 = vpack.c.b16 %v1121, %v1099
    %v1430 = vpack.c.b16 %v1122, %v1100
    %v1431 = vpack.c.b16 %v1123, %v1101
    %v1432 = vpack.c.b16 %v1124, %v1102
    %v1433 = vpack.c.b16 %v1125, %v1103
    %v1434 = vpack.c.b16 %v1126, %v1104
    %v1435 = vpack.c.b16 %v1127, %v1105
    %v1436 = vpack.c.b16 %v1128, %v1106
    %v1437 = vpack.c.b16 %v1129, %v1107
    %v1438 = vpack.c.b16 %v1130, %v1108
    %v1439 = vpack.c.b16 %v1131, %v1109
    %v1440 = vpack.c.b16 %v1154, %v1132
    %v1441 = vpack.c.b16 %v1155, %v1133
    %v1442 = vpack.c.b16 %v1156, %v1134
    %v1443 = vpack.c.b16 %v1157, %v1135
    %v1444 = vpack.c.b16 %v1158, %v1136
    %v1445 = vpack.c.b16 %v1159, %v1137
    %v1446 = vpack.c.b16 %v1160, %v1138
    %v1447 = vpack.c.b16 %v1161, %v1139
    %v1448 = vpack.c.b16 %v1162, %v1140
    %v1449 = vpack.c.b16 %v1163, %v1141
    %v1450 = vpack.c.b16 %v1164, %v1142
    %v1451 = vpack.c.b16 %v1165, %v1143
    %v1452 = vpack.c.b16 %v1166, %v1144
    %v1453 = vpack.c.b16 %v1167, %v1145
    %v1454 = vpack.c.b16 %v1168, %v1146
    %v1455 = vpack.c.b16 %v1169, %v1147
    %v1456 = vpack.c.b16 %v1170, %v1148
    %v1457 = vpack.c.b16 %v1171, %v1149
    %v1458 = vpack.c.b16 %v1172, %v1150
    %v1459 = vpack.c.b16 %v1173, %v1151
    %v1460 = vpack.c.b16 %v1174, %v1152
    %v1461 = vpack.c.b16 %v1175, %v1153
    %v1462 = vpack.c.b16 %v1198, %v1176
    %v1463 = vpack.c.b16 %v1199, %v1177
    %v1464 = vpack.c.b16 %v1200, %v1178
    %v1465 = vpack.c.b16 %v1201, %v1179
    %v1466 = vpack.c.b16 %v1202, %v1180
    %v1467 = vpack.c.b16 %v1203, %v1181
    %v1468 = vpack.c.b16 %v1204, %v1182
    %v1469 = vpack.c.b16 %v1205, %v1183
    %v1470 = vpack.c.b16 %v1206, %v1184
    %v1471 = vpack.c.b16 %v1207, %v1185
    %v1472 = vpack.c.b16 %v1208, %v1186
    %v1473 = vpack.c.b16 %v1209, %v1187
    %v1474 = vpack.c.b16 %v1210, %v1188
    %v1475 = vpack.c.b16 %v1211, %v1189
    %v1476 = vpack.c.b16 %v1212, %v1190
    %v1477 = vpack.c.b16 %v1213, %v1191
    %v1478 = vpack.c.b16 %v1214, %v1192
    %v1479 = vpack.c.b16 %v1215, %v1193
    %v1480 = vpack.c.b16 %v1216, %v1194
    %v1481 = vpack.c.b16 %v1217, %v1195
    %v1482 = vpack.c.b16 %v1218, %v1196
    %v1483 = vpack.c.b16 %v1219, %v1197
    %vm1748 = vcmask 523264
    %v1750 = vsel %vm1748, %v47, 0
    %1752 = vmatprep.subr.bf16.mxu0 %v1221
    %1753 = vmatpush1.bf16.msra.mxu0 %v1220
    %1754 = vmatprep.subr.bf16.mxu0 %v1243
    %1755 = vmatpush1.bf16.msra.mxu0 %v1242
    %1756 = vmatprep.subr.bf16.mxu0 %v1265
    %1757 = vmatpush1.bf16.msra.mxu0 %v1264
    %1758 = vmatprep.subr.bf16.mxu0 %v1287
    %1759 = vmatpush1.bf16.msra.mxu0 %v1286
    %1760 = vmatprep.subr.bf16.mxu0 %v1309
    %1761 = vmatpush1.bf16.msra.mxu0 %v1308
    %1762 = vmatprep.subr.bf16.mxu0 %v1331
    %1763 = vmatpush1.bf16.msra.mxu0 %v1330
    %1764 = vmatprep.subr.bf16.mxu0 %v1353
    %1765 = vmatpush1.bf16.msra.mxu0 %v1352
    %1766 = vmatprep.subr.bf16.mxu0 %v1375
    %1767 = vmatpush1.bf16.msra.mxu0 %v1374
    %1768 = vmatprep.subr.bf16.mxu0 %v1397
    %1769 = vmatpush1.bf16.msra.mxu0 %v1396
    %1770 = vmatprep.subr.bf16.mxu0 %v1419
    %1771 = vmatpush1.bf16.msra.mxu0 %v1418
    %1772 = vmatprep.subr.bf16.mxu0 %v1441
    %1773 = vmatpush1.bf16.msra.mxu0 %v1440
    %1774 = vmatprep.subr.bf16.mxu0 %v1463
    %1775 = vmatpush1.bf16.msra.mxu0 %v1462
    %1776 = vmatprep.subr.bf16.mxu0 0
    %1777 = vmatpush1.bf16.msra.mxu0 0
    %1778 = vmatprep.subr.bf16.mxu0 0
    %1779 = vmatpush1.bf16.msra.mxu0 0
    %1780 = vmatprep.subr.bf16.mxu0 0
    %1781 = vmatpush1.bf16.msra.mxu0 0
    %1782 = vmatprep.subr.bf16.mxu0 0
    %1783 = vmatpush1.bf16.msra.mxu0 0
    %1784 = vmatprep.mubr.bf16.mxu0 %v1750
    %1785 = vmatmul.mubr.bf16.gmra.mrb[0].mxu0 %v46
    %v1786 = vpop.f32.mrb[0].mxu0
    %v1787 = vadd.f32 %v321, %v1786
    %v1788 = vpop.f32.mrb[0].mxu0
    %v1789 = vadd.f32 %v325, %v1788
    %v1790 = vpop.f32.mrb[0].mxu0
    %v1791 = vpop.f32.mrb[0].mxu0
    %1792 = vdwg.mxu0
    %1793 = vmatprep.subr.bf16.mxu0 %v1223
    %1794 = vmatpush1.bf16.msra.mxu0 %v1222
    %1795 = vmatprep.subr.bf16.mxu0 %v1245
    %1796 = vmatpush1.bf16.msra.mxu0 %v1244
    %1797 = vmatprep.subr.bf16.mxu0 %v1267
    %1798 = vmatpush1.bf16.msra.mxu0 %v1266
    %1799 = vmatprep.subr.bf16.mxu0 %v1289
    %1800 = vmatpush1.bf16.msra.mxu0 %v1288
    %1801 = vmatprep.subr.bf16.mxu0 %v1311
    %1802 = vmatpush1.bf16.msra.mxu0 %v1310
    %1803 = vmatprep.subr.bf16.mxu0 %v1333
    %1804 = vmatpush1.bf16.msra.mxu0 %v1332
    %1805 = vmatprep.subr.bf16.mxu0 %v1355
    %1806 = vmatpush1.bf16.msra.mxu0 %v1354
    %1807 = vmatprep.subr.bf16.mxu0 %v1377
    %1808 = vmatpush1.bf16.msra.mxu0 %v1376
    %1809 = vmatprep.subr.bf16.mxu0 %v1399
    %1810 = vmatpush1.bf16.msra.mxu0 %v1398
    %1811 = vmatprep.subr.bf16.mxu0 %v1421
    %1812 = vmatpush1.bf16.msra.mxu0 %v1420
    %1813 = vmatprep.subr.bf16.mxu0 %v1443
    %1814 = vmatpush1.bf16.msra.mxu0 %v1442
    %1815 = vmatprep.subr.bf16.mxu0 %v1465
    %1816 = vmatpush1.bf16.msra.mxu0 %v1464
    %1817 = vmatprep.subr.bf16.mxu0 0
    %1818 = vmatpush1.bf16.msra.mxu0 0
    %1819 = vmatprep.subr.bf16.mxu0 0
    %1820 = vmatpush1.bf16.msra.mxu0 0
    %1821 = vmatprep.subr.bf16.mxu0 0
    %1822 = vmatpush1.bf16.msra.mxu0 0
    %1823 = vmatprep.subr.bf16.mxu0 0
    %1824 = vmatpush1.bf16.msra.mxu0 0
    %1825 = vmatprep.mubr.bf16.mxu0 %v1750
    %1826 = vmatmul.mubr.bf16.gmra.mrb[0].mxu0 %v46
    %v1827 = vpop.f32.mrb[0].mxu0
    %v1828 = vadd.f32 %v329, %v1827
    %v1829 = vpop.f32.mrb[0].mxu0
    %v1830 = vadd.f32 %v333, %v1829
    %v1831 = vpop.f32.mrb[0].mxu0
    %v1832 = vpop.f32.mrb[0].mxu0
    %1833 = vdwg.mxu0
    %1834 = vmatprep.subr.bf16.mxu0 %v1225
    %1835 = vmatpush1.bf16.msra.mxu0 %v1224
    %1836 = vmatprep.subr.bf16.mxu0 %v1247
    %1837 = vmatpush1.bf16.msra.mxu0 %v1246
    %1838 = vmatprep.subr.bf16.mxu0 %v1269
    %1839 = vmatpush1.bf16.msra.mxu0 %v1268
    %1840 = vmatprep.subr.bf16.mxu0 %v1291
    %1841 = vmatpush1.bf16.msra.mxu0 %v1290
    %1842 = vmatprep.subr.bf16.mxu0 %v1313
    %1843 = vmatpush1.bf16.msra.mxu0 %v1312
    %1844 = vmatprep.subr.bf16.mxu0 %v1335
    %1845 = vmatpush1.bf16.msra.mxu0 %v1334
    %1846 = vmatprep.subr.bf16.mxu0 %v1357
    %1847 = vmatpush1.bf16.msra.mxu0 %v1356
    %1848 = vmatprep.subr.bf16.mxu0 %v1379
    %1849 = vmatpush1.bf16.msra.mxu0 %v1378
    %1850 = vmatprep.subr.bf16.mxu0 %v1401
    %1851 = vmatpush1.bf16.msra.mxu0 %v1400
    %1852 = vmatprep.subr.bf16.mxu0 %v1423
    %1853 = vmatpush1.bf16.msra.mxu0 %v1422
    %1854 = vmatprep.subr.bf16.mxu0 %v1445
    %1855 = vmatpush1.bf16.msra.mxu0 %v1444
    %1856 = vmatprep.subr.bf16.mxu0 %v1467
    %1857 = vmatpush1.bf16.msra.mxu0 %v1466
    %1858 = vmatprep.subr.bf16.mxu0 0
    %1859 = vmatpush1.bf16.msra.mxu0 0
    %1860 = vmatprep.subr.bf16.mxu0 0
    %1861 = vmatpush1.bf16.msra.mxu0 0
    %1862 = vmatprep.subr.bf16.mxu0 0
    %1863 = vmatpush1.bf16.msra.mxu0 0
    %1864 = vmatprep.subr.bf16.mxu0 0
    %1865 = vmatpush1.bf16.msra.mxu0 0
    %1866 = vmatprep.mubr.bf16.mxu0 %v1750
    %1867 = vmatmul.mubr.bf16.gmra.mrb[0].mxu0 %v46
    %v1868 = vpop.f32.mrb[0].mxu0
    %v1869 = vadd.f32 %v337, %v1868
    %v1870 = vpop.f32.mrb[0].mxu0
    %v1871 = vadd.f32 %v341, %v1870
    %v1872 = vpop.f32.mrb[0].mxu0
    %v1873 = vpop.f32.mrb[0].mxu0
    %1874 = vdwg.mxu0
    %1875 = vmatprep.subr.bf16.mxu0 %v1227
    %1876 = vmatpush1.bf16.msra.mxu0 %v1226
    %1877 = vmatprep.subr.bf16.mxu0 %v1249
    %1878 = vmatpush1.bf16.msra.mxu0 %v1248
    %1879 = vmatprep.subr.bf16.mxu0 %v1271
    %1880 = vmatpush1.bf16.msra.mxu0 %v1270
    %1881 = vmatprep.subr.bf16.mxu0 %v1293
    %1882 = vmatpush1.bf16.msra.mxu0 %v1292
    %1883 = vmatprep.subr.bf16.mxu0 %v1315
    %1884 = vmatpush1.bf16.msra.mxu0 %v1314
    %1885 = vmatprep.subr.bf16.mxu0 %v1337
    %1886 = vmatpush1.bf16.msra.mxu0 %v1336
    %1887 = vmatprep.subr.bf16.mxu0 %v1359
    %1888 = vmatpush1.bf16.msra.mxu0 %v1358
    %1889 = vmatprep.subr.bf16.mxu0 %v1381
    %1890 = vmatpush1.bf16.msra.mxu0 %v1380
    %1891 = vmatprep.subr.bf16.mxu0 %v1403
    %1892 = vmatpush1.bf16.msra.mxu0 %v1402
    %1893 = vmatprep.subr.bf16.mxu0 %v1425
    %1894 = vmatpush1.bf16.msra.mxu0 %v1424
    %1895 = vmatprep.subr.bf16.mxu0 %v1447
    %1896 = vmatpush1.bf16.msra.mxu0 %v1446
    %1897 = vmatprep.subr.bf16.mxu0 %v1469
    %1898 = vmatpush1.bf16.msra.mxu0 %v1468
    %1899 = vmatprep.subr.bf16.mxu0 0
    %1900 = vmatpush1.bf16.msra.mxu0 0
    %1901 = vmatprep.subr.bf16.mxu0 0
    %1902 = vmatpush1.bf16.msra.mxu0 0
    %1903 = vmatprep.subr.bf16.mxu0 0
    %1904 = vmatpush1.bf16.msra.mxu0 0
    %1905 = vmatprep.subr.bf16.mxu0 0
    %1906 = vmatpush1.bf16.msra.mxu0 0
    %1907 = vmatprep.mubr.bf16.mxu0 %v1750
    %1908 = vmatmul.mubr.bf16.gmra.mrb[0].mxu0 %v46
    %v1909 = vpop.f32.mrb[0].mxu0
    %v1910 = vadd.f32 %v345, %v1909
    %v1911 = vpop.f32.mrb[0].mxu0
    %v1912 = vadd.f32 %v349, %v1911
    %v1913 = vpop.f32.mrb[0].mxu0
    %v1914 = vpop.f32.mrb[0].mxu0
    %1915 = vdwg.mxu0
    %1916 = vmatprep.subr.bf16.mxu0 %v1229
    %1917 = vmatpush1.bf16.msra.mxu0 %v1228
    %1918 = vmatprep.subr.bf16.mxu0 %v1251
    %1919 = vmatpush1.bf16.msra.mxu0 %v1250
    %1920 = vmatprep.subr.bf16.mxu0 %v1273
    %1921 = vmatpush1.bf16.msra.mxu0 %v1272
    %1922 = vmatprep.subr.bf16.mxu0 %v1295
    %1923 = vmatpush1.bf16.msra.mxu0 %v1294
    %1924 = vmatprep.subr.bf16.mxu0 %v1317
    %1925 = vmatpush1.bf16.msra.mxu0 %v1316
    %1926 = vmatprep.subr.bf16.mxu0 %v1339
    %1927 = vmatpush1.bf16.msra.mxu0 %v1338
    %1928 = vmatprep.subr.bf16.mxu0 %v1361
    %1929 = vmatpush1.bf16.msra.mxu0 %v1360
    %1930 = vmatprep.subr.bf16.mxu0 %v1383
    %1931 = vmatpush1.bf16.msra.mxu0 %v1382
    %1932 = vmatprep.subr.bf16.mxu0 %v1405
    %1933 = vmatpush1.bf16.msra.mxu0 %v1404
    %1934 = vmatprep.subr.bf16.mxu0 %v1427
    %1935 = vmatpush1.bf16.msra.mxu0 %v1426
    %1936 = vmatprep.subr.bf16.mxu0 %v1449
    %1937 = vmatpush1.bf16.msra.mxu0 %v1448
    %1938 = vmatprep.subr.bf16.mxu0 %v1471
    %1939 = vmatpush1.bf16.msra.mxu0 %v1470
    %1940 = vmatprep.subr.bf16.mxu0 0
    %1941 = vmatpush1.bf16.msra.mxu0 0
    %1942 = vmatprep.subr.bf16.mxu0 0
    %1943 = vmatpush1.bf16.msra.mxu0 0
    %1944 = vmatprep.subr.bf16.mxu0 0
    %1945 = vmatpush1.bf16.msra.mxu0 0
    %1946 = vmatprep.subr.bf16.mxu0 0
    %1947 = vmatpush1.bf16.msra.mxu0 0
    %1948 = vmatprep.mubr.bf16.mxu0 %v1750
    %1949 = vmatmul.mubr.bf16.gmra.mrb[0].mxu0 %v46
    %v1950 = vpop.f32.mrb[0].mxu0
    %v1951 = vadd.f32 %v353, %v1950
    %v1952 = vpop.f32.mrb[0].mxu0
    %v1953 = vadd.f32 %v357, %v1952
    %v1954 = vpop.f32.mrb[0].mxu0
    %v1955 = vpop.f32.mrb[0].mxu0
    %1956 = vdwg.mxu0
    %1957 = vmatprep.subr.bf16.mxu0 %v1231
    %1958 = vmatpush1.bf16.msra.mxu0 %v1230
    %1959 = vmatprep.subr.bf16.mxu0 %v1253
    %1960 = vmatpush1.bf16.msra.mxu0 %v1252
    %1961 = vmatprep.subr.bf16.mxu0 %v1275
    %1962 = vmatpush1.bf16.msra.mxu0 %v1274
    %1963 = vmatprep.subr.bf16.mxu0 %v1297
    %1964 = vmatpush1.bf16.msra.mxu0 %v1296
    %1965 = vmatprep.subr.bf16.mxu0 %v1319
    %1966 = vmatpush1.bf16.msra.mxu0 %v1318
    %1967 = vmatprep.subr.bf16.mxu0 %v1341
    %1968 = vmatpush1.bf16.msra.mxu0 %v1340
    %1969 = vmatprep.subr.bf16.mxu0 %v1363
    %1970 = vmatpush1.bf16.msra.mxu0 %v1362
    %1971 = vmatprep.subr.bf16.mxu0 %v1385
    %1972 = vmatpush1.bf16.msra.mxu0 %v1384
    %1973 = vmatprep.subr.bf16.mxu0 %v1407
    %1974 = vmatpush1.bf16.msra.mxu0 %v1406
    %1975 = vmatprep.subr.bf16.mxu0 %v1429
    %1976 = vmatpush1.bf16.msra.mxu0 %v1428
    %1977 = vmatprep.subr.bf16.mxu0 %v1451
    %1978 = vmatpush1.bf16.msra.mxu0 %v1450
    %1979 = vmatprep.subr.bf16.mxu0 %v1473
    %1980 = vmatpush1.bf16.msra.mxu0 %v1472
    %1981 = vmatprep.subr.bf16.mxu0 0
    %1982 = vmatpush1.bf16.msra.mxu0 0
    %1983 = vmatprep.subr.bf16.mxu0 0
    %1984 = vmatpush1.bf16.msra.mxu0 0
    %1985 = vmatprep.subr.bf16.mxu0 0
    %1986 = vmatpush1.bf16.msra.mxu0 0
    %1987 = vmatprep.subr.bf16.mxu0 0
    %1988 = vmatpush1.bf16.msra.mxu0 0
    %1989 = vmatprep.mubr.bf16.mxu0 %v1750
    %1990 = vmatmul.mubr.bf16.gmra.mrb[0].mxu0 %v46
    %v1991 = vpop.f32.mrb[0].mxu0
    %v1992 = vadd.f32 %v361, %v1991
    %v1993 = vpop.f32.mrb[0].mxu0
    %v1994 = vadd.f32 %v365, %v1993
    %v1995 = vpop.f32.mrb[0].mxu0
    %v1996 = vpop.f32.mrb[0].mxu0
    %1997 = vdwg.mxu0
    %1998 = vmatprep.subr.bf16.mxu0 %v1233
    %1999 = vmatpush1.bf16.msra.mxu0 %v1232
    %2000 = vmatprep.subr.bf16.mxu0 %v1255
    %2001 = vmatpush1.bf16.msra.mxu0 %v1254
    %2002 = vmatprep.subr.bf16.mxu0 %v1277
    %2003 = vmatpush1.bf16.msra.mxu0 %v1276
    %2004 = vmatprep.subr.bf16.mxu0 %v1299
    %2005 = vmatpush1.bf16.msra.mxu0 %v1298
    %2006 = vmatprep.subr.bf16.mxu0 %v1321
    %2007 = vmatpush1.bf16.msra.mxu0 %v1320
    %2008 = vmatprep.subr.bf16.mxu0 %v1343
    %2009 = vmatpush1.bf16.msra.mxu0 %v1342
    %2010 = vmatprep.subr.bf16.mxu0 %v1365
    %2011 = vmatpush1.bf16.msra.mxu0 %v1364
    %2012 = vmatprep.subr.bf16.mxu0 %v1387
    %2013 = vmatpush1.bf16.msra.mxu0 %v1386
    %2014 = vmatprep.subr.bf16.mxu0 %v1409
    %2015 = vmatpush1.bf16.msra.mxu0 %v1408
    %2016 = vmatprep.subr.bf16.mxu0 %v1431
    %2017 = vmatpush1.bf16.msra.mxu0 %v1430
    %2018 = vmatprep.subr.bf16.mxu0 %v1453
    %2019 = vmatpush1.bf16.msra.mxu0 %v1452
    %2020 = vmatprep.subr.bf16.mxu0 %v1475
    %2021 = vmatpush1.bf16.msra.mxu0 %v1474
    %2022 = vmatprep.subr.bf16.mxu0 0
    %2023 = vmatpush1.bf16.msra.mxu0 0
    %2024 = vmatprep.subr.bf16.mxu0 0
    %2025 = vmatpush1.bf16.msra.mxu0 0
    %2026 = vmatprep.subr.bf16.mxu0 0
    %2027 = vmatpush1.bf16.msra.mxu0 0
    %2028 = vmatprep.subr.bf16.mxu0 0
    %2029 = vmatpush1.bf16.msra.mxu0 0
    %2030 = vmatprep.mubr.bf16.mxu0 %v1750
    %2031 = vmatmul.mubr.bf16.gmra.mrb[0].mxu0 %v46
    %v2032 = vpop.f32.mrb[0].mxu0
    %v2033 = vadd.f32 %v369, %v2032
    %v2034 = vpop.f32.mrb[0].mxu0
    %v2035 = vadd.f32 %v373, %v2034
    %v2036 = vpop.f32.mrb[0].mxu0
    %v2037 = vpop.f32.mrb[0].mxu0
    %2038 = vdwg.mxu0
    %2039 = vmatprep.subr.bf16.mxu0 %v1235
    %2040 = vmatpush1.bf16.msra.mxu0 %v1234
    %2041 = vmatprep.subr.bf16.mxu0 %v1257
    %2042 = vmatpush1.bf16.msra.mxu0 %v1256
    %2043 = vmatprep.subr.bf16.mxu0 %v1279
    %2044 = vmatpush1.bf16.msra.mxu0 %v1278
    %2045 = vmatprep.subr.bf16.mxu0 %v1301
    %2046 = vmatpush1.bf16.msra.mxu0 %v1300
    %2047 = vmatprep.subr.bf16.mxu0 %v1323
    %2048 = vmatpush1.bf16.msra.mxu0 %v1322
    %2049 = vmatprep.subr.bf16.mxu0 %v1345
    %2050 = vmatpush1.bf16.msra.mxu0 %v1344
    %2051 = vmatprep.subr.bf16.mxu0 %v1367
    %2052 = vmatpush1.bf16.msra.mxu0 %v1366
    %2053 = vmatprep.subr.bf16.mxu0 %v1389
    %2054 = vmatpush1.bf16.msra.mxu0 %v1388
    %2055 = vmatprep.subr.bf16.mxu0 %v1411
    %2056 = vmatpush1.bf16.msra.mxu0 %v1410
    %2057 = vmatprep.subr.bf16.mxu0 %v1433
    %2058 = vmatpush1.bf16.msra.mxu0 %v1432
    %2059 = vmatprep.subr.bf16.mxu0 %v1455
    %2060 = vmatpush1.bf16.msra.mxu0 %v1454
    %2061 = vmatprep.subr.bf16.mxu0 %v1477
    %2062 = vmatpush1.bf16.msra.mxu0 %v1476
    %2063 = vmatprep.subr.bf16.mxu0 0
    %2064 = vmatpush1.bf16.msra.mxu0 0
    %2065 = vmatprep.subr.bf16.mxu0 0
    %2066 = vmatpush1.bf16.msra.mxu0 0
    %2067 = vmatprep.subr.bf16.mxu0 0
    %2068 = vmatpush1.bf16.msra.mxu0 0
    %2069 = vmatprep.subr.bf16.mxu0 0
    %2070 = vmatpush1.bf16.msra.mxu0 0
    %2071 = vmatprep.mubr.bf16.mxu0 %v1750
    %2072 = vmatmul.mubr.bf16.gmra.mrb[0].mxu0 %v46
    %v2073 = vpop.f32.mrb[0].mxu0
    %v2074 = vadd.f32 %v377, %v2073
    %v2075 = vpop.f32.mrb[0].mxu0
    %v2076 = vadd.f32 %v381, %v2075
    %v2077 = vpop.f32.mrb[0].mxu0
    %v2078 = vpop.f32.mrb[0].mxu0
    %2079 = vdwg.mxu0
    %2080 = vmatprep.subr.bf16.mxu0 %v1237
    %2081 = vmatpush1.bf16.msra.mxu0 %v1236
    %2082 = vmatprep.subr.bf16.mxu0 %v1259
    %2083 = vmatpush1.bf16.msra.mxu0 %v1258
    %2084 = vmatprep.subr.bf16.mxu0 %v1281
    %2085 = vmatpush1.bf16.msra.mxu0 %v1280
    %2086 = vmatprep.subr.bf16.mxu0 %v1303
    %2087 = vmatpush1.bf16.msra.mxu0 %v1302
    %2088 = vmatprep.subr.bf16.mxu0 %v1325
    %2089 = vmatpush1.bf16.msra.mxu0 %v1324
    %2090 = vmatprep.subr.bf16.mxu0 %v1347
    %2091 = vmatpush1.bf16.msra.mxu0 %v1346
    %2092 = vmatprep.subr.bf16.mxu0 %v1369
    %2093 = vmatpush1.bf16.msra.mxu0 %v1368
    %2094 = vmatprep.subr.bf16.mxu0 %v1391
    %2095 = vmatpush1.bf16.msra.mxu0 %v1390
    %2096 = vmatprep.subr.bf16.mxu0 %v1413
    %2097 = vmatpush1.bf16.msra.mxu0 %v1412
    %2098 = vmatprep.subr.bf16.mxu0 %v1435
    %2099 = vmatpush1.bf16.msra.mxu0 %v1434
    %2100 = vmatprep.subr.bf16.mxu0 %v1457
    %2101 = vmatpush1.bf16.msra.mxu0 %v1456
    %2102 = vmatprep.subr.bf16.mxu0 %v1479
    %2103 = vmatpush1.bf16.msra.mxu0 %v1478
    %2104 = vmatprep.subr.bf16.mxu0 0
    %2105 = vmatpush1.bf16.msra.mxu0 0
    %2106 = vmatprep.subr.bf16.mxu0 0
    %2107 = vmatpush1.bf16.msra.mxu0 0
    %2108 = vmatprep.subr.bf16.mxu0 0
    %2109 = vmatpush1.bf16.msra.mxu0 0
    %2110 = vmatprep.subr.bf16.mxu0 0
    %2111 = vmatpush1.bf16.msra.mxu0 0
    %2112 = vmatprep.mubr.bf16.mxu0 %v1750
    %2113 = vmatmul.mubr.bf16.gmra.mrb[0].mxu0 %v46
    %v2114 = vpop.f32.mrb[0].mxu0
    %v2115 = vadd.f32 %v385, %v2114
    %v2116 = vpop.f32.mrb[0].mxu0
    %v2117 = vadd.f32 %v389, %v2116
    %v2118 = vpop.f32.mrb[0].mxu0
    %v2119 = vpop.f32.mrb[0].mxu0
    %2120 = vdwg.mxu0
    %2121 = vmatprep.subr.bf16.mxu0 %v1239
    %2122 = vmatpush1.bf16.msra.mxu0 %v1238
    %2123 = vmatprep.subr.bf16.mxu0 %v1261
    %2124 = vmatpush1.bf16.msra.mxu0 %v1260
    %2125 = vmatprep.subr.bf16.mxu0 %v1283
    %2126 = vmatpush1.bf16.msra.mxu0 %v1282
    %2127 = vmatprep.subr.bf16.mxu0 %v1305
    %2128 = vmatpush1.bf16.msra.mxu0 %v1304
    %2129 = vmatprep.subr.bf16.mxu0 %v1327
    %2130 = vmatpush1.bf16.msra.mxu0 %v1326
    %2131 = vmatprep.subr.bf16.mxu0 %v1349
    %2132 = vmatpush1.bf16.msra.mxu0 %v1348
    %2133 = vmatprep.subr.bf16.mxu0 %v1371
    %2134 = vmatpush1.bf16.msra.mxu0 %v1370
    %2135 = vmatprep.subr.bf16.mxu0 %v1393
    %2136 = vmatpush1.bf16.msra.mxu0 %v1392
    %2137 = vmatprep.subr.bf16.mxu0 %v1415
    %2138 = vmatpush1.bf16.msra.mxu0 %v1414
    %2139 = vmatprep.subr.bf16.mxu0 %v1437
    %2140 = vmatpush1.bf16.msra.mxu0 %v1436
    %2141 = vmatprep.subr.bf16.mxu0 %v1459
    %2142 = vmatpush1.bf16.msra.mxu0 %v1458
    %2143 = vmatprep.subr.bf16.mxu0 %v1481
    %2144 = vmatpush1.bf16.msra.mxu0 %v1480
    %2145 = vmatprep.subr.bf16.mxu0 0
    %2146 = vmatpush1.bf16.msra.mxu0 0
    %2147 = vmatprep.subr.bf16.mxu0 0
    %2148 = vmatpush1.bf16.msra.mxu0 0
    %2149 = vmatprep.subr.bf16.mxu0 0
    %2150 = vmatpush1.bf16.msra.mxu0 0
    %2151 = vmatprep.subr.bf16.mxu0 0
    %2152 = vmatpush1.bf16.msra.mxu0 0
    %2153 = vmatprep.mubr.bf16.mxu0 %v1750
    %2154 = vmatmul.mubr.bf16.gmra.mrb[0].mxu0 %v46
    %v2155 = vpop.f32.mrb[0].mxu0
    %v2156 = vadd.f32 %v393, %v2155
    %v2157 = vpop.f32.mrb[0].mxu0
    %v2158 = vadd.f32 %v397, %v2157
    %v2159 = vpop.f32.mrb[0].mxu0
    %v2160 = vpop.f32.mrb[0].mxu0
    %2161 = vdwg.mxu0
    %2162 = vmatprep.subr.bf16.mxu0 %v1241
    %2163 = vmatpush1.bf16.msra.mxu0 %v1240
    %2164 = vmatprep.subr.bf16.mxu0 %v1263
    %2165 = vmatpush1.bf16.msra.mxu0 %v1262
    %2166 = vmatprep.subr.bf16.mxu0 %v1285
    %2167 = vmatpush1.bf16.msra.mxu0 %v1284
    %2168 = vmatprep.subr.bf16.mxu0 %v1307
    %2169 = vmatpush1.bf16.msra.mxu0 %v1306
    %2170 = vmatprep.subr.bf16.mxu0 %v1329
    %2171 = vmatpush1.bf16.msra.mxu0 %v1328
    %2172 = vmatprep.subr.bf16.mxu0 %v1351
    %2173 = vmatpush1.bf16.msra.mxu0 %v1350
    %2174 = vmatprep.subr.bf16.mxu0 %v1373
    %2175 = vmatpush1.bf16.msra.mxu0 %v1372
    %2176 = vmatprep.subr.bf16.mxu0 %v1395
    %2177 = vmatpush1.bf16.msra.mxu0 %v1394
    %2178 = vmatprep.subr.bf16.mxu0 %v1417
    %2179 = vmatpush1.bf16.msra.mxu0 %v1416
    %2180 = vmatprep.subr.bf16.mxu0 %v1439
    %2181 = vmatpush1.bf16.msra.mxu0 %v1438
    %2182 = vmatprep.subr.bf16.mxu0 %v1461
    %2183 = vmatpush1.bf16.msra.mxu0 %v1460
    %2184 = vmatprep.subr.bf16.mxu0 %v1483
    %2185 = vmatpush1.bf16.msra.mxu0 %v1482
    %2186 = vmatprep.subr.bf16.mxu0 0
    %2187 = vmatpush1.bf16.msra.mxu0 0
    %2188 = vmatprep.subr.bf16.mxu0 0
    %2189 = vmatpush1.bf16.msra.mxu0 0
    %2190 = vmatprep.subr.bf16.mxu0 0
    %2191 = vmatpush1.bf16.msra.mxu0 0
    %2192 = vmatprep.subr.bf16.mxu0 0
    %2193 = vmatpush1.bf16.msra.mxu0 0
    %2194 = vmatprep.mubr.bf16.mxu0 %v1750
    %2195 = vmatmul.mubr.bf16.gmra.mrb[0].mxu0 %v46
    %v2196 = vpop.f32.mrb[0].mxu0
    %v2197 = vadd.f32 %v401, %v2196
    %v2198 = vpop.f32.mrb[0].mxu0
    %v2199 = vadd.f32 %v405, %v2198
    %v2200 = vpop.f32.mrb[0].mxu0
    %v2201 = vpop.f32.mrb[0].mxu0
    %2202 = vdwg.mxu0
    %v2203 = vmax.f32 %v1787, 0.0
    %v2204 = vmax.f32 %v1789, 0.0
    %v2205 = vmax.f32 %v1828, 0.0
    %v2206 = vmax.f32 %v1830, 0.0
    %v2207 = vmax.f32 %v1869, 0.0
    %v2208 = vmax.f32 %v1871, 0.0
    %v2209 = vmax.f32 %v1910, 0.0
    %v2210 = vmax.f32 %v1912, 0.0
    %v2211 = vmax.f32 %v1951, 0.0
    %v2212 = vmax.f32 %v1953, 0.0
    %v2213 = vmax.f32 %v1992, 0.0
    %v2214 = vmax.f32 %v1994, 0.0
    %v2215 = vmax.f32 %v2033, 0.0
    %v2216 = vmax.f32 %v2035, 0.0
    %v2217 = vmax.f32 %v2074, 0.0
    %v2218 = vmax.f32 %v2076, 0.0
    %v2219 = vmax.f32 %v2115, 0.0
    %v2220 = vmax.f32 %v2117, 0.0
    %v2221 = vmax.f32 %v2156, 0.0
    %v2222 = vmax.f32 %v2158, 0.0
    %v2223 = vmax.f32 %v2197, 0.0
    %v2224 = vmax.f32 %v2199, 0.0
    %v2225 = vpack.c.bf16 %v2203, %v2203
    %v2226 = vpack.c.bf16 %v2204, %v2204
    %v2227 = vpack.c.bf16 %v2205, %v2205
    %v2228 = vpack.c.bf16 %v2206, %v2206
    %v2229 = vpack.c.bf16 %v2207, %v2207
    %v2230 = vpack.c.bf16 %v2208, %v2208
    %v2231 = vpack.c.bf16 %v2209, %v2209
    %v2232 = vpack.c.bf16 %v2210, %v2210
    %v2233 = vpack.c.bf16 %v2211, %v2211
    %v2234 = vpack.c.bf16 %v2212, %v2212
    %v2235 = vpack.c.bf16 %v2213, %v2213
    %v2236 = vpack.c.bf16 %v2214, %v2214
    %v2237 = vpack.c.bf16 %v2215, %v2215
    %v2238 = vpack.c.bf16 %v2216, %v2216
    %v2239 = vpack.c.bf16 %v2217, %v2217
    %v2240 = vpack.c.bf16 %v2218, %v2218
    %v2241 = vpack.c.bf16 %v2219, %v2219
    %v2242 = vpack.c.bf16 %v2220, %v2220
    %v2243 = vpack.c.bf16 %v2221, %v2221
    %v2244 = vpack.c.bf16 %v2222, %v2222
    %v2245 = vpack.c.bf16 %v2223, %v2223
    %v2246 = vpack.c.bf16 %v2224, %v2224
    %v2247 = vld [vmem:[%s3] sm:$0xff]
    %v2248 = vld [vmem:[%s3 + $0x8] sm:$0xff]
    %v2249 = vld [vmem:[%s3 + $0x10] sm:$0xff]
    %v2250 = vld [vmem:[%s3 + $0x18] sm:$0xff]
    %v2251 = vld [vmem:[%s3 + $0x20] sm:$0xff]
    %v2252 = vld [vmem:[%s3 + $0x28] sm:$0xff]
    %v2253 = vld [vmem:[%s3 + $0x30] sm:$0xff]
    %v2254 = vld [vmem:[%s3 + $0x38] sm:$0xff]
    %v2255 = vld [vmem:[%s3 + $0x40] sm:$0xff]
    %v2256 = vld [vmem:[%s3 + $0x48] sm:$0xff]
    %v2257 = vld [vmem:[%s3 + $0x50] sm:$0xff]
    %v2258 = vld [vmem:[%s3 + $0x58] sm:$0xff]
    %v2259 = vld [vmem:[%s3 + $0x60] sm:$0xff]
    %v2260 = vld [vmem:[%s3 + $0x68] sm:$0xff]
    %v2261 = vld [vmem:[%s3 + $0x70] sm:$0xff]
    %v2262 = vld [vmem:[%s3 + $0x78] sm:$0xff]
    %v2263 = vld [vmem:[%s3 + $0x80] sm:$0xff]
    %v2264 = vld [vmem:[%s3 + $0x88] sm:$0xff]
    %v2265 = vld [vmem:[%s3 + $0x90] sm:$0xff]
    %v2266 = vld [vmem:[%s3 + $0x98] sm:$0xff]
    %v2267 = vld [vmem:[%s3 + $0xa0] sm:$0xff]
    %v2268 = vld [vmem:[%s3 + $0xa8] sm:$0xff]
    %v2269 = vld [vmem:[%s3 + $0xb0] sm:$0xff]
    %v2270 = vld [vmem:[%s3 + $0xb8] sm:$0xff]
    %v2271 = vld [vmem:[%s3 + $0xc0] sm:$0xff]
    %v2272 = vld [vmem:[%s3 + $0xc8] sm:$0xff]
    %v2273 = vld [vmem:[%s3 + $0xd0] sm:$0xff]
    %v2274 = vld [vmem:[%s3 + $0xd8] sm:$0xff]
    %v2275 = vld [vmem:[%s3 + $0xe0] sm:$0xff]
    %v2276 = vld [vmem:[%s3 + $0xe8] sm:$0xff]
    %v2277 = vld [vmem:[%s3 + $0xf0] sm:$0xff]
    %v2278 = vld [vmem:[%s3 + $0xf8] sm:$0xff]
    %v2279 = vld [vmem:[%s3 + $0x100] sm:$0xff]
    %v2280 = vld [vmem:[%s3 + $0x108] sm:$0xff]
    %v2281 = vld [vmem:[%s3 + $0x110] sm:$0xff]
    %v2282 = vld [vmem:[%s3 + $0x118] sm:$0xff]
    %v2283 = vld [vmem:[%s3 + $0x120] sm:$0xff]
    %v2284 = vld [vmem:[%s3 + $0x128] sm:$0xff]
    %v2285 = vld [vmem:[%s3 + $0x130] sm:$0xff]
    %v2286 = vld [vmem:[%s3 + $0x138] sm:$0xff]
    %v2287 = vld [vmem:[%s3 + $0x140] sm:$0xff]
    %v2288 = vld [vmem:[%s3 + $0x148] sm:$0xff]
    %v2289 = vld [vmem:[%s3 + $0x150] sm:$0xff]
    %v2290 = vld [vmem:[%s3 + $0x158] sm:$0xff]
    %v2291 = vld [vmem:[%s3 + $0x160] sm:$0xff]
    %v2292 = vld [vmem:[%s3 + $0x168] sm:$0xff]
    %v2293 = vld [vmem:[%s3 + $0x170] sm:$0xff]
    %v2294 = vld [vmem:[%s3 + $0x178] sm:$0xff]
    %v2295 = vld [vmem:[%s3 + $0x180] sm:$0xff]
    %v2296 = vld [vmem:[%s3 + $0x188] sm:$0xff]
    %v2297 = vld [vmem:[%s3 + $0x190] sm:$0xff]
    %v2298 = vld [vmem:[%s3 + $0x198] sm:$0xff]
    %v2299 = vld [vmem:[%s3 + $0x1a0] sm:$0xff]
    %v2300 = vld [vmem:[%s3 + $0x1a8] sm:$0xff]
    %v2301 = vld [vmem:[%s3 + $0x1b0] sm:$0xff]
    %v2302 = vld [vmem:[%s3 + $0x1b8] sm:$0xff]
    %v2303 = vld [vmem:[%s3 + $0x1c0] sm:$0xff]
    %v2304 = vld [vmem:[%s3 + $0x1c8] sm:$0xff]
    %v2305 = vld [vmem:[%s3 + $0x1d0] sm:$0xff]
    %v2306 = vld [vmem:[%s3 + $0x1d8] sm:$0xff]
    %v2307 = vld [vmem:[%s3 + $0x1e0] sm:$0xff]
    %v2308 = vld [vmem:[%s3 + $0x1e8] sm:$0xff]
    %v2309 = vld [vmem:[%s3 + $0x1f0] sm:$0xff]
    %v2310 = vld [vmem:[%s3 + $0x1f8] sm:$0xff]
    %v2311 = vld [vmem:[%s3 + $0x200] sm:$0xff]
    %v2312 = vld [vmem:[%s3 + $0x208] sm:$0xff]
    %v2313 = vld [vmem:[%s3 + $0x210] sm:$0xff]
    %v2314 = vld [vmem:[%s3 + $0x218] sm:$0xff]
    %v2315 = vld [vmem:[%s3 + $0x220] sm:$0xff]
    %v2316 = vld [vmem:[%s3 + $0x228] sm:$0xff]
    %v2317 = vld [vmem:[%s3 + $0x230] sm:$0xff]
    %v2318 = vld [vmem:[%s3 + $0x238] sm:$0xff]
    %v2319 = vld [vmem:[%s3 + $0x240] sm:$0xff]
    %v2320 = vld [vmem:[%s3 + $0x248] sm:$0xff]
    %v2321 = vld [vmem:[%s3 + $0x250] sm:$0xff]
    %v2322 = vld [vmem:[%s3 + $0x258] sm:$0xff]
    %v2323 = vld [vmem:[%s3 + $0x260] sm:$0xff]
    %v2324 = vld [vmem:[%s3 + $0x268] sm:$0xff]
    %v2325 = vld [vmem:[%s3 + $0x270] sm:$0xff]
    %v2326 = vld [vmem:[%s3 + $0x278] sm:$0xff]
    %v2327 = vld [vmem:[%s3 + $0x280] sm:$0xff]
    %v2328 = vld [vmem:[%s3 + $0x288] sm:$0xff]
    %v2329 = vld [vmem:[%s3 + $0x290] sm:$0xff]
    %v2330 = vld [vmem:[%s3 + $0x298] sm:$0xff]
    %v2331 = vld [vmem:[%s3 + $0x2a0] sm:$0xff]
    %v2332 = vld [vmem:[%s3 + $0x2a8] sm:$0xff]
    %v2333 = vld [vmem:[%s3 + $0x2b0] sm:$0xff]
    %v2334 = vld [vmem:[%s3 + $0x2b8] sm:$0xff]
    %v2335 = vld [vmem:[%s3 + $0x2c0] sm:$0xff]
    %v2336 = vld [vmem:[%s3 + $0x2c8] sm:$0xff]
    %v2337 = vld [vmem:[%s3 + $0x2d0] sm:$0xff]
    %v2338 = vld [vmem:[%s3 + $0x2d8] sm:$0xff]
    %v2339 = vld [vmem:[%s3 + $0x2e0] sm:$0xff]
    %v2340 = vld [vmem:[%s3 + $0x2e8] sm:$0xff]
    %v2341 = vld [vmem:[%s3 + $0x2f0] sm:$0xff]
    %v2342 = vld [vmem:[%s3 + $0x2f8] sm:$0xff]
    %v2343 = vld [vmem:[%s3 + $0x300] sm:$0xff]
    %v2344 = vld [vmem:[%s3 + $0x308] sm:$0xff]
    %v2345 = vld [vmem:[%s3 + $0x310] sm:$0xff]
    %v2346 = vld [vmem:[%s3 + $0x318] sm:$0xff]
    %v2347 = vld [vmem:[%s3 + $0x320] sm:$0xff]
    %v2348 = vld [vmem:[%s3 + $0x328] sm:$0xff]
    %v2349 = vld [vmem:[%s3 + $0x330] sm:$0xff]
    %v2350 = vld [vmem:[%s3 + $0x338] sm:$0xff]
    %v2351 = vld [vmem:[%s3 + $0x340] sm:$0xff]
    %v2352 = vld [vmem:[%s3 + $0x348] sm:$0xff]
    %v2353 = vld [vmem:[%s3 + $0x350] sm:$0xff]
    %v2354 = vld [vmem:[%s3 + $0x358] sm:$0xff]
    %v2355 = vld [vmem:[%s3 + $0x360] sm:$0xff]
    %v2356 = vld [vmem:[%s3 + $0x368] sm:$0xff]
    %v2357 = vld [vmem:[%s3 + $0x370] sm:$0xff]
    %v2358 = vld [vmem:[%s3 + $0x378] sm:$0xff]
    %v2359 = vld [vmem:[%s3 + $0x380] sm:$0xff]
    %v2360 = vld [vmem:[%s3 + $0x388] sm:$0xff]
    %v2361 = vld [vmem:[%s3 + $0x390] sm:$0xff]
    %v2362 = vld [vmem:[%s3 + $0x398] sm:$0xff]
    %v2363 = vld [vmem:[%s3 + $0x3a0] sm:$0xff]
    %v2364 = vld [vmem:[%s3 + $0x3a8] sm:$0xff]
    %v2365 = vld [vmem:[%s3 + $0x3b0] sm:$0xff]
    %v2366 = vld [vmem:[%s3 + $0x3b8] sm:$0xff]
    %v2367 = vld [vmem:[%s3 + $0x3c0] sm:$0xff]
    %v2368 = vld [vmem:[%s3 + $0x3c8] sm:$0xff]
    %v2369 = vld [vmem:[%s3 + $0x3d0] sm:$0xff]
    %v2370 = vld [vmem:[%s3 + $0x3d8] sm:$0xff]
    %v2371 = vld [vmem:[%s3 + $0x3e0] sm:$0xff]
    %v2372 = vld [vmem:[%s3 + $0x3e8] sm:$0xff]
    %v2373 = vld [vmem:[%s3 + $0x3f0] sm:$0xff]
    %v2374 = vld [vmem:[%s3 + $0x3f8] sm:$0xff]
    %v2375 = vld [vmem:[%s3 + $0x400] sm:$0xff]
    %v2376 = vld [vmem:[%s3 + $0x408] sm:$0xff]
    %v2377 = vld [vmem:[%s3 + $0x410] sm:$0xff]
    %v2378 = vld [vmem:[%s3 + $0x418] sm:$0xff]
    %v2379 = vld [vmem:[%s3 + $0x420] sm:$0xff]
    %v2380 = vld [vmem:[%s3 + $0x428] sm:$0xff]
    %v2381 = vld [vmem:[%s3 + $0x430] sm:$0xff]
    %v2382 = vld [vmem:[%s3 + $0x438] sm:$0xff]
    %v2383 = vld [vmem:[%s3 + $0x440] sm:$0xff]
    %v2384 = vld [vmem:[%s3 + $0x448] sm:$0xff]
    %v2385 = vld [vmem:[%s3 + $0x450] sm:$0xff]
    %v2386 = vld [vmem:[%s3 + $0x458] sm:$0xff]
    %v2387 = vld [vmem:[%s3 + $0x460] sm:$0xff]
    %v2388 = vld [vmem:[%s3 + $0x468] sm:$0xff]
    %v2389 = vld [vmem:[%s3 + $0x470] sm:$0xff]
    %v2390 = vld [vmem:[%s3 + $0x478] sm:$0xff]
    %v2391 = vld [vmem:[%s3 + $0x480] sm:$0xff]
    %v2392 = vld [vmem:[%s3 + $0x488] sm:$0xff]
    %v2393 = vld [vmem:[%s3 + $0x490] sm:$0xff]
    %v2394 = vld [vmem:[%s3 + $0x498] sm:$0xff]
    %v2395 = vld [vmem:[%s3 + $0x4a0] sm:$0xff]
    %v2396 = vld [vmem:[%s3 + $0x4a8] sm:$0xff]
    %v2397 = vld [vmem:[%s3 + $0x4b0] sm:$0xff]
    %v2398 = vld [vmem:[%s3 + $0x4b8] sm:$0xff]
    %v2399 = vld [vmem:[%s3 + $0x4c0] sm:$0xff]
    %v2400 = vld [vmem:[%s3 + $0x4c8] sm:$0xff]
    %v2401 = vld [vmem:[%s3 + $0x4d0] sm:$0xff]
    %v2402 = vld [vmem:[%s3 + $0x4d8] sm:$0xff]
    %v2403 = vld [vmem:[%s3 + $0x4e0] sm:$0xff]
    %v2404 = vld [vmem:[%s3 + $0x4e8] sm:$0xff]
    %v2405 = vld [vmem:[%s3 + $0x4f0] sm:$0xff]
    %v2406 = vld [vmem:[%s3 + $0x4f8] sm:$0xff]
    %v2407 = vld [vmem:[%s3 + $0x500] sm:$0xff]
    %v2408 = vld [vmem:[%s3 + $0x508] sm:$0xff]
    %v2409 = vld [vmem:[%s3 + $0x510] sm:$0xff]
    %v2410 = vld [vmem:[%s3 + $0x518] sm:$0xff]
    %v2411 = vld [vmem:[%s3 + $0x520] sm:$0xff]
    %v2412 = vld [vmem:[%s3 + $0x528] sm:$0xff]
    %v2413 = vld [vmem:[%s3 + $0x530] sm:$0xff]
    %v2414 = vld [vmem:[%s3 + $0x538] sm:$0xff]
    %v2415 = vld [vmem:[%s3 + $0x540] sm:$0xff]
    %v2416 = vld [vmem:[%s3 + $0x548] sm:$0xff]
    %v2417 = vld [vmem:[%s3 + $0x550] sm:$0xff]
    %v2418 = vld [vmem:[%s3 + $0x558] sm:$0xff]
    %v2419 = vld [vmem:[%s3 + $0x560] sm:$0xff]
    %v2420 = vld [vmem:[%s3 + $0x568] sm:$0xff]
    %v2421 = vld [vmem:[%s3 + $0x570] sm:$0xff]
    %v2422 = vld [vmem:[%s3 + $0x578] sm:$0xff]
    %v2423 = vld [vmem:[%s3 + $0x580] sm:$0xff]
    %v2424 = vld [vmem:[%s3 + $0x588] sm:$0xff]
    %v2425 = vld [vmem:[%s3 + $0x590] sm:$0xff]
    %v2426 = vld [vmem:[%s3 + $0x598] sm:$0xff]
    %v2427 = vld [vmem:[%s3 + $0x5a0] sm:$0xff]
    %v2428 = vld [vmem:[%s3 + $0x5a8] sm:$0xff]
    %v2429 = vld [vmem:[%s3 + $0x5b0] sm:$0xff]
    %v2430 = vld [vmem:[%s3 + $0x5b8] sm:$0xff]
    %v2431 = vld [vmem:[%s3 + $0x5c0] sm:$0xff]
    %v2432 = vld [vmem:[%s3 + $0x5c8] sm:$0xff]
    %v2433 = vld [vmem:[%s3 + $0x5d0] sm:$0xff]
    %v2434 = vld [vmem:[%s3 + $0x5d8] sm:$0xff]
    %v2435 = vld [vmem:[%s3 + $0x5e0] sm:$0xff]
    %v2436 = vld [vmem:[%s3 + $0x5e8] sm:$0xff]
    %v2437 = vld [vmem:[%s3 + $0x5f0] sm:$0xff]
    %v2438 = vld [vmem:[%s3 + $0x5f8] sm:$0xff]
    %v2439 = vld [vmem:[%s3 + $0x600] sm:$0xff]
    %v2440 = vld [vmem:[%s3 + $0x608] sm:$0xff]
    %v2441 = vld [vmem:[%s3 + $0x610] sm:$0xff]
    %v2442 = vld [vmem:[%s3 + $0x618] sm:$0xff]
    %v2443 = vld [vmem:[%s3 + $0x620] sm:$0xff]
    %v2444 = vld [vmem:[%s3 + $0x628] sm:$0xff]
    %v2445 = vld [vmem:[%s3 + $0x630] sm:$0xff]
    %v2446 = vld [vmem:[%s3 + $0x638] sm:$0xff]
    %v2447 = vld [vmem:[%s3 + $0x640] sm:$0xff]
    %v2448 = vld [vmem:[%s3 + $0x648] sm:$0xff]
    %v2449 = vld [vmem:[%s3 + $0x650] sm:$0xff]
    %v2450 = vld [vmem:[%s3 + $0x658] sm:$0xff]
    %v2451 = vld [vmem:[%s3 + $0x660] sm:$0xff]
    %v2452 = vld [vmem:[%s3 + $0x668] sm:$0xff]
    %v2453 = vld [vmem:[%s3 + $0x670] sm:$0xff]
    %v2454 = vld [vmem:[%s3 + $0x678] sm:$0xff]
    %v2455 = vld [vmem:[%s3 + $0x680] sm:$0xff]
    %v2456 = vld [vmem:[%s3 + $0x688] sm:$0xff]
    %v2457 = vld [vmem:[%s3 + $0x690] sm:$0xff]
    %v2458 = vld [vmem:[%s3 + $0x698] sm:$0xff]
    %v2459 = vld [vmem:[%s3 + $0x6a0] sm:$0xff]
    %v2460 = vld [vmem:[%s3 + $0x6a8] sm:$0xff]
    %v2461 = vld [vmem:[%s3 + $0x6b0] sm:$0xff]
    %v2462 = vld [vmem:[%s3 + $0x6b8] sm:$0xff]
    %v2463 = vld [vmem:[%s3 + $0x6c0] sm:$0xff]
    %v2464 = vld [vmem:[%s3 + $0x6c8] sm:$0xff]
    %v2465 = vld [vmem:[%s3 + $0x6d0] sm:$0xff]
    %v2466 = vld [vmem:[%s3 + $0x6d8] sm:$0xff]
    %v2467 = vld [vmem:[%s3 + $0x6e0] sm:$0xff]
    %v2468 = vld [vmem:[%s3 + $0x6e8] sm:$0xff]
    %v2469 = vld [vmem:[%s3 + $0x6f0] sm:$0xff]
    %v2470 = vld [vmem:[%s3 + $0x6f8] sm:$0xff]
    %v2471 = vld [vmem:[%s3 + $0x700] sm:$0xff]
    %v2472 = vld [vmem:[%s3 + $0x708] sm:$0xff]
    %v2473 = vld [vmem:[%s3 + $0x710] sm:$0xff]
    %v2474 = vld [vmem:[%s3 + $0x718] sm:$0xff]
    %v2475 = vld [vmem:[%s3 + $0x720] sm:$0xff]
    %v2476 = vld [vmem:[%s3 + $0x728] sm:$0xff]
    %v2477 = vld [vmem:[%s3 + $0x730] sm:$0xff]
    %v2478 = vld [vmem:[%s3 + $0x738] sm:$0xff]
    %v2479 = vld [vmem:[%s3 + $0x740] sm:$0xff]
    %v2480 = vld [vmem:[%s3 + $0x748] sm:$0xff]
    %v2481 = vld [vmem:[%s3 + $0x750] sm:$0xff]
    %v2482 = vld [vmem:[%s3 + $0x758] sm:$0xff]
    %v2483 = vld [vmem:[%s3 + $0x760] sm:$0xff]
    %v2484 = vld [vmem:[%s3 + $0x768] sm:$0xff]
    %v2485 = vld [vmem:[%s3 + $0x770] sm:$0xff]
    %v2486 = vld [vmem:[%s3 + $0x778] sm:$0xff]
    %v2487 = vld [vmem:[%s3 + $0x780] sm:$0xff]
    %v2488 = vld [vmem:[%s3 + $0x788] sm:$0xff]
    %v2489 = vld [vmem:[%s3 + $0x790] sm:$0xff]
    %v2490 = vld [vmem:[%s3 + $0x798] sm:$0xff]
    %v2491 = vld [vmem:[%s3 + $0x7a0] sm:$0xff]
    %v2492 = vld [vmem:[%s3 + $0x7a8] sm:$0xff]
    %v2493 = vld [vmem:[%s3 + $0x7b0] sm:$0xff]
    %v2494 = vld [vmem:[%s3 + $0x7b8] sm:$0xff]
    %v2495 = vld [vmem:[%s3 + $0x7c0] sm:$0xff]
    %v2496 = vld [vmem:[%s3 + $0x7c8] sm:$0xff]
    %v2497 = vld [vmem:[%s3 + $0x7d0] sm:$0xff]
    %v2498 = vld [vmem:[%s3 + $0x7d8] sm:$0xff]
    %v2499 = vld [vmem:[%s3 + $0x7e0] sm:$0xff]
    %v2500 = vld [vmem:[%s3 + $0x7e8] sm:$0xff]
    %v2501 = vld [vmem:[%s3 + $0x7f0] sm:$0xff]
    %v2502 = vld [vmem:[%s3 + $0x7f8] sm:$0xff]
    %v2503 = vld [vmem:[%s3 + $0x800] sm:$0xff]
    %v2504 = vld [vmem:[%s3 + $0x808] sm:$0xff]
    %v2505 = vld [vmem:[%s3 + $0x810] sm:$0xff]
    %v2506 = vld [vmem:[%s3 + $0x818] sm:$0xff]
    %v2507 = vld [vmem:[%s3 + $0x820] sm:$0xff]
    %v2508 = vld [vmem:[%s3 + $0x828] sm:$0xff]
    %v2509 = vld [vmem:[%s3 + $0x830] sm:$0xff]
    %v2510 = vld [vmem:[%s3 + $0x838] sm:$0xff]
    %v2511 = vld [vmem:[%s3 + $0x840] sm:$0xff]
    %v2512 = vld [vmem:[%s3 + $0x848] sm:$0xff]
    %v2513 = vld [vmem:[%s3 + $0x850] sm:$0xff]
    %v2514 = vld [vmem:[%s3 + $0x858] sm:$0xff]
    %v2515 = vld [vmem:[%s3 + $0x860] sm:$0xff]
    %v2516 = vld [vmem:[%s3 + $0x868] sm:$0xff]
    %v2517 = vld [vmem:[%s3 + $0x870] sm:$0xff]
    %v2518 = vld [vmem:[%s3 + $0x878] sm:$0xff]
    %v2519 = vld [vmem:[%s3 + $0x880] sm:$0xff]
    %v2520 = vld [vmem:[%s3 + $0x888] sm:$0xff]
    %v2521 = vld [vmem:[%s3 + $0x890] sm:$0xff]
    %v2522 = vld [vmem:[%s3 + $0x898] sm:$0xff]
    %v2523 = vld [vmem:[%s3 + $0x8a0] sm:$0xff]
    %v2524 = vld [vmem:[%s3 + $0x8a8] sm:$0xff]
    %v2525 = vld [vmem:[%s3 + $0x8b0] sm:$0xff]
    %v2526 = vld [vmem:[%s3 + $0x8b8] sm:$0xff]
    %v2527 = vld [vmem:[%s3 + $0x8c0] sm:$0xff]
    %v2528 = vld [vmem:[%s3 + $0x8c8] sm:$0xff]
    %v2529 = vld [vmem:[%s3 + $0x8d0] sm:$0xff]
    %v2530 = vld [vmem:[%s3 + $0x8d8] sm:$0xff]
    %v2531 = vld [vmem:[%s3 + $0x8e0] sm:$0xff]
    %v2532 = vld [vmem:[%s3 + $0x8e8] sm:$0xff]
    %v2533 = vld [vmem:[%s3 + $0x8f0] sm:$0xff]
    %v2534 = vld [vmem:[%s3 + $0x8f8] sm:$0xff]
    %v2535 = vld [vmem:[%s3 + $0x900] sm:$0xff]
    %v2536 = vld [vmem:[%s3 + $0x908] sm:$0xff]
    %v2537 = vld [vmem:[%s3 + $0x910] sm:$0xff]
    %v2538 = vld [vmem:[%s3 + $0x918] sm:$0xff]
    %v2539 = vld [vmem:[%s3 + $0x920] sm:$0xff]
    %v2540 = vld [vmem:[%s3 + $0x928] sm:$0xff]
    %v2541 = vld [vmem:[%s3 + $0x930] sm:$0xff]
    %v2542 = vld [vmem:[%s3 + $0x938] sm:$0xff]
    %v2543 = vld [vmem:[%s3 + $0x940] sm:$0xff]
    %v2544 = vld [vmem:[%s3 + $0x948] sm:$0xff]
    %v2545 = vld [vmem:[%s3 + $0x950] sm:$0xff]
    %v2546 = vld [vmem:[%s3 + $0x958] sm:$0xff]
    %v2547 = vld [vmem:[%s3 + $0x960] sm:$0xff]
    %v2548 = vld [vmem:[%s3 + $0x968] sm:$0xff]
    %v2549 = vld [vmem:[%s3 + $0x970] sm:$0xff]
    %v2550 = vld [vmem:[%s3 + $0x978] sm:$0xff]
    %v2551 = vld [vmem:[%s3 + $0x980] sm:$0xff]
    %v2552 = vld [vmem:[%s3 + $0x988] sm:$0xff]
    %v2553 = vld [vmem:[%s3 + $0x990] sm:$0xff]
    %v2554 = vld [vmem:[%s3 + $0x998] sm:$0xff]
    %v2555 = vld [vmem:[%s3 + $0x9a0] sm:$0xff]
    %v2556 = vld [vmem:[%s3 + $0x9a8] sm:$0xff]
    %v2557 = vld [vmem:[%s3 + $0x9b0] sm:$0xff]
    %v2558 = vld [vmem:[%s3 + $0x9b8] sm:$0xff]
    %v2559 = vld [vmem:[%s3 + $0x9c0] sm:$0xff]
    %v2560 = vld [vmem:[%s3 + $0x9c8] sm:$0xff]
    %v2561 = vld [vmem:[%s3 + $0x9d0] sm:$0xff]
    %v2562 = vld [vmem:[%s3 + $0x9d8] sm:$0xff]
    %v2563 = vld [vmem:[%s3 + $0x9e0] sm:$0xff]
    %v2564 = vld [vmem:[%s3 + $0x9e8] sm:$0xff]
    %v2565 = vld [vmem:[%s3 + $0x9f0] sm:$0xff]
    %v2566 = vld [vmem:[%s3 + $0x9f8] sm:$0xff]
    %v2567 = vld [vmem:[%s3 + $0xa00] sm:$0xff]
    %v2568 = vld [vmem:[%s3 + $0xa08] sm:$0xff]
    %v2569 = vld [vmem:[%s3 + $0xa10] sm:$0xff]
    %v2570 = vld [vmem:[%s3 + $0xa18] sm:$0xff]
    %v2571 = vld [vmem:[%s3 + $0xa20] sm:$0xff]
    %v2572 = vld [vmem:[%s3 + $0xa28] sm:$0xff]
    %v2573 = vld [vmem:[%s3 + $0xa30] sm:$0xff]
    %v2574 = vld [vmem:[%s3 + $0xa38] sm:$0xff]
    %v2575 = vld [vmem:[%s3 + $0xa40] sm:$0xff]
    %v2576 = vld [vmem:[%s3 + $0xa48] sm:$0xff]
    %v2577 = vld [vmem:[%s3 + $0xa50] sm:$0xff]
    %v2578 = vld [vmem:[%s3 + $0xa58] sm:$0xff]
    %v2579 = vld [vmem:[%s3 + $0xa60] sm:$0xff]
    %v2580 = vld [vmem:[%s3 + $0xa68] sm:$0xff]
    %v2581 = vld [vmem:[%s3 + $0xa70] sm:$0xff]
    %v2582 = vld [vmem:[%s3 + $0xa78] sm:$0xff]
    %v2583 = vld [vmem:[%s3 + $0xa80] sm:$0xff]
    %v2584 = vld [vmem:[%s3 + $0xa88] sm:$0xff]
    %v2585 = vld [vmem:[%s3 + $0xa90] sm:$0xff]
    %v2586 = vld [vmem:[%s3 + $0xa98] sm:$0xff]
    %v2587 = vld [vmem:[%s3 + $0xaa0] sm:$0xff]
    %v2588 = vld [vmem:[%s3 + $0xaa8] sm:$0xff]
    %v2589 = vld [vmem:[%s3 + $0xab0] sm:$0xff]
    %v2590 = vld [vmem:[%s3 + $0xab8] sm:$0xff]
    %v2591 = vld [vmem:[%s3 + $0xac0] sm:$0xff]
    %v2592 = vld [vmem:[%s3 + $0xac8] sm:$0xff]
    %v2593 = vld [vmem:[%s3 + $0xad0] sm:$0xff]
    %v2594 = vld [vmem:[%s3 + $0xad8] sm:$0xff]
    %v2595 = vld [vmem:[%s3 + $0xae0] sm:$0xff]
    %v2596 = vld [vmem:[%s3 + $0xae8] sm:$0xff]
    %v2597 = vld [vmem:[%s3 + $0xaf0] sm:$0xff]
    %v2598 = vld [vmem:[%s3 + $0xaf8] sm:$0xff]
    %v2599 = vld [vmem:[%s3 + $0xb00] sm:$0xff]
    %v2600 = vld [vmem:[%s3 + $0xb08] sm:$0xff]
    %v2601 = vld [vmem:[%s3 + $0xb10] sm:$0xff]
    %v2602 = vld [vmem:[%s3 + $0xb18] sm:$0xff]
    %v2603 = vld [vmem:[%s3 + $0xb20] sm:$0xff]
    %v2604 = vld [vmem:[%s3 + $0xb28] sm:$0xff]
    %v2605 = vld [vmem:[%s3 + $0xb30] sm:$0xff]
    %v2606 = vld [vmem:[%s3 + $0xb38] sm:$0xff]
    %v2607 = vld [vmem:[%s3 + $0xb40] sm:$0xff]
    %v2608 = vld [vmem:[%s3 + $0xb48] sm:$0xff]
    %v2609 = vld [vmem:[%s3 + $0xb50] sm:$0xff]
    %v2610 = vld [vmem:[%s3 + $0xb58] sm:$0xff]
    %v2611 = vld [vmem:[%s3 + $0xb60] sm:$0xff]
    %v2612 = vld [vmem:[%s3 + $0xb68] sm:$0xff]
    %v2613 = vld [vmem:[%s3 + $0xb70] sm:$0xff]
    %v2614 = vld [vmem:[%s3 + $0xb78] sm:$0xff]
    %v2615 = vld [vmem:[%s3 + $0xb80] sm:$0xff]
    %v2616 = vld [vmem:[%s3 + $0xb88] sm:$0xff]
    %v2617 = vld [vmem:[%s3 + $0xb90] sm:$0xff]
    %v2618 = vld [vmem:[%s3 + $0xb98] sm:$0xff]
    %v2619 = vld [vmem:[%s3 + $0xba0] sm:$0xff]
    %v2620 = vld [vmem:[%s3 + $0xba8] sm:$0xff]
    %v2621 = vld [vmem:[%s3 + $0xbb0] sm:$0xff]
    %v2622 = vld [vmem:[%s3 + $0xbb8] sm:$0xff]
    %v2623 = vld [vmem:[%s3 + $0xbc0] sm:$0xff]
    %v2624 = vld [vmem:[%s3 + $0xbc8] sm:$0xff]
    %v2625 = vld [vmem:[%s3 + $0xbd0] sm:$0xff]
    %v2626 = vld [vmem:[%s3 + $0xbd8] sm:$0xff]
    %v2627 = vld [vmem:[%s3 + $0xbe0] sm:$0xff]
    %v2628 = vld [vmem:[%s3 + $0xbe8] sm:$0xff]
    %v2629 = vld [vmem:[%s3 + $0xbf0] sm:$0xff]
    %v2630 = vld [vmem:[%s3 + $0xbf8] sm:$0xff]
    %v2631 = vld [vmem:[%s3 + $0xc00] sm:$0xff]
    %v2632 = vld [vmem:[%s3 + $0xc08] sm:$0xff]
    %v2633 = vld [vmem:[%s3 + $0xc10] sm:$0xff]
    %v2634 = vld [vmem:[%s3 + $0xc18] sm:$0xff]
    %v2635 = vld [vmem:[%s3 + $0xc20] sm:$0xff]
    %v2636 = vld [vmem:[%s3 + $0xc28] sm:$0xff]
    %v2637 = vld [vmem:[%s3 + $0xc30] sm:$0xff]
    %v2638 = vld [vmem:[%s3 + $0xc38] sm:$0xff]
    %v2639 = vld [vmem:[%s3 + $0xc40] sm:$0xff]
    %v2640 = vld [vmem:[%s3 + $0xc48] sm:$0xff]
    %v2641 = vld [vmem:[%s3 + $0xc50] sm:$0xff]
    %v2642 = vld [vmem:[%s3 + $0xc58] sm:$0xff]
    %v2643 = vld [vmem:[%s3 + $0xc60] sm:$0xff]
    %v2644 = vld [vmem:[%s3 + $0xc68] sm:$0xff]
    %v2645 = vld [vmem:[%s3 + $0xc70] sm:$0xff]
    %v2646 = vld [vmem:[%s3 + $0xc78] sm:$0xff]
    %v2647 = vld [vmem:[%s3 + $0xc80] sm:$0xff]
    %v2648 = vld [vmem:[%s3 + $0xc88] sm:$0xff]
    %v2649 = vld [vmem:[%s3 + $0xc90] sm:$0xff]
    %v2650 = vld [vmem:[%s3 + $0xc98] sm:$0xff]
    %v2651 = vld [vmem:[%s3 + $0xca0] sm:$0xff]
    %v2652 = vld [vmem:[%s3 + $0xca8] sm:$0xff]
    %v2653 = vld [vmem:[%s3 + $0xcb0] sm:$0xff]
    %v2654 = vld [vmem:[%s3 + $0xcb8] sm:$0xff]
    %v2655 = vld [vmem:[%s3 + $0xcc0] sm:$0xff]
    %v2656 = vld [vmem:[%s3 + $0xcc8] sm:$0xff]
    %v2657 = vld [vmem:[%s3 + $0xcd0] sm:$0xff]
    %v2658 = vld [vmem:[%s3 + $0xcd8] sm:$0xff]
    %v2659 = vld [vmem:[%s3 + $0xce0] sm:$0xff]
    %v2660 = vld [vmem:[%s3 + $0xce8] sm:$0xff]
    %v2661 = vld [vmem:[%s3 + $0xcf0] sm:$0xff]
    %v2662 = vld [vmem:[%s3 + $0xcf8] sm:$0xff]
    %v2663 = vld [vmem:[%s3 + $0xd00] sm:$0xff]
    %v2664 = vld [vmem:[%s3 + $0xd08] sm:$0xff]
    %v2665 = vld [vmem:[%s3 + $0xd10] sm:$0xff]
    %v2666 = vld [vmem:[%s3 + $0xd18] sm:$0xff]
    %v2667 = vld [vmem:[%s3 + $0xd20] sm:$0xff]
    %v2668 = vld [vmem:[%s3 + $0xd28] sm:$0xff]
    %v2669 = vld [vmem:[%s3 + $0xd30] sm:$0xff]
    %v2670 = vld [vmem:[%s3 + $0xd38] sm:$0xff]
    %v2671 = vld [vmem:[%s3 + $0xd40] sm:$0xff]
    %v2672 = vld [vmem:[%s3 + $0xd48] sm:$0xff]
    %v2673 = vld [vmem:[%s3 + $0xd50] sm:$0xff]
    %v2674 = vld [vmem:[%s3 + $0xd58] sm:$0xff]
    %v2675 = vld [vmem:[%s3 + $0xd60] sm:$0xff]
    %v2676 = vld [vmem:[%s3 + $0xd68] sm:$0xff]
    %v2677 = vld [vmem:[%s3 + $0xd70] sm:$0xff]
    %v2678 = vld [vmem:[%s3 + $0xd78] sm:$0xff]
    %v2679 = vld [vmem:[%s3 + $0xd80] sm:$0xff]
    %v2680 = vld [vmem:[%s3 + $0xd88] sm:$0xff]
    %v2681 = vld [vmem:[%s3 + $0xd90] sm:$0xff]
    %v2682 = vld [vmem:[%s3 + $0xd98] sm:$0xff]
    %v2683 = vld [vmem:[%s3 + $0xda0] sm:$0xff]
    %v2684 = vld [vmem:[%s3 + $0xda8] sm:$0xff]
    %v2685 = vld [vmem:[%s3 + $0xdb0] sm:$0xff]
    %v2686 = vld [vmem:[%s3 + $0xdb8] sm:$0xff]
    %v2687 = vld [vmem:[%s3 + $0xdc0] sm:$0xff]
    %v2688 = vld [vmem:[%s3 + $0xdc8] sm:$0xff]
    %v2689 = vld [vmem:[%s3 + $0xdd0] sm:$0xff]
    %v2690 = vld [vmem:[%s3 + $0xdd8] sm:$0xff]
    %v2691 = vld [vmem:[%s3 + $0xde0] sm:$0xff]
    %v2692 = vld [vmem:[%s3 + $0xde8] sm:$0xff]
    %v2693 = vld [vmem:[%s3 + $0xdf0] sm:$0xff]
    %v2694 = vld [vmem:[%s3 + $0xdf8] sm:$0xff]
    %v2695 = vld [vmem:[%s3 + $0xe00] sm:$0xff]
    %v2696 = vld [vmem:[%s3 + $0xe08] sm:$0xff]
    %v2697 = vld [vmem:[%s3 + $0xe10] sm:$0xff]
    %v2698 = vld [vmem:[%s3 + $0xe18] sm:$0xff]
    %v2699 = vld [vmem:[%s3 + $0xe20] sm:$0xff]
    %v2700 = vld [vmem:[%s3 + $0xe28] sm:$0xff]
    %v2701 = vld [vmem:[%s3 + $0xe30] sm:$0xff]
    %v2702 = vld [vmem:[%s3 + $0xe38] sm:$0xff]
    %v2703 = vld [vmem:[%s3 + $0xe40] sm:$0xff]
    %v2704 = vld [vmem:[%s3 + $0xe48] sm:$0xff]
    %v2705 = vld [vmem:[%s3 + $0xe50] sm:$0xff]
    %v2706 = vld [vmem:[%s3 + $0xe58] sm:$0xff]
    %v2707 = vld [vmem:[%s3 + $0xe60] sm:$0xff]
    %v2708 = vld [vmem:[%s3 + $0xe68] sm:$0xff]
    %v2709 = vld [vmem:[%s3 + $0xe70] sm:$0xff]
    %v2710 = vld [vmem:[%s3 + $0xe78] sm:$0xff]
    %v2711 = vld [vmem:[%s3 + $0xe80] sm:$0xff]
    %v2712 = vld [vmem:[%s3 + $0xe88] sm:$0xff]
    %v2713 = vld [vmem:[%s3 + $0xe90] sm:$0xff]
    %v2714 = vld [vmem:[%s3 + $0xe98] sm:$0xff]
    %v2715 = vld [vmem:[%s3 + $0xea0] sm:$0xff]
    %v2716 = vld [vmem:[%s3 + $0xea8] sm:$0xff]
    %v2717 = vld [vmem:[%s3 + $0xeb0] sm:$0xff]
    %v2718 = vld [vmem:[%s3 + $0xeb8] sm:$0xff]
    %v2719 = vld [vmem:[%s3 + $0xec0] sm:$0xff]
    %v2720 = vld [vmem:[%s3 + $0xec8] sm:$0xff]
    %v2721 = vld [vmem:[%s3 + $0xed0] sm:$0xff]
    %v2722 = vld [vmem:[%s3 + $0xed8] sm:$0xff]
    %v2723 = vld [vmem:[%s3 + $0xee0] sm:$0xff]
    %v2724 = vld [vmem:[%s3 + $0xee8] sm:$0xff]
    %v2725 = vld [vmem:[%s3 + $0xef0] sm:$0xff]
    %v2726 = vld [vmem:[%s3 + $0xef8] sm:$0xff]
    %v2727 = vld [vmem:[%s3 + $0xf00] sm:$0xff]
    %v2728 = vld [vmem:[%s3 + $0xf08] sm:$0xff]
    %v2729 = vld [vmem:[%s3 + $0xf10] sm:$0xff]
    %v2730 = vld [vmem:[%s3 + $0xf18] sm:$0xff]
    %v2731 = vld [vmem:[%s3 + $0xf20] sm:$0xff]
    %v2732 = vld [vmem:[%s3 + $0xf28] sm:$0xff]
    %v2733 = vld [vmem:[%s3 + $0xf30] sm:$0xff]
    %v2734 = vld [vmem:[%s3 + $0xf38] sm:$0xff]
    %v2735 = vld [vmem:[%s3 + $0xf40] sm:$0xff]
    %v2736 = vld [vmem:[%s3 + $0xf48] sm:$0xff]
    %v2737 = vld [vmem:[%s3 + $0xf50] sm:$0xff]
    %v2738 = vld [vmem:[%s3 + $0xf58] sm:$0xff]
    %v2739 = vld [vmem:[%s3 + $0xf60] sm:$0xff]
    %v2740 = vld [vmem:[%s3 + $0xf68] sm:$0xff]
    %v2741 = vld [vmem:[%s3 + $0xf70] sm:$0xff]
    %v2742 = vld [vmem:[%s3 + $0xf78] sm:$0xff]
    %v2743 = vld [vmem:[%s3 + $0xf80] sm:$0xff]
    %v2744 = vld [vmem:[%s3 + $0xf88] sm:$0xff]
    %v2745 = vld [vmem:[%s3 + $0xf90] sm:$0xff]
    %v2746 = vld [vmem:[%s3 + $0xf98] sm:$0xff]
    %v2747 = vld [vmem:[%s3 + $0xfa0] sm:$0xff]
    %v2748 = vld [vmem:[%s3 + $0xfa8] sm:$0xff]
    %v2749 = vld [vmem:[%s3 + $0xfb0] sm:$0xff]
    %v2750 = vld [vmem:[%s3 + $0xfb8] sm:$0xff]
    %v2751 = vld [vmem:[%s3 + $0xfc0] sm:$0xff]
    %v2752 = vld [vmem:[%s3 + $0xfc8] sm:$0xff]
    %v2753 = vld [vmem:[%s3 + $0xfd0] sm:$0xff]
    %v2754 = vld [vmem:[%s3 + $0xfd8] sm:$0xff]
    %v2755 = vld [vmem:[%s3 + $0xfe0] sm:$0xff]
    %v2756 = vld [vmem:[%s3 + $0xfe8] sm:$0xff]
    %v2757 = vld [vmem:[%s3 + $0xff0] sm:$0xff]
    %v2758 = vld [vmem:[%s3 + $0xff8] sm:$0xff]
    %v2759 = vld [vmem:[%s3 + $0x1000] sm:$0xff]
    %v2760 = vld [vmem:[%s3 + $0x1008] sm:$0xff]
    %v2761 = vld [vmem:[%s3 + $0x1010] sm:$0xff]
    %v2762 = vld [vmem:[%s3 + $0x1018] sm:$0xff]
    %v2763 = vld [vmem:[%s3 + $0x1020] sm:$0xff]
    %v2764 = vld [vmem:[%s3 + $0x1028] sm:$0xff]
    %v2765 = vld [vmem:[%s3 + $0x1030] sm:$0xff]
    %v2766 = vld [vmem:[%s3 + $0x1038] sm:$0xff]
    %v2767 = vld [vmem:[%s3 + $0x1040] sm:$0xff]
    %v2768 = vld [vmem:[%s3 + $0x1048] sm:$0xff]
    %v2769 = vld [vmem:[%s3 + $0x1050] sm:$0xff]
    %v2770 = vld [vmem:[%s3 + $0x1058] sm:$0xff]
    %v2771 = vld [vmem:[%s3 + $0x1060] sm:$0xff]
    %v2772 = vld [vmem:[%s3 + $0x1068] sm:$0xff]
    %v2773 = vld [vmem:[%s3 + $0x1070] sm:$0xff]
    %v2774 = vld [vmem:[%s3 + $0x1078] sm:$0xff]
    %v2775 = vld [vmem:[%s3 + $0x1080] sm:$0xff]
    %v2776 = vld [vmem:[%s3 + $0x1088] sm:$0xff]
    %v2777 = vld [vmem:[%s3 + $0x1090] sm:$0xff]
    %v2778 = vld [vmem:[%s3 + $0x1098] sm:$0xff]
    %v2779 = vld [vmem:[%s3 + $0x10a0] sm:$0xff]
    %v2780 = vld [vmem:[%s3 + $0x10a8] sm:$0xff]
    %v2781 = vld [vmem:[%s3 + $0x10b0] sm:$0xff]
    %v2782 = vld [vmem:[%s3 + $0x10b8] sm:$0xff]
    %v2783 = vld [vmem:[%s3 + $0x10c0] sm:$0xff]
    %v2784 = vld [vmem:[%s3 + $0x10c8] sm:$0xff]
    %v2785 = vld [vmem:[%s3 + $0x10d0] sm:$0xff]
    %v2786 = vld [vmem:[%s3 + $0x10d8] sm:$0xff]
    %v2787 = vld [vmem:[%s3 + $0x10e0] sm:$0xff]
    %v2788 = vld [vmem:[%s3 + $0x10e8] sm:$0xff]
    %v2789 = vld [vmem:[%s3 + $0x10f0] sm:$0xff]
    %v2790 = vld [vmem:[%s3 + $0x10f8] sm:$0xff]
    %v2791 = vld [vmem:[%s3 + $0x1100] sm:$0xff]
    %v2792 = vld [vmem:[%s3 + $0x1108] sm:$0xff]
    %v2793 = vld [vmem:[%s3 + $0x1110] sm:$0xff]
    %v2794 = vld [vmem:[%s3 + $0x1118] sm:$0xff]
    %v2795 = vld [vmem:[%s3 + $0x1120] sm:$0xff]
    %v2796 = vld [vmem:[%s3 + $0x1128] sm:$0xff]
    %v2797 = vld [vmem:[%s3 + $0x1130] sm:$0xff]
    %v2798 = vld [vmem:[%s3 + $0x1138] sm:$0xff]
    %v2799 = vld [vmem:[%s3 + $0x1140] sm:$0xff]
    %v2800 = vld [vmem:[%s3 + $0x1148] sm:$0xff]
    %v2801 = vld [vmem:[%s3 + $0x1150] sm:$0xff]
    %v2802 = vld [vmem:[%s3 + $0x1158] sm:$0xff]
    %v2803 = vld [vmem:[%s3 + $0x1160] sm:$0xff]
    %v2804 = vld [vmem:[%s3 + $0x1168] sm:$0xff]
    %v2805 = vld [vmem:[%s3 + $0x1170] sm:$0xff]
    %v2806 = vld [vmem:[%s3 + $0x1178] sm:$0xff]
    %v2807 = vld [vmem:[%s3 + $0x1180] sm:$0xff]
    %v2808 = vld [vmem:[%s3 + $0x1188] sm:$0xff]
    %v2809 = vld [vmem:[%s3 + $0x1190] sm:$0xff]
    %v2810 = vld [vmem:[%s3 + $0x1198] sm:$0xff]
    %v2811 = vld [vmem:[%s3 + $0x11a0] sm:$0xff]
    %v2812 = vld [vmem:[%s3 + $0x11a8] sm:$0xff]
    %v2813 = vld [vmem:[%s3 + $0x11b0] sm:$0xff]
    %v2814 = vld [vmem:[%s3 + $0x11b8] sm:$0xff]
    %v2815 = vld [vmem:[%s3 + $0x11c0] sm:$0xff]
    %v2816 = vld [vmem:[%s3 + $0x11c8] sm:$0xff]
    %v2817 = vld [vmem:[%s3 + $0x11d0] sm:$0xff]
    %v2818 = vld [vmem:[%s3 + $0x11d8] sm:$0xff]
    %v2819 = vld [vmem:[%s3 + $0x11e0] sm:$0xff]
    %v2820 = vld [vmem:[%s3 + $0x11e8] sm:$0xff]
    %v2821 = vld [vmem:[%s3 + $0x11f0] sm:$0xff]
    %v2822 = vld [vmem:[%s3 + $0x11f8] sm:$0xff]
    %v2823 = vld [vmem:[%s3 + $0x1200] sm:$0xff]
    %v2824 = vld [vmem:[%s3 + $0x1208] sm:$0xff]
    %v2825 = vld [vmem:[%s3 + $0x1210] sm:$0xff]
    %v2826 = vld [vmem:[%s3 + $0x1218] sm:$0xff]
    %v2827 = vld [vmem:[%s3 + $0x1220] sm:$0xff]
    %v2828 = vld [vmem:[%s3 + $0x1228] sm:$0xff]
    %v2829 = vld [vmem:[%s3 + $0x1230] sm:$0xff]
    %v2830 = vld [vmem:[%s3 + $0x1238] sm:$0xff]
    %v2831 = vld [vmem:[%s3 + $0x1240] sm:$0xff]
    %v2832 = vld [vmem:[%s3 + $0x1248] sm:$0xff]
    %v2833 = vld [vmem:[%s3 + $0x1250] sm:$0xff]
    %v2834 = vld [vmem:[%s3 + $0x1258] sm:$0xff]
    %v2835 = vld [vmem:[%s3 + $0x1260] sm:$0xff]
    %v2836 = vld [vmem:[%s3 + $0x1268] sm:$0xff]
    %v2837 = vld [vmem:[%s3 + $0x1270] sm:$0xff]
    %v2838 = vld [vmem:[%s3 + $0x1278] sm:$0xff]
    %v2839 = vld [vmem:[%s3 + $0x1280] sm:$0xff]
    %v2840 = vld [vmem:[%s3 + $0x1288] sm:$0xff]
    %v2841 = vld [vmem:[%s3 + $0x1290] sm:$0xff]
    %v2842 = vld [vmem:[%s3 + $0x1298] sm:$0xff]
    %v2843 = vld [vmem:[%s3 + $0x12a0] sm:$0xff]
    %v2844 = vld [vmem:[%s3 + $0x12a8] sm:$0xff]
    %v2845 = vld [vmem:[%s3 + $0x12b0] sm:$0xff]
    %v2846 = vld [vmem:[%s3 + $0x12b8] sm:$0xff]
    %v2847 = vld [vmem:[%s3 + $0x12c0] sm:$0xff]
    %v2848 = vld [vmem:[%s3 + $0x12c8] sm:$0xff]
    %v2849 = vld [vmem:[%s3 + $0x12d0] sm:$0xff]
    %v2850 = vld [vmem:[%s3 + $0x12d8] sm:$0xff]
    %v2851 = vld [vmem:[%s3 + $0x12e0] sm:$0xff]
    %v2852 = vld [vmem:[%s3 + $0x12e8] sm:$0xff]
    %v2853 = vld [vmem:[%s3 + $0x12f0] sm:$0xff]
    %v2854 = vld [vmem:[%s3 + $0x12f8] sm:$0xff]
    %v2855 = vld [vmem:[%s3 + $0x1300] sm:$0xff]
    %v2856 = vld [vmem:[%s3 + $0x1308] sm:$0xff]
    %v2857 = vld [vmem:[%s3 + $0x1310] sm:$0xff]
    %v2858 = vld [vmem:[%s3 + $0x1318] sm:$0xff]
    %v2859 = vld [vmem:[%s3 + $0x1320] sm:$0xff]
    %v2860 = vld [vmem:[%s3 + $0x1328] sm:$0xff]
    %v2861 = vld [vmem:[%s3 + $0x1330] sm:$0xff]
    %v2862 = vld [vmem:[%s3 + $0x1338] sm:$0xff]
    %v2863 = vld [vmem:[%s3 + $0x1340] sm:$0xff]
    %v2864 = vld [vmem:[%s3 + $0x1348] sm:$0xff]
    %v2865 = vld [vmem:[%s3 + $0x1350] sm:$0xff]
    %v2866 = vld [vmem:[%s3 + $0x1358] sm:$0xff]
    %v2867 = vld [vmem:[%s3 + $0x1360] sm:$0xff]
    %v2868 = vld [vmem:[%s3 + $0x1368] sm:$0xff]
    %v2869 = vld [vmem:[%s3 + $0x1370] sm:$0xff]
    %v2870 = vld [vmem:[%s3 + $0x1378] sm:$0xff]
    %v2871 = vld [vmem:[%s3 + $0x1380] sm:$0xff]
    %v2872 = vld [vmem:[%s3 + $0x1388] sm:$0xff]
    %v2873 = vld [vmem:[%s3 + $0x1390] sm:$0xff]
    %v2874 = vld [vmem:[%s3 + $0x1398] sm:$0xff]
    %v2875 = vld [vmem:[%s3 + $0x13a0] sm:$0xff]
    %v2876 = vld [vmem:[%s3 + $0x13a8] sm:$0xff]
    %v2877 = vld [vmem:[%s3 + $0x13b0] sm:$0xff]
    %v2878 = vld [vmem:[%s3 + $0x13b8] sm:$0xff]
    %v2879 = vld [vmem:[%s3 + $0x13c0] sm:$0xff]
    %v2880 = vld [vmem:[%s3 + $0x13c8] sm:$0xff]
    %v2881 = vld [vmem:[%s3 + $0x13d0] sm:$0xff]
    %v2882 = vld [vmem:[%s3 + $0x13d8] sm:$0xff]
    %v2883 = vld [vmem:[%s3 + $0x13e0] sm:$0xff]
    %v2884 = vld [vmem:[%s3 + $0x13e8] sm:$0xff]
    %v2885 = vld [vmem:[%s3 + $0x13f0] sm:$0xff]
    %v2886 = vld [vmem:[%s3 + $0x13f8] sm:$0xff]
    %v2887 = vld [vmem:[%s3 + $0x1400] sm:$0xff]
    %v2888 = vld [vmem:[%s3 + $0x1408] sm:$0xff]
    %v2889 = vld [vmem:[%s3 + $0x1410] sm:$0xff]
    %v2890 = vld [vmem:[%s3 + $0x1418] sm:$0xff]
    %v2891 = vld [vmem:[%s3 + $0x1420] sm:$0xff]
    %v2892 = vld [vmem:[%s3 + $0x1428] sm:$0xff]
    %v2893 = vld [vmem:[%s3 + $0x1430] sm:$0xff]
    %v2894 = vld [vmem:[%s3 + $0x1438] sm:$0xff]
    %v2895 = vld [vmem:[%s3 + $0x1440] sm:$0xff]
    %v2896 = vld [vmem:[%s3 + $0x1448] sm:$0xff]
    %v2897 = vld [vmem:[%s3 + $0x1450] sm:$0xff]
    %v2898 = vld [vmem:[%s3 + $0x1458] sm:$0xff]
    %v2899 = vld [vmem:[%s3 + $0x1460] sm:$0xff]
    %v2900 = vld [vmem:[%s3 + $0x1468] sm:$0xff]
    %v2901 = vld [vmem:[%s3 + $0x1470] sm:$0xff]
    %v2902 = vld [vmem:[%s3 + $0x1478] sm:$0xff]
    %v2903 = vld [vmem:[%s3 + $0x1480] sm:$0xff]
    %v2904 = vld [vmem:[%s3 + $0x1488] sm:$0xff]
    %v2905 = vld [vmem:[%s3 + $0x1490] sm:$0xff]
    %v2906 = vld [vmem:[%s3 + $0x1498] sm:$0xff]
    %v2907 = vld [vmem:[%s3 + $0x14a0] sm:$0xff]
    %v2908 = vld [vmem:[%s3 + $0x14a8] sm:$0xff]
    %v2909 = vld [vmem:[%s3 + $0x14b0] sm:$0xff]
    %v2910 = vld [vmem:[%s3 + $0x14b8] sm:$0xff]
    %v2911 = vld [vmem:[%s3 + $0x14c0] sm:$0xff]
    %v2912 = vld [vmem:[%s3 + $0x14c8] sm:$0xff]
    %v2913 = vld [vmem:[%s3 + $0x14d0] sm:$0xff]
    %v2914 = vld [vmem:[%s3 + $0x14d8] sm:$0xff]
    %v2915 = vld [vmem:[%s3 + $0x14e0] sm:$0xff]
    %v2916 = vld [vmem:[%s3 + $0x14e8] sm:$0xff]
    %v2917 = vld [vmem:[%s3 + $0x14f0] sm:$0xff]
    %v2918 = vld [vmem:[%s3 + $0x14f8] sm:$0xff]
    %v2919 = vld [vmem:[%s3 + $0x1500] sm:$0xff]
    %v2920 = vld [vmem:[%s3 + $0x1508] sm:$0xff]
    %v2921 = vld [vmem:[%s3 + $0x1510] sm:$0xff]
    %v2922 = vld [vmem:[%s3 + $0x1518] sm:$0xff]
    %v2923 = vld [vmem:[%s3 + $0x1520] sm:$0xff]
    %v2924 = vld [vmem:[%s3 + $0x1528] sm:$0xff]
    %v2925 = vld [vmem:[%s3 + $0x1530] sm:$0xff]
    %v2926 = vld [vmem:[%s3 + $0x1538] sm:$0xff]
    %v2927 = vld [vmem:[%s3 + $0x1540] sm:$0xff]
    %v2928 = vld [vmem:[%s3 + $0x1548] sm:$0xff]
    %v2929 = vld [vmem:[%s3 + $0x1550] sm:$0xff]
    %v2930 = vld [vmem:[%s3 + $0x1558] sm:$0xff]
    %v2931 = vld [vmem:[%s3 + $0x1560] sm:$0xff]
    %v2932 = vld [vmem:[%s3 + $0x1568] sm:$0xff]
    %v2933 = vld [vmem:[%s3 + $0x1570] sm:$0xff]
    %v2934 = vld [vmem:[%s3 + $0x1578] sm:$0xff]
    %v2935 = vld [vmem:[%s3 + $0x1580] sm:$0xff]
    %v2936 = vld [vmem:[%s3 + $0x1588] sm:$0xff]
    %v2937 = vld [vmem:[%s3 + $0x1590] sm:$0xff]
    %v2938 = vld [vmem:[%s3 + $0x1598] sm:$0xff]
    %v2939 = vld [vmem:[%s3 + $0x15a0] sm:$0xff]
    %v2940 = vld [vmem:[%s3 + $0x15a8] sm:$0xff]
    %v2941 = vld [vmem:[%s3 + $0x15b0] sm:$0xff]
    %v2942 = vld [vmem:[%s3 + $0x15b8] sm:$0xff]
    %v2943 = vld [vmem:[%s3 + $0x15c0] sm:$0xff]
    %v2944 = vld [vmem:[%s3 + $0x15c8] sm:$0xff]
    %v2945 = vld [vmem:[%s3 + $0x15d0] sm:$0xff]
    %v2946 = vld [vmem:[%s3 + $0x15d8] sm:$0xff]
    %v2947 = vld [vmem:[%s3 + $0x15e0] sm:$0xff]
    %v2948 = vld [vmem:[%s3 + $0x15e8] sm:$0xff]
    %v2949 = vld [vmem:[%s3 + $0x15f0] sm:$0xff]
    %v2950 = vld [vmem:[%s3 + $0x15f8] sm:$0xff]
    %v2951 = vld [vmem:[%s3 + $0x1600] sm:$0xff]
    %v2952 = vld [vmem:[%s3 + $0x1608] sm:$0xff]
    %v2953 = vld [vmem:[%s3 + $0x1610] sm:$0xff]
    %v2954 = vld [vmem:[%s3 + $0x1618] sm:$0xff]
    %v2955 = vld [vmem:[%s3 + $0x1620] sm:$0xff]
    %v2956 = vld [vmem:[%s3 + $0x1628] sm:$0xff]
    %v2957 = vld [vmem:[%s3 + $0x1630] sm:$0xff]
    %v2958 = vld [vmem:[%s3 + $0x1638] sm:$0xff]
    %v2959 = vld [vmem:[%s3 + $0x1640] sm:$0xff]
    %v2960 = vld [vmem:[%s3 + $0x1648] sm:$0xff]
    %v2961 = vld [vmem:[%s3 + $0x1650] sm:$0xff]
    %v2962 = vld [vmem:[%s3 + $0x1658] sm:$0xff]
    %v2963 = vld [vmem:[%s3 + $0x1660] sm:$0xff]
    %v2964 = vld [vmem:[%s3 + $0x1668] sm:$0xff]
    %v2965 = vld [vmem:[%s3 + $0x1670] sm:$0xff]
    %v2966 = vld [vmem:[%s3 + $0x1678] sm:$0xff]
    %v2967 = vld [vmem:[%s3 + $0x1680] sm:$0xff]
    %v2968 = vld [vmem:[%s3 + $0x1688] sm:$0xff]
    %v2969 = vld [vmem:[%s3 + $0x1690] sm:$0xff]
    %v2970 = vld [vmem:[%s3 + $0x1698] sm:$0xff]
    %v2971 = vld [vmem:[%s3 + $0x16a0] sm:$0xff]
    %v2972 = vld [vmem:[%s3 + $0x16a8] sm:$0xff]
    %v2973 = vld [vmem:[%s3 + $0x16b0] sm:$0xff]
    %v2974 = vld [vmem:[%s3 + $0x16b8] sm:$0xff]
    %v2975 = vld [vmem:[%s3 + $0x16c0] sm:$0xff]
    %v2976 = vld [vmem:[%s3 + $0x16c8] sm:$0xff]
    %v2977 = vld [vmem:[%s3 + $0x16d0] sm:$0xff]
    %v2978 = vld [vmem:[%s3 + $0x16d8] sm:$0xff]
    %v2979 = vld [vmem:[%s3 + $0x16e0] sm:$0xff]
    %v2980 = vld [vmem:[%s3 + $0x16e8] sm:$0xff]
    %v2981 = vld [vmem:[%s3 + $0x16f0] sm:$0xff]
    %v2982 = vld [vmem:[%s3 + $0x16f8] sm:$0xff]
    %v2983 = vld [vmem:[%s3 + $0x1700] sm:$0xff]
    %v2984 = vld [vmem:[%s3 + $0x1708] sm:$0xff]
    %v2985 = vld [vmem:[%s3 + $0x1710] sm:$0xff]
    %v2986 = vld [vmem:[%s3 + $0x1718] sm:$0xff]
    %v2987 = vld [vmem:[%s3 + $0x1720] sm:$0xff]
    %v2988 = vld [vmem:[%s3 + $0x1728] sm:$0xff]
    %v2989 = vld [vmem:[%s3 + $0x1730] sm:$0xff]
    %v2990 = vld [vmem:[%s3 + $0x1738] sm:$0xff]
    %v2991 = vld [vmem:[%s3 + $0x1740] sm:$0xff]
    %v2992 = vld [vmem:[%s3 + $0x1748] sm:$0xff]
    %v2993 = vld [vmem:[%s3 + $0x1750] sm:$0xff]
    %v2994 = vld [vmem:[%s3 + $0x1758] sm:$0xff]
    %v2995 = vld [vmem:[%s3 + $0x1760] sm:$0xff]
    %v2996 = vld [vmem:[%s3 + $0x1768] sm:$0xff]
    %v2997 = vld [vmem:[%s3 + $0x1770] sm:$0xff]
    %v2998 = vld [vmem:[%s3 + $0x1778] sm:$0xff]
    %v2999 = vld [vmem:[%s3 + $0x1780] sm:$0xff]
    %v3000 = vld [vmem:[%s3 + $0x1788] sm:$0xff]
    %v3001 = vld [vmem:[%s3 + $0x1790] sm:$0xff]
    %v3002 = vld [vmem:[%s3 + $0x1798] sm:$0xff]
    %v3003 = vld [vmem:[%s3 + $0x17a0] sm:$0xff]
    %v3004 = vld [vmem:[%s3 + $0x17a8] sm:$0xff]
    %v3005 = vld [vmem:[%s3 + $0x17b0] sm:$0xff]
    %v3006 = vld [vmem:[%s3 + $0x17b8] sm:$0xff]
    %v3007 = vld [vmem:[%s3 + $0x17c0] sm:$0xff]
    %v3008 = vld [vmem:[%s3 + $0x17c8] sm:$0xff]
    %v3009 = vld [vmem:[%s3 + $0x17d0] sm:$0xff]
    %v3010 = vld [vmem:[%s3 + $0x17d8] sm:$0xff]
    %v3011 = vld [vmem:[%s3 + $0x17e0] sm:$0xff]
    %v3012 = vld [vmem:[%s3 + $0x17e8] sm:$0xff]
    %v3013 = vld [vmem:[%s3 + $0x17f0] sm:$0xff]
    %v3014 = vld [vmem:[%s3 + $0x17f8] sm:$0xff]
    %v3015 = vld [vmem:[%s3 + $0x1800] sm:$0xff]
    %v3016 = vld [vmem:[%s3 + $0x1808] sm:$0xff]
    %v3017 = vld [vmem:[%s3 + $0x1810] sm:$0xff]
    %v3018 = vld [vmem:[%s3 + $0x1818] sm:$0xff]
    %v3019 = vld [vmem:[%s3 + $0x1820] sm:$0xff]
    %v3020 = vld [vmem:[%s3 + $0x1828] sm:$0xff]
    %v3021 = vld [vmem:[%s3 + $0x1830] sm:$0xff]
    %v3022 = vld [vmem:[%s3 + $0x1838] sm:$0xff]
    %v3023 = vld [vmem:[%s3 + $0x1840] sm:$0xff]
    %v3024 = vld [vmem:[%s3 + $0x1848] sm:$0xff]
    %v3025 = vld [vmem:[%s3 + $0x1850] sm:$0xff]
    %v3026 = vld [vmem:[%s3 + $0x1858] sm:$0xff]
    %v3027 = vld [vmem:[%s3 + $0x1860] sm:$0xff]
    %v3028 = vld [vmem:[%s3 + $0x1868] sm:$0xff]
    %v3029 = vld [vmem:[%s3 + $0x1870] sm:$0xff]
    %v3030 = vld [vmem:[%s3 + $0x1878] sm:$0xff]
    %v3031 = vld [vmem:[%s3 + $0x1880] sm:$0xff]
    %v3032 = vld [vmem:[%s3 + $0x1888] sm:$0xff]
    %v3033 = vld [vmem:[%s3 + $0x1890] sm:$0xff]
    %v3034 = vld [vmem:[%s3 + $0x1898] sm:$0xff]
    %v3035 = vld [vmem:[%s3 + $0x18a0] sm:$0xff]
    %v3036 = vld [vmem:[%s3 + $0x18a8] sm:$0xff]
    %v3037 = vld [vmem:[%s3 + $0x18b0] sm:$0xff]
    %v3038 = vld [vmem:[%s3 + $0x18b8] sm:$0xff]
    %v3039 = vld [vmem:[%s3 + $0x18c0] sm:$0xff]
    %v3040 = vld [vmem:[%s3 + $0x18c8] sm:$0xff]
    %v3041 = vld [vmem:[%s3 + $0x18d0] sm:$0xff]
    %v3042 = vld [vmem:[%s3 + $0x18d8] sm:$0xff]
    %v3043 = vld [vmem:[%s3 + $0x18e0] sm:$0xff]
    %v3044 = vld [vmem:[%s3 + $0x18e8] sm:$0xff]
    %v3045 = vld [vmem:[%s3 + $0x18f0] sm:$0xff]
    %v3046 = vld [vmem:[%s3 + $0x18f8] sm:$0xff]
    %v3047 = vld [vmem:[%s3 + $0x1900] sm:$0xff]
    %v3048 = vld [vmem:[%s3 + $0x1908] sm:$0xff]
    %v3049 = vld [vmem:[%s3 + $0x1910] sm:$0xff]
    %v3050 = vld [vmem:[%s3 + $0x1918] sm:$0xff]
    %v3051 = vld [vmem:[%s3 + $0x1920] sm:$0xff]
    %v3052 = vld [vmem:[%s3 + $0x1928] sm:$0xff]
    %v3053 = vld [vmem:[%s3 + $0x1930] sm:$0xff]
    %v3054 = vld [vmem:[%s3 + $0x1938] sm:$0xff]
    %v3055 = vld [vmem:[%s3 + $0x1940] sm:$0xff]
    %v3056 = vld [vmem:[%s3 + $0x1948] sm:$0xff]
    %v3057 = vld [vmem:[%s3 + $0x1950] sm:$0xff]
    %v3058 = vld [vmem:[%s3 + $0x1958] sm:$0xff]
    %v3059 = vld [vmem:[%s3 + $0x1960] sm:$0xff]
    %v3060 = vld [vmem:[%s3 + $0x1968] sm:$0xff]
    %v3061 = vld [vmem:[%s3 + $0x1970] sm:$0xff]
    %v3062 = vld [vmem:[%s3 + $0x1978] sm:$0xff]
    %v3063 = vld [vmem:[%s3 + $0x1980] sm:$0xff]
    %v3064 = vld [vmem:[%s3 + $0x1988] sm:$0xff]
    %v3065 = vld [vmem:[%s3 + $0x1990] sm:$0xff]
    %v3066 = vld [vmem:[%s3 + $0x1998] sm:$0xff]
    %v3067 = vld [vmem:[%s3 + $0x19a0] sm:$0xff]
    %v3068 = vld [vmem:[%s3 + $0x19a8] sm:$0xff]
    %v3069 = vld [vmem:[%s3 + $0x19b0] sm:$0xff]
    %v3070 = vld [vmem:[%s3 + $0x19b8] sm:$0xff]
    %v3071 = vld [vmem:[%s3 + $0x19c0] sm:$0xff]
    %v3072 = vld [vmem:[%s3 + $0x19c8] sm:$0xff]
    %v3073 = vld [vmem:[%s3 + $0x19d0] sm:$0xff]
    %v3074 = vld [vmem:[%s3 + $0x19d8] sm:$0xff]
    %v3075 = vld [vmem:[%s3 + $0x19e0] sm:$0xff]
    %v3076 = vld [vmem:[%s3 + $0x19e8] sm:$0xff]
    %v3077 = vld [vmem:[%s3 + $0x19f0] sm:$0xff]
    %v3078 = vld [vmem:[%s3 + $0x19f8] sm:$0xff]
    %v3079 = vld [vmem:[%s3 + $0x1a00] sm:$0xff]
    %v3080 = vld [vmem:[%s3 + $0x1a08] sm:$0xff]
    %v3081 = vld [vmem:[%s3 + $0x1a10] sm:$0xff]
    %v3082 = vld [vmem:[%s3 + $0x1a18] sm:$0xff]
    %v3083 = vld [vmem:[%s3 + $0x1a20] sm:$0xff]
    %v3084 = vld [vmem:[%s3 + $0x1a28] sm:$0xff]
    %v3085 = vld [vmem:[%s3 + $0x1a30] sm:$0xff]
    %v3086 = vld [vmem:[%s3 + $0x1a38] sm:$0xff]
    %v3087 = vld [vmem:[%s3 + $0x1a40] sm:$0xff]
    %v3088 = vld [vmem:[%s3 + $0x1a48] sm:$0xff]
    %v3089 = vld [vmem:[%s3 + $0x1a50] sm:$0xff]
    %v3090 = vld [vmem:[%s3 + $0x1a58] sm:$0xff]
    %v3091 = vld [vmem:[%s3 + $0x1a60] sm:$0xff]
    %v3092 = vld [vmem:[%s3 + $0x1a68] sm:$0xff]
    %v3093 = vld [vmem:[%s3 + $0x1a70] sm:$0xff]
    %v3094 = vld [vmem:[%s3 + $0x1a78] sm:$0xff]
    %v3095 = vld [vmem:[%s3 + $0x1a80] sm:$0xff]
    %v3096 = vld [vmem:[%s3 + $0x1a88] sm:$0xff]
    %v3097 = vld [vmem:[%s3 + $0x1a90] sm:$0xff]
    %v3098 = vld [vmem:[%s3 + $0x1a98] sm:$0xff]
    %v3099 = vld [vmem:[%s3 + $0x1aa0] sm:$0xff]
    %v3100 = vld [vmem:[%s3 + $0x1aa8] sm:$0xff]
    %v3101 = vld [vmem:[%s3 + $0x1ab0] sm:$0xff]
    %v3102 = vld [vmem:[%s3 + $0x1ab8] sm:$0xff]
    %v3103 = vld [vmem:[%s3 + $0x1ac0] sm:$0xff]
    %v3104 = vld [vmem:[%s3 + $0x1ac8] sm:$0xff]
    %v3105 = vld [vmem:[%s3 + $0x1ad0] sm:$0xff]
    %v3106 = vld [vmem:[%s3 + $0x1ad8] sm:$0xff]
    %v3107 = vld [vmem:[%s3 + $0x1ae0] sm:$0xff]
    %v3108 = vld [vmem:[%s3 + $0x1ae8] sm:$0xff]
    %v3109 = vld [vmem:[%s3 + $0x1af0] sm:$0xff]
    %v3110 = vld [vmem:[%s3 + $0x1af8] sm:$0xff]
    %v3111 = vld [vmem:[%s3 + $0x1b00] sm:$0xff]
    %v3112 = vld [vmem:[%s3 + $0x1b08] sm:$0xff]
    %v3113 = vld [vmem:[%s3 + $0x1b10] sm:$0xff]
    %v3114 = vld [vmem:[%s3 + $0x1b18] sm:$0xff]
    %v3115 = vld [vmem:[%s3 + $0x1b20] sm:$0xff]
    %v3116 = vld [vmem:[%s3 + $0x1b28] sm:$0xff]
    %v3117 = vld [vmem:[%s3 + $0x1b30] sm:$0xff]
    %v3118 = vld [vmem:[%s3 + $0x1b38] sm:$0xff]
    %v3119 = vld [vmem:[%s3 + $0x1b40] sm:$0xff]
    %v3120 = vld [vmem:[%s3 + $0x1b48] sm:$0xff]
    %v3121 = vld [vmem:[%s3 + $0x1b50] sm:$0xff]
    %v3122 = vld [vmem:[%s3 + $0x1b58] sm:$0xff]
    %v3123 = vld [vmem:[%s3 + $0x1b60] sm:$0xff]
    %v3124 = vld [vmem:[%s3 + $0x1b68] sm:$0xff]
    %v3125 = vld [vmem:[%s3 + $0x1b70] sm:$0xff]
    %v3126 = vld [vmem:[%s3 + $0x1b78] sm:$0xff]
    %v3127 = vld [vmem:[%s3 + $0x1b80] sm:$0xff]
    %v3128 = vld [vmem:[%s3 + $0x1b88] sm:$0xff]
    %v3129 = vld [vmem:[%s3 + $0x1b90] sm:$0xff]
    %v3130 = vld [vmem:[%s3 + $0x1b98] sm:$0xff]
    %v3131 = vld [vmem:[%s3 + $0x1ba0] sm:$0xff]
    %v3132 = vld [vmem:[%s3 + $0x1ba8] sm:$0xff]
    %v3133 = vld [vmem:[%s3 + $0x1bb0] sm:$0xff]
    %v3134 = vld [vmem:[%s3 + $0x1bb8] sm:$0xff]
    %v3135 = vld [vmem:[%s3 + $0x1bc0] sm:$0xff]
    %v3136 = vld [vmem:[%s3 + $0x1bc8] sm:$0xff]
    %v3137 = vld [vmem:[%s3 + $0x1bd0] sm:$0xff]
    %v3138 = vld [vmem:[%s3 + $0x1bd8] sm:$0xff]
    %v3139 = vld [vmem:[%s3 + $0x1be0] sm:$0xff]
    %v3140 = vld [vmem:[%s3 + $0x1be8] sm:$0xff]
    %v3141 = vld [vmem:[%s3 + $0x1bf0] sm:$0xff]
    %v3142 = vld [vmem:[%s3 + $0x1bf8] sm:$0xff]
    %v3143 = vld [vmem:[%s3 + $0x1c00] sm:$0xff]
    %v3144 = vld [vmem:[%s3 + $0x1c08] sm:$0xff]
    %v3145 = vld [vmem:[%s3 + $0x1c10] sm:$0xff]
    %v3146 = vld [vmem:[%s3 + $0x1c18] sm:$0xff]
    %v3147 = vld [vmem:[%s3 + $0x1c20] sm:$0xff]
    %v3148 = vld [vmem:[%s3 + $0x1c28] sm:$0xff]
    %v3149 = vld [vmem:[%s3 + $0x1c30] sm:$0xff]
    %v3150 = vld [vmem:[%s3 + $0x1c38] sm:$0xff]
    %v3151 = vld [vmem:[%s3 + $0x1c40] sm:$0xff]
    %v3152 = vld [vmem:[%s3 + $0x1c48] sm:$0xff]
    %v3153 = vld [vmem:[%s3 + $0x1c50] sm:$0xff]
    %v3154 = vld [vmem:[%s3 + $0x1c58] sm:$0xff]
    %v3155 = vld [vmem:[%s3 + $0x1c60] sm:$0xff]
    %v3156 = vld [vmem:[%s3 + $0x1c68] sm:$0xff]
    %v3157 = vld [vmem:[%s3 + $0x1c70] sm:$0xff]
    %v3158 = vld [vmem:[%s3 + $0x1c78] sm:$0xff]
    %v3159 = vld [vmem:[%s3 + $0x1c80] sm:$0xff]
    %v3160 = vld [vmem:[%s3 + $0x1c88] sm:$0xff]
    %v3161 = vld [vmem:[%s3 + $0x1c90] sm:$0xff]
    %v3162 = vld [vmem:[%s3 + $0x1c98] sm:$0xff]
    %v3163 = vld [vmem:[%s3 + $0x1ca0] sm:$0xff]
    %v3164 = vld [vmem:[%s3 + $0x1ca8] sm:$0xff]
    %v3165 = vld [vmem:[%s3 + $0x1cb0] sm:$0xff]
    %v3166 = vld [vmem:[%s3 + $0x1cb8] sm:$0xff]
    %v3167 = vld [vmem:[%s3 + $0x1cc0] sm:$0xff]
    %v3168 = vld [vmem:[%s3 + $0x1cc8] sm:$0xff]
    %v3169 = vld [vmem:[%s3 + $0x1cd0] sm:$0xff]
    %v3170 = vld [vmem:[%s3 + $0x1cd8] sm:$0xff]
    %v3171 = vld [vmem:[%s3 + $0x1ce0] sm:$0xff]
    %v3172 = vld [vmem:[%s3 + $0x1ce8] sm:$0xff]
    %v3173 = vld [vmem:[%s3 + $0x1cf0] sm:$0xff]
    %v3174 = vld [vmem:[%s3 + $0x1cf8] sm:$0xff]
    %v3175 = vld [vmem:[%s3 + $0x1d00] sm:$0xff]
    %v3176 = vld [vmem:[%s3 + $0x1d08] sm:$0xff]
    %v3177 = vld [vmem:[%s3 + $0x1d10] sm:$0xff]
    %v3178 = vld [vmem:[%s3 + $0x1d18] sm:$0xff]
    %v3179 = vld [vmem:[%s3 + $0x1d20] sm:$0xff]
    %v3180 = vld [vmem:[%s3 + $0x1d28] sm:$0xff]
    %v3181 = vld [vmem:[%s3 + $0x1d30] sm:$0xff]
    %v3182 = vld [vmem:[%s3 + $0x1d38] sm:$0xff]
    %v3183 = vld [vmem:[%s3 + $0x1d40] sm:$0xff]
    %v3184 = vld [vmem:[%s3 + $0x1d48] sm:$0xff]
    %v3185 = vld [vmem:[%s3 + $0x1d50] sm:$0xff]
    %v3186 = vld [vmem:[%s3 + $0x1d58] sm:$0xff]
    %v3187 = vld [vmem:[%s3 + $0x1d60] sm:$0xff]
    %v3188 = vld [vmem:[%s3 + $0x1d68] sm:$0xff]
    %v3189 = vld [vmem:[%s3 + $0x1d70] sm:$0xff]
    %v3190 = vld [vmem:[%s3 + $0x1d78] sm:$0xff]
    %v3191 = vld [vmem:[%s3 + $0x1d80] sm:$0xff]
    %v3192 = vld [vmem:[%s3 + $0x1d88] sm:$0xff]
    %v3193 = vld [vmem:[%s3 + $0x1d90] sm:$0xff]
    %v3194 = vld [vmem:[%s3 + $0x1d98] sm:$0xff]
    %v3195 = vld [vmem:[%s3 + $0x1da0] sm:$0xff]
    %v3196 = vld [vmem:[%s3 + $0x1da8] sm:$0xff]
    %v3197 = vld [vmem:[%s3 + $0x1db0] sm:$0xff]
    %v3198 = vld [vmem:[%s3 + $0x1db8] sm:$0xff]
    %v3199 = vld [vmem:[%s3 + $0x1dc0] sm:$0xff]
    %v3200 = vld [vmem:[%s3 + $0x1dc8] sm:$0xff]
    %v3201 = vld [vmem:[%s3 + $0x1dd0] sm:$0xff]
    %v3202 = vld [vmem:[%s3 + $0x1dd8] sm:$0xff]
    %v3203 = vld [vmem:[%s3 + $0x1de0] sm:$0xff]
    %v3204 = vld [vmem:[%s3 + $0x1de8] sm:$0xff]
    %v3205 = vld [vmem:[%s3 + $0x1df0] sm:$0xff]
    %v3206 = vld [vmem:[%s3 + $0x1df8] sm:$0xff]
    %v3207 = vld [vmem:[%s3 + $0x1e00] sm:$0xff]
    %v3208 = vld [vmem:[%s3 + $0x1e08] sm:$0xff]
    %v3209 = vld [vmem:[%s3 + $0x1e10] sm:$0xff]
    %v3210 = vld [vmem:[%s3 + $0x1e18] sm:$0xff]
    %v3211 = vld [vmem:[%s3 + $0x1e20] sm:$0xff]
    %v3212 = vld [vmem:[%s3 + $0x1e28] sm:$0xff]
    %v3213 = vld [vmem:[%s3 + $0x1e30] sm:$0xff]
    %v3214 = vld [vmem:[%s3 + $0x1e38] sm:$0xff]
    %v3215 = vld [vmem:[%s3 + $0x1e40] sm:$0xff]
    %v3216 = vld [vmem:[%s3 + $0x1e48] sm:$0xff]
    %v3217 = vld [vmem:[%s3 + $0x1e50] sm:$0xff]
    %v3218 = vld [vmem:[%s3 + $0x1e58] sm:$0xff]
    %v3219 = vld [vmem:[%s3 + $0x1e60] sm:$0xff]
    %v3220 = vld [vmem:[%s3 + $0x1e68] sm:$0xff]
    %v3221 = vld [vmem:[%s3 + $0x1e70] sm:$0xff]
    %v3222 = vld [vmem:[%s3 + $0x1e78] sm:$0xff]
    %v3223 = vld [vmem:[%s3 + $0x1e80] sm:$0xff]
    %v3224 = vld [vmem:[%s3 + $0x1e88] sm:$0xff]
    %v3225 = vld [vmem:[%s3 + $0x1e90] sm:$0xff]
    %v3226 = vld [vmem:[%s3 + $0x1e98] sm:$0xff]
    %v3227 = vld [vmem:[%s3 + $0x1ea0] sm:$0xff]
    %v3228 = vld [vmem:[%s3 + $0x1ea8] sm:$0xff]
    %v3229 = vld [vmem:[%s3 + $0x1eb0] sm:$0xff]
    %v3230 = vld [vmem:[%s3 + $0x1eb8] sm:$0xff]
    %v3231 = vld [vmem:[%s3 + $0x1ec0] sm:$0xff]
    %v3232 = vld [vmem:[%s3 + $0x1ec8] sm:$0xff]
    %v3233 = vld [vmem:[%s3 + $0x1ed0] sm:$0xff]
    %v3234 = vld [vmem:[%s3 + $0x1ed8] sm:$0xff]
    %v3235 = vld [vmem:[%s3 + $0x1ee0] sm:$0xff]
    %v3236 = vld [vmem:[%s3 + $0x1ee8] sm:$0xff]
    %v3237 = vld [vmem:[%s3 + $0x1ef0] sm:$0xff]
    %v3238 = vld [vmem:[%s3 + $0x1ef8] sm:$0xff]
    %v3239 = vld [vmem:[%s3 + $0x1f00] sm:$0xff]
    %v3240 = vld [vmem:[%s3 + $0x1f08] sm:$0xff]
    %v3241 = vld [vmem:[%s3 + $0x1f10] sm:$0xff]
    %v3242 = vld [vmem:[%s3 + $0x1f18] sm:$0xff]
    %v3243 = vld [vmem:[%s3 + $0x1f20] sm:$0xff]
    %v3244 = vld [vmem:[%s3 + $0x1f28] sm:$0xff]
    %v3245 = vld [vmem:[%s3 + $0x1f30] sm:$0xff]
    %v3246 = vld [vmem:[%s3 + $0x1f38] sm:$0xff]
    %v3247 = vld [vmem:[%s3 + $0x1f40] sm:$0xff]
    %v3248 = vld [vmem:[%s3 + $0x1f48] sm:$0xff]
    %v3249 = vld [vmem:[%s3 + $0x1f50] sm:$0xff]
    %v3250 = vld [vmem:[%s3 + $0x1f58] sm:$0xff]
    %v3251 = vld [vmem:[%s3 + $0x1f60] sm:$0xff]
    %v3252 = vld [vmem:[%s3 + $0x1f68] sm:$0xff]
    %v3253 = vld [vmem:[%s3 + $0x1f70] sm:$0xff]
    %v3254 = vld [vmem:[%s3 + $0x1f78] sm:$0xff]
    %v3255 = vld [vmem:[%s3 + $0x1f80] sm:$0xff]
    %v3256 = vld [vmem:[%s3 + $0x1f88] sm:$0xff]
    %v3257 = vld [vmem:[%s3 + $0x1f90] sm:$0xff]
    %v3258 = vld [vmem:[%s3 + $0x1f98] sm:$0xff]
    %v3259 = vld [vmem:[%s3 + $0x1fa0] sm:$0xff]
    %v3260 = vld [vmem:[%s3 + $0x1fa8] sm:$0xff]
    %v3261 = vld [vmem:[%s3 + $0x1fb0] sm:$0xff]
    %v3262 = vld [vmem:[%s3 + $0x1fb8] sm:$0xff]
    %v3263 = vld [vmem:[%s3 + $0x1fc0] sm:$0xff]
    %v3264 = vld [vmem:[%s3 + $0x1fc8] sm:$0xff]
    %v3265 = vld [vmem:[%s3 + $0x1fd0] sm:$0xff]
    %v3266 = vld [vmem:[%s3 + $0x1fd8] sm:$0xff]
    %v3267 = vld [vmem:[%s3 + $0x1fe0] sm:$0xff]
    %v3268 = vld [vmem:[%s3 + $0x1fe8] sm:$0xff]
    %v3269 = vld [vmem:[%s3 + $0x1ff0] sm:$0xff]
    %v3270 = vld [vmem:[%s3 + $0x1ff8] sm:$0xff]
    %v3271 = vld [vmem:[%s3 + $0x2000] sm:$0xff]
    %v3272 = vld [vmem:[%s3 + $0x2008] sm:$0xff]
    %v3273 = vld [vmem:[%s3 + $0x2010] sm:$0xff]
    %v3274 = vld [vmem:[%s3 + $0x2018] sm:$0xff]
    %v3275 = vld [vmem:[%s3 + $0x2020] sm:$0xff]
    %v3276 = vld [vmem:[%s3 + $0x2028] sm:$0xff]
    %v3277 = vld [vmem:[%s3 + $0x2030] sm:$0xff]
    %v3278 = vld [vmem:[%s3 + $0x2038] sm:$0xff]
    %v3279 = vld [vmem:[%s3 + $0x2040] sm:$0xff]
    %v3280 = vld [vmem:[%s3 + $0x2048] sm:$0xff]
    %v3281 = vld [vmem:[%s3 + $0x2050] sm:$0xff]
    %v3282 = vld [vmem:[%s3 + $0x2058] sm:$0xff]
    %v3283 = vld [vmem:[%s3 + $0x2060] sm:$0xff]
    %v3284 = vld [vmem:[%s3 + $0x2068] sm:$0xff]
    %v3285 = vld [vmem:[%s3 + $0x2070] sm:$0xff]
    %v3286 = vld [vmem:[%s3 + $0x2078] sm:$0xff]
    %v3287 = vld [vmem:[%s3 + $0x2080] sm:$0xff]
    %v3288 = vld [vmem:[%s3 + $0x2088] sm:$0xff]
    %v3289 = vld [vmem:[%s3 + $0x2090] sm:$0xff]
    %v3290 = vld [vmem:[%s3 + $0x2098] sm:$0xff]
    %v3291 = vld [vmem:[%s3 + $0x20a0] sm:$0xff]
    %v3292 = vld [vmem:[%s3 + $0x20a8] sm:$0xff]
    %v3293 = vld [vmem:[%s3 + $0x20b0] sm:$0xff]
    %v3294 = vld [vmem:[%s3 + $0x20b8] sm:$0xff]
    %v3295 = vld [vmem:[%s3 + $0x20c0] sm:$0xff]
    %v3296 = vld [vmem:[%s3 + $0x20c8] sm:$0xff]
    %v3297 = vld [vmem:[%s3 + $0x20d0] sm:$0xff]
    %v3298 = vld [vmem:[%s3 + $0x20d8] sm:$0xff]
    %v3299 = vld [vmem:[%s3 + $0x20e0] sm:$0xff]
    %v3300 = vld [vmem:[%s3 + $0x20e8] sm:$0xff]
    %v3301 = vld [vmem:[%s3 + $0x20f0] sm:$0xff]
    %v3302 = vld [vmem:[%s3 + $0x20f8] sm:$0xff]
    %v3303 = vld [vmem:[%s3 + $0x2100] sm:$0xff]
    %v3304 = vld [vmem:[%s3 + $0x2108] sm:$0xff]
    %v3305 = vld [vmem:[%s3 + $0x2110] sm:$0xff]
    %v3306 = vld [vmem:[%s3 + $0x2118] sm:$0xff]
    %v3307 = vld [vmem:[%s3 + $0x2120] sm:$0xff]
    %v3308 = vld [vmem:[%s3 + $0x2128] sm:$0xff]
    %v3309 = vld [vmem:[%s3 + $0x2130] sm:$0xff]
    %v3310 = vld [vmem:[%s3 + $0x2138] sm:$0xff]
    %v3311 = vld [vmem:[%s3 + $0x2140] sm:$0xff]
    %v3312 = vld [vmem:[%s3 + $0x2148] sm:$0xff]
    %v3313 = vld [vmem:[%s3 + $0x2150] sm:$0xff]
    %v3314 = vld [vmem:[%s3 + $0x2158] sm:$0xff]
    %v3315 = vld [vmem:[%s3 + $0x2160] sm:$0xff]
    %v3316 = vld [vmem:[%s3 + $0x2168] sm:$0xff]
    %v3317 = vld [vmem:[%s3 + $0x2170] sm:$0xff]
    %v3318 = vld [vmem:[%s3 + $0x2178] sm:$0xff]
    %v3319 = vld [vmem:[%s3 + $0x2180] sm:$0xff]
    %v3320 = vld [vmem:[%s3 + $0x2188] sm:$0xff]
    %v3321 = vld [vmem:[%s3 + $0x2190] sm:$0xff]
    %v3322 = vld [vmem:[%s3 + $0x2198] sm:$0xff]
    %v3323 = vld [vmem:[%s3 + $0x21a0] sm:$0xff]
    %v3324 = vld [vmem:[%s3 + $0x21a8] sm:$0xff]
    %v3325 = vld [vmem:[%s3 + $0x21b0] sm:$0xff]
    %v3326 = vld [vmem:[%s3 + $0x21b8] sm:$0xff]
    %v3327 = vld [vmem:[%s3 + $0x21c0] sm:$0xff]
    %v3328 = vld [vmem:[%s3 + $0x21c8] sm:$0xff]
    %v3329 = vld [vmem:[%s3 + $0x21d0] sm:$0xff]
    %v3330 = vld [vmem:[%s3 + $0x21d8] sm:$0xff]
    %v3331 = vld [vmem:[%s3 + $0x21e0] sm:$0xff]
    %v3332 = vld [vmem:[%s3 + $0x21e8] sm:$0xff]
    %v3333 = vld [vmem:[%s3 + $0x21f0] sm:$0xff]
    %v3334 = vld [vmem:[%s3 + $0x21f8] sm:$0xff]
    %v3335 = vld [vmem:[%s3 + $0x2200] sm:$0xff]
    %v3336 = vld [vmem:[%s3 + $0x2208] sm:$0xff]
    %v3337 = vld [vmem:[%s3 + $0x2210] sm:$0xff]
    %v3338 = vld [vmem:[%s3 + $0x2218] sm:$0xff]
    %v3339 = vld [vmem:[%s3 + $0x2220] sm:$0xff]
    %v3340 = vld [vmem:[%s3 + $0x2228] sm:$0xff]
    %v3341 = vld [vmem:[%s3 + $0x2230] sm:$0xff]
    %v3342 = vld [vmem:[%s3 + $0x2238] sm:$0xff]
    %v3343 = vld [vmem:[%s3 + $0x2240] sm:$0xff]
    %v3344 = vld [vmem:[%s3 + $0x2248] sm:$0xff]
    %v3345 = vld [vmem:[%s3 + $0x2250] sm:$0xff]
    %v3346 = vld [vmem:[%s3 + $0x2258] sm:$0xff]
    %v3347 = vld [vmem:[%s3 + $0x2260] sm:$0xff]
    %v3348 = vld [vmem:[%s3 + $0x2268] sm:$0xff]
    %v3349 = vld [vmem:[%s3 + $0x2270] sm:$0xff]
    %v3350 = vld [vmem:[%s3 + $0x2278] sm:$0xff]
    %v3351 = vld [vmem:[%s3 + $0x2280] sm:$0xff]
    %v3352 = vld [vmem:[%s3 + $0x2288] sm:$0xff]
    %v3353 = vld [vmem:[%s3 + $0x2290] sm:$0xff]
    %v3354 = vld [vmem:[%s3 + $0x2298] sm:$0xff]
    %v3355 = vld [vmem:[%s3 + $0x22a0] sm:$0xff]
    %v3356 = vld [vmem:[%s3 + $0x22a8] sm:$0xff]
    %v3357 = vld [vmem:[%s3 + $0x22b0] sm:$0xff]
    %v3358 = vld [vmem:[%s3 + $0x22b8] sm:$0xff]
    %v3359 = vld [vmem:[%s3 + $0x22c0] sm:$0xff]
    %v3360 = vld [vmem:[%s3 + $0x22c8] sm:$0xff]
    %v3361 = vld [vmem:[%s3 + $0x22d0] sm:$0xff]
    %v3362 = vld [vmem:[%s3 + $0x22d8] sm:$0xff]
    %v3363 = vld [vmem:[%s3 + $0x22e0] sm:$0xff]
    %v3364 = vld [vmem:[%s3 + $0x22e8] sm:$0xff]
    %v3365 = vld [vmem:[%s3 + $0x22f0] sm:$0xff]
    %v3366 = vld [vmem:[%s3 + $0x22f8] sm:$0xff]
    %v3367 = vld [vmem:[%s3 + $0x2300] sm:$0xff]
    %v3368 = vld [vmem:[%s3 + $0x2308] sm:$0xff]
    %v3369 = vld [vmem:[%s3 + $0x2310] sm:$0xff]
    %v3370 = vld [vmem:[%s3 + $0x2318] sm:$0xff]
    %v3371 = vld [vmem:[%s3 + $0x2320] sm:$0xff]
    %v3372 = vld [vmem:[%s3 + $0x2328] sm:$0xff]
    %v3373 = vld [vmem:[%s3 + $0x2330] sm:$0xff]
    %v3374 = vld [vmem:[%s3 + $0x2338] sm:$0xff]
    %v3375 = vld [vmem:[%s3 + $0x2340] sm:$0xff]
    %v3376 = vld [vmem:[%s3 + $0x2348] sm:$0xff]
    %v3377 = vld [vmem:[%s3 + $0x2350] sm:$0xff]
    %v3378 = vld [vmem:[%s3 + $0x2358] sm:$0xff]
    %v3379 = vld [vmem:[%s3 + $0x2360] sm:$0xff]
    %v3380 = vld [vmem:[%s3 + $0x2368] sm:$0xff]
    %v3381 = vld [vmem:[%s3 + $0x2370] sm:$0xff]
    %v3382 = vld [vmem:[%s3 + $0x2378] sm:$0xff]
    %v3383 = vld [vmem:[%s3 + $0x2380] sm:$0xff]
    %v3384 = vld [vmem:[%s3 + $0x2388] sm:$0xff]
    %v3385 = vld [vmem:[%s3 + $0x2390] sm:$0xff]
    %v3386 = vld [vmem:[%s3 + $0x2398] sm:$0xff]
    %v3387 = vld [vmem:[%s3 + $0x23a0] sm:$0xff]
    %v3388 = vld [vmem:[%s3 + $0x23a8] sm:$0xff]
    %v3389 = vld [vmem:[%s3 + $0x23b0] sm:$0xff]
    %v3390 = vld [vmem:[%s3 + $0x23b8] sm:$0xff]
    %v3391 = vld [vmem:[%s3 + $0x23c0] sm:$0xff]
    %v3392 = vld [vmem:[%s3 + $0x23c8] sm:$0xff]
    %v3393 = vld [vmem:[%s3 + $0x23d0] sm:$0xff]
    %v3394 = vld [vmem:[%s3 + $0x23d8] sm:$0xff]
    %v3395 = vld [vmem:[%s3 + $0x23e0] sm:$0xff]
    %v3396 = vld [vmem:[%s3 + $0x23e8] sm:$0xff]
    %v3397 = vld [vmem:[%s3 + $0x23f0] sm:$0xff]
    %v3398 = vld [vmem:[%s3 + $0x23f8] sm:$0xff]
    %v3399 = vld [vmem:[%s3 + $0x2400] sm:$0xff]
    %v3400 = vld [vmem:[%s3 + $0x2408] sm:$0xff]
    %v3401 = vld [vmem:[%s3 + $0x2410] sm:$0xff]
    %v3402 = vld [vmem:[%s3 + $0x2418] sm:$0xff]
    %v3403 = vld [vmem:[%s3 + $0x2420] sm:$0xff]
    %v3404 = vld [vmem:[%s3 + $0x2428] sm:$0xff]
    %v3405 = vld [vmem:[%s3 + $0x2430] sm:$0xff]
    %v3406 = vld [vmem:[%s3 + $0x2438] sm:$0xff]
    %v3407 = vld [vmem:[%s3 + $0x2440] sm:$0xff]
    %v3408 = vld [vmem:[%s3 + $0x2448] sm:$0xff]
    %v3409 = vld [vmem:[%s3 + $0x2450] sm:$0xff]
    %v3410 = vld [vmem:[%s3 + $0x2458] sm:$0xff]
    %v3411 = vld [vmem:[%s3 + $0x2460] sm:$0xff]
    %v3412 = vld [vmem:[%s3 + $0x2468] sm:$0xff]
    %v3413 = vld [vmem:[%s3 + $0x2470] sm:$0xff]
    %v3414 = vld [vmem:[%s3 + $0x2478] sm:$0xff]
    %v3415 = vld [vmem:[%s3 + $0x2480] sm:$0xff]
    %v3416 = vld [vmem:[%s3 + $0x2488] sm:$0xff]
    %v3417 = vld [vmem:[%s3 + $0x2490] sm:$0xff]
    %v3418 = vld [vmem:[%s3 + $0x2498] sm:$0xff]
    %v3419 = vld [vmem:[%s3 + $0x24a0] sm:$0xff]
    %v3420 = vld [vmem:[%s3 + $0x24a8] sm:$0xff]
    %v3421 = vld [vmem:[%s3 + $0x24b0] sm:$0xff]
    %v3422 = vld [vmem:[%s3 + $0x24b8] sm:$0xff]
    %v3423 = vld [vmem:[%s3 + $0x24c0] sm:$0xff]
    %v3424 = vld [vmem:[%s3 + $0x24c8] sm:$0xff]
    %v3425 = vld [vmem:[%s3 + $0x24d0] sm:$0xff]
    %v3426 = vld [vmem:[%s3 + $0x24d8] sm:$0xff]
    %v3427 = vld [vmem:[%s3 + $0x24e0] sm:$0xff]
    %v3428 = vld [vmem:[%s3 + $0x24e8] sm:$0xff]
    %v3429 = vld [vmem:[%s3 + $0x24f0] sm:$0xff]
    %v3430 = vld [vmem:[%s3 + $0x24f8] sm:$0xff]
    %v3431 = vld [vmem:[%s3 + $0x2500] sm:$0xff]
    %v3432 = vld [vmem:[%s3 + $0x2508] sm:$0xff]
    %v3433 = vld [vmem:[%s3 + $0x2510] sm:$0xff]
    %v3434 = vld [vmem:[%s3 + $0x2518] sm:$0xff]
    %v3435 = vld [vmem:[%s3 + $0x2520] sm:$0xff]
    %v3436 = vld [vmem:[%s3 + $0x2528] sm:$0xff]
    %v3437 = vld [vmem:[%s3 + $0x2530] sm:$0xff]
    %v3438 = vld [vmem:[%s3 + $0x2538] sm:$0xff]
    %v3439 = vld [vmem:[%s3 + $0x2540] sm:$0xff]
    %v3440 = vld [vmem:[%s3 + $0x2548] sm:$0xff]
    %v3441 = vld [vmem:[%s3 + $0x2550] sm:$0xff]
    %v3442 = vld [vmem:[%s3 + $0x2558] sm:$0xff]
    %v3443 = vld [vmem:[%s3 + $0x2560] sm:$0xff]
    %v3444 = vld [vmem:[%s3 + $0x2568] sm:$0xff]
    %v3445 = vld [vmem:[%s3 + $0x2570] sm:$0xff]
    %v3446 = vld [vmem:[%s3 + $0x2578] sm:$0xff]
    %v3447 = vld [vmem:[%s3 + $0x2580] sm:$0xff]
    %v3448 = vld [vmem:[%s3 + $0x2588] sm:$0xff]
    %v3449 = vld [vmem:[%s3 + $0x2590] sm:$0xff]
    %v3450 = vld [vmem:[%s3 + $0x2598] sm:$0xff]
    %v3451 = vld [vmem:[%s3 + $0x25a0] sm:$0xff]
    %v3452 = vld [vmem:[%s3 + $0x25a8] sm:$0xff]
    %v3453 = vld [vmem:[%s3 + $0x25b0] sm:$0xff]
    %v3454 = vld [vmem:[%s3 + $0x25b8] sm:$0xff]
    %v3455 = vld [vmem:[%s3 + $0x25c0] sm:$0xff]
    %v3456 = vld [vmem:[%s3 + $0x25c8] sm:$0xff]
    %v3457 = vld [vmem:[%s3 + $0x25d0] sm:$0xff]
    %v3458 = vld [vmem:[%s3 + $0x25d8] sm:$0xff]
    %v3459 = vld [vmem:[%s3 + $0x25e0] sm:$0xff]
    %v3460 = vld [vmem:[%s3 + $0x25e8] sm:$0xff]
    %v3461 = vld [vmem:[%s3 + $0x25f0] sm:$0xff]
    %v3462 = vld [vmem:[%s3 + $0x25f8] sm:$0xff]
    %v3463 = vld [vmem:[%s3 + $0x2600] sm:$0xff]
    %v3464 = vld [vmem:[%s3 + $0x2608] sm:$0xff]
    %v3465 = vld [vmem:[%s3 + $0x2610] sm:$0xff]
    %v3466 = vld [vmem:[%s3 + $0x2618] sm:$0xff]
    %v3467 = vld [vmem:[%s3 + $0x2620] sm:$0xff]
    %v3468 = vld [vmem:[%s3 + $0x2628] sm:$0xff]
    %v3469 = vld [vmem:[%s3 + $0x2630] sm:$0xff]
    %v3470 = vld [vmem:[%s3 + $0x2638] sm:$0xff]
    %v3471 = vld [vmem:[%s3 + $0x2640] sm:$0xff]
    %v3472 = vld [vmem:[%s3 + $0x2648] sm:$0xff]
    %v3473 = vld [vmem:[%s3 + $0x2650] sm:$0xff]
    %v3474 = vld [vmem:[%s3 + $0x2658] sm:$0xff]
    %v3475 = vld [vmem:[%s3 + $0x2660] sm:$0xff]
    %v3476 = vld [vmem:[%s3 + $0x2668] sm:$0xff]
    %v3477 = vld [vmem:[%s3 + $0x2670] sm:$0xff]
    %v3478 = vld [vmem:[%s3 + $0x2678] sm:$0xff]
    %v3479 = vld [vmem:[%s3 + $0x2680] sm:$0xff]
    %v3480 = vld [vmem:[%s3 + $0x2688] sm:$0xff]
    %v3481 = vld [vmem:[%s3 + $0x2690] sm:$0xff]
    %v3482 = vld [vmem:[%s3 + $0x2698] sm:$0xff]
    %v3483 = vld [vmem:[%s3 + $0x26a0] sm:$0xff]
    %v3484 = vld [vmem:[%s3 + $0x26a8] sm:$0xff]
    %v3485 = vld [vmem:[%s3 + $0x26b0] sm:$0xff]
    %v3486 = vld [vmem:[%s3 + $0x26b8] sm:$0xff]
    %v3487 = vld [vmem:[%s3 + $0x26c0] sm:$0xff]
    %v3488 = vld [vmem:[%s3 + $0x26c8] sm:$0xff]
    %v3489 = vld [vmem:[%s3 + $0x26d0] sm:$0xff]
    %v3490 = vld [vmem:[%s3 + $0x26d8] sm:$0xff]
    %v3491 = vld [vmem:[%s3 + $0x26e0] sm:$0xff]
    %v3492 = vld [vmem:[%s3 + $0x26e8] sm:$0xff]
    %v3493 = vld [vmem:[%s3 + $0x26f0] sm:$0xff]
    %v3494 = vld [vmem:[%s3 + $0x26f8] sm:$0xff]
    %v3495 = vld [vmem:[%s3 + $0x2700] sm:$0xff]
    %v3496 = vld [vmem:[%s3 + $0x2708] sm:$0xff]
    %v3497 = vld [vmem:[%s3 + $0x2710] sm:$0xff]
    %v3498 = vld [vmem:[%s3 + $0x2718] sm:$0xff]
    %v3499 = vld [vmem:[%s3 + $0x2720] sm:$0xff]
    %v3500 = vld [vmem:[%s3 + $0x2728] sm:$0xff]
    %v3501 = vld [vmem:[%s3 + $0x2730] sm:$0xff]
    %v3502 = vld [vmem:[%s3 + $0x2738] sm:$0xff]
    %v3503 = vld [vmem:[%s3 + $0x2740] sm:$0xff]
    %v3504 = vld [vmem:[%s3 + $0x2748] sm:$0xff]
    %v3505 = vld [vmem:[%s3 + $0x2750] sm:$0xff]
    %v3506 = vld [vmem:[%s3 + $0x2758] sm:$0xff]
    %v3507 = vld [vmem:[%s3 + $0x2760] sm:$0xff]
    %v3508 = vld [vmem:[%s3 + $0x2768] sm:$0xff]
    %v3509 = vld [vmem:[%s3 + $0x2770] sm:$0xff]
    %v3510 = vld [vmem:[%s3 + $0x2778] sm:$0xff]
    %v3511 = vld [vmem:[%s3 + $0x2780] sm:$0xff]
    %v3512 = vld [vmem:[%s3 + $0x2788] sm:$0xff]
    %v3513 = vld [vmem:[%s3 + $0x2790] sm:$0xff]
    %v3514 = vld [vmem:[%s3 + $0x2798] sm:$0xff]
    %v3515 = vld [vmem:[%s3 + $0x27a0] sm:$0xff]
    %v3516 = vld [vmem:[%s3 + $0x27a8] sm:$0xff]
    %v3517 = vld [vmem:[%s3 + $0x27b0] sm:$0xff]
    %v3518 = vld [vmem:[%s3 + $0x27b8] sm:$0xff]
    %v3519 = vld [vmem:[%s3 + $0x27c0] sm:$0xff]
    %v3520 = vld [vmem:[%s3 + $0x27c8] sm:$0xff]
    %v3521 = vld [vmem:[%s3 + $0x27d0] sm:$0xff]
    %v3522 = vld [vmem:[%s3 + $0x27d8] sm:$0xff]
    %v3523 = vld [vmem:[%s3 + $0x27e0] sm:$0xff]
    %v3524 = vld [vmem:[%s3 + $0x27e8] sm:$0xff]
    %v3525 = vld [vmem:[%s3 + $0x27f0] sm:$0xff]
    %v3526 = vld [vmem:[%s3 + $0x27f8] sm:$0xff]
    %v3527 = vld [vmem:[%s3 + $0x2800] sm:$0xff]
    %v3528 = vld [vmem:[%s3 + $0x2808] sm:$0xff]
    %v3529 = vld [vmem:[%s3 + $0x2810] sm:$0xff]
    %v3530 = vld [vmem:[%s3 + $0x2818] sm:$0xff]
    %v3531 = vld [vmem:[%s3 + $0x2820] sm:$0xff]
    %v3532 = vld [vmem:[%s3 + $0x2828] sm:$0xff]
    %v3533 = vld [vmem:[%s3 + $0x2830] sm:$0xff]
    %v3534 = vld [vmem:[%s3 + $0x2838] sm:$0xff]
    %v3535 = vld [vmem:[%s3 + $0x2840] sm:$0xff]
    %v3536 = vld [vmem:[%s3 + $0x2848] sm:$0xff]
    %v3537 = vld [vmem:[%s3 + $0x2850] sm:$0xff]
    %v3538 = vld [vmem:[%s3 + $0x2858] sm:$0xff]
    %v3539 = vld [vmem:[%s3 + $0x2860] sm:$0xff]
    %v3540 = vld [vmem:[%s3 + $0x2868] sm:$0xff]
    %v3541 = vld [vmem:[%s3 + $0x2870] sm:$0xff]
    %v3542 = vld [vmem:[%s3 + $0x2878] sm:$0xff]
    %v3543 = vld [vmem:[%s3 + $0x2880] sm:$0xff]
    %v3544 = vld [vmem:[%s3 + $0x2888] sm:$0xff]
    %v3545 = vld [vmem:[%s3 + $0x2890] sm:$0xff]
    %v3546 = vld [vmem:[%s3 + $0x2898] sm:$0xff]
    %v3547 = vld [vmem:[%s3 + $0x28a0] sm:$0xff]
    %v3548 = vld [vmem:[%s3 + $0x28a8] sm:$0xff]
    %v3549 = vld [vmem:[%s3 + $0x28b0] sm:$0xff]
    %v3550 = vld [vmem:[%s3 + $0x28b8] sm:$0xff]
    %v3551 = vld [vmem:[%s3 + $0x28c0] sm:$0xff]
    %v3552 = vld [vmem:[%s3 + $0x28c8] sm:$0xff]
    %v3553 = vld [vmem:[%s3 + $0x28d0] sm:$0xff]
    %v3554 = vld [vmem:[%s3 + $0x28d8] sm:$0xff]
    %v3555 = vld [vmem:[%s3 + $0x28e0] sm:$0xff]
    %v3556 = vld [vmem:[%s3 + $0x28e8] sm:$0xff]
    %v3557 = vld [vmem:[%s3 + $0x28f0] sm:$0xff]
    %v3558 = vld [vmem:[%s3 + $0x28f8] sm:$0xff]
    %v3559 = vld [vmem:[%s3 + $0x2900] sm:$0xff]
    %v3560 = vld [vmem:[%s3 + $0x2908] sm:$0xff]
    %v3561 = vld [vmem:[%s3 + $0x2910] sm:$0xff]
    %v3562 = vld [vmem:[%s3 + $0x2918] sm:$0xff]
    %v3563 = vld [vmem:[%s3 + $0x2920] sm:$0xff]
    %v3564 = vld [vmem:[%s3 + $0x2928] sm:$0xff]
    %v3565 = vld [vmem:[%s3 + $0x2930] sm:$0xff]
    %v3566 = vld [vmem:[%s3 + $0x2938] sm:$0xff]
    %v3567 = vld [vmem:[%s3 + $0x2940] sm:$0xff]
    %v3568 = vld [vmem:[%s3 + $0x2948] sm:$0xff]
    %v3569 = vld [vmem:[%s3 + $0x2950] sm:$0xff]
    %v3570 = vld [vmem:[%s3 + $0x2958] sm:$0xff]
    %v3571 = vld [vmem:[%s3 + $0x2960] sm:$0xff]
    %v3572 = vld [vmem:[%s3 + $0x2968] sm:$0xff]
    %v3573 = vld [vmem:[%s3 + $0x2970] sm:$0xff]
    %v3574 = vld [vmem:[%s3 + $0x2978] sm:$0xff]
    %v3575 = vld [vmem:[%s3 + $0x2980] sm:$0xff]
    %v3576 = vld [vmem:[%s3 + $0x2988] sm:$0xff]
    %v3577 = vld [vmem:[%s3 + $0x2990] sm:$0xff]
    %v3578 = vld [vmem:[%s3 + $0x2998] sm:$0xff]
    %v3579 = vld [vmem:[%s3 + $0x29a0] sm:$0xff]
    %v3580 = vld [vmem:[%s3 + $0x29a8] sm:$0xff]
    %v3581 = vld [vmem:[%s3 + $0x29b0] sm:$0xff]
    %v3582 = vld [vmem:[%s3 + $0x29b8] sm:$0xff]
    %v3583 = vld [vmem:[%s3 + $0x29c0] sm:$0xff]
    %v3584 = vld [vmem:[%s3 + $0x29c8] sm:$0xff]
    %v3585 = vld [vmem:[%s3 + $0x29d0] sm:$0xff]
    %v3586 = vld [vmem:[%s3 + $0x29d8] sm:$0xff]
    %v3587 = vld [vmem:[%s3 + $0x29e0] sm:$0xff]
    %v3588 = vld [vmem:[%s3 + $0x29e8] sm:$0xff]
    %v3589 = vld [vmem:[%s3 + $0x29f0] sm:$0xff]
    %v3590 = vld [vmem:[%s3 + $0x29f8] sm:$0xff]
    %v3591 = vld [vmem:[%s3 + $0x2a00] sm:$0xff]
    %v3592 = vld [vmem:[%s3 + $0x2a08] sm:$0xff]
    %v3593 = vld [vmem:[%s3 + $0x2a10] sm:$0xff]
    %v3594 = vld [vmem:[%s3 + $0x2a18] sm:$0xff]
    %v3595 = vld [vmem:[%s3 + $0x2a20] sm:$0xff]
    %v3596 = vld [vmem:[%s3 + $0x2a28] sm:$0xff]
    %v3597 = vld [vmem:[%s3 + $0x2a30] sm:$0xff]
    %v3598 = vld [vmem:[%s3 + $0x2a38] sm:$0xff]
    %v3599 = vld [vmem:[%s3 + $0x2a40] sm:$0xff]
    %v3600 = vld [vmem:[%s3 + $0x2a48] sm:$0xff]
    %v3601 = vld [vmem:[%s3 + $0x2a50] sm:$0xff]
    %v3602 = vld [vmem:[%s3 + $0x2a58] sm:$0xff]
    %v3603 = vld [vmem:[%s3 + $0x2a60] sm:$0xff]
    %v3604 = vld [vmem:[%s3 + $0x2a68] sm:$0xff]
    %v3605 = vld [vmem:[%s3 + $0x2a70] sm:$0xff]
    %v3606 = vld [vmem:[%s3 + $0x2a78] sm:$0xff]
    %v3607 = vld [vmem:[%s3 + $0x2a80] sm:$0xff]
    %v3608 = vld [vmem:[%s3 + $0x2a88] sm:$0xff]
    %v3609 = vld [vmem:[%s3 + $0x2a90] sm:$0xff]
    %v3610 = vld [vmem:[%s3 + $0x2a98] sm:$0xff]
    %v3611 = vld [vmem:[%s3 + $0x2aa0] sm:$0xff]
    %v3612 = vld [vmem:[%s3 + $0x2aa8] sm:$0xff]
    %v3613 = vld [vmem:[%s3 + $0x2ab0] sm:$0xff]
    %v3614 = vld [vmem:[%s3 + $0x2ab8] sm:$0xff]
    %v3615 = vld [vmem:[%s3 + $0x2ac0] sm:$0xff]
    %v3616 = vld [vmem:[%s3 + $0x2ac8] sm:$0xff]
    %v3617 = vld [vmem:[%s3 + $0x2ad0] sm:$0xff]
    %v3618 = vld [vmem:[%s3 + $0x2ad8] sm:$0xff]
    %v3619 = vld [vmem:[%s3 + $0x2ae0] sm:$0xff]
    %v3620 = vld [vmem:[%s3 + $0x2ae8] sm:$0xff]
    %v3621 = vld [vmem:[%s3 + $0x2af0] sm:$0xff]
    %v3622 = vld [vmem:[%s3 + $0x2af8] sm:$0xff]
    %v3623 = vld [vmem:[%s3 + $0x2b00] sm:$0xff]
    %v3624 = vld [vmem:[%s3 + $0x2b08] sm:$0xff]
    %v3625 = vld [vmem:[%s3 + $0x2b10] sm:$0xff]
    %v3626 = vld [vmem:[%s3 + $0x2b18] sm:$0xff]
    %v3627 = vld [vmem:[%s3 + $0x2b20] sm:$0xff]
    %v3628 = vld [vmem:[%s3 + $0x2b28] sm:$0xff]
    %v3629 = vld [vmem:[%s3 + $0x2b30] sm:$0xff]
    %v3630 = vld [vmem:[%s3 + $0x2b38] sm:$0xff]
    %v3631 = vld [vmem:[%s3 + $0x2b40] sm:$0xff]
    %v3632 = vld [vmem:[%s3 + $0x2b48] sm:$0xff]
    %v3633 = vld [vmem:[%s3 + $0x2b50] sm:$0xff]
    %v3634 = vld [vmem:[%s3 + $0x2b58] sm:$0xff]
    %v3635 = vld [vmem:[%s3 + $0x2b60] sm:$0xff]
    %v3636 = vld [vmem:[%s3 + $0x2b68] sm:$0xff]
    %v3637 = vld [vmem:[%s3 + $0x2b70] sm:$0xff]
    %v3638 = vld [vmem:[%s3 + $0x2b78] sm:$0xff]
    %v3639 = vld [vmem:[%s3 + $0x2b80] sm:$0xff]
    %v3640 = vld [vmem:[%s3 + $0x2b88] sm:$0xff]
    %v3641 = vld [vmem:[%s3 + $0x2b90] sm:$0xff]
    %v3642 = vld [vmem:[%s3 + $0x2b98] sm:$0xff]
    %v3643 = vld [vmem:[%s3 + $0x2ba0] sm:$0xff]
    %v3644 = vld [vmem:[%s3 + $0x2ba8] sm:$0xff]
    %v3645 = vld [vmem:[%s3 + $0x2bb0] sm:$0xff]
    %v3646 = vld [vmem:[%s3 + $0x2bb8] sm:$0xff]
    %v3647 = vld [vmem:[%s3 + $0x2bc0] sm:$0xff]
    %v3648 = vld [vmem:[%s3 + $0x2bc8] sm:$0xff]
    %v3649 = vld [vmem:[%s3 + $0x2bd0] sm:$0xff]
    %v3650 = vld [vmem:[%s3 + $0x2bd8] sm:$0xff]
    %v3651 = vld [vmem:[%s3 + $0x2be0] sm:$0xff]
    %v3652 = vld [vmem:[%s3 + $0x2be8] sm:$0xff]
    %v3653 = vld [vmem:[%s3 + $0x2bf0] sm:$0xff]
    %v3654 = vld [vmem:[%s3 + $0x2bf8] sm:$0xff]
    %v3655 = vld [vmem:[%s4] sm:$0xff]
    %v3657 = vlaneseq
    %v3658 = vshrl.u32 %v3657, 7
    %v3659 = vsub.s32 0, %v3658
    %v3660 = vrot.slane %v3655, %v3659
    %v3661 = vlaneseq
    %v3662 = vshrl.u32 %v3661, 7
    %v3663 = vsub.s32 1, %v3662
    %v3664 = vrot.slane %v3655, %v3663
    %v3665 = vlaneseq
    %v3666 = vshrl.u32 %v3665, 7
    %v3667 = vsub.s32 2, %v3666
    %v3668 = vrot.slane %v3655, %v3667
    %v3669 = vlaneseq
    %v3670 = vshrl.u32 %v3669, 7
    %v3671 = vsub.s32 3, %v3670
    %v3672 = vrot.slane %v3655, %v3671
    %v3673 = vlaneseq
    %v3674 = vshrl.u32 %v3673, 7
    %v3675 = vsub.s32 4, %v3674
    %v3676 = vrot.slane %v3655, %v3675
    %v3677 = vlaneseq
    %v3678 = vshrl.u32 %v3677, 7
    %v3679 = vsub.s32 5, %v3678
    %v3680 = vrot.slane %v3655, %v3679
    %v3681 = vlaneseq
    %v3682 = vshrl.u32 %v3681, 7
    %v3683 = vsub.s32 6, %v3682
    %v3684 = vrot.slane %v3655, %v3683
    %v3685 = vlaneseq
    %v3686 = vshrl.u32 %v3685, 7
    %v3687 = vsub.s32 7, %v3686
    %v3688 = vrot.slane %v3655, %v3687
    %v5105 = vunpack.c.l.b16 %v2247
    %v5106 = vunpack.c.h.b16 %v2247
    %v5107 = vunpack.c.l.b16 %v2248
    %v5108 = vunpack.c.h.b16 %v2248
    %v5109 = vunpack.c.l.b16 %v2249
    %v5110 = vunpack.c.h.b16 %v2249
    %v5111 = vunpack.c.l.b16 %v2250
    %v5112 = vunpack.c.h.b16 %v2250
    %v5113 = vunpack.c.l.b16 %v2251
    %v5114 = vunpack.c.h.b16 %v2251
    %v5115 = vunpack.c.l.b16 %v2252
    %v5116 = vunpack.c.h.b16 %v2252
    %v5117 = vunpack.c.l.b16 %v2253
    %v5118 = vunpack.c.h.b16 %v2253
    %v5119 = vunpack.c.l.b16 %v2254
    %v5120 = vunpack.c.h.b16 %v2254
    %v5121 = vunpack.c.l.b16 %v2255
    %v5122 = vunpack.c.h.b16 %v2255
    %v5123 = vunpack.c.l.b16 %v2256
    %v5124 = vunpack.c.h.b16 %v2256
    %v5125 = vunpack.c.l.b16 %v2257
    %v5126 = vunpack.c.h.b16 %v2257
    %v5127 = vunpack.c.l.b16 %v2258
    %v5128 = vunpack.c.h.b16 %v2258
    %v5129 = vunpack.c.l.b16 %v2259
    %v5130 = vunpack.c.h.b16 %v2259
    %v5131 = vunpack.c.l.b16 %v2260
    %v5132 = vunpack.c.h.b16 %v2260
    %v5133 = vunpack.c.l.b16 %v2261
    %v5134 = vunpack.c.h.b16 %v2261
    %v5135 = vunpack.c.l.b16 %v2262
    %v5136 = vunpack.c.h.b16 %v2262
    %v5137 = vunpack.c.l.b16 %v2263
    %v5138 = vunpack.c.h.b16 %v2263
    %v5139 = vunpack.c.l.b16 %v2264
    %v5140 = vunpack.c.h.b16 %v2264
    %v5141 = vunpack.c.l.b16 %v2265
    %v5142 = vunpack.c.h.b16 %v2265
    %v5143 = vunpack.c.l.b16 %v2266
    %v5144 = vunpack.c.h.b16 %v2266
    %v5145 = vunpack.c.l.b16 %v2267
    %v5146 = vunpack.c.h.b16 %v2267
    %v5147 = vunpack.c.l.b16 %v2268
    %v5148 = vunpack.c.h.b16 %v2268
    %v5149 = vunpack.c.l.b16 %v2269
    %v5150 = vunpack.c.h.b16 %v2269
    %v5151 = vunpack.c.l.b16 %v2270
    %v5152 = vunpack.c.h.b16 %v2270
    %v5153 = vunpack.c.l.b16 %v2271
    %v5154 = vunpack.c.h.b16 %v2271
    %v5155 = vunpack.c.l.b16 %v2272
    %v5156 = vunpack.c.h.b16 %v2272
    %v5157 = vunpack.c.l.b16 %v2273
    %v5158 = vunpack.c.h.b16 %v2273
    %v5159 = vunpack.c.l.b16 %v2274
    %v5160 = vunpack.c.h.b16 %v2274
    %v5161 = vunpack.c.l.b16 %v2275
    %v5162 = vunpack.c.h.b16 %v2275
    %v5163 = vunpack.c.l.b16 %v2276
    %v5164 = vunpack.c.h.b16 %v2276
    %v5165 = vunpack.c.l.b16 %v2277
    %v5166 = vunpack.c.h.b16 %v2277
    %v5167 = vunpack.c.l.b16 %v2278
    %v5168 = vunpack.c.h.b16 %v2278
    %v5169 = vunpack.c.l.b16 %v2279
    %v5170 = vunpack.c.h.b16 %v2279
    %v5171 = vunpack.c.l.b16 %v2280
    %v5172 = vunpack.c.h.b16 %v2280
    %v5173 = vunpack.c.l.b16 %v2281
    %v5174 = vunpack.c.h.b16 %v2281
    %v5175 = vunpack.c.l.b16 %v2282
    %v5176 = vunpack.c.h.b16 %v2282
    %v5177 = vunpack.c.l.b16 %v2283
    %v5178 = vunpack.c.h.b16 %v2283
    %v5179 = vunpack.c.l.b16 %v2284
    %v5180 = vunpack.c.h.b16 %v2284
    %v5181 = vunpack.c.l.b16 %v2285
    %v5182 = vunpack.c.h.b16 %v2285
    %v5183 = vunpack.c.l.b16 %v2286
    %v5184 = vunpack.c.h.b16 %v2286
    %v5185 = vunpack.c.l.b16 %v2287
    %v5186 = vunpack.c.h.b16 %v2287
    %v5187 = vunpack.c.l.b16 %v2288
    %v5188 = vunpack.c.h.b16 %v2288
    %v5189 = vunpack.c.l.b16 %v2289
    %v5190 = vunpack.c.h.b16 %v2289
    %v5191 = vunpack.c.l.b16 %v2290
    %v5192 = vunpack.c.h.b16 %v2290
    %v5193 = vunpack.c.l.b16 %v2291
    %v5194 = vunpack.c.h.b16 %v2291
    %v5195 = vunpack.c.l.b16 %v2292
    %v5196 = vunpack.c.h.b16 %v2292
    %v5197 = vunpack.c.l.b16 %v2293
    %v5198 = vunpack.c.h.b16 %v2293
    %v5199 = vunpack.c.l.b16 %v2294
    %v5200 = vunpack.c.h.b16 %v2294
    %v5201 = vunpack.c.l.b16 %v2295
    %v5202 = vunpack.c.h.b16 %v2295
    %v5203 = vunpack.c.l.b16 %v2296
    %v5204 = vunpack.c.h.b16 %v2296
    %v5205 = vunpack.c.l.b16 %v2297
    %v5206 = vunpack.c.h.b16 %v2297
    %v5207 = vunpack.c.l.b16 %v2298
    %v5208 = vunpack.c.h.b16 %v2298
    %v5209 = vunpack.c.l.b16 %v2299
    %v5210 = vunpack.c.h.b16 %v2299
    %v5211 = vunpack.c.l.b16 %v2300
    %v5212 = vunpack.c.h.b16 %v2300
    %v5213 = vunpack.c.l.b16 %v2301
    %v5214 = vunpack.c.h.b16 %v2301
    %v5215 = vunpack.c.l.b16 %v2302
    %v5216 = vunpack.c.h.b16 %v2302
    %v5217 = vunpack.c.l.b16 %v2303
    %v5218 = vunpack.c.h.b16 %v2303
    %v5219 = vunpack.c.l.b16 %v2304
    %v5220 = vunpack.c.h.b16 %v2304
    %v5221 = vunpack.c.l.b16 %v2305
    %v5222 = vunpack.c.h.b16 %v2305
    %v5223 = vunpack.c.l.b16 %v2306
    %v5224 = vunpack.c.h.b16 %v2306
    %v5225 = vunpack.c.l.b16 %v2307
    %v5226 = vunpack.c.h.b16 %v2307
    %v5227 = vunpack.c.l.b16 %v2308
    %v5228 = vunpack.c.h.b16 %v2308
    %v5229 = vunpack.c.l.b16 %v2309
    %v5230 = vunpack.c.h.b16 %v2309
    %v5231 = vunpack.c.l.b16 %v2310
    %v5232 = vunpack.c.h.b16 %v2310
    %v5233 = vunpack.c.l.b16 %v2311
    %v5234 = vunpack.c.h.b16 %v2311
    %v5235 = vunpack.c.l.b16 %v2312
    %v5236 = vunpack.c.h.b16 %v2312
    %v5237 = vunpack.c.l.b16 %v2313
    %v5238 = vunpack.c.h.b16 %v2313
    %v5239 = vunpack.c.l.b16 %v2314
    %v5240 = vunpack.c.h.b16 %v2314
    %v5241 = vunpack.c.l.b16 %v2315
    %v5242 = vunpack.c.h.b16 %v2315
    %v5243 = vunpack.c.l.b16 %v2316
    %v5244 = vunpack.c.h.b16 %v2316
    %v5245 = vunpack.c.l.b16 %v2317
    %v5246 = vunpack.c.h.b16 %v2317
    %v5247 = vunpack.c.l.b16 %v2318
    %v5248 = vunpack.c.h.b16 %v2318
    %v5249 = vunpack.c.l.b16 %v2319
    %v5250 = vunpack.c.h.b16 %v2319
    %v5251 = vunpack.c.l.b16 %v2320
    %v5252 = vunpack.c.h.b16 %v2320
    %v5253 = vunpack.c.l.b16 %v2321
    %v5254 = vunpack.c.h.b16 %v2321
    %v5255 = vunpack.c.l.b16 %v2322
    %v5256 = vunpack.c.h.b16 %v2322
    %v5257 = vunpack.c.l.b16 %v2323
    %v5258 = vunpack.c.h.b16 %v2323
    %v5259 = vunpack.c.l.b16 %v2324
    %v5260 = vunpack.c.h.b16 %v2324
    %v5261 = vunpack.c.l.b16 %v2325
    %v5262 = vunpack.c.h.b16 %v2325
    %v5263 = vunpack.c.l.b16 %v2326
    %v5264 = vunpack.c.h.b16 %v2326
    %v5265 = vunpack.c.l.b16 %v2327
    %v5266 = vunpack.c.h.b16 %v2327
    %v5267 = vunpack.c.l.b16 %v2328
    %v5268 = vunpack.c.h.b16 %v2328
    %v5269 = vunpack.c.l.b16 %v2329
    %v5270 = vunpack.c.h.b16 %v2329
    %v5271 = vunpack.c.l.b16 %v2330
    %v5272 = vunpack.c.h.b16 %v2330
    %v5273 = vunpack.c.l.b16 %v2331
    %v5274 = vunpack.c.h.b16 %v2331
    %v5275 = vunpack.c.l.b16 %v2332
    %v5276 = vunpack.c.h.b16 %v2332
    %v5277 = vunpack.c.l.b16 %v2333
    %v5278 = vunpack.c.h.b16 %v2333
    %v5279 = vunpack.c.l.b16 %v2334
    %v5280 = vunpack.c.h.b16 %v2334
    %v5281 = vunpack.c.l.b16 %v2335
    %v5282 = vunpack.c.h.b16 %v2335
    %v5283 = vunpack.c.l.b16 %v2336
    %v5284 = vunpack.c.h.b16 %v2336
    %v5285 = vunpack.c.l.b16 %v2337
    %v5286 = vunpack.c.h.b16 %v2337
    %v5287 = vunpack.c.l.b16 %v2338
    %v5288 = vunpack.c.h.b16 %v2338
    %v5289 = vunpack.c.l.b16 %v2339
    %v5290 = vunpack.c.h.b16 %v2339
    %v5291 = vunpack.c.l.b16 %v2340
    %v5292 = vunpack.c.h.b16 %v2340
    %v5293 = vunpack.c.l.b16 %v2341
    %v5294 = vunpack.c.h.b16 %v2341
    %v5295 = vunpack.c.l.b16 %v2342
    %v5296 = vunpack.c.h.b16 %v2342
    %v5297 = vunpack.c.l.b16 %v2343
    %v5298 = vunpack.c.h.b16 %v2343
    %v5299 = vunpack.c.l.b16 %v2344
    %v5300 = vunpack.c.h.b16 %v2344
    %v5301 = vunpack.c.l.b16 %v2345
    %v5302 = vunpack.c.h.b16 %v2345
    %v5303 = vunpack.c.l.b16 %v2346
    %v5304 = vunpack.c.h.b16 %v2346
    %v5305 = vunpack.c.l.b16 %v2347
    %v5306 = vunpack.c.h.b16 %v2347
    %v5307 = vunpack.c.l.b16 %v2348
    %v5308 = vunpack.c.h.b16 %v2348
    %v5309 = vunpack.c.l.b16 %v2349
    %v5310 = vunpack.c.h.b16 %v2349
    %v5311 = vunpack.c.l.b16 %v2350
    %v5312 = vunpack.c.h.b16 %v2350
    %v5313 = vunpack.c.l.b16 %v2351
    %v5314 = vunpack.c.h.b16 %v2351
    %v5315 = vunpack.c.l.b16 %v2352
    %v5316 = vunpack.c.h.b16 %v2352
    %v5317 = vunpack.c.l.b16 %v2353
    %v5318 = vunpack.c.h.b16 %v2353
    %v5319 = vunpack.c.l.b16 %v2354
    %v5320 = vunpack.c.h.b16 %v2354
    %v5321 = vunpack.c.l.b16 %v2355
    %v5322 = vunpack.c.h.b16 %v2355
    %v5323 = vunpack.c.l.b16 %v2356
    %v5324 = vunpack.c.h.b16 %v2356
    %v5325 = vunpack.c.l.b16 %v2357
    %v5326 = vunpack.c.h.b16 %v2357
    %v5327 = vunpack.c.l.b16 %v2358
    %v5328 = vunpack.c.h.b16 %v2358
    %v5329 = vunpack.c.l.b16 %v2359
    %v5330 = vunpack.c.h.b16 %v2359
    %v5331 = vunpack.c.l.b16 %v2360
    %v5332 = vunpack.c.h.b16 %v2360
    %v5333 = vunpack.c.l.b16 %v2361
    %v5334 = vunpack.c.h.b16 %v2361
    %v5335 = vunpack.c.l.b16 %v2362
    %v5336 = vunpack.c.h.b16 %v2362
    %v5337 = vunpack.c.l.b16 %v2363
    %v5338 = vunpack.c.h.b16 %v2363
    %v5339 = vunpack.c.l.b16 %v2364
    %v5340 = vunpack.c.h.b16 %v2364
    %v5341 = vunpack.c.l.b16 %v2365
    %v5342 = vunpack.c.h.b16 %v2365
    %v5343 = vunpack.c.l.b16 %v2366
    %v5344 = vunpack.c.h.b16 %v2366
    %v5345 = vunpack.c.l.b16 %v2367
    %v5346 = vunpack.c.h.b16 %v2367
    %v5347 = vunpack.c.l.b16 %v2368
    %v5348 = vunpack.c.h.b16 %v2368
    %v5349 = vunpack.c.l.b16 %v2369
    %v5350 = vunpack.c.h.b16 %v2369
    %v5351 = vunpack.c.l.b16 %v2370
    %v5352 = vunpack.c.h.b16 %v2370
    %v5353 = vunpack.c.l.b16 %v2371
    %v5354 = vunpack.c.h.b16 %v2371
    %v5355 = vunpack.c.l.b16 %v2372
    %v5356 = vunpack.c.h.b16 %v2372
    %v5357 = vunpack.c.l.b16 %v2373
    %v5358 = vunpack.c.h.b16 %v2373
    %v5359 = vunpack.c.l.b16 %v2374
    %v5360 = vunpack.c.h.b16 %v2374
    %v5361 = vunpack.c.l.b16 %v2375
    %v5362 = vunpack.c.h.b16 %v2375
    %v5363 = vunpack.c.l.b16 %v2376
    %v5364 = vunpack.c.h.b16 %v2376
    %v5365 = vunpack.c.l.b16 %v2377
    %v5366 = vunpack.c.h.b16 %v2377
    %v5367 = vunpack.c.l.b16 %v2378
    %v5368 = vunpack.c.h.b16 %v2378
    %v5369 = vunpack.c.l.b16 %v2379
    %v5370 = vunpack.c.h.b16 %v2379
    %v5371 = vunpack.c.l.b16 %v2380
    %v5372 = vunpack.c.h.b16 %v2380
    %v5373 = vunpack.c.l.b16 %v2381
    %v5374 = vunpack.c.h.b16 %v2381
    %v5375 = vunpack.c.l.b16 %v2382
    %v5376 = vunpack.c.h.b16 %v2382
    %v5377 = vunpack.c.l.b16 %v2383
    %v5378 = vunpack.c.h.b16 %v2383
    %v5379 = vunpack.c.l.b16 %v2384
    %v5380 = vunpack.c.h.b16 %v2384
    %v5381 = vunpack.c.l.b16 %v2385
    %v5382 = vunpack.c.h.b16 %v2385
    %v5383 = vunpack.c.l.b16 %v2386
    %v5384 = vunpack.c.h.b16 %v2386
    %v5385 = vunpack.c.l.b16 %v2387
    %v5386 = vunpack.c.h.b16 %v2387
    %v5387 = vunpack.c.l.b16 %v2388
    %v5388 = vunpack.c.h.b16 %v2388
    %v5389 = vunpack.c.l.b16 %v2389
    %v5390 = vunpack.c.h.b16 %v2389
    %v5391 = vunpack.c.l.b16 %v2390
    %v5392 = vunpack.c.h.b16 %v2390
    %v5393 = vunpack.c.l.b16 %v2391
    %v5394 = vunpack.c.h.b16 %v2391
    %v5395 = vunpack.c.l.b16 %v2392
    %v5396 = vunpack.c.h.b16 %v2392
    %v5397 = vunpack.c.l.b16 %v2393
    %v5398 = vunpack.c.h.b16 %v2393
    %v5399 = vunpack.c.l.b16 %v2394
    %v5400 = vunpack.c.h.b16 %v2394
    %v5401 = vunpack.c.l.b16 %v2395
    %v5402 = vunpack.c.h.b16 %v2395
    %v5403 = vunpack.c.l.b16 %v2396
    %v5404 = vunpack.c.h.b16 %v2396
    %v5405 = vunpack.c.l.b16 %v2397
    %v5406 = vunpack.c.h.b16 %v2397
    %v5407 = vunpack.c.l.b16 %v2398
    %v5408 = vunpack.c.h.b16 %v2398
    %v5409 = vunpack.c.l.b16 %v2399
    %v5410 = vunpack.c.h.b16 %v2399
    %v5411 = vunpack.c.l.b16 %v2400
    %v5412 = vunpack.c.h.b16 %v2400
    %v5413 = vunpack.c.l.b16 %v2401
    %v5414 = vunpack.c.h.b16 %v2401
    %v5415 = vunpack.c.l.b16 %v2402
    %v5416 = vunpack.c.h.b16 %v2402
    %v5417 = vunpack.c.l.b16 %v2403
    %v5418 = vunpack.c.h.b16 %v2403
    %v5419 = vunpack.c.l.b16 %v2404
    %v5420 = vunpack.c.h.b16 %v2404
    %v5421 = vunpack.c.l.b16 %v2405
    %v5422 = vunpack.c.h.b16 %v2405
    %v5423 = vunpack.c.l.b16 %v2406
    %v5424 = vunpack.c.h.b16 %v2406
    %v5425 = vunpack.c.l.b16 %v2407
    %v5426 = vunpack.c.h.b16 %v2407
    %v5427 = vunpack.c.l.b16 %v2408
    %v5428 = vunpack.c.h.b16 %v2408
    %v5429 = vunpack.c.l.b16 %v2409
    %v5430 = vunpack.c.h.b16 %v2409
    %v5431 = vunpack.c.l.b16 %v2410
    %v5432 = vunpack.c.h.b16 %v2410
    %v5433 = vunpack.c.l.b16 %v2411
    %v5434 = vunpack.c.h.b16 %v2411
    %v5435 = vunpack.c.l.b16 %v2412
    %v5436 = vunpack.c.h.b16 %v2412
    %v5437 = vunpack.c.l.b16 %v2413
    %v5438 = vunpack.c.h.b16 %v2413
    %v5439 = vunpack.c.l.b16 %v2414
    %v5440 = vunpack.c.h.b16 %v2414
    %v5441 = vunpack.c.l.b16 %v2415
    %v5442 = vunpack.c.h.b16 %v2415
    %v5443 = vunpack.c.l.b16 %v2416
    %v5444 = vunpack.c.h.b16 %v2416
    %v5445 = vunpack.c.l.b16 %v2417
    %v5446 = vunpack.c.h.b16 %v2417
    %v5447 = vunpack.c.l.b16 %v2418
    %v5448 = vunpack.c.h.b16 %v2418
    %v5449 = vunpack.c.l.b16 %v2419
    %v5450 = vunpack.c.h.b16 %v2419
    %v5451 = vunpack.c.l.b16 %v2420
    %v5452 = vunpack.c.h.b16 %v2420
    %v5453 = vunpack.c.l.b16 %v2421
    %v5454 = vunpack.c.h.b16 %v2421
    %v5455 = vunpack.c.l.b16 %v2422
    %v5456 = vunpack.c.h.b16 %v2422
    %v5457 = vunpack.c.l.b16 %v2423
    %v5458 = vunpack.c.h.b16 %v2423
    %v5459 = vunpack.c.l.b16 %v2424
    %v5460 = vunpack.c.h.b16 %v2424
    %v5461 = vunpack.c.l.b16 %v2425
    %v5462 = vunpack.c.h.b16 %v2425
    %v5463 = vunpack.c.l.b16 %v2426
    %v5464 = vunpack.c.h.b16 %v2426
    %v5465 = vunpack.c.l.b16 %v2427
    %v5466 = vunpack.c.h.b16 %v2427
    %v5467 = vunpack.c.l.b16 %v2428
    %v5468 = vunpack.c.h.b16 %v2428
    %v5469 = vunpack.c.l.b16 %v2429
    %v5470 = vunpack.c.h.b16 %v2429
    %v5471 = vunpack.c.l.b16 %v2430
    %v5472 = vunpack.c.h.b16 %v2430
    %v5473 = vunpack.c.l.b16 %v2431
    %v5474 = vunpack.c.h.b16 %v2431
    %v5475 = vunpack.c.l.b16 %v2432
    %v5476 = vunpack.c.h.b16 %v2432
    %v5477 = vunpack.c.l.b16 %v2433
    %v5478 = vunpack.c.h.b16 %v2433
    %v5479 = vunpack.c.l.b16 %v2434
    %v5480 = vunpack.c.h.b16 %v2434
    %v5481 = vunpack.c.l.b16 %v2435
    %v5482 = vunpack.c.h.b16 %v2435
    %v5483 = vunpack.c.l.b16 %v2436
    %v5484 = vunpack.c.h.b16 %v2436
    %v5485 = vunpack.c.l.b16 %v2437
    %v5486 = vunpack.c.h.b16 %v2437
    %v5487 = vunpack.c.l.b16 %v2438
    %v5488 = vunpack.c.h.b16 %v2438
    %v5489 = vunpack.c.l.b16 %v2439
    %v5490 = vunpack.c.h.b16 %v2439
    %v5491 = vunpack.c.l.b16 %v2440
    %v5492 = vunpack.c.h.b16 %v2440
    %v5493 = vunpack.c.l.b16 %v2441
    %v5494 = vunpack.c.h.b16 %v2441
    %v5495 = vunpack.c.l.b16 %v2442
    %v5496 = vunpack.c.h.b16 %v2442
    %v5497 = vunpack.c.l.b16 %v2443
    %v5498 = vunpack.c.h.b16 %v2443
    %v5499 = vunpack.c.l.b16 %v2444
    %v5500 = vunpack.c.h.b16 %v2444
    %v5501 = vunpack.c.l.b16 %v2445
    %v5502 = vunpack.c.h.b16 %v2445
    %v5503 = vunpack.c.l.b16 %v2446
    %v5504 = vunpack.c.h.b16 %v2446
    %v5505 = vunpack.c.l.b16 %v2447
    %v5506 = vunpack.c.h.b16 %v2447
    %v5507 = vunpack.c.l.b16 %v2448
    %v5508 = vunpack.c.h.b16 %v2448
    %v5509 = vunpack.c.l.b16 %v2449
    %v5510 = vunpack.c.h.b16 %v2449
    %v5511 = vunpack.c.l.b16 %v2450
    %v5512 = vunpack.c.h.b16 %v2450
    %v5513 = vunpack.c.l.b16 %v2451
    %v5514 = vunpack.c.h.b16 %v2451
    %v5515 = vunpack.c.l.b16 %v2452
    %v5516 = vunpack.c.h.b16 %v2452
    %v5517 = vunpack.c.l.b16 %v2453
    %v5518 = vunpack.c.h.b16 %v2453
    %v5519 = vunpack.c.l.b16 %v2454
    %v5520 = vunpack.c.h.b16 %v2454
    %v5521 = vunpack.c.l.b16 %v2455
    %v5522 = vunpack.c.h.b16 %v2455
    %v5523 = vunpack.c.l.b16 %v2456
    %v5524 = vunpack.c.h.b16 %v2456
    %v5525 = vunpack.c.l.b16 %v2457
    %v5526 = vunpack.c.h.b16 %v2457
    %v5527 = vunpack.c.l.b16 %v2458
    %v5528 = vunpack.c.h.b16 %v2458
    %v5529 = vunpack.c.l.b16 %v2459
    %v5530 = vunpack.c.h.b16 %v2459
    %v5531 = vunpack.c.l.b16 %v2460
    %v5532 = vunpack.c.h.b16 %v2460
    %v5533 = vunpack.c.l.b16 %v2461
    %v5534 = vunpack.c.h.b16 %v2461
    %v5535 = vunpack.c.l.b16 %v2462
    %v5536 = vunpack.c.h.b16 %v2462
    %v5537 = vunpack.c.l.b16 %v2463
    %v5538 = vunpack.c.h.b16 %v2463
    %v5539 = vunpack.c.l.b16 %v2464
    %v5540 = vunpack.c.h.b16 %v2464
    %v5541 = vunpack.c.l.b16 %v2465
    %v5542 = vunpack.c.h.b16 %v2465
    %v5543 = vunpack.c.l.b16 %v2466
    %v5544 = vunpack.c.h.b16 %v2466
    %v5545 = vunpack.c.l.b16 %v2467
    %v5546 = vunpack.c.h.b16 %v2467
    %v5547 = vunpack.c.l.b16 %v2468
    %v5548 = vunpack.c.h.b16 %v2468
    %v5549 = vunpack.c.l.b16 %v2469
    %v5550 = vunpack.c.h.b16 %v2469
    %v5551 = vunpack.c.l.b16 %v2470
    %v5552 = vunpack.c.h.b16 %v2470
    %v5553 = vunpack.c.l.b16 %v2471
    %v5554 = vunpack.c.h.b16 %v2471
    %v5555 = vunpack.c.l.b16 %v2472
    %v5556 = vunpack.c.h.b16 %v2472
    %v5557 = vunpack.c.l.b16 %v2473
    %v5558 = vunpack.c.h.b16 %v2473
    %v5559 = vunpack.c.l.b16 %v2474
    %v5560 = vunpack.c.h.b16 %v2474
    %v5561 = vunpack.c.l.b16 %v2475
    %v5562 = vunpack.c.h.b16 %v2475
    %v5563 = vunpack.c.l.b16 %v2476
    %v5564 = vunpack.c.h.b16 %v2476
    %v5565 = vunpack.c.l.b16 %v2477
    %v5566 = vunpack.c.h.b16 %v2477
    %v5567 = vunpack.c.l.b16 %v2478
    %v5568 = vunpack.c.h.b16 %v2478
    %v5569 = vunpack.c.l.b16 %v2479
    %v5570 = vunpack.c.h.b16 %v2479
    %v5571 = vunpack.c.l.b16 %v2480
    %v5572 = vunpack.c.h.b16 %v2480
    %v5573 = vunpack.c.l.b16 %v2481
    %v5574 = vunpack.c.h.b16 %v2481
    %v5575 = vunpack.c.l.b16 %v2482
    %v5576 = vunpack.c.h.b16 %v2482
    %v5577 = vunpack.c.l.b16 %v2483
    %v5578 = vunpack.c.h.b16 %v2483
    %v5579 = vunpack.c.l.b16 %v2484
    %v5580 = vunpack.c.h.b16 %v2484
    %v5581 = vunpack.c.l.b16 %v2485
    %v5582 = vunpack.c.h.b16 %v2485
    %v5583 = vunpack.c.l.b16 %v2486
    %v5584 = vunpack.c.h.b16 %v2486
    %v5585 = vunpack.c.l.b16 %v2487
    %v5586 = vunpack.c.h.b16 %v2487
    %v5587 = vunpack.c.l.b16 %v2488
    %v5588 = vunpack.c.h.b16 %v2488
    %v5589 = vunpack.c.l.b16 %v2489
    %v5590 = vunpack.c.h.b16 %v2489
    %v5591 = vunpack.c.l.b16 %v2490
    %v5592 = vunpack.c.h.b16 %v2490
    %v5593 = vunpack.c.l.b16 %v2491
    %v5594 = vunpack.c.h.b16 %v2491
    %v5595 = vunpack.c.l.b16 %v2492
    %v5596 = vunpack.c.h.b16 %v2492
    %v5597 = vunpack.c.l.b16 %v2493
    %v5598 = vunpack.c.h.b16 %v2493
    %v5599 = vunpack.c.l.b16 %v2494
    %v5600 = vunpack.c.h.b16 %v2494
    %v5601 = vunpack.c.l.b16 %v2495
    %v5602 = vunpack.c.h.b16 %v2495
    %v5603 = vunpack.c.l.b16 %v2496
    %v5604 = vunpack.c.h.b16 %v2496
    %v5605 = vunpack.c.l.b16 %v2497
    %v5606 = vunpack.c.h.b16 %v2497
    %v5607 = vunpack.c.l.b16 %v2498
    %v5608 = vunpack.c.h.b16 %v2498
    %v5609 = vunpack.c.l.b16 %v2499
    %v5610 = vunpack.c.h.b16 %v2499
    %v5611 = vunpack.c.l.b16 %v2500
    %v5612 = vunpack.c.h.b16 %v2500
    %v5613 = vunpack.c.l.b16 %v2501
    %v5614 = vunpack.c.h.b16 %v2501
    %v5615 = vunpack.c.l.b16 %v2502
    %v5616 = vunpack.c.h.b16 %v2502
    %v5617 = vunpack.c.l.b16 %v2503
    %v5618 = vunpack.c.h.b16 %v2503
    %v5619 = vunpack.c.l.b16 %v2504
    %v5620 = vunpack.c.h.b16 %v2504
    %v5621 = vunpack.c.l.b16 %v2505
    %v5622 = vunpack.c.h.b16 %v2505
    %v5623 = vunpack.c.l.b16 %v2506
    %v5624 = vunpack.c.h.b16 %v2506
    %v5625 = vunpack.c.l.b16 %v2507
    %v5626 = vunpack.c.h.b16 %v2507
    %v5627 = vunpack.c.l.b16 %v2508
    %v5628 = vunpack.c.h.b16 %v2508
    %v5629 = vunpack.c.l.b16 %v2509
    %v5630 = vunpack.c.h.b16 %v2509
    %v5631 = vunpack.c.l.b16 %v2510
    %v5632 = vunpack.c.h.b16 %v2510
    %v5633 = vunpack.c.l.b16 %v2511
    %v5634 = vunpack.c.h.b16 %v2511
    %v5635 = vunpack.c.l.b16 %v2512
    %v5636 = vunpack.c.h.b16 %v2512
    %v5637 = vunpack.c.l.b16 %v2513
    %v5638 = vunpack.c.h.b16 %v2513
    %v5639 = vunpack.c.l.b16 %v2514
    %v5640 = vunpack.c.h.b16 %v2514
    %v5641 = vunpack.c.l.b16 %v2515
    %v5642 = vunpack.c.h.b16 %v2515
    %v5643 = vunpack.c.l.b16 %v2516
    %v5644 = vunpack.c.h.b16 %v2516
    %v5645 = vunpack.c.l.b16 %v2517
    %v5646 = vunpack.c.h.b16 %v2517
    %v5647 = vunpack.c.l.b16 %v2518
    %v5648 = vunpack.c.h.b16 %v2518
    %v5649 = vunpack.c.l.b16 %v2519
    %v5650 = vunpack.c.h.b16 %v2519
    %v5651 = vunpack.c.l.b16 %v2520
    %v5652 = vunpack.c.h.b16 %v2520
    %v5653 = vunpack.c.l.b16 %v2521
    %v5654 = vunpack.c.h.b16 %v2521
    %v5655 = vunpack.c.l.b16 %v2522
    %v5656 = vunpack.c.h.b16 %v2522
    %v5657 = vunpack.c.l.b16 %v2523
    %v5658 = vunpack.c.h.b16 %v2523
    %v5659 = vunpack.c.l.b16 %v2524
    %v5660 = vunpack.c.h.b16 %v2524
    %v5661 = vunpack.c.l.b16 %v2525
    %v5662 = vunpack.c.h.b16 %v2525
    %v5663 = vunpack.c.l.b16 %v2526
    %v5664 = vunpack.c.h.b16 %v2526
    %v5665 = vunpack.c.l.b16 %v2527
    %v5666 = vunpack.c.h.b16 %v2527
    %v5667 = vunpack.c.l.b16 %v2528
    %v5668 = vunpack.c.h.b16 %v2528
    %v5669 = vunpack.c.l.b16 %v2529
    %v5670 = vunpack.c.h.b16 %v2529
    %v5671 = vunpack.c.l.b16 %v2530
    %v5672 = vunpack.c.h.b16 %v2530
    %v5673 = vunpack.c.l.b16 %v2531
    %v5674 = vunpack.c.h.b16 %v2531
    %v5675 = vunpack.c.l.b16 %v2532
    %v5676 = vunpack.c.h.b16 %v2532
    %v5677 = vunpack.c.l.b16 %v2533
    %v5678 = vunpack.c.h.b16 %v2533
    %v5679 = vunpack.c.l.b16 %v2534
    %v5680 = vunpack.c.h.b16 %v2534
    %v5681 = vunpack.c.l.b16 %v2535
    %v5682 = vunpack.c.h.b16 %v2535
    %v5683 = vunpack.c.l.b16 %v2536
    %v5684 = vunpack.c.h.b16 %v2536
    %v5685 = vunpack.c.l.b16 %v2537
    %v5686 = vunpack.c.h.b16 %v2537
    %v5687 = vunpack.c.l.b16 %v2538
    %v5688 = vunpack.c.h.b16 %v2538
    %v5689 = vunpack.c.l.b16 %v2539
    %v5690 = vunpack.c.h.b16 %v2539
    %v5691 = vunpack.c.l.b16 %v2540
    %v5692 = vunpack.c.h.b16 %v2540
    %v5693 = vunpack.c.l.b16 %v2541
    %v5694 = vunpack.c.h.b16 %v2541
    %v5695 = vunpack.c.l.b16 %v2542
    %v5696 = vunpack.c.h.b16 %v2542
    %v5697 = vunpack.c.l.b16 %v2543
    %v5698 = vunpack.c.h.b16 %v2543
    %v5699 = vunpack.c.l.b16 %v2544
    %v5700 = vunpack.c.h.b16 %v2544
    %v5701 = vunpack.c.l.b16 %v2545
    %v5702 = vunpack.c.h.b16 %v2545
    %v5703 = vunpack.c.l.b16 %v2546
    %v5704 = vunpack.c.h.b16 %v2546
    %v5705 = vunpack.c.l.b16 %v2547
    %v5706 = vunpack.c.h.b16 %v2547
    %v5707 = vunpack.c.l.b16 %v2548
    %v5708 = vunpack.c.h.b16 %v2548
    %v5709 = vunpack.c.l.b16 %v2549
    %v5710 = vunpack.c.h.b16 %v2549
    %v5711 = vunpack.c.l.b16 %v2550
    %v5712 = vunpack.c.h.b16 %v2550
    %v5713 = vunpack.c.l.b16 %v2551
    %v5714 = vunpack.c.h.b16 %v2551
    %v5715 = vunpack.c.l.b16 %v2552
    %v5716 = vunpack.c.h.b16 %v2552
    %v5717 = vunpack.c.l.b16 %v2553
    %v5718 = vunpack.c.h.b16 %v2553
    %v5719 = vunpack.c.l.b16 %v2554
    %v5720 = vunpack.c.h.b16 %v2554
    %v5721 = vunpack.c.l.b16 %v2555
    %v5722 = vunpack.c.h.b16 %v2555
    %v5723 = vunpack.c.l.b16 %v2556
    %v5724 = vunpack.c.h.b16 %v2556
    %v5725 = vunpack.c.l.b16 %v2557
    %v5726 = vunpack.c.h.b16 %v2557
    %v5727 = vunpack.c.l.b16 %v2558
    %v5728 = vunpack.c.h.b16 %v2558
    %v5729 = vunpack.c.l.b16 %v2559
    %v5730 = vunpack.c.h.b16 %v2559
    %v5731 = vunpack.c.l.b16 %v2560
    %v5732 = vunpack.c.h.b16 %v2560
    %v5733 = vunpack.c.l.b16 %v2561
    %v5734 = vunpack.c.h.b16 %v2561
    %v5735 = vunpack.c.l.b16 %v2562
    %v5736 = vunpack.c.h.b16 %v2562
    %v5737 = vunpack.c.l.b16 %v2563
    %v5738 = vunpack.c.h.b16 %v2563
    %v5739 = vunpack.c.l.b16 %v2564
    %v5740 = vunpack.c.h.b16 %v2564
    %v5741 = vunpack.c.l.b16 %v2565
    %v5742 = vunpack.c.h.b16 %v2565
    %v5743 = vunpack.c.l.b16 %v2566
    %v5744 = vunpack.c.h.b16 %v2566
    %v5745 = vunpack.c.l.b16 %v2567
    %v5746 = vunpack.c.h.b16 %v2567
    %v5747 = vunpack.c.l.b16 %v2568
    %v5748 = vunpack.c.h.b16 %v2568
    %v5749 = vunpack.c.l.b16 %v2569
    %v5750 = vunpack.c.h.b16 %v2569
    %v5751 = vunpack.c.l.b16 %v2570
    %v5752 = vunpack.c.h.b16 %v2570
    %v5753 = vunpack.c.l.b16 %v2571
    %v5754 = vunpack.c.h.b16 %v2571
    %v5755 = vunpack.c.l.b16 %v2572
    %v5756 = vunpack.c.h.b16 %v2572
    %v5757 = vunpack.c.l.b16 %v2573
    %v5758 = vunpack.c.h.b16 %v2573
    %v5759 = vunpack.c.l.b16 %v2574
    %v5760 = vunpack.c.h.b16 %v2574
    %v5761 = vunpack.c.l.b16 %v2575
    %v5762 = vunpack.c.h.b16 %v2575
    %v5763 = vunpack.c.l.b16 %v2576
    %v5764 = vunpack.c.h.b16 %v2576
    %v5765 = vunpack.c.l.b16 %v2577
    %v5766 = vunpack.c.h.b16 %v2577
    %v5767 = vunpack.c.l.b16 %v2578
    %v5768 = vunpack.c.h.b16 %v2578
    %v5769 = vunpack.c.l.b16 %v2579
    %v5770 = vunpack.c.h.b16 %v2579
    %v5771 = vunpack.c.l.b16 %v2580
    %v5772 = vunpack.c.h.b16 %v2580
    %v5773 = vunpack.c.l.b16 %v2581
    %v5774 = vunpack.c.h.b16 %v2581
    %v5775 = vunpack.c.l.b16 %v2582
    %v5776 = vunpack.c.h.b16 %v2582
    %v5777 = vunpack.c.l.b16 %v2583
    %v5778 = vunpack.c.h.b16 %v2583
    %v5779 = vunpack.c.l.b16 %v2584
    %v5780 = vunpack.c.h.b16 %v2584
    %v5781 = vunpack.c.l.b16 %v2585
    %v5782 = vunpack.c.h.b16 %v2585
    %v5783 = vunpack.c.l.b16 %v2586
    %v5784 = vunpack.c.h.b16 %v2586
    %v5785 = vunpack.c.l.b16 %v2587
    %v5786 = vunpack.c.h.b16 %v2587
    %v5787 = vunpack.c.l.b16 %v2588
    %v5788 = vunpack.c.h.b16 %v2588
    %v5789 = vunpack.c.l.b16 %v2589
    %v5790 = vunpack.c.h.b16 %v2589
    %v5791 = vunpack.c.l.b16 %v2590
    %v5792 = vunpack.c.h.b16 %v2590
    %v5793 = vunpack.c.l.b16 %v2591
    %v5794 = vunpack.c.h.b16 %v2591
    %v5795 = vunpack.c.l.b16 %v2592
    %v5796 = vunpack.c.h.b16 %v2592
    %v5797 = vunpack.c.l.b16 %v2593
    %v5798 = vunpack.c.h.b16 %v2593
    %v5799 = vunpack.c.l.b16 %v2594
    %v5800 = vunpack.c.h.b16 %v2594
    %v5801 = vunpack.c.l.b16 %v2595
    %v5802 = vunpack.c.h.b16 %v2595
    %v5803 = vunpack.c.l.b16 %v2596
    %v5804 = vunpack.c.h.b16 %v2596
    %v5805 = vunpack.c.l.b16 %v2597
    %v5806 = vunpack.c.h.b16 %v2597
    %v5807 = vunpack.c.l.b16 %v2598
    %v5808 = vunpack.c.h.b16 %v2598
    %v5809 = vunpack.c.l.b16 %v2599
    %v5810 = vunpack.c.h.b16 %v2599
    %v5811 = vunpack.c.l.b16 %v2600
    %v5812 = vunpack.c.h.b16 %v2600
    %v5813 = vunpack.c.l.b16 %v2601
    %v5814 = vunpack.c.h.b16 %v2601
    %v5815 = vunpack.c.l.b16 %v2602
    %v5816 = vunpack.c.h.b16 %v2602
    %v5817 = vunpack.c.l.b16 %v2603
    %v5818 = vunpack.c.h.b16 %v2603
    %v5819 = vunpack.c.l.b16 %v2604
    %v5820 = vunpack.c.h.b16 %v2604
    %v5821 = vunpack.c.l.b16 %v2605
    %v5822 = vunpack.c.h.b16 %v2605
    %v5823 = vunpack.c.l.b16 %v2606
    %v5824 = vunpack.c.h.b16 %v2606
    %v5825 = vunpack.c.l.b16 %v2607
    %v5826 = vunpack.c.h.b16 %v2607
    %v5827 = vunpack.c.l.b16 %v2608
    %v5828 = vunpack.c.h.b16 %v2608
    %v5829 = vunpack.c.l.b16 %v2609
    %v5830 = vunpack.c.h.b16 %v2609
    %v5831 = vunpack.c.l.b16 %v2610
    %v5832 = vunpack.c.h.b16 %v2610
    %v5833 = vunpack.c.l.b16 %v2611
    %v5834 = vunpack.c.h.b16 %v2611
    %v5835 = vunpack.c.l.b16 %v2612
    %v5836 = vunpack.c.h.b16 %v2612
    %v5837 = vunpack.c.l.b16 %v2613
    %v5838 = vunpack.c.h.b16 %v2613
    %v5839 = vunpack.c.l.b16 %v2614
    %v5840 = vunpack.c.h.b16 %v2614
    %v5841 = vunpack.c.l.b16 %v2615
    %v5842 = vunpack.c.h.b16 %v2615
    %v5843 = vunpack.c.l.b16 %v2616
    %v5844 = vunpack.c.h.b16 %v2616
    %v5845 = vunpack.c.l.b16 %v2617
    %v5846 = vunpack.c.h.b16 %v2617
    %v5847 = vunpack.c.l.b16 %v2618
    %v5848 = vunpack.c.h.b16 %v2618
    %v5849 = vunpack.c.l.b16 %v2619
    %v5850 = vunpack.c.h.b16 %v2619
    %v5851 = vunpack.c.l.b16 %v2620
    %v5852 = vunpack.c.h.b16 %v2620
    %v5853 = vunpack.c.l.b16 %v2621
    %v5854 = vunpack.c.h.b16 %v2621
    %v5855 = vunpack.c.l.b16 %v2622
    %v5856 = vunpack.c.h.b16 %v2622
    %v5857 = vunpack.c.l.b16 %v2623
    %v5858 = vunpack.c.h.b16 %v2623
    %v5859 = vunpack.c.l.b16 %v2624
    %v5860 = vunpack.c.h.b16 %v2624
    %v5861 = vunpack.c.l.b16 %v2625
    %v5862 = vunpack.c.h.b16 %v2625
    %v5863 = vunpack.c.l.b16 %v2626
    %v5864 = vunpack.c.h.b16 %v2626
    %v5865 = vunpack.c.l.b16 %v2627
    %v5866 = vunpack.c.h.b16 %v2627
    %v5867 = vunpack.c.l.b16 %v2628
    %v5868 = vunpack.c.h.b16 %v2628
    %v5869 = vunpack.c.l.b16 %v2629
    %v5870 = vunpack.c.h.b16 %v2629
    %v5871 = vunpack.c.l.b16 %v2630
    %v5872 = vunpack.c.h.b16 %v2630
    %v5873 = vunpack.c.l.b16 %v2631
    %v5874 = vunpack.c.h.b16 %v2631
    %v5875 = vunpack.c.l.b16 %v2632
    %v5876 = vunpack.c.h.b16 %v2632
    %v5877 = vunpack.c.l.b16 %v2633
    %v5878 = vunpack.c.h.b16 %v2633
    %v5879 = vunpack.c.l.b16 %v2634
    %v5880 = vunpack.c.h.b16 %v2634
    %v5881 = vunpack.c.l.b16 %v2635
    %v5882 = vunpack.c.h.b16 %v2635
    %v5883 = vunpack.c.l.b16 %v2636
    %v5884 = vunpack.c.h.b16 %v2636
    %v5885 = vunpack.c.l.b16 %v2637
    %v5886 = vunpack.c.h.b16 %v2637
    %v5887 = vunpack.c.l.b16 %v2638
    %v5888 = vunpack.c.h.b16 %v2638
    %v5889 = vunpack.c.l.b16 %v2639
    %v5890 = vunpack.c.h.b16 %v2639
    %v5891 = vunpack.c.l.b16 %v2640
    %v5892 = vunpack.c.h.b16 %v2640
    %v5893 = vunpack.c.l.b16 %v2641
    %v5894 = vunpack.c.h.b16 %v2641
    %v5895 = vunpack.c.l.b16 %v2642
    %v5896 = vunpack.c.h.b16 %v2642
    %v5897 = vunpack.c.l.b16 %v2643
    %v5898 = vunpack.c.h.b16 %v2643
    %v5899 = vunpack.c.l.b16 %v2644
    %v5900 = vunpack.c.h.b16 %v2644
    %v5901 = vunpack.c.l.b16 %v2645
    %v5902 = vunpack.c.h.b16 %v2645
    %v5903 = vunpack.c.l.b16 %v2646
    %v5904 = vunpack.c.h.b16 %v2646
    %v5905 = vunpack.c.l.b16 %v2647
    %v5906 = vunpack.c.h.b16 %v2647
    %v5907 = vunpack.c.l.b16 %v2648
    %v5908 = vunpack.c.h.b16 %v2648
    %v5909 = vunpack.c.l.b16 %v2649
    %v5910 = vunpack.c.h.b16 %v2649
    %v5911 = vunpack.c.l.b16 %v2650
    %v5912 = vunpack.c.h.b16 %v2650
    %v5913 = vunpack.c.l.b16 %v2651
    %v5914 = vunpack.c.h.b16 %v2651
    %v5915 = vunpack.c.l.b16 %v2652
    %v5916 = vunpack.c.h.b16 %v2652
    %v5917 = vunpack.c.l.b16 %v2653
    %v5918 = vunpack.c.h.b16 %v2653
    %v5919 = vunpack.c.l.b16 %v2654
    %v5920 = vunpack.c.h.b16 %v2654
    %v5921 = vunpack.c.l.b16 %v2655
    %v5922 = vunpack.c.h.b16 %v2655
    %v5923 = vunpack.c.l.b16 %v2656
    %v5924 = vunpack.c.h.b16 %v2656
    %v5925 = vunpack.c.l.b16 %v2657
    %v5926 = vunpack.c.h.b16 %v2657
    %v5927 = vunpack.c.l.b16 %v2658
    %v5928 = vunpack.c.h.b16 %v2658
    %v5929 = vunpack.c.l.b16 %v2659
    %v5930 = vunpack.c.h.b16 %v2659
    %v5931 = vunpack.c.l.b16 %v2660
    %v5932 = vunpack.c.h.b16 %v2660
    %v5933 = vunpack.c.l.b16 %v2661
    %v5934 = vunpack.c.h.b16 %v2661
    %v5935 = vunpack.c.l.b16 %v2662
    %v5936 = vunpack.c.h.b16 %v2662
    %v5937 = vunpack.c.l.b16 %v2663
    %v5938 = vunpack.c.h.b16 %v2663
    %v5939 = vunpack.c.l.b16 %v2664
    %v5940 = vunpack.c.h.b16 %v2664
    %v5941 = vunpack.c.l.b16 %v2665
    %v5942 = vunpack.c.h.b16 %v2665
    %v5943 = vunpack.c.l.b16 %v2666
    %v5944 = vunpack.c.h.b16 %v2666
    %v5945 = vunpack.c.l.b16 %v2667
    %v5946 = vunpack.c.h.b16 %v2667
    %v5947 = vunpack.c.l.b16 %v2668
    %v5948 = vunpack.c.h.b16 %v2668
    %v5949 = vunpack.c.l.b16 %v2669
    %v5950 = vunpack.c.h.b16 %v2669
    %v5951 = vunpack.c.l.b16 %v2670
    %v5952 = vunpack.c.h.b16 %v2670
    %v5953 = vunpack.c.l.b16 %v2671
    %v5954 = vunpack.c.h.b16 %v2671
    %v5955 = vunpack.c.l.b16 %v2672
    %v5956 = vunpack.c.h.b16 %v2672
    %v5957 = vunpack.c.l.b16 %v2673
    %v5958 = vunpack.c.h.b16 %v2673
    %v5959 = vunpack.c.l.b16 %v2674
    %v5960 = vunpack.c.h.b16 %v2674
    %v5961 = vunpack.c.l.b16 %v2675
    %v5962 = vunpack.c.h.b16 %v2675
    %v5963 = vunpack.c.l.b16 %v2676
    %v5964 = vunpack.c.h.b16 %v2676
    %v5965 = vunpack.c.l.b16 %v2677
    %v5966 = vunpack.c.h.b16 %v2677
    %v5967 = vunpack.c.l.b16 %v2678
    %v5968 = vunpack.c.h.b16 %v2678
    %v5969 = vunpack.c.l.b16 %v2679
    %v5970 = vunpack.c.h.b16 %v2679
    %v5971 = vunpack.c.l.b16 %v2680
    %v5972 = vunpack.c.h.b16 %v2680
    %v5973 = vunpack.c.l.b16 %v2681
    %v5974 = vunpack.c.h.b16 %v2681
    %v5975 = vunpack.c.l.b16 %v2682
    %v5976 = vunpack.c.h.b16 %v2682
    %v5977 = vunpack.c.l.b16 %v2683
    %v5978 = vunpack.c.h.b16 %v2683
    %v5979 = vunpack.c.l.b16 %v2684
    %v5980 = vunpack.c.h.b16 %v2684
    %v5981 = vunpack.c.l.b16 %v2685
    %v5982 = vunpack.c.h.b16 %v2685
    %v5983 = vunpack.c.l.b16 %v2686
    %v5984 = vunpack.c.h.b16 %v2686
    %v5985 = vunpack.c.l.b16 %v2687
    %v5986 = vunpack.c.h.b16 %v2687
    %v5987 = vunpack.c.l.b16 %v2688
    %v5988 = vunpack.c.h.b16 %v2688
    %v5989 = vunpack.c.l.b16 %v2689
    %v5990 = vunpack.c.h.b16 %v2689
    %v5991 = vunpack.c.l.b16 %v2690
    %v5992 = vunpack.c.h.b16 %v2690
    %v5993 = vunpack.c.l.b16 %v2691
    %v5994 = vunpack.c.h.b16 %v2691
    %v5995 = vunpack.c.l.b16 %v2692
    %v5996 = vunpack.c.h.b16 %v2692
    %v5997 = vunpack.c.l.b16 %v2693
    %v5998 = vunpack.c.h.b16 %v2693
    %v5999 = vunpack.c.l.b16 %v2694
    %v6000 = vunpack.c.h.b16 %v2694
    %v6001 = vunpack.c.l.b16 %v2695
    %v6002 = vunpack.c.h.b16 %v2695
    %v6003 = vunpack.c.l.b16 %v2696
    %v6004 = vunpack.c.h.b16 %v2696
    %v6005 = vunpack.c.l.b16 %v2697
    %v6006 = vunpack.c.h.b16 %v2697
    %v6007 = vunpack.c.l.b16 %v2698
    %v6008 = vunpack.c.h.b16 %v2698
    %v6009 = vunpack.c.l.b16 %v2699
    %v6010 = vunpack.c.h.b16 %v2699
    %v6011 = vunpack.c.l.b16 %v2700
    %v6012 = vunpack.c.h.b16 %v2700
    %v6013 = vunpack.c.l.b16 %v2701
    %v6014 = vunpack.c.h.b16 %v2701
    %v6015 = vunpack.c.l.b16 %v2702
    %v6016 = vunpack.c.h.b16 %v2702
    %v6017 = vunpack.c.l.b16 %v2703
    %v6018 = vunpack.c.h.b16 %v2703
    %v6019 = vunpack.c.l.b16 %v2704
    %v6020 = vunpack.c.h.b16 %v2704
    %v6021 = vunpack.c.l.b16 %v2705
    %v6022 = vunpack.c.h.b16 %v2705
    %v6023 = vunpack.c.l.b16 %v2706
    %v6024 = vunpack.c.h.b16 %v2706
    %v6025 = vunpack.c.l.b16 %v2707
    %v6026 = vunpack.c.h.b16 %v2707
    %v6027 = vunpack.c.l.b16 %v2708
    %v6028 = vunpack.c.h.b16 %v2708
    %v6029 = vunpack.c.l.b16 %v2709
    %v6030 = vunpack.c.h.b16 %v2709
    %v6031 = vunpack.c.l.b16 %v2710
    %v6032 = vunpack.c.h.b16 %v2710
    %v6033 = vunpack.c.l.b16 %v2711
    %v6034 = vunpack.c.h.b16 %v2711
    %v6035 = vunpack.c.l.b16 %v2712
    %v6036 = vunpack.c.h.b16 %v2712
    %v6037 = vunpack.c.l.b16 %v2713
    %v6038 = vunpack.c.h.b16 %v2713
    %v6039 = vunpack.c.l.b16 %v2714
    %v6040 = vunpack.c.h.b16 %v2714
    %v6041 = vunpack.c.l.b16 %v2715
    %v6042 = vunpack.c.h.b16 %v2715
    %v6043 = vunpack.c.l.b16 %v2716
    %v6044 = vunpack.c.h.b16 %v2716
    %v6045 = vunpack.c.l.b16 %v2717
    %v6046 = vunpack.c.h.b16 %v2717
    %v6047 = vunpack.c.l.b16 %v2718
    %v6048 = vunpack.c.h.b16 %v2718
    %v6049 = vunpack.c.l.b16 %v2719
    %v6050 = vunpack.c.h.b16 %v2719
    %v6051 = vunpack.c.l.b16 %v2720
    %v6052 = vunpack.c.h.b16 %v2720
    %v6053 = vunpack.c.l.b16 %v2721
    %v6054 = vunpack.c.h.b16 %v2721
    %v6055 = vunpack.c.l.b16 %v2722
    %v6056 = vunpack.c.h.b16 %v2722
    %v6057 = vunpack.c.l.b16 %v2723
    %v6058 = vunpack.c.h.b16 %v2723
    %v6059 = vunpack.c.l.b16 %v2724
    %v6060 = vunpack.c.h.b16 %v2724
    %v6061 = vunpack.c.l.b16 %v2725
    %v6062 = vunpack.c.h.b16 %v2725
    %v6063 = vunpack.c.l.b16 %v2726
    %v6064 = vunpack.c.h.b16 %v2726
    %v6065 = vunpack.c.l.b16 %v2727
    %v6066 = vunpack.c.h.b16 %v2727
    %v6067 = vunpack.c.l.b16 %v2728
    %v6068 = vunpack.c.h.b16 %v2728
    %v6069 = vunpack.c.l.b16 %v2729
    %v6070 = vunpack.c.h.b16 %v2729
    %v6071 = vunpack.c.l.b16 %v2730
    %v6072 = vunpack.c.h.b16 %v2730
    %v6073 = vunpack.c.l.b16 %v2731
    %v6074 = vunpack.c.h.b16 %v2731
    %v6075 = vunpack.c.l.b16 %v2732
    %v6076 = vunpack.c.h.b16 %v2732
    %v6077 = vunpack.c.l.b16 %v2733
    %v6078 = vunpack.c.h.b16 %v2733
    %v6079 = vunpack.c.l.b16 %v2734
    %v6080 = vunpack.c.h.b16 %v2734
    %v6081 = vunpack.c.l.b16 %v2735
    %v6082 = vunpack.c.h.b16 %v2735
    %v6083 = vunpack.c.l.b16 %v2736
    %v6084 = vunpack.c.h.b16 %v2736
    %v6085 = vunpack.c.l.b16 %v2737
    %v6086 = vunpack.c.h.b16 %v2737
    %v6087 = vunpack.c.l.b16 %v2738
    %v6088 = vunpack.c.h.b16 %v2738
    %v6089 = vunpack.c.l.b16 %v2739
    %v6090 = vunpack.c.h.b16 %v2739
    %v6091 = vunpack.c.l.b16 %v2740
    %v6092 = vunpack.c.h.b16 %v2740
    %v6093 = vunpack.c.l.b16 %v2741
    %v6094 = vunpack.c.h.b16 %v2741
    %v6095 = vunpack.c.l.b16 %v2742
    %v6096 = vunpack.c.h.b16 %v2742
    %v6097 = vunpack.c.l.b16 %v2743
    %v6098 = vunpack.c.h.b16 %v2743
    %v6099 = vunpack.c.l.b16 %v2744
    %v6100 = vunpack.c.h.b16 %v2744
    %v6101 = vunpack.c.l.b16 %v2745
    %v6102 = vunpack.c.h.b16 %v2745
    %v6103 = vunpack.c.l.b16 %v2746
    %v6104 = vunpack.c.h.b16 %v2746
    %v6105 = vunpack.c.l.b16 %v2747
    %v6106 = vunpack.c.h.b16 %v2747
    %v6107 = vunpack.c.l.b16 %v2748
    %v6108 = vunpack.c.h.b16 %v2748
    %v6109 = vunpack.c.l.b16 %v2749
    %v6110 = vunpack.c.h.b16 %v2749
    %v6111 = vunpack.c.l.b16 %v2750
    %v6112 = vunpack.c.h.b16 %v2750
    %v6113 = vunpack.c.l.b16 %v2751
    %v6114 = vunpack.c.h.b16 %v2751
    %v6115 = vunpack.c.l.b16 %v2752
    %v6116 = vunpack.c.h.b16 %v2752
    %v6117 = vunpack.c.l.b16 %v2753
    %v6118 = vunpack.c.h.b16 %v2753
    %v6119 = vunpack.c.l.b16 %v2754
    %v6120 = vunpack.c.h.b16 %v2754
    %v6121 = vunpack.c.l.b16 %v2755
    %v6122 = vunpack.c.h.b16 %v2755
    %v6123 = vunpack.c.l.b16 %v2756
    %v6124 = vunpack.c.h.b16 %v2756
    %v6125 = vunpack.c.l.b16 %v2757
    %v6126 = vunpack.c.h.b16 %v2757
    %v6127 = vunpack.c.l.b16 %v2758
    %v6128 = vunpack.c.h.b16 %v2758
    %v6129 = vunpack.c.l.b16 %v2759
    %v6130 = vunpack.c.h.b16 %v2759
    %v6131 = vunpack.c.l.b16 %v2760
    %v6132 = vunpack.c.h.b16 %v2760
    %v6133 = vunpack.c.l.b16 %v2761
    %v6134 = vunpack.c.h.b16 %v2761
    %v6135 = vunpack.c.l.b16 %v2762
    %v6136 = vunpack.c.h.b16 %v2762
    %v6137 = vunpack.c.l.b16 %v2763
    %v6138 = vunpack.c.h.b16 %v2763
    %v6139 = vunpack.c.l.b16 %v2764
    %v6140 = vunpack.c.h.b16 %v2764
    %v6141 = vunpack.c.l.b16 %v2765
    %v6142 = vunpack.c.h.b16 %v2765
    %v6143 = vunpack.c.l.b16 %v2766
    %v6144 = vunpack.c.h.b16 %v2766
    %v6145 = vunpack.c.l.b16 %v2767
    %v6146 = vunpack.c.h.b16 %v2767
    %v6147 = vunpack.c.l.b16 %v2768
    %v6148 = vunpack.c.h.b16 %v2768
    %v6149 = vunpack.c.l.b16 %v2769
    %v6150 = vunpack.c.h.b16 %v2769
    %v6151 = vunpack.c.l.b16 %v2770
    %v6152 = vunpack.c.h.b16 %v2770
    %v6153 = vunpack.c.l.b16 %v2771
    %v6154 = vunpack.c.h.b16 %v2771
    %v6155 = vunpack.c.l.b16 %v2772
    %v6156 = vunpack.c.h.b16 %v2772
    %v6157 = vunpack.c.l.b16 %v2773
    %v6158 = vunpack.c.h.b16 %v2773
    %v6159 = vunpack.c.l.b16 %v2774
    %v6160 = vunpack.c.h.b16 %v2774
    %v6161 = vunpack.c.l.b16 %v2775
    %v6162 = vunpack.c.h.b16 %v2775
    %v6163 = vunpack.c.l.b16 %v2776
    %v6164 = vunpack.c.h.b16 %v2776
    %v6165 = vunpack.c.l.b16 %v2777
    %v6166 = vunpack.c.h.b16 %v2777
    %v6167 = vunpack.c.l.b16 %v2778
    %v6168 = vunpack.c.h.b16 %v2778
    %v6169 = vunpack.c.l.b16 %v2779
    %v6170 = vunpack.c.h.b16 %v2779
    %v6171 = vunpack.c.l.b16 %v2780
    %v6172 = vunpack.c.h.b16 %v2780
    %v6173 = vunpack.c.l.b16 %v2781
    %v6174 = vunpack.c.h.b16 %v2781
    %v6175 = vunpack.c.l.b16 %v2782
    %v6176 = vunpack.c.h.b16 %v2782
    %v6177 = vunpack.c.l.b16 %v2783
    %v6178 = vunpack.c.h.b16 %v2783
    %v6179 = vunpack.c.l.b16 %v2784
    %v6180 = vunpack.c.h.b16 %v2784
    %v6181 = vunpack.c.l.b16 %v2785
    %v6182 = vunpack.c.h.b16 %v2785
    %v6183 = vunpack.c.l.b16 %v2786
    %v6184 = vunpack.c.h.b16 %v2786
    %v6185 = vunpack.c.l.b16 %v2787
    %v6186 = vunpack.c.h.b16 %v2787
    %v6187 = vunpack.c.l.b16 %v2788
    %v6188 = vunpack.c.h.b16 %v2788
    %v6189 = vunpack.c.l.b16 %v2789
    %v6190 = vunpack.c.h.b16 %v2789
    %v6191 = vunpack.c.l.b16 %v2790
    %v6192 = vunpack.c.h.b16 %v2790
    %v6193 = vunpack.c.l.b16 %v2791
    %v6194 = vunpack.c.h.b16 %v2791
    %v6195 = vunpack.c.l.b16 %v2792
    %v6196 = vunpack.c.h.b16 %v2792
    %v6197 = vunpack.c.l.b16 %v2793
    %v6198 = vunpack.c.h.b16 %v2793
    %v6199 = vunpack.c.l.b16 %v2794
    %v6200 = vunpack.c.h.b16 %v2794
    %v6201 = vunpack.c.l.b16 %v2795
    %v6202 = vunpack.c.h.b16 %v2795
    %v6203 = vunpack.c.l.b16 %v2796
    %v6204 = vunpack.c.h.b16 %v2796
    %v6205 = vunpack.c.l.b16 %v2797
    %v6206 = vunpack.c.h.b16 %v2797
    %v6207 = vunpack.c.l.b16 %v2798
    %v6208 = vunpack.c.h.b16 %v2798
    %v6209 = vunpack.c.l.b16 %v2799
    %v6210 = vunpack.c.h.b16 %v2799
    %v6211 = vunpack.c.l.b16 %v2800
    %v6212 = vunpack.c.h.b16 %v2800
    %v6213 = vunpack.c.l.b16 %v2801
    %v6214 = vunpack.c.h.b16 %v2801
    %v6215 = vunpack.c.l.b16 %v2802
    %v6216 = vunpack.c.h.b16 %v2802
    %v6217 = vunpack.c.l.b16 %v2803
    %v6218 = vunpack.c.h.b16 %v2803
    %v6219 = vunpack.c.l.b16 %v2804
    %v6220 = vunpack.c.h.b16 %v2804
    %v6221 = vunpack.c.l.b16 %v2805
    %v6222 = vunpack.c.h.b16 %v2805
    %v6223 = vunpack.c.l.b16 %v2806
    %v6224 = vunpack.c.h.b16 %v2806
    %v6225 = vunpack.c.l.b16 %v2807
    %v6226 = vunpack.c.h.b16 %v2807
    %v6227 = vunpack.c.l.b16 %v2808
    %v6228 = vunpack.c.h.b16 %v2808
    %v6229 = vunpack.c.l.b16 %v2809
    %v6230 = vunpack.c.h.b16 %v2809
    %v6231 = vunpack.c.l.b16 %v2810
    %v6232 = vunpack.c.h.b16 %v2810
    %v6233 = vunpack.c.l.b16 %v2811
    %v6234 = vunpack.c.h.b16 %v2811
    %v6235 = vunpack.c.l.b16 %v2812
    %v6236 = vunpack.c.h.b16 %v2812
    %v6237 = vunpack.c.l.b16 %v2813
    %v6238 = vunpack.c.h.b16 %v2813
    %v6239 = vunpack.c.l.b16 %v2814
    %v6240 = vunpack.c.h.b16 %v2814
    %v6241 = vunpack.c.l.b16 %v2815
    %v6242 = vunpack.c.h.b16 %v2815
    %v6243 = vunpack.c.l.b16 %v2816
    %v6244 = vunpack.c.h.b16 %v2816
    %v6245 = vunpack.c.l.b16 %v2817
    %v6246 = vunpack.c.h.b16 %v2817
    %v6247 = vunpack.c.l.b16 %v2818
    %v6248 = vunpack.c.h.b16 %v2818
    %v6249 = vunpack.c.l.b16 %v2819
    %v6250 = vunpack.c.h.b16 %v2819
    %v6251 = vunpack.c.l.b16 %v2820
    %v6252 = vunpack.c.h.b16 %v2820
    %v6253 = vunpack.c.l.b16 %v2821
    %v6254 = vunpack.c.h.b16 %v2821
    %v6255 = vunpack.c.l.b16 %v2822
    %v6256 = vunpack.c.h.b16 %v2822
    %v6257 = vunpack.c.l.b16 %v2823
    %v6258 = vunpack.c.h.b16 %v2823
    %v6259 = vunpack.c.l.b16 %v2824
    %v6260 = vunpack.c.h.b16 %v2824
    %v6261 = vunpack.c.l.b16 %v2825
    %v6262 = vunpack.c.h.b16 %v2825
    %v6263 = vunpack.c.l.b16 %v2826
    %v6264 = vunpack.c.h.b16 %v2826
    %v6265 = vunpack.c.l.b16 %v2827
    %v6266 = vunpack.c.h.b16 %v2827
    %v6267 = vunpack.c.l.b16 %v2828
    %v6268 = vunpack.c.h.b16 %v2828
    %v6269 = vunpack.c.l.b16 %v2829
    %v6270 = vunpack.c.h.b16 %v2829
    %v6271 = vunpack.c.l.b16 %v2830
    %v6272 = vunpack.c.h.b16 %v2830
    %v6273 = vunpack.c.l.b16 %v2831
    %v6274 = vunpack.c.h.b16 %v2831
    %v6275 = vunpack.c.l.b16 %v2832
    %v6276 = vunpack.c.h.b16 %v2832
    %v6277 = vunpack.c.l.b16 %v2833
    %v6278 = vunpack.c.h.b16 %v2833
    %v6279 = vunpack.c.l.b16 %v2834
    %v6280 = vunpack.c.h.b16 %v2834
    %v6281 = vunpack.c.l.b16 %v2835
    %v6282 = vunpack.c.h.b16 %v2835
    %v6283 = vunpack.c.l.b16 %v2836
    %v6284 = vunpack.c.h.b16 %v2836
    %v6285 = vunpack.c.l.b16 %v2837
    %v6286 = vunpack.c.h.b16 %v2837
    %v6287 = vunpack.c.l.b16 %v2838
    %v6288 = vunpack.c.h.b16 %v2838
    %v6289 = vunpack.c.l.b16 %v2839
    %v6290 = vunpack.c.h.b16 %v2839
    %v6291 = vunpack.c.l.b16 %v2840
    %v6292 = vunpack.c.h.b16 %v2840
    %v6293 = vunpack.c.l.b16 %v2841
    %v6294 = vunpack.c.h.b16 %v2841
    %v6295 = vunpack.c.l.b16 %v2842
    %v6296 = vunpack.c.h.b16 %v2842
    %v6297 = vunpack.c.l.b16 %v2843
    %v6298 = vunpack.c.h.b16 %v2843
    %v6299 = vunpack.c.l.b16 %v2844
    %v6300 = vunpack.c.h.b16 %v2844
    %v6301 = vunpack.c.l.b16 %v2845
    %v6302 = vunpack.c.h.b16 %v2845
    %v6303 = vunpack.c.l.b16 %v2846
    %v6304 = vunpack.c.h.b16 %v2846
    %v6305 = vunpack.c.l.b16 %v2847
    %v6306 = vunpack.c.h.b16 %v2847
    %v6307 = vunpack.c.l.b16 %v2848
    %v6308 = vunpack.c.h.b16 %v2848
    %v6309 = vunpack.c.l.b16 %v2849
    %v6310 = vunpack.c.h.b16 %v2849
    %v6311 = vunpack.c.l.b16 %v2850
    %v6312 = vunpack.c.h.b16 %v2850
    %v6313 = vunpack.c.l.b16 %v2851
    %v6314 = vunpack.c.h.b16 %v2851
    %v6315 = vunpack.c.l.b16 %v2852
    %v6316 = vunpack.c.h.b16 %v2852
    %v6317 = vunpack.c.l.b16 %v2853
    %v6318 = vunpack.c.h.b16 %v2853
    %v6319 = vunpack.c.l.b16 %v2854
    %v6320 = vunpack.c.h.b16 %v2854
    %v6321 = vunpack.c.l.b16 %v2855
    %v6322 = vunpack.c.h.b16 %v2855
    %v6323 = vunpack.c.l.b16 %v2856
    %v6324 = vunpack.c.h.b16 %v2856
    %v6325 = vunpack.c.l.b16 %v2857
    %v6326 = vunpack.c.h.b16 %v2857
    %v6327 = vunpack.c.l.b16 %v2858
    %v6328 = vunpack.c.h.b16 %v2858
    %v6329 = vunpack.c.l.b16 %v2859
    %v6330 = vunpack.c.h.b16 %v2859
    %v6331 = vunpack.c.l.b16 %v2860
    %v6332 = vunpack.c.h.b16 %v2860
    %v6333 = vunpack.c.l.b16 %v2861
    %v6334 = vunpack.c.h.b16 %v2861
    %v6335 = vunpack.c.l.b16 %v2862
    %v6336 = vunpack.c.h.b16 %v2862
    %v6337 = vunpack.c.l.b16 %v2863
    %v6338 = vunpack.c.h.b16 %v2863
    %v6339 = vunpack.c.l.b16 %v2864
    %v6340 = vunpack.c.h.b16 %v2864
    %v6341 = vunpack.c.l.b16 %v2865
    %v6342 = vunpack.c.h.b16 %v2865
    %v6343 = vunpack.c.l.b16 %v2866
    %v6344 = vunpack.c.h.b16 %v2866
    %v6345 = vunpack.c.l.b16 %v2867
    %v6346 = vunpack.c.h.b16 %v2867
    %v6347 = vunpack.c.l.b16 %v2868
    %v6348 = vunpack.c.h.b16 %v2868
    %v6349 = vunpack.c.l.b16 %v2869
    %v6350 = vunpack.c.h.b16 %v2869
    %v6351 = vunpack.c.l.b16 %v2870
    %v6352 = vunpack.c.h.b16 %v2870
    %v6353 = vunpack.c.l.b16 %v2871
    %v6354 = vunpack.c.h.b16 %v2871
    %v6355 = vunpack.c.l.b16 %v2872
    %v6356 = vunpack.c.h.b16 %v2872
    %v6357 = vunpack.c.l.b16 %v2873
    %v6358 = vunpack.c.h.b16 %v2873
    %v6359 = vunpack.c.l.b16 %v2874
    %v6360 = vunpack.c.h.b16 %v2874
    %v6361 = vunpack.c.l.b16 %v2875
    %v6362 = vunpack.c.h.b16 %v2875
    %v6363 = vunpack.c.l.b16 %v2876
    %v6364 = vunpack.c.h.b16 %v2876
    %v6365 = vunpack.c.l.b16 %v2877
    %v6366 = vunpack.c.h.b16 %v2877
    %v6367 = vunpack.c.l.b16 %v2878
    %v6368 = vunpack.c.h.b16 %v2878
    %v6369 = vunpack.c.l.b16 %v2879
    %v6370 = vunpack.c.h.b16 %v2879
    %v6371 = vunpack.c.l.b16 %v2880
    %v6372 = vunpack.c.h.b16 %v2880
    %v6373 = vunpack.c.l.b16 %v2881
    %v6374 = vunpack.c.h.b16 %v2881
    %v6375 = vunpack.c.l.b16 %v2882
    %v6376 = vunpack.c.h.b16 %v2882
    %v6377 = vunpack.c.l.b16 %v2883
    %v6378 = vunpack.c.h.b16 %v2883
    %v6379 = vunpack.c.l.b16 %v2884
    %v6380 = vunpack.c.h.b16 %v2884
    %v6381 = vunpack.c.l.b16 %v2885
    %v6382 = vunpack.c.h.b16 %v2885
    %v6383 = vunpack.c.l.b16 %v2886
    %v6384 = vunpack.c.h.b16 %v2886
    %v6385 = vunpack.c.l.b16 %v2887
    %v6386 = vunpack.c.h.b16 %v2887
    %v6387 = vunpack.c.l.b16 %v2888
    %v6388 = vunpack.c.h.b16 %v2888
    %v6389 = vunpack.c.l.b16 %v2889
    %v6390 = vunpack.c.h.b16 %v2889
    %v6391 = vunpack.c.l.b16 %v2890
    %v6392 = vunpack.c.h.b16 %v2890
    %v6393 = vunpack.c.l.b16 %v2891
    %v6394 = vunpack.c.h.b16 %v2891
    %v6395 = vunpack.c.l.b16 %v2892
    %v6396 = vunpack.c.h.b16 %v2892
    %v6397 = vunpack.c.l.b16 %v2893
    %v6398 = vunpack.c.h.b16 %v2893
    %v6399 = vunpack.c.l.b16 %v2894
    %v6400 = vunpack.c.h.b16 %v2894
    %v6401 = vunpack.c.l.b16 %v2895
    %v6402 = vunpack.c.h.b16 %v2895
    %v6403 = vunpack.c.l.b16 %v2896
    %v6404 = vunpack.c.h.b16 %v2896
    %v6405 = vunpack.c.l.b16 %v2897
    %v6406 = vunpack.c.h.b16 %v2897
    %v6407 = vunpack.c.l.b16 %v2898
    %v6408 = vunpack.c.h.b16 %v2898
    %v6409 = vunpack.c.l.b16 %v2899
    %v6410 = vunpack.c.h.b16 %v2899
    %v6411 = vunpack.c.l.b16 %v2900
    %v6412 = vunpack.c.h.b16 %v2900
    %v6413 = vunpack.c.l.b16 %v2901
    %v6414 = vunpack.c.h.b16 %v2901
    %v6415 = vunpack.c.l.b16 %v2902
    %v6416 = vunpack.c.h.b16 %v2902
    %v6417 = vunpack.c.l.b16 %v2903
    %v6418 = vunpack.c.h.b16 %v2903
    %v6419 = vunpack.c.l.b16 %v2904
    %v6420 = vunpack.c.h.b16 %v2904
    %v6421 = vunpack.c.l.b16 %v2905
    %v6422 = vunpack.c.h.b16 %v2905
    %v6423 = vunpack.c.l.b16 %v2906
    %v6424 = vunpack.c.h.b16 %v2906
    %v6425 = vunpack.c.l.b16 %v2907
    %v6426 = vunpack.c.h.b16 %v2907
    %v6427 = vunpack.c.l.b16 %v2908
    %v6428 = vunpack.c.h.b16 %v2908
    %v6429 = vunpack.c.l.b16 %v2909
    %v6430 = vunpack.c.h.b16 %v2909
    %v6431 = vunpack.c.l.b16 %v2910
    %v6432 = vunpack.c.h.b16 %v2910
    %v6433 = vunpack.c.l.b16 %v2911
    %v6434 = vunpack.c.h.b16 %v2911
    %v6435 = vunpack.c.l.b16 %v2912
    %v6436 = vunpack.c.h.b16 %v2912
    %v6437 = vunpack.c.l.b16 %v2913
    %v6438 = vunpack.c.h.b16 %v2913
    %v6439 = vunpack.c.l.b16 %v2914
    %v6440 = vunpack.c.h.b16 %v2914
    %v6441 = vunpack.c.l.b16 %v2915
    %v6442 = vunpack.c.h.b16 %v2915
    %v6443 = vunpack.c.l.b16 %v2916
    %v6444 = vunpack.c.h.b16 %v2916
    %v6445 = vunpack.c.l.b16 %v2917
    %v6446 = vunpack.c.h.b16 %v2917
    %v6447 = vunpack.c.l.b16 %v2918
    %v6448 = vunpack.c.h.b16 %v2918
    %v6449 = vunpack.c.l.b16 %v2919
    %v6450 = vunpack.c.h.b16 %v2919
    %v6451 = vunpack.c.l.b16 %v2920
    %v6452 = vunpack.c.h.b16 %v2920
    %v6453 = vunpack.c.l.b16 %v2921
    %v6454 = vunpack.c.h.b16 %v2921
    %v6455 = vunpack.c.l.b16 %v2922
    %v6456 = vunpack.c.h.b16 %v2922
    %v6457 = vunpack.c.l.b16 %v2923
    %v6458 = vunpack.c.h.b16 %v2923
    %v6459 = vunpack.c.l.b16 %v2924
    %v6460 = vunpack.c.h.b16 %v2924
    %v6461 = vunpack.c.l.b16 %v2925
    %v6462 = vunpack.c.h.b16 %v2925
    %v6463 = vunpack.c.l.b16 %v2926
    %v6464 = vunpack.c.h.b16 %v2926
    %v6465 = vunpack.c.l.b16 %v2927
    %v6466 = vunpack.c.h.b16 %v2927
    %v6467 = vunpack.c.l.b16 %v2928
    %v6468 = vunpack.c.h.b16 %v2928
    %v6469 = vunpack.c.l.b16 %v2929
    %v6470 = vunpack.c.h.b16 %v2929
    %v6471 = vunpack.c.l.b16 %v2930
    %v6472 = vunpack.c.h.b16 %v2930
    %v6473 = vunpack.c.l.b16 %v2931
    %v6474 = vunpack.c.h.b16 %v2931
    %v6475 = vunpack.c.l.b16 %v2932
    %v6476 = vunpack.c.h.b16 %v2932
    %v6477 = vunpack.c.l.b16 %v2933
    %v6478 = vunpack.c.h.b16 %v2933
    %v6479 = vunpack.c.l.b16 %v2934
    %v6480 = vunpack.c.h.b16 %v2934
    %v6481 = vunpack.c.l.b16 %v2935
    %v6482 = vunpack.c.h.b16 %v2935
    %v6483 = vunpack.c.l.b16 %v2936
    %v6484 = vunpack.c.h.b16 %v2936
    %v6485 = vunpack.c.l.b16 %v2937
    %v6486 = vunpack.c.h.b16 %v2937
    %v6487 = vunpack.c.l.b16 %v2938
    %v6488 = vunpack.c.h.b16 %v2938
    %v6489 = vunpack.c.l.b16 %v2939
    %v6490 = vunpack.c.h.b16 %v2939
    %v6491 = vunpack.c.l.b16 %v2940
    %v6492 = vunpack.c.h.b16 %v2940
    %v6493 = vunpack.c.l.b16 %v2941
    %v6494 = vunpack.c.h.b16 %v2941
    %v6495 = vunpack.c.l.b16 %v2942
    %v6496 = vunpack.c.h.b16 %v2942
    %v6497 = vunpack.c.l.b16 %v2943
    %v6498 = vunpack.c.h.b16 %v2943
    %v6499 = vunpack.c.l.b16 %v2944
    %v6500 = vunpack.c.h.b16 %v2944
    %v6501 = vunpack.c.l.b16 %v2945
    %v6502 = vunpack.c.h.b16 %v2945
    %v6503 = vunpack.c.l.b16 %v2946
    %v6504 = vunpack.c.h.b16 %v2946
    %v6505 = vunpack.c.l.b16 %v2947
    %v6506 = vunpack.c.h.b16 %v2947
    %v6507 = vunpack.c.l.b16 %v2948
    %v6508 = vunpack.c.h.b16 %v2948
    %v6509 = vunpack.c.l.b16 %v2949
    %v6510 = vunpack.c.h.b16 %v2949
    %v6511 = vunpack.c.l.b16 %v2950
    %v6512 = vunpack.c.h.b16 %v2950
    %v6513 = vunpack.c.l.b16 %v2951
    %v6514 = vunpack.c.h.b16 %v2951
    %v6515 = vunpack.c.l.b16 %v2952
    %v6516 = vunpack.c.h.b16 %v2952
    %v6517 = vunpack.c.l.b16 %v2953
    %v6518 = vunpack.c.h.b16 %v2953
    %v6519 = vunpack.c.l.b16 %v2954
    %v6520 = vunpack.c.h.b16 %v2954
    %v6521 = vunpack.c.l.b16 %v2955
    %v6522 = vunpack.c.h.b16 %v2955
    %v6523 = vunpack.c.l.b16 %v2956
    %v6524 = vunpack.c.h.b16 %v2956
    %v6525 = vunpack.c.l.b16 %v2957
    %v6526 = vunpack.c.h.b16 %v2957
    %v6527 = vunpack.c.l.b16 %v2958
    %v6528 = vunpack.c.h.b16 %v2958
    %v6529 = vunpack.c.l.b16 %v2959
    %v6530 = vunpack.c.h.b16 %v2959
    %v6531 = vunpack.c.l.b16 %v2960
    %v6532 = vunpack.c.h.b16 %v2960
    %v6533 = vunpack.c.l.b16 %v2961
    %v6534 = vunpack.c.h.b16 %v2961
    %v6535 = vunpack.c.l.b16 %v2962
    %v6536 = vunpack.c.h.b16 %v2962
    %v6537 = vunpack.c.l.b16 %v2963
    %v6538 = vunpack.c.h.b16 %v2963
    %v6539 = vunpack.c.l.b16 %v2964
    %v6540 = vunpack.c.h.b16 %v2964
    %v6541 = vunpack.c.l.b16 %v2965
    %v6542 = vunpack.c.h.b16 %v2965
    %v6543 = vunpack.c.l.b16 %v2966
    %v6544 = vunpack.c.h.b16 %v2966
    %v6545 = vunpack.c.l.b16 %v2967
    %v6546 = vunpack.c.h.b16 %v2967
    %v6547 = vunpack.c.l.b16 %v2968
    %v6548 = vunpack.c.h.b16 %v2968
    %v6549 = vunpack.c.l.b16 %v2969
    %v6550 = vunpack.c.h.b16 %v2969
    %v6551 = vunpack.c.l.b16 %v2970
    %v6552 = vunpack.c.h.b16 %v2970
    %v6553 = vunpack.c.l.b16 %v2971
    %v6554 = vunpack.c.h.b16 %v2971
    %v6555 = vunpack.c.l.b16 %v2972
    %v6556 = vunpack.c.h.b16 %v2972
    %v6557 = vunpack.c.l.b16 %v2973
    %v6558 = vunpack.c.h.b16 %v2973
    %v6559 = vunpack.c.l.b16 %v2974
    %v6560 = vunpack.c.h.b16 %v2974
    %v6561 = vunpack.c.l.b16 %v2975
    %v6562 = vunpack.c.h.b16 %v2975
    %v6563 = vunpack.c.l.b16 %v2976
    %v6564 = vunpack.c.h.b16 %v2976
    %v6565 = vunpack.c.l.b16 %v2977
    %v6566 = vunpack.c.h.b16 %v2977
    %v6567 = vunpack.c.l.b16 %v2978
    %v6568 = vunpack.c.h.b16 %v2978
    %v6569 = vunpack.c.l.b16 %v2979
    %v6570 = vunpack.c.h.b16 %v2979
    %v6571 = vunpack.c.l.b16 %v2980
    %v6572 = vunpack.c.h.b16 %v2980
    %v6573 = vunpack.c.l.b16 %v2981
    %v6574 = vunpack.c.h.b16 %v2981
    %v6575 = vunpack.c.l.b16 %v2982
    %v6576 = vunpack.c.h.b16 %v2982
    %v6577 = vunpack.c.l.b16 %v2983
    %v6578 = vunpack.c.h.b16 %v2983
    %v6579 = vunpack.c.l.b16 %v2984
    %v6580 = vunpack.c.h.b16 %v2984
    %v6581 = vunpack.c.l.b16 %v2985
    %v6582 = vunpack.c.h.b16 %v2985
    %v6583 = vunpack.c.l.b16 %v2986
    %v6584 = vunpack.c.h.b16 %v2986
    %v6585 = vunpack.c.l.b16 %v2987
    %v6586 = vunpack.c.h.b16 %v2987
    %v6587 = vunpack.c.l.b16 %v2988
    %v6588 = vunpack.c.h.b16 %v2988
    %v6589 = vunpack.c.l.b16 %v2989
    %v6590 = vunpack.c.h.b16 %v2989
    %v6591 = vunpack.c.l.b16 %v2990
    %v6592 = vunpack.c.h.b16 %v2990
    %v6593 = vunpack.c.l.b16 %v2991
    %v6594 = vunpack.c.h.b16 %v2991
    %v6595 = vunpack.c.l.b16 %v2992
    %v6596 = vunpack.c.h.b16 %v2992
    %v6597 = vunpack.c.l.b16 %v2993
    %v6598 = vunpack.c.h.b16 %v2993
    %v6599 = vunpack.c.l.b16 %v2994
    %v6600 = vunpack.c.h.b16 %v2994
    %v6601 = vunpack.c.l.b16 %v2995
    %v6602 = vunpack.c.h.b16 %v2995
    %v6603 = vunpack.c.l.b16 %v2996
    %v6604 = vunpack.c.h.b16 %v2996
    %v6605 = vunpack.c.l.b16 %v2997
    %v6606 = vunpack.c.h.b16 %v2997
    %v6607 = vunpack.c.l.b16 %v2998
    %v6608 = vunpack.c.h.b16 %v2998
    %v6609 = vunpack.c.l.b16 %v2999
    %v6610 = vunpack.c.h.b16 %v2999
    %v6611 = vunpack.c.l.b16 %v3000
    %v6612 = vunpack.c.h.b16 %v3000
    %v6613 = vunpack.c.l.b16 %v3001
    %v6614 = vunpack.c.h.b16 %v3001
    %v6615 = vunpack.c.l.b16 %v3002
    %v6616 = vunpack.c.h.b16 %v3002
    %v6617 = vunpack.c.l.b16 %v3003
    %v6618 = vunpack.c.h.b16 %v3003
    %v6619 = vunpack.c.l.b16 %v3004
    %v6620 = vunpack.c.h.b16 %v3004
    %v6621 = vunpack.c.l.b16 %v3005
    %v6622 = vunpack.c.h.b16 %v3005
    %v6623 = vunpack.c.l.b16 %v3006
    %v6624 = vunpack.c.h.b16 %v3006
    %v6625 = vunpack.c.l.b16 %v3007
    %v6626 = vunpack.c.h.b16 %v3007
    %v6627 = vunpack.c.l.b16 %v3008
    %v6628 = vunpack.c.h.b16 %v3008
    %v6629 = vunpack.c.l.b16 %v3009
    %v6630 = vunpack.c.h.b16 %v3009
    %v6631 = vunpack.c.l.b16 %v3010
    %v6632 = vunpack.c.h.b16 %v3010
    %v6633 = vunpack.c.l.b16 %v3011
    %v6634 = vunpack.c.h.b16 %v3011
    %v6635 = vunpack.c.l.b16 %v3012
    %v6636 = vunpack.c.h.b16 %v3012
    %v6637 = vunpack.c.l.b16 %v3013
    %v6638 = vunpack.c.h.b16 %v3013
    %v6639 = vunpack.c.l.b16 %v3014
    %v6640 = vunpack.c.h.b16 %v3014
    %v6641 = vunpack.c.l.b16 %v3015
    %v6642 = vunpack.c.h.b16 %v3015
    %v6643 = vunpack.c.l.b16 %v3016
    %v6644 = vunpack.c.h.b16 %v3016
    %v6645 = vunpack.c.l.b16 %v3017
    %v6646 = vunpack.c.h.b16 %v3017
    %v6647 = vunpack.c.l.b16 %v3018
    %v6648 = vunpack.c.h.b16 %v3018
    %v6649 = vunpack.c.l.b16 %v3019
    %v6650 = vunpack.c.h.b16 %v3019
    %v6651 = vunpack.c.l.b16 %v3020
    %v6652 = vunpack.c.h.b16 %v3020
    %v6653 = vunpack.c.l.b16 %v3021
    %v6654 = vunpack.c.h.b16 %v3021
    %v6655 = vunpack.c.l.b16 %v3022
    %v6656 = vunpack.c.h.b16 %v3022
    %v6657 = vunpack.c.l.b16 %v3023
    %v6658 = vunpack.c.h.b16 %v3023
    %v6659 = vunpack.c.l.b16 %v3024
    %v6660 = vunpack.c.h.b16 %v3024
    %v6661 = vunpack.c.l.b16 %v3025
    %v6662 = vunpack.c.h.b16 %v3025
    %v6663 = vunpack.c.l.b16 %v3026
    %v6664 = vunpack.c.h.b16 %v3026
    %v6665 = vunpack.c.l.b16 %v3027
    %v6666 = vunpack.c.h.b16 %v3027
    %v6667 = vunpack.c.l.b16 %v3028
    %v6668 = vunpack.c.h.b16 %v3028
    %v6669 = vunpack.c.l.b16 %v3029
    %v6670 = vunpack.c.h.b16 %v3029
    %v6671 = vunpack.c.l.b16 %v3030
    %v6672 = vunpack.c.h.b16 %v3030
    %v6673 = vunpack.c.l.b16 %v3031
    %v6674 = vunpack.c.h.b16 %v3031
    %v6675 = vunpack.c.l.b16 %v3032
    %v6676 = vunpack.c.h.b16 %v3032
    %v6677 = vunpack.c.l.b16 %v3033
    %v6678 = vunpack.c.h.b16 %v3033
    %v6679 = vunpack.c.l.b16 %v3034
    %v6680 = vunpack.c.h.b16 %v3034
    %v6681 = vunpack.c.l.b16 %v3035
    %v6682 = vunpack.c.h.b16 %v3035
    %v6683 = vunpack.c.l.b16 %v3036
    %v6684 = vunpack.c.h.b16 %v3036
    %v6685 = vunpack.c.l.b16 %v3037
    %v6686 = vunpack.c.h.b16 %v3037
    %v6687 = vunpack.c.l.b16 %v3038
    %v6688 = vunpack.c.h.b16 %v3038
    %v6689 = vunpack.c.l.b16 %v3039
    %v6690 = vunpack.c.h.b16 %v3039
    %v6691 = vunpack.c.l.b16 %v3040
    %v6692 = vunpack.c.h.b16 %v3040
    %v6693 = vunpack.c.l.b16 %v3041
    %v6694 = vunpack.c.h.b16 %v3041
    %v6695 = vunpack.c.l.b16 %v3042
    %v6696 = vunpack.c.h.b16 %v3042
    %v6697 = vunpack.c.l.b16 %v3043
    %v6698 = vunpack.c.h.b16 %v3043
    %v6699 = vunpack.c.l.b16 %v3044
    %v6700 = vunpack.c.h.b16 %v3044
    %v6701 = vunpack.c.l.b16 %v3045
    %v6702 = vunpack.c.h.b16 %v3045
    %v6703 = vunpack.c.l.b16 %v3046
    %v6704 = vunpack.c.h.b16 %v3046
    %v6705 = vunpack.c.l.b16 %v3047
    %v6706 = vunpack.c.h.b16 %v3047
    %v6707 = vunpack.c.l.b16 %v3048
    %v6708 = vunpack.c.h.b16 %v3048
    %v6709 = vunpack.c.l.b16 %v3049
    %v6710 = vunpack.c.h.b16 %v3049
    %v6711 = vunpack.c.l.b16 %v3050
    %v6712 = vunpack.c.h.b16 %v3050
    %v6713 = vunpack.c.l.b16 %v3051
    %v6714 = vunpack.c.h.b16 %v3051
    %v6715 = vunpack.c.l.b16 %v3052
    %v6716 = vunpack.c.h.b16 %v3052
    %v6717 = vunpack.c.l.b16 %v3053
    %v6718 = vunpack.c.h.b16 %v3053
    %v6719 = vunpack.c.l.b16 %v3054
    %v6720 = vunpack.c.h.b16 %v3054
    %v6721 = vunpack.c.l.b16 %v3055
    %v6722 = vunpack.c.h.b16 %v3055
    %v6723 = vunpack.c.l.b16 %v3056
    %v6724 = vunpack.c.h.b16 %v3056
    %v6725 = vunpack.c.l.b16 %v3057
    %v6726 = vunpack.c.h.b16 %v3057
    %v6727 = vunpack.c.l.b16 %v3058
    %v6728 = vunpack.c.h.b16 %v3058
    %v6729 = vunpack.c.l.b16 %v3059
    %v6730 = vunpack.c.h.b16 %v3059
    %v6731 = vunpack.c.l.b16 %v3060
    %v6732 = vunpack.c.h.b16 %v3060
    %v6733 = vunpack.c.l.b16 %v3061
    %v6734 = vunpack.c.h.b16 %v3061
    %v6735 = vunpack.c.l.b16 %v3062
    %v6736 = vunpack.c.h.b16 %v3062
    %v6737 = vunpack.c.l.b16 %v3063
    %v6738 = vunpack.c.h.b16 %v3063
    %v6739 = vunpack.c.l.b16 %v3064
    %v6740 = vunpack.c.h.b16 %v3064
    %v6741 = vunpack.c.l.b16 %v3065
    %v6742 = vunpack.c.h.b16 %v3065
    %v6743 = vunpack.c.l.b16 %v3066
    %v6744 = vunpack.c.h.b16 %v3066
    %v6745 = vunpack.c.l.b16 %v3067
    %v6746 = vunpack.c.h.b16 %v3067
    %v6747 = vunpack.c.l.b16 %v3068
    %v6748 = vunpack.c.h.b16 %v3068
    %v6749 = vunpack.c.l.b16 %v3069
    %v6750 = vunpack.c.h.b16 %v3069
    %v6751 = vunpack.c.l.b16 %v3070
    %v6752 = vunpack.c.h.b16 %v3070
    %v6753 = vunpack.c.l.b16 %v3071
    %v6754 = vunpack.c.h.b16 %v3071
    %v6755 = vunpack.c.l.b16 %v3072
    %v6756 = vunpack.c.h.b16 %v3072
    %v6757 = vunpack.c.l.b16 %v3073
    %v6758 = vunpack.c.h.b16 %v3073
    %v6759 = vunpack.c.l.b16 %v3074
    %v6760 = vunpack.c.h.b16 %v3074
    %v6761 = vunpack.c.l.b16 %v3075
    %v6762 = vunpack.c.h.b16 %v3075
    %v6763 = vunpack.c.l.b16 %v3076
    %v6764 = vunpack.c.h.b16 %v3076
    %v6765 = vunpack.c.l.b16 %v3077
    %v6766 = vunpack.c.h.b16 %v3077
    %v6767 = vunpack.c.l.b16 %v3078
    %v6768 = vunpack.c.h.b16 %v3078
    %v6769 = vunpack.c.l.b16 %v3079
    %v6770 = vunpack.c.h.b16 %v3079
    %v6771 = vunpack.c.l.b16 %v3080
    %v6772 = vunpack.c.h.b16 %v3080
    %v6773 = vunpack.c.l.b16 %v3081
    %v6774 = vunpack.c.h.b16 %v3081
    %v6775 = vunpack.c.l.b16 %v3082
    %v6776 = vunpack.c.h.b16 %v3082
    %v6777 = vunpack.c.l.b16 %v3083
    %v6778 = vunpack.c.h.b16 %v3083
    %v6779 = vunpack.c.l.b16 %v3084
    %v6780 = vunpack.c.h.b16 %v3084
    %v6781 = vunpack.c.l.b16 %v3085
    %v6782 = vunpack.c.h.b16 %v3085
    %v6783 = vunpack.c.l.b16 %v3086
    %v6784 = vunpack.c.h.b16 %v3086
    %v6785 = vunpack.c.l.b16 %v3087
    %v6786 = vunpack.c.h.b16 %v3087
    %v6787 = vunpack.c.l.b16 %v3088
    %v6788 = vunpack.c.h.b16 %v3088
    %v6789 = vunpack.c.l.b16 %v3089
    %v6790 = vunpack.c.h.b16 %v3089
    %v6791 = vunpack.c.l.b16 %v3090
    %v6792 = vunpack.c.h.b16 %v3090
    %v6793 = vunpack.c.l.b16 %v3091
    %v6794 = vunpack.c.h.b16 %v3091
    %v6795 = vunpack.c.l.b16 %v3092
    %v6796 = vunpack.c.h.b16 %v3092
    %v6797 = vunpack.c.l.b16 %v3093
    %v6798 = vunpack.c.h.b16 %v3093
    %v6799 = vunpack.c.l.b16 %v3094
    %v6800 = vunpack.c.h.b16 %v3094
    %v6801 = vunpack.c.l.b16 %v3095
    %v6802 = vunpack.c.h.b16 %v3095
    %v6803 = vunpack.c.l.b16 %v3096
    %v6804 = vunpack.c.h.b16 %v3096
    %v6805 = vunpack.c.l.b16 %v3097
    %v6806 = vunpack.c.h.b16 %v3097
    %v6807 = vunpack.c.l.b16 %v3098
    %v6808 = vunpack.c.h.b16 %v3098
    %v6809 = vunpack.c.l.b16 %v3099
    %v6810 = vunpack.c.h.b16 %v3099
    %v6811 = vunpack.c.l.b16 %v3100
    %v6812 = vunpack.c.h.b16 %v3100
    %v6813 = vunpack.c.l.b16 %v3101
    %v6814 = vunpack.c.h.b16 %v3101
    %v6815 = vunpack.c.l.b16 %v3102
    %v6816 = vunpack.c.h.b16 %v3102
    %v6817 = vunpack.c.l.b16 %v3103
    %v6818 = vunpack.c.h.b16 %v3103
    %v6819 = vunpack.c.l.b16 %v3104
    %v6820 = vunpack.c.h.b16 %v3104
    %v6821 = vunpack.c.l.b16 %v3105
    %v6822 = vunpack.c.h.b16 %v3105
    %v6823 = vunpack.c.l.b16 %v3106
    %v6824 = vunpack.c.h.b16 %v3106
    %v6825 = vunpack.c.l.b16 %v3107
    %v6826 = vunpack.c.h.b16 %v3107
    %v6827 = vunpack.c.l.b16 %v3108
    %v6828 = vunpack.c.h.b16 %v3108
    %v6829 = vunpack.c.l.b16 %v3109
    %v6830 = vunpack.c.h.b16 %v3109
    %v6831 = vunpack.c.l.b16 %v3110
    %v6832 = vunpack.c.h.b16 %v3110
    %v6833 = vunpack.c.l.b16 %v3111
    %v6834 = vunpack.c.h.b16 %v3111
    %v6835 = vunpack.c.l.b16 %v3112
    %v6836 = vunpack.c.h.b16 %v3112
    %v6837 = vunpack.c.l.b16 %v3113
    %v6838 = vunpack.c.h.b16 %v3113
    %v6839 = vunpack.c.l.b16 %v3114
    %v6840 = vunpack.c.h.b16 %v3114
    %v6841 = vunpack.c.l.b16 %v3115
    %v6842 = vunpack.c.h.b16 %v3115
    %v6843 = vunpack.c.l.b16 %v3116
    %v6844 = vunpack.c.h.b16 %v3116
    %v6845 = vunpack.c.l.b16 %v3117
    %v6846 = vunpack.c.h.b16 %v3117
    %v6847 = vunpack.c.l.b16 %v3118
    %v6848 = vunpack.c.h.b16 %v3118
    %v6849 = vunpack.c.l.b16 %v3119
    %v6850 = vunpack.c.h.b16 %v3119
    %v6851 = vunpack.c.l.b16 %v3120
    %v6852 = vunpack.c.h.b16 %v3120
    %v6853 = vunpack.c.l.b16 %v3121
    %v6854 = vunpack.c.h.b16 %v3121
    %v6855 = vunpack.c.l.b16 %v3122
    %v6856 = vunpack.c.h.b16 %v3122
    %v6857 = vunpack.c.l.b16 %v3123
    %v6858 = vunpack.c.h.b16 %v3123
    %v6859 = vunpack.c.l.b16 %v3124
    %v6860 = vunpack.c.h.b16 %v3124
    %v6861 = vunpack.c.l.b16 %v3125
    %v6862 = vunpack.c.h.b16 %v3125
    %v6863 = vunpack.c.l.b16 %v3126
    %v6864 = vunpack.c.h.b16 %v3126
    %v6865 = vunpack.c.l.b16 %v3127
    %v6866 = vunpack.c.h.b16 %v3127
    %v6867 = vunpack.c.l.b16 %v3128
    %v6868 = vunpack.c.h.b16 %v3128
    %v6869 = vunpack.c.l.b16 %v3129
    %v6870 = vunpack.c.h.b16 %v3129
    %v6871 = vunpack.c.l.b16 %v3130
    %v6872 = vunpack.c.h.b16 %v3130
    %v6873 = vunpack.c.l.b16 %v3131
    %v6874 = vunpack.c.h.b16 %v3131
    %v6875 = vunpack.c.l.b16 %v3132
    %v6876 = vunpack.c.h.b16 %v3132
    %v6877 = vunpack.c.l.b16 %v3133
    %v6878 = vunpack.c.h.b16 %v3133
    %v6879 = vunpack.c.l.b16 %v3134
    %v6880 = vunpack.c.h.b16 %v3134
    %v6881 = vunpack.c.l.b16 %v3135
    %v6882 = vunpack.c.h.b16 %v3135
    %v6883 = vunpack.c.l.b16 %v3136
    %v6884 = vunpack.c.h.b16 %v3136
    %v6885 = vunpack.c.l.b16 %v3137
    %v6886 = vunpack.c.h.b16 %v3137
    %v6887 = vunpack.c.l.b16 %v3138
    %v6888 = vunpack.c.h.b16 %v3138
    %v6889 = vunpack.c.l.b16 %v3139
    %v6890 = vunpack.c.h.b16 %v3139
    %v6891 = vunpack.c.l.b16 %v3140
    %v6892 = vunpack.c.h.b16 %v3140
    %v6893 = vunpack.c.l.b16 %v3141
    %v6894 = vunpack.c.h.b16 %v3141
    %v6895 = vunpack.c.l.b16 %v3142
    %v6896 = vunpack.c.h.b16 %v3142
    %v6897 = vunpack.c.l.b16 %v3143
    %v6898 = vunpack.c.h.b16 %v3143
    %v6899 = vunpack.c.l.b16 %v3144
    %v6900 = vunpack.c.h.b16 %v3144
    %v6901 = vunpack.c.l.b16 %v3145
    %v6902 = vunpack.c.h.b16 %v3145
    %v6903 = vunpack.c.l.b16 %v3146
    %v6904 = vunpack.c.h.b16 %v3146
    %v6905 = vunpack.c.l.b16 %v3147
    %v6906 = vunpack.c.h.b16 %v3147
    %v6907 = vunpack.c.l.b16 %v3148
    %v6908 = vunpack.c.h.b16 %v3148
    %v6909 = vunpack.c.l.b16 %v3149
    %v6910 = vunpack.c.h.b16 %v3149
    %v6911 = vunpack.c.l.b16 %v3150
    %v6912 = vunpack.c.h.b16 %v3150
    %v6913 = vunpack.c.l.b16 %v3151
    %v6914 = vunpack.c.h.b16 %v3151
    %v6915 = vunpack.c.l.b16 %v3152
    %v6916 = vunpack.c.h.b16 %v3152
    %v6917 = vunpack.c.l.b16 %v3153
    %v6918 = vunpack.c.h.b16 %v3153
    %v6919 = vunpack.c.l.b16 %v3154
    %v6920 = vunpack.c.h.b16 %v3154
    %v6921 = vunpack.c.l.b16 %v3155
    %v6922 = vunpack.c.h.b16 %v3155
    %v6923 = vunpack.c.l.b16 %v3156
    %v6924 = vunpack.c.h.b16 %v3156
    %v6925 = vunpack.c.l.b16 %v3157
    %v6926 = vunpack.c.h.b16 %v3157
    %v6927 = vunpack.c.l.b16 %v3158
    %v6928 = vunpack.c.h.b16 %v3158
    %v6929 = vunpack.c.l.b16 %v3159
    %v6930 = vunpack.c.h.b16 %v3159
    %v6931 = vunpack.c.l.b16 %v3160
    %v6932 = vunpack.c.h.b16 %v3160
    %v6933 = vunpack.c.l.b16 %v3161
    %v6934 = vunpack.c.h.b16 %v3161
    %v6935 = vunpack.c.l.b16 %v3162
    %v6936 = vunpack.c.h.b16 %v3162
    %v6937 = vunpack.c.l.b16 %v3163
    %v6938 = vunpack.c.h.b16 %v3163
    %v6939 = vunpack.c.l.b16 %v3164
    %v6940 = vunpack.c.h.b16 %v3164
    %v6941 = vunpack.c.l.b16 %v3165
    %v6942 = vunpack.c.h.b16 %v3165
    %v6943 = vunpack.c.l.b16 %v3166
    %v6944 = vunpack.c.h.b16 %v3166
    %v6945 = vunpack.c.l.b16 %v3167
    %v6946 = vunpack.c.h.b16 %v3167
    %v6947 = vunpack.c.l.b16 %v3168
    %v6948 = vunpack.c.h.b16 %v3168
    %v6949 = vunpack.c.l.b16 %v3169
    %v6950 = vunpack.c.h.b16 %v3169
    %v6951 = vunpack.c.l.b16 %v3170
    %v6952 = vunpack.c.h.b16 %v3170
    %v6953 = vunpack.c.l.b16 %v3171
    %v6954 = vunpack.c.h.b16 %v3171
    %v6955 = vunpack.c.l.b16 %v3172
    %v6956 = vunpack.c.h.b16 %v3172
    %v6957 = vunpack.c.l.b16 %v3173
    %v6958 = vunpack.c.h.b16 %v3173
    %v6959 = vunpack.c.l.b16 %v3174
    %v6960 = vunpack.c.h.b16 %v3174
    %v6961 = vunpack.c.l.b16 %v3175
    %v6962 = vunpack.c.h.b16 %v3175
    %v6963 = vunpack.c.l.b16 %v3176
    %v6964 = vunpack.c.h.b16 %v3176
    %v6965 = vunpack.c.l.b16 %v3177
    %v6966 = vunpack.c.h.b16 %v3177
    %v6967 = vunpack.c.l.b16 %v3178
    %v6968 = vunpack.c.h.b16 %v3178
    %v6969 = vunpack.c.l.b16 %v3179
    %v6970 = vunpack.c.h.b16 %v3179
    %v6971 = vunpack.c.l.b16 %v3180
    %v6972 = vunpack.c.h.b16 %v3180
    %v6973 = vunpack.c.l.b16 %v3181
    %v6974 = vunpack.c.h.b16 %v3181
    %v6975 = vunpack.c.l.b16 %v3182
    %v6976 = vunpack.c.h.b16 %v3182
    %v6977 = vunpack.c.l.b16 %v3183
    %v6978 = vunpack.c.h.b16 %v3183
    %v6979 = vunpack.c.l.b16 %v3184
    %v6980 = vunpack.c.h.b16 %v3184
    %v6981 = vunpack.c.l.b16 %v3185
    %v6982 = vunpack.c.h.b16 %v3185
    %v6983 = vunpack.c.l.b16 %v3186
    %v6984 = vunpack.c.h.b16 %v3186
    %v6985 = vunpack.c.l.b16 %v3187
    %v6986 = vunpack.c.h.b16 %v3187
    %v6987 = vunpack.c.l.b16 %v3188
    %v6988 = vunpack.c.h.b16 %v3188
    %v6989 = vunpack.c.l.b16 %v3189
    %v6990 = vunpack.c.h.b16 %v3189
    %v6991 = vunpack.c.l.b16 %v3190
    %v6992 = vunpack.c.h.b16 %v3190
    %v6993 = vunpack.c.l.b16 %v3191
    %v6994 = vunpack.c.h.b16 %v3191
    %v6995 = vunpack.c.l.b16 %v3192
    %v6996 = vunpack.c.h.b16 %v3192
    %v6997 = vunpack.c.l.b16 %v3193
    %v6998 = vunpack.c.h.b16 %v3193
    %v6999 = vunpack.c.l.b16 %v3194
    %v7000 = vunpack.c.h.b16 %v3194
    %v7001 = vunpack.c.l.b16 %v3195
    %v7002 = vunpack.c.h.b16 %v3195
    %v7003 = vunpack.c.l.b16 %v3196
    %v7004 = vunpack.c.h.b16 %v3196
    %v7005 = vunpack.c.l.b16 %v3197
    %v7006 = vunpack.c.h.b16 %v3197
    %v7007 = vunpack.c.l.b16 %v3198
    %v7008 = vunpack.c.h.b16 %v3198
    %v7009 = vunpack.c.l.b16 %v3199
    %v7010 = vunpack.c.h.b16 %v3199
    %v7011 = vunpack.c.l.b16 %v3200
    %v7012 = vunpack.c.h.b16 %v3200
    %v7013 = vunpack.c.l.b16 %v3201
    %v7014 = vunpack.c.h.b16 %v3201
    %v7015 = vunpack.c.l.b16 %v3202
    %v7016 = vunpack.c.h.b16 %v3202
    %v7017 = vunpack.c.l.b16 %v3203
    %v7018 = vunpack.c.h.b16 %v3203
    %v7019 = vunpack.c.l.b16 %v3204
    %v7020 = vunpack.c.h.b16 %v3204
    %v7021 = vunpack.c.l.b16 %v3205
    %v7022 = vunpack.c.h.b16 %v3205
    %v7023 = vunpack.c.l.b16 %v3206
    %v7024 = vunpack.c.h.b16 %v3206
    %v7025 = vunpack.c.l.b16 %v3207
    %v7026 = vunpack.c.h.b16 %v3207
    %v7027 = vunpack.c.l.b16 %v3208
    %v7028 = vunpack.c.h.b16 %v3208
    %v7029 = vunpack.c.l.b16 %v3209
    %v7030 = vunpack.c.h.b16 %v3209
    %v7031 = vunpack.c.l.b16 %v3210
    %v7032 = vunpack.c.h.b16 %v3210
    %v7033 = vunpack.c.l.b16 %v3211
    %v7034 = vunpack.c.h.b16 %v3211
    %v7035 = vunpack.c.l.b16 %v3212
    %v7036 = vunpack.c.h.b16 %v3212
    %v7037 = vunpack.c.l.b16 %v3213
    %v7038 = vunpack.c.h.b16 %v3213
    %v7039 = vunpack.c.l.b16 %v3214
    %v7040 = vunpack.c.h.b16 %v3214
    %v7041 = vunpack.c.l.b16 %v3215
    %v7042 = vunpack.c.h.b16 %v3215
    %v7043 = vunpack.c.l.b16 %v3216
    %v7044 = vunpack.c.h.b16 %v3216
    %v7045 = vunpack.c.l.b16 %v3217
    %v7046 = vunpack.c.h.b16 %v3217
    %v7047 = vunpack.c.l.b16 %v3218
    %v7048 = vunpack.c.h.b16 %v3218
    %v7049 = vunpack.c.l.b16 %v3219
    %v7050 = vunpack.c.h.b16 %v3219
    %v7051 = vunpack.c.l.b16 %v3220
    %v7052 = vunpack.c.h.b16 %v3220
    %v7053 = vunpack.c.l.b16 %v3221
    %v7054 = vunpack.c.h.b16 %v3221
    %v7055 = vunpack.c.l.b16 %v3222
    %v7056 = vunpack.c.h.b16 %v3222
    %v7057 = vunpack.c.l.b16 %v3223
    %v7058 = vunpack.c.h.b16 %v3223
    %v7059 = vunpack.c.l.b16 %v3224
    %v7060 = vunpack.c.h.b16 %v3224
    %v7061 = vunpack.c.l.b16 %v3225
    %v7062 = vunpack.c.h.b16 %v3225
    %v7063 = vunpack.c.l.b16 %v3226
    %v7064 = vunpack.c.h.b16 %v3226
    %v7065 = vunpack.c.l.b16 %v3227
    %v7066 = vunpack.c.h.b16 %v3227
    %v7067 = vunpack.c.l.b16 %v3228
    %v7068 = vunpack.c.h.b16 %v3228
    %v7069 = vunpack.c.l.b16 %v3229
    %v7070 = vunpack.c.h.b16 %v3229
    %v7071 = vunpack.c.l.b16 %v3230
    %v7072 = vunpack.c.h.b16 %v3230
    %v7073 = vunpack.c.l.b16 %v3231
    %v7074 = vunpack.c.h.b16 %v3231
    %v7075 = vunpack.c.l.b16 %v3232
    %v7076 = vunpack.c.h.b16 %v3232
    %v7077 = vunpack.c.l.b16 %v3233
    %v7078 = vunpack.c.h.b16 %v3233
    %v7079 = vunpack.c.l.b16 %v3234
    %v7080 = vunpack.c.h.b16 %v3234
    %v7081 = vunpack.c.l.b16 %v3235
    %v7082 = vunpack.c.h.b16 %v3235
    %v7083 = vunpack.c.l.b16 %v3236
    %v7084 = vunpack.c.h.b16 %v3236
    %v7085 = vunpack.c.l.b16 %v3237
    %v7086 = vunpack.c.h.b16 %v3237
    %v7087 = vunpack.c.l.b16 %v3238
    %v7088 = vunpack.c.h.b16 %v3238
    %v7089 = vunpack.c.l.b16 %v3239
    %v7090 = vunpack.c.h.b16 %v3239
    %v7091 = vunpack.c.l.b16 %v3240
    %v7092 = vunpack.c.h.b16 %v3240
    %v7093 = vunpack.c.l.b16 %v3241
    %v7094 = vunpack.c.h.b16 %v3241
    %v7095 = vunpack.c.l.b16 %v3242
    %v7096 = vunpack.c.h.b16 %v3242
    %v7097 = vunpack.c.l.b16 %v3243
    %v7098 = vunpack.c.h.b16 %v3243
    %v7099 = vunpack.c.l.b16 %v3244
    %v7100 = vunpack.c.h.b16 %v3244
    %v7101 = vunpack.c.l.b16 %v3245
    %v7102 = vunpack.c.h.b16 %v3245
    %v7103 = vunpack.c.l.b16 %v3246
    %v7104 = vunpack.c.h.b16 %v3246
    %v7105 = vunpack.c.l.b16 %v3247
    %v7106 = vunpack.c.h.b16 %v3247
    %v7107 = vunpack.c.l.b16 %v3248
    %v7108 = vunpack.c.h.b16 %v3248
    %v7109 = vunpack.c.l.b16 %v3249
    %v7110 = vunpack.c.h.b16 %v3249
    %v7111 = vunpack.c.l.b16 %v3250
    %v7112 = vunpack.c.h.b16 %v3250
    %v7113 = vunpack.c.l.b16 %v3251
    %v7114 = vunpack.c.h.b16 %v3251
    %v7115 = vunpack.c.l.b16 %v3252
    %v7116 = vunpack.c.h.b16 %v3252
    %v7117 = vunpack.c.l.b16 %v3253
    %v7118 = vunpack.c.h.b16 %v3253
    %v7119 = vunpack.c.l.b16 %v3254
    %v7120 = vunpack.c.h.b16 %v3254
    %v7121 = vunpack.c.l.b16 %v3255
    %v7122 = vunpack.c.h.b16 %v3255
    %v7123 = vunpack.c.l.b16 %v3256
    %v7124 = vunpack.c.h.b16 %v3256
    %v7125 = vunpack.c.l.b16 %v3257
    %v7126 = vunpack.c.h.b16 %v3257
    %v7127 = vunpack.c.l.b16 %v3258
    %v7128 = vunpack.c.h.b16 %v3258
    %v7129 = vunpack.c.l.b16 %v3259
    %v7130 = vunpack.c.h.b16 %v3259
    %v7131 = vunpack.c.l.b16 %v3260
    %v7132 = vunpack.c.h.b16 %v3260
    %v7133 = vunpack.c.l.b16 %v3261
    %v7134 = vunpack.c.h.b16 %v3261
    %v7135 = vunpack.c.l.b16 %v3262
    %v7136 = vunpack.c.h.b16 %v3262
    %v7137 = vunpack.c.l.b16 %v3263
    %v7138 = vunpack.c.h.b16 %v3263
    %v7139 = vunpack.c.l.b16 %v3264
    %v7140 = vunpack.c.h.b16 %v3264
    %v7141 = vunpack.c.l.b16 %v3265
    %v7142 = vunpack.c.h.b16 %v3265
    %v7143 = vunpack.c.l.b16 %v3266
    %v7144 = vunpack.c.h.b16 %v3266
    %v7145 = vunpack.c.l.b16 %v3267
    %v7146 = vunpack.c.h.b16 %v3267
    %v7147 = vunpack.c.l.b16 %v3268
    %v7148 = vunpack.c.h.b16 %v3268
    %v7149 = vunpack.c.l.b16 %v3269
    %v7150 = vunpack.c.h.b16 %v3269
    %v7151 = vunpack.c.l.b16 %v3270
    %v7152 = vunpack.c.h.b16 %v3270
    %v7153 = vunpack.c.l.b16 %v3271
    %v7154 = vunpack.c.h.b16 %v3271
    %v7155 = vunpack.c.l.b16 %v3272
    %v7156 = vunpack.c.h.b16 %v3272
    %v7157 = vunpack.c.l.b16 %v3273
    %v7158 = vunpack.c.h.b16 %v3273
    %v7159 = vunpack.c.l.b16 %v3274
    %v7160 = vunpack.c.h.b16 %v3274
    %v7161 = vunpack.c.l.b16 %v3275
    %v7162 = vunpack.c.h.b16 %v3275
    %v7163 = vunpack.c.l.b16 %v3276
    %v7164 = vunpack.c.h.b16 %v3276
    %v7165 = vunpack.c.l.b16 %v3277
    %v7166 = vunpack.c.h.b16 %v3277
    %v7167 = vunpack.c.l.b16 %v3278
    %v7168 = vunpack.c.h.b16 %v3278
    %v7169 = vunpack.c.l.b16 %v3279
    %v7170 = vunpack.c.h.b16 %v3279
    %v7171 = vunpack.c.l.b16 %v3280
    %v7172 = vunpack.c.h.b16 %v3280
    %v7173 = vunpack.c.l.b16 %v3281
    %v7174 = vunpack.c.h.b16 %v3281
    %v7175 = vunpack.c.l.b16 %v3282
    %v7176 = vunpack.c.h.b16 %v3282
    %v7177 = vunpack.c.l.b16 %v3283
    %v7178 = vunpack.c.h.b16 %v3283
    %v7179 = vunpack.c.l.b16 %v3284
    %v7180 = vunpack.c.h.b16 %v3284
    %v7181 = vunpack.c.l.b16 %v3285
    %v7182 = vunpack.c.h.b16 %v3285
    %v7183 = vunpack.c.l.b16 %v3286
    %v7184 = vunpack.c.h.b16 %v3286
    %v7185 = vunpack.c.l.b16 %v3287
    %v7186 = vunpack.c.h.b16 %v3287
    %v7187 = vunpack.c.l.b16 %v3288
    %v7188 = vunpack.c.h.b16 %v3288
    %v7189 = vunpack.c.l.b16 %v3289
    %v7190 = vunpack.c.h.b16 %v3289
    %v7191 = vunpack.c.l.b16 %v3290
    %v7192 = vunpack.c.h.b16 %v3290
    %v7193 = vunpack.c.l.b16 %v3291
    %v7194 = vunpack.c.h.b16 %v3291
    %v7195 = vunpack.c.l.b16 %v3292
    %v7196 = vunpack.c.h.b16 %v3292
    %v7197 = vunpack.c.l.b16 %v3293
    %v7198 = vunpack.c.h.b16 %v3293
    %v7199 = vunpack.c.l.b16 %v3294
    %v7200 = vunpack.c.h.b16 %v3294
    %v7201 = vunpack.c.l.b16 %v3295
    %v7202 = vunpack.c.h.b16 %v3295
    %v7203 = vunpack.c.l.b16 %v3296
    %v7204 = vunpack.c.h.b16 %v3296
    %v7205 = vunpack.c.l.b16 %v3297
    %v7206 = vunpack.c.h.b16 %v3297
    %v7207 = vunpack.c.l.b16 %v3298
    %v7208 = vunpack.c.h.b16 %v3298
    %v7209 = vunpack.c.l.b16 %v3299
    %v7210 = vunpack.c.h.b16 %v3299
    %v7211 = vunpack.c.l.b16 %v3300
    %v7212 = vunpack.c.h.b16 %v3300
    %v7213 = vunpack.c.l.b16 %v3301
    %v7214 = vunpack.c.h.b16 %v3301
    %v7215 = vunpack.c.l.b16 %v3302
    %v7216 = vunpack.c.h.b16 %v3302
    %v7217 = vunpack.c.l.b16 %v3303
    %v7218 = vunpack.c.h.b16 %v3303
    %v7219 = vunpack.c.l.b16 %v3304
    %v7220 = vunpack.c.h.b16 %v3304
    %v7221 = vunpack.c.l.b16 %v3305
    %v7222 = vunpack.c.h.b16 %v3305
    %v7223 = vunpack.c.l.b16 %v3306
    %v7224 = vunpack.c.h.b16 %v3306
    %v7225 = vunpack.c.l.b16 %v3307
    %v7226 = vunpack.c.h.b16 %v3307
    %v7227 = vunpack.c.l.b16 %v3308
    %v7228 = vunpack.c.h.b16 %v3308
    %v7229 = vunpack.c.l.b16 %v3309
    %v7230 = vunpack.c.h.b16 %v3309
    %v7231 = vunpack.c.l.b16 %v3310
    %v7232 = vunpack.c.h.b16 %v3310
    %v7233 = vunpack.c.l.b16 %v3311
    %v7234 = vunpack.c.h.b16 %v3311
    %v7235 = vunpack.c.l.b16 %v3312
    %v7236 = vunpack.c.h.b16 %v3312
    %v7237 = vunpack.c.l.b16 %v3313
    %v7238 = vunpack.c.h.b16 %v3313
    %v7239 = vunpack.c.l.b16 %v3314
    %v7240 = vunpack.c.h.b16 %v3314
    %v7241 = vunpack.c.l.b16 %v3315
    %v7242 = vunpack.c.h.b16 %v3315
    %v7243 = vunpack.c.l.b16 %v3316
    %v7244 = vunpack.c.h.b16 %v3316
    %v7245 = vunpack.c.l.b16 %v3317
    %v7246 = vunpack.c.h.b16 %v3317
    %v7247 = vunpack.c.l.b16 %v3318
    %v7248 = vunpack.c.h.b16 %v3318
    %v7249 = vunpack.c.l.b16 %v3319
    %v7250 = vunpack.c.h.b16 %v3319
    %v7251 = vunpack.c.l.b16 %v3320
    %v7252 = vunpack.c.h.b16 %v3320
    %v7253 = vunpack.c.l.b16 %v3321
    %v7254 = vunpack.c.h.b16 %v3321
    %v7255 = vunpack.c.l.b16 %v3322
    %v7256 = vunpack.c.h.b16 %v3322
    %v7257 = vunpack.c.l.b16 %v3323
    %v7258 = vunpack.c.h.b16 %v3323
    %v7259 = vunpack.c.l.b16 %v3324
    %v7260 = vunpack.c.h.b16 %v3324
    %v7261 = vunpack.c.l.b16 %v3325
    %v7262 = vunpack.c.h.b16 %v3325
    %v7263 = vunpack.c.l.b16 %v3326
    %v7264 = vunpack.c.h.b16 %v3326
    %v7265 = vunpack.c.l.b16 %v3327
    %v7266 = vunpack.c.h.b16 %v3327
    %v7267 = vunpack.c.l.b16 %v3328
    %v7268 = vunpack.c.h.b16 %v3328
    %v7269 = vunpack.c.l.b16 %v3329
    %v7270 = vunpack.c.h.b16 %v3329
    %v7271 = vunpack.c.l.b16 %v3330
    %v7272 = vunpack.c.h.b16 %v3330
    %v7273 = vunpack.c.l.b16 %v3331
    %v7274 = vunpack.c.h.b16 %v3331
    %v7275 = vunpack.c.l.b16 %v3332
    %v7276 = vunpack.c.h.b16 %v3332
    %v7277 = vunpack.c.l.b16 %v3333
    %v7278 = vunpack.c.h.b16 %v3333
    %v7279 = vunpack.c.l.b16 %v3334
    %v7280 = vunpack.c.h.b16 %v3334
    %v7281 = vunpack.c.l.b16 %v3335
    %v7282 = vunpack.c.h.b16 %v3335
    %v7283 = vunpack.c.l.b16 %v3336
    %v7284 = vunpack.c.h.b16 %v3336
    %v7285 = vunpack.c.l.b16 %v3337
    %v7286 = vunpack.c.h.b16 %v3337
    %v7287 = vunpack.c.l.b16 %v3338
    %v7288 = vunpack.c.h.b16 %v3338
    %v7289 = vunpack.c.l.b16 %v3339
    %v7290 = vunpack.c.h.b16 %v3339
    %v7291 = vunpack.c.l.b16 %v3340
    %v7292 = vunpack.c.h.b16 %v3340
    %v7293 = vunpack.c.l.b16 %v3341
    %v7294 = vunpack.c.h.b16 %v3341
    %v7295 = vunpack.c.l.b16 %v3342
    %v7296 = vunpack.c.h.b16 %v3342
    %v7297 = vunpack.c.l.b16 %v3343
    %v7298 = vunpack.c.h.b16 %v3343
    %v7299 = vunpack.c.l.b16 %v3344
    %v7300 = vunpack.c.h.b16 %v3344
    %v7301 = vunpack.c.l.b16 %v3345
    %v7302 = vunpack.c.h.b16 %v3345
    %v7303 = vunpack.c.l.b16 %v3346
    %v7304 = vunpack.c.h.b16 %v3346
    %v7305 = vunpack.c.l.b16 %v3347
    %v7306 = vunpack.c.h.b16 %v3347
    %v7307 = vunpack.c.l.b16 %v3348
    %v7308 = vunpack.c.h.b16 %v3348
    %v7309 = vunpack.c.l.b16 %v3349
    %v7310 = vunpack.c.h.b16 %v3349
    %v7311 = vunpack.c.l.b16 %v3350
    %v7312 = vunpack.c.h.b16 %v3350
    %v7313 = vunpack.c.l.b16 %v3351
    %v7314 = vunpack.c.h.b16 %v3351
    %v7315 = vunpack.c.l.b16 %v3352
    %v7316 = vunpack.c.h.b16 %v3352
    %v7317 = vunpack.c.l.b16 %v3353
    %v7318 = vunpack.c.h.b16 %v3353
    %v7319 = vunpack.c.l.b16 %v3354
    %v7320 = vunpack.c.h.b16 %v3354
    %v7321 = vunpack.c.l.b16 %v3355
    %v7322 = vunpack.c.h.b16 %v3355
    %v7323 = vunpack.c.l.b16 %v3356
    %v7324 = vunpack.c.h.b16 %v3356
    %v7325 = vunpack.c.l.b16 %v3357
    %v7326 = vunpack.c.h.b16 %v3357
    %v7327 = vunpack.c.l.b16 %v3358
    %v7328 = vunpack.c.h.b16 %v3358
    %v7329 = vunpack.c.l.b16 %v3359
    %v7330 = vunpack.c.h.b16 %v3359
    %v7331 = vunpack.c.l.b16 %v3360
    %v7332 = vunpack.c.h.b16 %v3360
    %v7333 = vunpack.c.l.b16 %v3361
    %v7334 = vunpack.c.h.b16 %v3361
    %v7335 = vunpack.c.l.b16 %v3362
    %v7336 = vunpack.c.h.b16 %v3362
    %v7337 = vunpack.c.l.b16 %v3363
    %v7338 = vunpack.c.h.b16 %v3363
    %v7339 = vunpack.c.l.b16 %v3364
    %v7340 = vunpack.c.h.b16 %v3364
    %v7341 = vunpack.c.l.b16 %v3365
    %v7342 = vunpack.c.h.b16 %v3365
    %v7343 = vunpack.c.l.b16 %v3366
    %v7344 = vunpack.c.h.b16 %v3366
    %v7345 = vunpack.c.l.b16 %v3367
    %v7346 = vunpack.c.h.b16 %v3367
    %v7347 = vunpack.c.l.b16 %v3368
    %v7348 = vunpack.c.h.b16 %v3368
    %v7349 = vunpack.c.l.b16 %v3369
    %v7350 = vunpack.c.h.b16 %v3369
    %v7351 = vunpack.c.l.b16 %v3370
    %v7352 = vunpack.c.h.b16 %v3370
    %v7353 = vunpack.c.l.b16 %v3371
    %v7354 = vunpack.c.h.b16 %v3371
    %v7355 = vunpack.c.l.b16 %v3372
    %v7356 = vunpack.c.h.b16 %v3372
    %v7357 = vunpack.c.l.b16 %v3373
    %v7358 = vunpack.c.h.b16 %v3373
    %v7359 = vunpack.c.l.b16 %v3374
    %v7360 = vunpack.c.h.b16 %v3374
    %v7361 = vunpack.c.l.b16 %v3375
    %v7362 = vunpack.c.h.b16 %v3375
    %v7363 = vunpack.c.l.b16 %v3376
    %v7364 = vunpack.c.h.b16 %v3376
    %v7365 = vunpack.c.l.b16 %v3377
    %v7366 = vunpack.c.h.b16 %v3377
    %v7367 = vunpack.c.l.b16 %v3378
    %v7368 = vunpack.c.h.b16 %v3378
    %v7369 = vunpack.c.l.b16 %v3379
    %v7370 = vunpack.c.h.b16 %v3379
    %v7371 = vunpack.c.l.b16 %v3380
    %v7372 = vunpack.c.h.b16 %v3380
    %v7373 = vunpack.c.l.b16 %v3381
    %v7374 = vunpack.c.h.b16 %v3381
    %v7375 = vunpack.c.l.b16 %v3382
    %v7376 = vunpack.c.h.b16 %v3382
    %v7377 = vunpack.c.l.b16 %v3383
    %v7378 = vunpack.c.h.b16 %v3383
    %v7379 = vunpack.c.l.b16 %v3384
    %v7380 = vunpack.c.h.b16 %v3384
    %v7381 = vunpack.c.l.b16 %v3385
    %v7382 = vunpack.c.h.b16 %v3385
    %v7383 = vunpack.c.l.b16 %v3386
    %v7384 = vunpack.c.h.b16 %v3386
    %v7385 = vunpack.c.l.b16 %v3387
    %v7386 = vunpack.c.h.b16 %v3387
    %v7387 = vunpack.c.l.b16 %v3388
    %v7388 = vunpack.c.h.b16 %v3388
    %v7389 = vunpack.c.l.b16 %v3389
    %v7390 = vunpack.c.h.b16 %v3389
    %v7391 = vunpack.c.l.b16 %v3390
    %v7392 = vunpack.c.h.b16 %v3390
    %v7393 = vunpack.c.l.b16 %v3391
    %v7394 = vunpack.c.h.b16 %v3391
    %v7395 = vunpack.c.l.b16 %v3392
    %v7396 = vunpack.c.h.b16 %v3392
    %v7397 = vunpack.c.l.b16 %v3393
    %v7398 = vunpack.c.h.b16 %v3393
    %v7399 = vunpack.c.l.b16 %v3394
    %v7400 = vunpack.c.h.b16 %v3394
    %v7401 = vunpack.c.l.b16 %v3395
    %v7402 = vunpack.c.h.b16 %v3395
    %v7403 = vunpack.c.l.b16 %v3396
    %v7404 = vunpack.c.h.b16 %v3396
    %v7405 = vunpack.c.l.b16 %v3397
    %v7406 = vunpack.c.h.b16 %v3397
    %v7407 = vunpack.c.l.b16 %v3398
    %v7408 = vunpack.c.h.b16 %v3398
    %v7409 = vunpack.c.l.b16 %v3399
    %v7410 = vunpack.c.h.b16 %v3399
    %v7411 = vunpack.c.l.b16 %v3400
    %v7412 = vunpack.c.h.b16 %v3400
    %v7413 = vunpack.c.l.b16 %v3401
    %v7414 = vunpack.c.h.b16 %v3401
    %v7415 = vunpack.c.l.b16 %v3402
    %v7416 = vunpack.c.h.b16 %v3402
    %v7417 = vunpack.c.l.b16 %v3403
    %v7418 = vunpack.c.h.b16 %v3403
    %v7419 = vunpack.c.l.b16 %v3404
    %v7420 = vunpack.c.h.b16 %v3404
    %v7421 = vunpack.c.l.b16 %v3405
    %v7422 = vunpack.c.h.b16 %v3405
    %v7423 = vunpack.c.l.b16 %v3406
    %v7424 = vunpack.c.h.b16 %v3406
    %v7425 = vunpack.c.l.b16 %v3407
    %v7426 = vunpack.c.h.b16 %v3407
    %v7427 = vunpack.c.l.b16 %v3408
    %v7428 = vunpack.c.h.b16 %v3408
    %v7429 = vunpack.c.l.b16 %v3409
    %v7430 = vunpack.c.h.b16 %v3409
    %v7431 = vunpack.c.l.b16 %v3410
    %v7432 = vunpack.c.h.b16 %v3410
    %v7433 = vunpack.c.l.b16 %v3411
    %v7434 = vunpack.c.h.b16 %v3411
    %v7435 = vunpack.c.l.b16 %v3412
    %v7436 = vunpack.c.h.b16 %v3412
    %v7437 = vunpack.c.l.b16 %v3413
    %v7438 = vunpack.c.h.b16 %v3413
    %v7439 = vunpack.c.l.b16 %v3414
    %v7440 = vunpack.c.h.b16 %v3414
    %v7441 = vunpack.c.l.b16 %v3415
    %v7442 = vunpack.c.h.b16 %v3415
    %v7443 = vunpack.c.l.b16 %v3416
    %v7444 = vunpack.c.h.b16 %v3416
    %v7445 = vunpack.c.l.b16 %v3417
    %v7446 = vunpack.c.h.b16 %v3417
    %v7447 = vunpack.c.l.b16 %v3418
    %v7448 = vunpack.c.h.b16 %v3418
    %v7449 = vunpack.c.l.b16 %v3419
    %v7450 = vunpack.c.h.b16 %v3419
    %v7451 = vunpack.c.l.b16 %v3420
    %v7452 = vunpack.c.h.b16 %v3420
    %v7453 = vunpack.c.l.b16 %v3421
    %v7454 = vunpack.c.h.b16 %v3421
    %v7455 = vunpack.c.l.b16 %v3422
    %v7456 = vunpack.c.h.b16 %v3422
    %v7457 = vunpack.c.l.b16 %v3423
    %v7458 = vunpack.c.h.b16 %v3423
    %v7459 = vunpack.c.l.b16 %v3424
    %v7460 = vunpack.c.h.b16 %v3424
    %v7461 = vunpack.c.l.b16 %v3425
    %v7462 = vunpack.c.h.b16 %v3425
    %v7463 = vunpack.c.l.b16 %v3426
    %v7464 = vunpack.c.h.b16 %v3426
    %v7465 = vunpack.c.l.b16 %v3427
    %v7466 = vunpack.c.h.b16 %v3427
    %v7467 = vunpack.c.l.b16 %v3428
    %v7468 = vunpack.c.h.b16 %v3428
    %v7469 = vunpack.c.l.b16 %v3429
    %v7470 = vunpack.c.h.b16 %v3429
    %v7471 = vunpack.c.l.b16 %v3430
    %v7472 = vunpack.c.h.b16 %v3430
    %v7473 = vunpack.c.l.b16 %v3431
    %v7474 = vunpack.c.h.b16 %v3431
    %v7475 = vunpack.c.l.b16 %v3432
    %v7476 = vunpack.c.h.b16 %v3432
    %v7477 = vunpack.c.l.b16 %v3433
    %v7478 = vunpack.c.h.b16 %v3433
    %v7479 = vunpack.c.l.b16 %v3434
    %v7480 = vunpack.c.h.b16 %v3434
    %v7481 = vunpack.c.l.b16 %v3435
    %v7482 = vunpack.c.h.b16 %v3435
    %v7483 = vunpack.c.l.b16 %v3436
    %v7484 = vunpack.c.h.b16 %v3436
    %v7485 = vunpack.c.l.b16 %v3437
    %v7486 = vunpack.c.h.b16 %v3437
    %v7487 = vunpack.c.l.b16 %v3438
    %v7488 = vunpack.c.h.b16 %v3438
    %v7489 = vunpack.c.l.b16 %v3439
    %v7490 = vunpack.c.h.b16 %v3439
    %v7491 = vunpack.c.l.b16 %v3440
    %v7492 = vunpack.c.h.b16 %v3440
    %v7493 = vunpack.c.l.b16 %v3441
    %v7494 = vunpack.c.h.b16 %v3441
    %v7495 = vunpack.c.l.b16 %v3442
    %v7496 = vunpack.c.h.b16 %v3442
    %v7497 = vunpack.c.l.b16 %v3443
    %v7498 = vunpack.c.h.b16 %v3443
    %v7499 = vunpack.c.l.b16 %v3444
    %v7500 = vunpack.c.h.b16 %v3444
    %v7501 = vunpack.c.l.b16 %v3445
    %v7502 = vunpack.c.h.b16 %v3445
    %v7503 = vunpack.c.l.b16 %v3446
    %v7504 = vunpack.c.h.b16 %v3446
    %v7505 = vunpack.c.l.b16 %v3447
    %v7506 = vunpack.c.h.b16 %v3447
    %v7507 = vunpack.c.l.b16 %v3448
    %v7508 = vunpack.c.h.b16 %v3448
    %v7509 = vunpack.c.l.b16 %v3449
    %v7510 = vunpack.c.h.b16 %v3449
    %v7511 = vunpack.c.l.b16 %v3450
    %v7512 = vunpack.c.h.b16 %v3450
    %v7513 = vunpack.c.l.b16 %v3451
    %v7514 = vunpack.c.h.b16 %v3451
    %v7515 = vunpack.c.l.b16 %v3452
    %v7516 = vunpack.c.h.b16 %v3452
    %v7517 = vunpack.c.l.b16 %v3453
    %v7518 = vunpack.c.h.b16 %v3453
    %v7519 = vunpack.c.l.b16 %v3454
    %v7520 = vunpack.c.h.b16 %v3454
    %v7521 = vunpack.c.l.b16 %v3455
    %v7522 = vunpack.c.h.b16 %v3455
    %v7523 = vunpack.c.l.b16 %v3456
    %v7524 = vunpack.c.h.b16 %v3456
    %v7525 = vunpack.c.l.b16 %v3457
    %v7526 = vunpack.c.h.b16 %v3457
    %v7527 = vunpack.c.l.b16 %v3458
    %v7528 = vunpack.c.h.b16 %v3458
    %v7529 = vunpack.c.l.b16 %v3459
    %v7530 = vunpack.c.h.b16 %v3459
    %v7531 = vunpack.c.l.b16 %v3460
    %v7532 = vunpack.c.h.b16 %v3460
    %v7533 = vunpack.c.l.b16 %v3461
    %v7534 = vunpack.c.h.b16 %v3461
    %v7535 = vunpack.c.l.b16 %v3462
    %v7536 = vunpack.c.h.b16 %v3462
    %v7537 = vunpack.c.l.b16 %v3463
    %v7538 = vunpack.c.h.b16 %v3463
    %v7539 = vunpack.c.l.b16 %v3464
    %v7540 = vunpack.c.h.b16 %v3464
    %v7541 = vunpack.c.l.b16 %v3465
    %v7542 = vunpack.c.h.b16 %v3465
    %v7543 = vunpack.c.l.b16 %v3466
    %v7544 = vunpack.c.h.b16 %v3466
    %v7545 = vunpack.c.l.b16 %v3467
    %v7546 = vunpack.c.h.b16 %v3467
    %v7547 = vunpack.c.l.b16 %v3468
    %v7548 = vunpack.c.h.b16 %v3468
    %v7549 = vunpack.c.l.b16 %v3469
    %v7550 = vunpack.c.h.b16 %v3469
    %v7551 = vunpack.c.l.b16 %v3470
    %v7552 = vunpack.c.h.b16 %v3470
    %v7553 = vunpack.c.l.b16 %v3471
    %v7554 = vunpack.c.h.b16 %v3471
    %v7555 = vunpack.c.l.b16 %v3472
    %v7556 = vunpack.c.h.b16 %v3472
    %v7557 = vunpack.c.l.b16 %v3473
    %v7558 = vunpack.c.h.b16 %v3473
    %v7559 = vunpack.c.l.b16 %v3474
    %v7560 = vunpack.c.h.b16 %v3474
    %v7561 = vunpack.c.l.b16 %v3475
    %v7562 = vunpack.c.h.b16 %v3475
    %v7563 = vunpack.c.l.b16 %v3476
    %v7564 = vunpack.c.h.b16 %v3476
    %v7565 = vunpack.c.l.b16 %v3477
    %v7566 = vunpack.c.h.b16 %v3477
    %v7567 = vunpack.c.l.b16 %v3478
    %v7568 = vunpack.c.h.b16 %v3478
    %v7569 = vunpack.c.l.b16 %v3479
    %v7570 = vunpack.c.h.b16 %v3479
    %v7571 = vunpack.c.l.b16 %v3480
    %v7572 = vunpack.c.h.b16 %v3480
    %v7573 = vunpack.c.l.b16 %v3481
    %v7574 = vunpack.c.h.b16 %v3481
    %v7575 = vunpack.c.l.b16 %v3482
    %v7576 = vunpack.c.h.b16 %v3482
    %v7577 = vunpack.c.l.b16 %v3483
    %v7578 = vunpack.c.h.b16 %v3483
    %v7579 = vunpack.c.l.b16 %v3484
    %v7580 = vunpack.c.h.b16 %v3484
    %v7581 = vunpack.c.l.b16 %v3485
    %v7582 = vunpack.c.h.b16 %v3485
    %v7583 = vunpack.c.l.b16 %v3486
    %v7584 = vunpack.c.h.b16 %v3486
    %v7585 = vunpack.c.l.b16 %v3487
    %v7586 = vunpack.c.h.b16 %v3487
    %v7587 = vunpack.c.l.b16 %v3488
    %v7588 = vunpack.c.h.b16 %v3488
    %v7589 = vunpack.c.l.b16 %v3489
    %v7590 = vunpack.c.h.b16 %v3489
    %v7591 = vunpack.c.l.b16 %v3490
    %v7592 = vunpack.c.h.b16 %v3490
    %v7593 = vunpack.c.l.b16 %v3491
    %v7594 = vunpack.c.h.b16 %v3491
    %v7595 = vunpack.c.l.b16 %v3492
    %v7596 = vunpack.c.h.b16 %v3492
    %v7597 = vunpack.c.l.b16 %v3493
    %v7598 = vunpack.c.h.b16 %v3493
    %v7599 = vunpack.c.l.b16 %v3494
    %v7600 = vunpack.c.h.b16 %v3494
    %v7601 = vunpack.c.l.b16 %v3495
    %v7602 = vunpack.c.h.b16 %v3495
    %v7603 = vunpack.c.l.b16 %v3496
    %v7604 = vunpack.c.h.b16 %v3496
    %v7605 = vunpack.c.l.b16 %v3497
    %v7606 = vunpack.c.h.b16 %v3497
    %v7607 = vunpack.c.l.b16 %v3498
    %v7608 = vunpack.c.h.b16 %v3498
    %v7609 = vunpack.c.l.b16 %v3499
    %v7610 = vunpack.c.h.b16 %v3499
    %v7611 = vunpack.c.l.b16 %v3500
    %v7612 = vunpack.c.h.b16 %v3500
    %v7613 = vunpack.c.l.b16 %v3501
    %v7614 = vunpack.c.h.b16 %v3501
    %v7615 = vunpack.c.l.b16 %v3502
    %v7616 = vunpack.c.h.b16 %v3502
    %v7617 = vunpack.c.l.b16 %v3503
    %v7618 = vunpack.c.h.b16 %v3503
    %v7619 = vunpack.c.l.b16 %v3504
    %v7620 = vunpack.c.h.b16 %v3504
    %v7621 = vunpack.c.l.b16 %v3505
    %v7622 = vunpack.c.h.b16 %v3505
    %v7623 = vunpack.c.l.b16 %v3506
    %v7624 = vunpack.c.h.b16 %v3506
    %v7625 = vunpack.c.l.b16 %v3507
    %v7626 = vunpack.c.h.b16 %v3507
    %v7627 = vunpack.c.l.b16 %v3508
    %v7628 = vunpack.c.h.b16 %v3508
    %v7629 = vunpack.c.l.b16 %v3509
    %v7630 = vunpack.c.h.b16 %v3509
    %v7631 = vunpack.c.l.b16 %v3510
    %v7632 = vunpack.c.h.b16 %v3510
    %v7633 = vunpack.c.l.b16 %v3511
    %v7634 = vunpack.c.h.b16 %v3511
    %v7635 = vunpack.c.l.b16 %v3512
    %v7636 = vunpack.c.h.b16 %v3512
    %v7637 = vunpack.c.l.b16 %v3513
    %v7638 = vunpack.c.h.b16 %v3513
    %v7639 = vunpack.c.l.b16 %v3514
    %v7640 = vunpack.c.h.b16 %v3514
    %v7641 = vunpack.c.l.b16 %v3515
    %v7642 = vunpack.c.h.b16 %v3515
    %v7643 = vunpack.c.l.b16 %v3516
    %v7644 = vunpack.c.h.b16 %v3516
    %v7645 = vunpack.c.l.b16 %v3517
    %v7646 = vunpack.c.h.b16 %v3517
    %v7647 = vunpack.c.l.b16 %v3518
    %v7648 = vunpack.c.h.b16 %v3518
    %v7649 = vunpack.c.l.b16 %v3519
    %v7650 = vunpack.c.h.b16 %v3519
    %v7651 = vunpack.c.l.b16 %v3520
    %v7652 = vunpack.c.h.b16 %v3520
    %v7653 = vunpack.c.l.b16 %v3521
    %v7654 = vunpack.c.h.b16 %v3521
    %v7655 = vunpack.c.l.b16 %v3522
    %v7656 = vunpack.c.h.b16 %v3522
    %v7657 = vunpack.c.l.b16 %v3523
    %v7658 = vunpack.c.h.b16 %v3523
    %v7659 = vunpack.c.l.b16 %v3524
    %v7660 = vunpack.c.h.b16 %v3524
    %v7661 = vunpack.c.l.b16 %v3525
    %v7662 = vunpack.c.h.b16 %v3525
    %v7663 = vunpack.c.l.b16 %v3526
    %v7664 = vunpack.c.h.b16 %v3526
    %v7665 = vunpack.c.l.b16 %v3527
    %v7666 = vunpack.c.h.b16 %v3527
    %v7667 = vunpack.c.l.b16 %v3528
    %v7668 = vunpack.c.h.b16 %v3528
    %v7669 = vunpack.c.l.b16 %v3529
    %v7670 = vunpack.c.h.b16 %v3529
    %v7671 = vunpack.c.l.b16 %v3530
    %v7672 = vunpack.c.h.b16 %v3530
    %v7673 = vunpack.c.l.b16 %v3531
    %v7674 = vunpack.c.h.b16 %v3531
    %v7675 = vunpack.c.l.b16 %v3532
    %v7676 = vunpack.c.h.b16 %v3532
    %v7677 = vunpack.c.l.b16 %v3533
    %v7678 = vunpack.c.h.b16 %v3533
    %v7679 = vunpack.c.l.b16 %v3534
    %v7680 = vunpack.c.h.b16 %v3534
    %v7681 = vunpack.c.l.b16 %v3535
    %v7682 = vunpack.c.h.b16 %v3535
    %v7683 = vunpack.c.l.b16 %v3536
    %v7684 = vunpack.c.h.b16 %v3536
    %v7685 = vunpack.c.l.b16 %v3537
    %v7686 = vunpack.c.h.b16 %v3537
    %v7687 = vunpack.c.l.b16 %v3538
    %v7688 = vunpack.c.h.b16 %v3538
    %v7689 = vunpack.c.l.b16 %v3539
    %v7690 = vunpack.c.h.b16 %v3539
    %v7691 = vunpack.c.l.b16 %v3540
    %v7692 = vunpack.c.h.b16 %v3540
    %v7693 = vunpack.c.l.b16 %v3541
    %v7694 = vunpack.c.h.b16 %v3541
    %v7695 = vunpack.c.l.b16 %v3542
    %v7696 = vunpack.c.h.b16 %v3542
    %v7697 = vunpack.c.l.b16 %v3543
    %v7698 = vunpack.c.h.b16 %v3543
    %v7699 = vunpack.c.l.b16 %v3544
    %v7700 = vunpack.c.h.b16 %v3544
    %v7701 = vunpack.c.l.b16 %v3545
    %v7702 = vunpack.c.h.b16 %v3545
    %v7703 = vunpack.c.l.b16 %v3546
    %v7704 = vunpack.c.h.b16 %v3546
    %v7705 = vunpack.c.l.b16 %v3547
    %v7706 = vunpack.c.h.b16 %v3547
    %v7707 = vunpack.c.l.b16 %v3548
    %v7708 = vunpack.c.h.b16 %v3548
    %v7709 = vunpack.c.l.b16 %v3549
    %v7710 = vunpack.c.h.b16 %v3549
    %v7711 = vunpack.c.l.b16 %v3550
    %v7712 = vunpack.c.h.b16 %v3550
    %v7713 = vunpack.c.l.b16 %v3551
    %v7714 = vunpack.c.h.b16 %v3551
    %v7715 = vunpack.c.l.b16 %v3552
    %v7716 = vunpack.c.h.b16 %v3552
    %v7717 = vunpack.c.l.b16 %v3553
    %v7718 = vunpack.c.h.b16 %v3553
    %v7719 = vunpack.c.l.b16 %v3554
    %v7720 = vunpack.c.h.b16 %v3554
    %v7721 = vunpack.c.l.b16 %v3555
    %v7722 = vunpack.c.h.b16 %v3555
    %v7723 = vunpack.c.l.b16 %v3556
    %v7724 = vunpack.c.h.b16 %v3556
    %v7725 = vunpack.c.l.b16 %v3557
    %v7726 = vunpack.c.h.b16 %v3557
    %v7727 = vunpack.c.l.b16 %v3558
    %v7728 = vunpack.c.h.b16 %v3558
    %v7729 = vunpack.c.l.b16 %v3559
    %v7730 = vunpack.c.h.b16 %v3559
    %v7731 = vunpack.c.l.b16 %v3560
    %v7732 = vunpack.c.h.b16 %v3560
    %v7733 = vunpack.c.l.b16 %v3561
    %v7734 = vunpack.c.h.b16 %v3561
    %v7735 = vunpack.c.l.b16 %v3562
    %v7736 = vunpack.c.h.b16 %v3562
    %v7737 = vunpack.c.l.b16 %v3563
    %v7738 = vunpack.c.h.b16 %v3563
    %v7739 = vunpack.c.l.b16 %v3564
    %v7740 = vunpack.c.h.b16 %v3564
    %v7741 = vunpack.c.l.b16 %v3565
    %v7742 = vunpack.c.h.b16 %v3565
    %v7743 = vunpack.c.l.b16 %v3566
    %v7744 = vunpack.c.h.b16 %v3566
    %v7745 = vunpack.c.l.b16 %v3567
    %v7746 = vunpack.c.h.b16 %v3567
    %v7747 = vunpack.c.l.b16 %v3568
    %v7748 = vunpack.c.h.b16 %v3568
    %v7749 = vunpack.c.l.b16 %v3569
    %v7750 = vunpack.c.h.b16 %v3569
    %v7751 = vunpack.c.l.b16 %v3570
    %v7752 = vunpack.c.h.b16 %v3570
    %v7753 = vunpack.c.l.b16 %v3571
    %v7754 = vunpack.c.h.b16 %v3571
    %v7755 = vunpack.c.l.b16 %v3572
    %v7756 = vunpack.c.h.b16 %v3572
    %v7757 = vunpack.c.l.b16 %v3573
    %v7758 = vunpack.c.h.b16 %v3573
    %v7759 = vunpack.c.l.b16 %v3574
    %v7760 = vunpack.c.h.b16 %v3574
    %v7761 = vunpack.c.l.b16 %v3575
    %v7762 = vunpack.c.h.b16 %v3575
    %v7763 = vunpack.c.l.b16 %v3576
    %v7764 = vunpack.c.h.b16 %v3576
    %v7765 = vunpack.c.l.b16 %v3577
    %v7766 = vunpack.c.h.b16 %v3577
    %v7767 = vunpack.c.l.b16 %v3578
    %v7768 = vunpack.c.h.b16 %v3578
    %v7769 = vunpack.c.l.b16 %v3579
    %v7770 = vunpack.c.h.b16 %v3579
    %v7771 = vunpack.c.l.b16 %v3580
    %v7772 = vunpack.c.h.b16 %v3580
    %v7773 = vunpack.c.l.b16 %v3581
    %v7774 = vunpack.c.h.b16 %v3581
    %v7775 = vunpack.c.l.b16 %v3582
    %v7776 = vunpack.c.h.b16 %v3582
    %v7777 = vunpack.c.l.b16 %v3583
    %v7778 = vunpack.c.h.b16 %v3583
    %v7779 = vunpack.c.l.b16 %v3584
    %v7780 = vunpack.c.h.b16 %v3584
    %v7781 = vunpack.c.l.b16 %v3585
    %v7782 = vunpack.c.h.b16 %v3585
    %v7783 = vunpack.c.l.b16 %v3586
    %v7784 = vunpack.c.h.b16 %v3586
    %v7785 = vunpack.c.l.b16 %v3587
    %v7786 = vunpack.c.h.b16 %v3587
    %v7787 = vunpack.c.l.b16 %v3588
    %v7788 = vunpack.c.h.b16 %v3588
    %v7789 = vunpack.c.l.b16 %v3589
    %v7790 = vunpack.c.h.b16 %v3589
    %v7791 = vunpack.c.l.b16 %v3590
    %v7792 = vunpack.c.h.b16 %v3590
    %v7793 = vunpack.c.l.b16 %v3591
    %v7794 = vunpack.c.h.b16 %v3591
    %v7795 = vunpack.c.l.b16 %v3592
    %v7796 = vunpack.c.h.b16 %v3592
    %v7797 = vunpack.c.l.b16 %v3593
    %v7798 = vunpack.c.h.b16 %v3593
    %v7799 = vunpack.c.l.b16 %v3594
    %v7800 = vunpack.c.h.b16 %v3594
    %v7801 = vunpack.c.l.b16 %v3595
    %v7802 = vunpack.c.h.b16 %v3595
    %v7803 = vunpack.c.l.b16 %v3596
    %v7804 = vunpack.c.h.b16 %v3596
    %v7805 = vunpack.c.l.b16 %v3597
    %v7806 = vunpack.c.h.b16 %v3597
    %v7807 = vunpack.c.l.b16 %v3598
    %v7808 = vunpack.c.h.b16 %v3598
    %v7809 = vunpack.c.l.b16 %v3599
    %v7810 = vunpack.c.h.b16 %v3599
    %v7811 = vunpack.c.l.b16 %v3600
    %v7812 = vunpack.c.h.b16 %v3600
    %v7813 = vunpack.c.l.b16 %v3601
    %v7814 = vunpack.c.h.b16 %v3601
    %v7815 = vunpack.c.l.b16 %v3602
    %v7816 = vunpack.c.h.b16 %v3602
    %v7817 = vunpack.c.l.b16 %v3603
    %v7818 = vunpack.c.h.b16 %v3603
    %v7819 = vunpack.c.l.b16 %v3604
    %v7820 = vunpack.c.h.b16 %v3604
    %v7821 = vunpack.c.l.b16 %v3605
    %v7822 = vunpack.c.h.b16 %v3605
    %v7823 = vunpack.c.l.b16 %v3606
    %v7824 = vunpack.c.h.b16 %v3606
    %v7825 = vunpack.c.l.b16 %v3607
    %v7826 = vunpack.c.h.b16 %v3607
    %v7827 = vunpack.c.l.b16 %v3608
    %v7828 = vunpack.c.h.b16 %v3608
    %v7829 = vunpack.c.l.b16 %v3609
    %v7830 = vunpack.c.h.b16 %v3609
    %v7831 = vunpack.c.l.b16 %v3610
    %v7832 = vunpack.c.h.b16 %v3610
    %v7833 = vunpack.c.l.b16 %v3611
    %v7834 = vunpack.c.h.b16 %v3611
    %v7835 = vunpack.c.l.b16 %v3612
    %v7836 = vunpack.c.h.b16 %v3612
    %v7837 = vunpack.c.l.b16 %v3613
    %v7838 = vunpack.c.h.b16 %v3613
    %v7839 = vunpack.c.l.b16 %v3614
    %v7840 = vunpack.c.h.b16 %v3614
    %v7841 = vunpack.c.l.b16 %v3615
    %v7842 = vunpack.c.h.b16 %v3615
    %v7843 = vunpack.c.l.b16 %v3616
    %v7844 = vunpack.c.h.b16 %v3616
    %v7845 = vunpack.c.l.b16 %v3617
    %v7846 = vunpack.c.h.b16 %v3617
    %v7847 = vunpack.c.l.b16 %v3618
    %v7848 = vunpack.c.h.b16 %v3618
    %v7849 = vunpack.c.l.b16 %v3619
    %v7850 = vunpack.c.h.b16 %v3619
    %v7851 = vunpack.c.l.b16 %v3620
    %v7852 = vunpack.c.h.b16 %v3620
    %v7853 = vunpack.c.l.b16 %v3621
    %v7854 = vunpack.c.h.b16 %v3621
    %v7855 = vunpack.c.l.b16 %v3622
    %v7856 = vunpack.c.h.b16 %v3622
    %v7857 = vunpack.c.l.b16 %v3623
    %v7858 = vunpack.c.h.b16 %v3623
    %v7859 = vunpack.c.l.b16 %v3624
    %v7860 = vunpack.c.h.b16 %v3624
    %v7861 = vunpack.c.l.b16 %v3625
    %v7862 = vunpack.c.h.b16 %v3625
    %v7863 = vunpack.c.l.b16 %v3626
    %v7864 = vunpack.c.h.b16 %v3626
    %v7865 = vunpack.c.l.b16 %v3627
    %v7866 = vunpack.c.h.b16 %v3627
    %v7867 = vunpack.c.l.b16 %v3628
    %v7868 = vunpack.c.h.b16 %v3628
    %v7869 = vunpack.c.l.b16 %v3629
    %v7870 = vunpack.c.h.b16 %v3629
    %v7871 = vunpack.c.l.b16 %v3630
    %v7872 = vunpack.c.h.b16 %v3630
    %v7873 = vunpack.c.l.b16 %v3631
    %v7874 = vunpack.c.h.b16 %v3631
    %v7875 = vunpack.c.l.b16 %v3632
    %v7876 = vunpack.c.h.b16 %v3632
    %v7877 = vunpack.c.l.b16 %v3633
    %v7878 = vunpack.c.h.b16 %v3633
    %v7879 = vunpack.c.l.b16 %v3634
    %v7880 = vunpack.c.h.b16 %v3634
    %v7881 = vunpack.c.l.b16 %v3635
    %v7882 = vunpack.c.h.b16 %v3635
    %v7883 = vunpack.c.l.b16 %v3636
    %v7884 = vunpack.c.h.b16 %v3636
    %v7885 = vunpack.c.l.b16 %v3637
    %v7886 = vunpack.c.h.b16 %v3637
    %v7887 = vunpack.c.l.b16 %v3638
    %v7888 = vunpack.c.h.b16 %v3638
    %v7889 = vunpack.c.l.b16 %v3639
    %v7890 = vunpack.c.h.b16 %v3639
    %v7891 = vunpack.c.l.b16 %v3640
    %v7892 = vunpack.c.h.b16 %v3640
    %v7893 = vunpack.c.l.b16 %v3641
    %v7894 = vunpack.c.h.b16 %v3641
    %v7895 = vunpack.c.l.b16 %v3642
    %v7896 = vunpack.c.h.b16 %v3642
    %v7897 = vunpack.c.l.b16 %v3643
    %v7898 = vunpack.c.h.b16 %v3643
    %v7899 = vunpack.c.l.b16 %v3644
    %v7900 = vunpack.c.h.b16 %v3644
    %v7901 = vunpack.c.l.b16 %v3645
    %v7902 = vunpack.c.h.b16 %v3645
    %v7903 = vunpack.c.l.b16 %v3646
    %v7904 = vunpack.c.h.b16 %v3646
    %v7905 = vunpack.c.l.b16 %v3647
    %v7906 = vunpack.c.h.b16 %v3647
    %v7907 = vunpack.c.l.b16 %v3648
    %v7908 = vunpack.c.h.b16 %v3648
    %v7909 = vunpack.c.l.b16 %v3649
    %v7910 = vunpack.c.h.b16 %v3649
    %v7911 = vunpack.c.l.b16 %v3650
    %v7912 = vunpack.c.h.b16 %v3650
    %v7913 = vunpack.c.l.b16 %v3651
    %v7914 = vunpack.c.h.b16 %v3651
    %v7915 = vunpack.c.l.b16 %v3652
    %v7916 = vunpack.c.h.b16 %v3652
    %v7917 = vunpack.c.l.b16 %v3653
    %v7918 = vunpack.c.h.b16 %v3653
    %v7919 = vunpack.c.l.b16 %v3654
    %v7920 = vunpack.c.h.b16 %v3654
    %v7921 = vpack.c.b16 %v5113, %v5105
    %v7922 = vpack.c.b16 %v5114, %v5106
    %v7923 = vpack.c.b16 %v5115, %v5107
    %v7924 = vpack.c.b16 %v5116, %v5108
    %v7925 = vpack.c.b16 %v5117, %v5109
    %v7926 = vpack.c.b16 %v5118, %v5110
    %v7927 = vpack.c.b16 %v5119, %v5111
    %v7928 = vpack.c.b16 %v5120, %v5112
    %v7929 = vpack.c.b16 %v5129, %v5121
    %v7930 = vpack.c.b16 %v5130, %v5122
    %v7931 = vpack.c.b16 %v5131, %v5123
    %v7932 = vpack.c.b16 %v5132, %v5124
    %v7933 = vpack.c.b16 %v5133, %v5125
    %v7934 = vpack.c.b16 %v5134, %v5126
    %v7935 = vpack.c.b16 %v5135, %v5127
    %v7936 = vpack.c.b16 %v5136, %v5128
    %v7937 = vpack.c.b16 %v5145, %v5137
    %v7938 = vpack.c.b16 %v5146, %v5138
    %v7939 = vpack.c.b16 %v5147, %v5139
    %v7940 = vpack.c.b16 %v5148, %v5140
    %v7941 = vpack.c.b16 %v5149, %v5141
    %v7942 = vpack.c.b16 %v5150, %v5142
    %v7943 = vpack.c.b16 %v5151, %v5143
    %v7944 = vpack.c.b16 %v5152, %v5144
    %v7945 = vpack.c.b16 %v5161, %v5153
    %v7946 = vpack.c.b16 %v5162, %v5154
    %v7947 = vpack.c.b16 %v5163, %v5155
    %v7948 = vpack.c.b16 %v5164, %v5156
    %v7949 = vpack.c.b16 %v5165, %v5157
    %v7950 = vpack.c.b16 %v5166, %v5158
    %v7951 = vpack.c.b16 %v5167, %v5159
    %v7952 = vpack.c.b16 %v5168, %v5160
    %v7953 = vpack.c.b16 %v5177, %v5169
    %v7954 = vpack.c.b16 %v5178, %v5170
    %v7955 = vpack.c.b16 %v5179, %v5171
    %v7956 = vpack.c.b16 %v5180, %v5172
    %v7957 = vpack.c.b16 %v5181, %v5173
    %v7958 = vpack.c.b16 %v5182, %v5174
    %v7959 = vpack.c.b16 %v5183, %v5175
    %v7960 = vpack.c.b16 %v5184, %v5176
    %v7961 = vpack.c.b16 %v5193, %v5185
    %v7962 = vpack.c.b16 %v5194, %v5186
    %v7963 = vpack.c.b16 %v5195, %v5187
    %v7964 = vpack.c.b16 %v5196, %v5188
    %v7965 = vpack.c.b16 %v5197, %v5189
    %v7966 = vpack.c.b16 %v5198, %v5190
    %v7967 = vpack.c.b16 %v5199, %v5191
    %v7968 = vpack.c.b16 %v5200, %v5192
    %v7969 = vpack.c.b16 %v5209, %v5201
    %v7970 = vpack.c.b16 %v5210, %v5202
    %v7971 = vpack.c.b16 %v5211, %v5203
    %v7972 = vpack.c.b16 %v5212, %v5204
    %v7973 = vpack.c.b16 %v5213, %v5205
    %v7974 = vpack.c.b16 %v5214, %v5206
    %v7975 = vpack.c.b16 %v5215, %v5207
    %v7976 = vpack.c.b16 %v5216, %v5208
    %v7977 = vpack.c.b16 %v5225, %v5217
    %v7978 = vpack.c.b16 %v5226, %v5218
    %v7979 = vpack.c.b16 %v5227, %v5219
    %v7980 = vpack.c.b16 %v5228, %v5220
    %v7981 = vpack.c.b16 %v5229, %v5221
    %v7982 = vpack.c.b16 %v5230, %v5222
    %v7983 = vpack.c.b16 %v5231, %v5223
    %v7984 = vpack.c.b16 %v5232, %v5224
    %v7985 = vpack.c.b16 %v5241, %v5233
    %v7986 = vpack.c.b16 %v5242, %v5234
    %v7987 = vpack.c.b16 %v5243, %v5235
    %v7988 = vpack.c.b16 %v5244, %v5236
    %v7989 = vpack.c.b16 %v5245, %v5237
    %v7990 = vpack.c.b16 %v5246, %v5238
    %v7991 = vpack.c.b16 %v5247, %v5239
    %v7992 = vpack.c.b16 %v5248, %v5240
    %v7993 = vpack.c.b16 %v5257, %v5249
    %v7994 = vpack.c.b16 %v5258, %v5250
    %v7995 = vpack.c.b16 %v5259, %v5251
    %v7996 = vpack.c.b16 %v5260, %v5252
    %v7997 = vpack.c.b16 %v5261, %v5253
    %v7998 = vpack.c.b16 %v5262, %v5254
    %v7999 = vpack.c.b16 %v5263, %v5255
    %v8000 = vpack.c.b16 %v5264, %v5256
    %v8001 = vpack.c.b16 %v5273, %v5265
    %v8002 = vpack.c.b16 %v5274, %v5266
    %v8003 = vpack.c.b16 %v5275, %v5267
    %v8004 = vpack.c.b16 %v5276, %v5268
    %v8005 = vpack.c.b16 %v5277, %v5269
    %v8006 = vpack.c.b16 %v5278, %v5270
    %v8007 = vpack.c.b16 %v5279, %v5271
    %v8008 = vpack.c.b16 %v5280, %v5272
    %v8009 = vpack.c.b16 %v5289, %v5281
    %v8010 = vpack.c.b16 %v5290, %v5282
    %v8011 = vpack.c.b16 %v5291, %v5283
    %v8012 = vpack.c.b16 %v5292, %v5284
    %v8013 = vpack.c.b16 %v5293, %v5285
    %v8014 = vpack.c.b16 %v5294, %v5286
    %v8015 = vpack.c.b16 %v5295, %v5287
    %v8016 = vpack.c.b16 %v5296, %v5288
    %v8017 = vpack.c.b16 %v5305, %v5297
    %v8018 = vpack.c.b16 %v5306, %v5298
    %v8019 = vpack.c.b16 %v5307, %v5299
    %v8020 = vpack.c.b16 %v5308, %v5300
    %v8021 = vpack.c.b16 %v5309, %v5301
    %v8022 = vpack.c.b16 %v5310, %v5302
    %v8023 = vpack.c.b16 %v5311, %v5303
    %v8024 = vpack.c.b16 %v5312, %v5304
    %v8025 = vpack.c.b16 %v5321, %v5313
    %v8026 = vpack.c.b16 %v5322, %v5314
    %v8027 = vpack.c.b16 %v5323, %v5315
    %v8028 = vpack.c.b16 %v5324, %v5316
    %v8029 = vpack.c.b16 %v5325, %v5317
    %v8030 = vpack.c.b16 %v5326, %v5318
    %v8031 = vpack.c.b16 %v5327, %v5319
    %v8032 = vpack.c.b16 %v5328, %v5320
    %v8033 = vpack.c.b16 %v5337, %v5329
    %v8034 = vpack.c.b16 %v5338, %v5330
    %v8035 = vpack.c.b16 %v5339, %v5331
    %v8036 = vpack.c.b16 %v5340, %v5332
    %v8037 = vpack.c.b16 %v5341, %v5333
    %v8038 = vpack.c.b16 %v5342, %v5334
    %v8039 = vpack.c.b16 %v5343, %v5335
    %v8040 = vpack.c.b16 %v5344, %v5336
    %v8041 = vpack.c.b16 %v5353, %v5345
    %v8042 = vpack.c.b16 %v5354, %v5346
    %v8043 = vpack.c.b16 %v5355, %v5347
    %v8044 = vpack.c.b16 %v5356, %v5348
    %v8045 = vpack.c.b16 %v5357, %v5349
    %v8046 = vpack.c.b16 %v5358, %v5350
    %v8047 = vpack.c.b16 %v5359, %v5351
    %v8048 = vpack.c.b16 %v5360, %v5352
    %v8049 = vpack.c.b16 %v5369, %v5361
    %v8050 = vpack.c.b16 %v5370, %v5362
    %v8051 = vpack.c.b16 %v5371, %v5363
    %v8052 = vpack.c.b16 %v5372, %v5364
    %v8053 = vpack.c.b16 %v5373, %v5365
    %v8054 = vpack.c.b16 %v5374, %v5366
    %v8055 = vpack.c.b16 %v5375, %v5367
    %v8056 = vpack.c.b16 %v5376, %v5368
    %v8057 = vpack.c.b16 %v5385, %v5377
    %v8058 = vpack.c.b16 %v5386, %v5378
    %v8059 = vpack.c.b16 %v5387, %v5379
    %v8060 = vpack.c.b16 %v5388, %v5380
    %v8061 = vpack.c.b16 %v5389, %v5381
    %v8062 = vpack.c.b16 %v5390, %v5382
    %v8063 = vpack.c.b16 %v5391, %v5383
    %v8064 = vpack.c.b16 %v5392, %v5384
    %v8065 = vpack.c.b16 %v5401, %v5393
    %v8066 = vpack.c.b16 %v5402, %v5394
    %v8067 = vpack.c.b16 %v5403, %v5395
    %v8068 = vpack.c.b16 %v5404, %v5396
    %v8069 = vpack.c.b16 %v5405, %v5397
    %v8070 = vpack.c.b16 %v5406, %v5398
    %v8071 = vpack.c.b16 %v5407, %v5399
    %v8072 = vpack.c.b16 %v5408, %v5400
    %v8073 = vpack.c.b16 %v5417, %v5409
    %v8074 = vpack.c.b16 %v5418, %v5410
    %v8075 = vpack.c.b16 %v5419, %v5411
    %v8076 = vpack.c.b16 %v5420, %v5412
    %v8077 = vpack.c.b16 %v5421, %v5413
    %v8078 = vpack.c.b16 %v5422, %v5414
    %v8079 = vpack.c.b16 %v5423, %v5415
    %v8080 = vpack.c.b16 %v5424, %v5416
    %v8081 = vpack.c.b16 %v5433, %v5425
    %v8082 = vpack.c.b16 %v5434, %v5426
    %v8083 = vpack.c.b16 %v5435, %v5427
    %v8084 = vpack.c.b16 %v5436, %v5428
    %v8085 = vpack.c.b16 %v5437, %v5429
    %v8086 = vpack.c.b16 %v5438, %v5430
    %v8087 = vpack.c.b16 %v5439, %v5431
    %v8088 = vpack.c.b16 %v5440, %v5432
    %v8089 = vpack.c.b16 %v5449, %v5441
    %v8090 = vpack.c.b16 %v5450, %v5442
    %v8091 = vpack.c.b16 %v5451, %v5443
    %v8092 = vpack.c.b16 %v5452, %v5444
    %v8093 = vpack.c.b16 %v5453, %v5445
    %v8094 = vpack.c.b16 %v5454, %v5446
    %v8095 = vpack.c.b16 %v5455, %v5447
    %v8096 = vpack.c.b16 %v5456, %v5448
    %v8097 = vpack.c.b16 %v5465, %v5457
    %v8098 = vpack.c.b16 %v5466, %v5458
    %v8099 = vpack.c.b16 %v5467, %v5459
    %v8100 = vpack.c.b16 %v5468, %v5460
    %v8101 = vpack.c.b16 %v5469, %v5461
    %v8102 = vpack.c.b16 %v5470, %v5462
    %v8103 = vpack.c.b16 %v5471, %v5463
    %v8104 = vpack.c.b16 %v5472, %v5464
    %v8105 = vpack.c.b16 %v5481, %v5473
    %v8106 = vpack.c.b16 %v5482, %v5474
    %v8107 = vpack.c.b16 %v5483, %v5475
    %v8108 = vpack.c.b16 %v5484, %v5476
    %v8109 = vpack.c.b16 %v5485, %v5477
    %v8110 = vpack.c.b16 %v5486, %v5478
    %v8111 = vpack.c.b16 %v5487, %v5479
    %v8112 = vpack.c.b16 %v5488, %v5480
    %v8113 = vpack.c.b16 %v5497, %v5489
    %v8114 = vpack.c.b16 %v5498, %v5490
    %v8115 = vpack.c.b16 %v5499, %v5491
    %v8116 = vpack.c.b16 %v5500, %v5492
    %v8117 = vpack.c.b16 %v5501, %v5493
    %v8118 = vpack.c.b16 %v5502, %v5494
    %v8119 = vpack.c.b16 %v5503, %v5495
    %v8120 = vpack.c.b16 %v5504, %v5496
    %v8121 = vpack.c.b16 %v5513, %v5505
    %v8122 = vpack.c.b16 %v5514, %v5506
    %v8123 = vpack.c.b16 %v5515, %v5507
    %v8124 = vpack.c.b16 %v5516, %v5508
    %v8125 = vpack.c.b16 %v5517, %v5509
    %v8126 = vpack.c.b16 %v5518, %v5510
    %v8127 = vpack.c.b16 %v5519, %v5511
    %v8128 = vpack.c.b16 %v5520, %v5512
    %v8129 = vpack.c.b16 %v5529, %v5521
    %v8130 = vpack.c.b16 %v5530, %v5522
    %v8131 = vpack.c.b16 %v5531, %v5523
    %v8132 = vpack.c.b16 %v5532, %v5524
    %v8133 = vpack.c.b16 %v5533, %v5525
    %v8134 = vpack.c.b16 %v5534, %v5526
    %v8135 = vpack.c.b16 %v5535, %v5527
    %v8136 = vpack.c.b16 %v5536, %v5528
    %v8137 = vpack.c.b16 %v5545, %v5537
    %v8138 = vpack.c.b16 %v5546, %v5538
    %v8139 = vpack.c.b16 %v5547, %v5539
    %v8140 = vpack.c.b16 %v5548, %v5540
    %v8141 = vpack.c.b16 %v5549, %v5541
    %v8142 = vpack.c.b16 %v5550, %v5542
    %v8143 = vpack.c.b16 %v5551, %v5543
    %v8144 = vpack.c.b16 %v5552, %v5544
    %v8145 = vpack.c.b16 %v5561, %v5553
    %v8146 = vpack.c.b16 %v5562, %v5554
    %v8147 = vpack.c.b16 %v5563, %v5555
    %v8148 = vpack.c.b16 %v5564, %v5556
    %v8149 = vpack.c.b16 %v5565, %v5557
    %v8150 = vpack.c.b16 %v5566, %v5558
    %v8151 = vpack.c.b16 %v5567, %v5559
    %v8152 = vpack.c.b16 %v5568, %v5560
    %v8153 = vpack.c.b16 %v5577, %v5569
    %v8154 = vpack.c.b16 %v5578, %v5570
    %v8155 = vpack.c.b16 %v5579, %v5571
    %v8156 = vpack.c.b16 %v5580, %v5572
    %v8157 = vpack.c.b16 %v5581, %v5573
    %v8158 = vpack.c.b16 %v5582, %v5574
    %v8159 = vpack.c.b16 %v5583, %v5575
    %v8160 = vpack.c.b16 %v5584, %v5576
    %v8161 = vpack.c.b16 %v5593, %v5585
    %v8162 = vpack.c.b16 %v5594, %v5586
    %v8163 = vpack.c.b16 %v5595, %v5587
    %v8164 = vpack.c.b16 %v5596, %v5588
    %v8165 = vpack.c.b16 %v5597, %v5589
    %v8166 = vpack.c.b16 %v5598, %v5590
    %v8167 = vpack.c.b16 %v5599, %v5591
    %v8168 = vpack.c.b16 %v5600, %v5592
    %v8169 = vpack.c.b16 %v5609, %v5601
    %v8170 = vpack.c.b16 %v5610, %v5602
    %v8171 = vpack.c.b16 %v5611, %v5603
    %v8172 = vpack.c.b16 %v5612, %v5604
    %v8173 = vpack.c.b16 %v5613, %v5605
    %v8174 = vpack.c.b16 %v5614, %v5606
    %v8175 = vpack.c.b16 %v5615, %v5607
    %v8176 = vpack.c.b16 %v5616, %v5608
    %v8177 = vpack.c.b16 %v5625, %v5617
    %v8178 = vpack.c.b16 %v5626, %v5618
    %v8179 = vpack.c.b16 %v5627, %v5619
    %v8180 = vpack.c.b16 %v5628, %v5620
    %v8181 = vpack.c.b16 %v5629, %v5621
    %v8182 = vpack.c.b16 %v5630, %v5622
    %v8183 = vpack.c.b16 %v5631, %v5623
    %v8184 = vpack.c.b16 %v5632, %v5624
    %v8185 = vpack.c.b16 %v5641, %v5633
    %v8186 = vpack.c.b16 %v5642, %v5634
    %v8187 = vpack.c.b16 %v5643, %v5635
    %v8188 = vpack.c.b16 %v5644, %v5636
    %v8189 = vpack.c.b16 %v5645, %v5637
    %v8190 = vpack.c.b16 %v5646, %v5638
    %v8191 = vpack.c.b16 %v5647, %v5639
    %v8192 = vpack.c.b16 %v5648, %v5640
    %v8193 = vpack.c.b16 %v5657, %v5649
    %v8194 = vpack.c.b16 %v5658, %v5650
    %v8195 = vpack.c.b16 %v5659, %v5651
    %v8196 = vpack.c.b16 %v5660, %v5652
    %v8197 = vpack.c.b16 %v5661, %v5653
    %v8198 = vpack.c.b16 %v5662, %v5654
    %v8199 = vpack.c.b16 %v5663, %v5655
    %v8200 = vpack.c.b16 %v5664, %v5656
    %v8201 = vpack.c.b16 %v5673, %v5665
    %v8202 = vpack.c.b16 %v5674, %v5666
    %v8203 = vpack.c.b16 %v5675, %v5667
    %v8204 = vpack.c.b16 %v5676, %v5668
    %v8205 = vpack.c.b16 %v5677, %v5669
    %v8206 = vpack.c.b16 %v5678, %v5670
    %v8207 = vpack.c.b16 %v5679, %v5671
    %v8208 = vpack.c.b16 %v5680, %v5672
    %v8209 = vpack.c.b16 %v5689, %v5681
    %v8210 = vpack.c.b16 %v5690, %v5682
    %v8211 = vpack.c.b16 %v5691, %v5683
    %v8212 = vpack.c.b16 %v5692, %v5684
    %v8213 = vpack.c.b16 %v5693, %v5685
    %v8214 = vpack.c.b16 %v5694, %v5686
    %v8215 = vpack.c.b16 %v5695, %v5687
    %v8216 = vpack.c.b16 %v5696, %v5688
    %v8217 = vpack.c.b16 %v5705, %v5697
    %v8218 = vpack.c.b16 %v5706, %v5698
    %v8219 = vpack.c.b16 %v5707, %v5699
    %v8220 = vpack.c.b16 %v5708, %v5700
    %v8221 = vpack.c.b16 %v5709, %v5701
    %v8222 = vpack.c.b16 %v5710, %v5702
    %v8223 = vpack.c.b16 %v5711, %v5703
    %v8224 = vpack.c.b16 %v5712, %v5704
    %v8225 = vpack.c.b16 %v5721, %v5713
    %v8226 = vpack.c.b16 %v5722, %v5714
    %v8227 = vpack.c.b16 %v5723, %v5715
    %v8228 = vpack.c.b16 %v5724, %v5716
    %v8229 = vpack.c.b16 %v5725, %v5717
    %v8230 = vpack.c.b16 %v5726, %v5718
    %v8231 = vpack.c.b16 %v5727, %v5719
    %v8232 = vpack.c.b16 %v5728, %v5720
    %v8233 = vpack.c.b16 %v5737, %v5729
    %v8234 = vpack.c.b16 %v5738, %v5730
    %v8235 = vpack.c.b16 %v5739, %v5731
    %v8236 = vpack.c.b16 %v5740, %v5732
    %v8237 = vpack.c.b16 %v5741, %v5733
    %v8238 = vpack.c.b16 %v5742, %v5734
    %v8239 = vpack.c.b16 %v5743, %v5735
    %v8240 = vpack.c.b16 %v5744, %v5736
    %v8241 = vpack.c.b16 %v5753, %v5745
    %v8242 = vpack.c.b16 %v5754, %v5746
    %v8243 = vpack.c.b16 %v5755, %v5747
    %v8244 = vpack.c.b16 %v5756, %v5748
    %v8245 = vpack.c.b16 %v5757, %v5749
    %v8246 = vpack.c.b16 %v5758, %v5750
    %v8247 = vpack.c.b16 %v5759, %v5751
    %v8248 = vpack.c.b16 %v5760, %v5752
    %v8249 = vpack.c.b16 %v5769, %v5761
    %v8250 = vpack.c.b16 %v5770, %v5762
    %v8251 = vpack.c.b16 %v5771, %v5763
    %v8252 = vpack.c.b16 %v5772, %v5764
    %v8253 = vpack.c.b16 %v5773, %v5765
    %v8254 = vpack.c.b16 %v5774, %v5766
    %v8255 = vpack.c.b16 %v5775, %v5767
    %v8256 = vpack.c.b16 %v5776, %v5768
    %v8257 = vpack.c.b16 %v5785, %v5777
    %v8258 = vpack.c.b16 %v5786, %v5778
    %v8259 = vpack.c.b16 %v5787, %v5779
    %v8260 = vpack.c.b16 %v5788, %v5780
    %v8261 = vpack.c.b16 %v5789, %v5781
    %v8262 = vpack.c.b16 %v5790, %v5782
    %v8263 = vpack.c.b16 %v5791, %v5783
    %v8264 = vpack.c.b16 %v5792, %v5784
    %v8265 = vpack.c.b16 %v5801, %v5793
    %v8266 = vpack.c.b16 %v5802, %v5794
    %v8267 = vpack.c.b16 %v5803, %v5795
    %v8268 = vpack.c.b16 %v5804, %v5796
    %v8269 = vpack.c.b16 %v5805, %v5797
    %v8270 = vpack.c.b16 %v5806, %v5798
    %v8271 = vpack.c.b16 %v5807, %v5799
    %v8272 = vpack.c.b16 %v5808, %v5800
    %v8273 = vpack.c.b16 %v5817, %v5809
    %v8274 = vpack.c.b16 %v5818, %v5810
    %v8275 = vpack.c.b16 %v5819, %v5811
    %v8276 = vpack.c.b16 %v5820, %v5812
    %v8277 = vpack.c.b16 %v5821, %v5813
    %v8278 = vpack.c.b16 %v5822, %v5814
    %v8279 = vpack.c.b16 %v5823, %v5815
    %v8280 = vpack.c.b16 %v5824, %v5816
    %v8281 = vpack.c.b16 %v5833, %v5825
    %v8282 = vpack.c.b16 %v5834, %v5826
    %v8283 = vpack.c.b16 %v5835, %v5827
    %v8284 = vpack.c.b16 %v5836, %v5828
    %v8285 = vpack.c.b16 %v5837, %v5829
    %v8286 = vpack.c.b16 %v5838, %v5830
    %v8287 = vpack.c.b16 %v5839, %v5831
    %v8288 = vpack.c.b16 %v5840, %v5832
    %v8289 = vpack.c.b16 %v5849, %v5841
    %v8290 = vpack.c.b16 %v5850, %v5842
    %v8291 = vpack.c.b16 %v5851, %v5843
    %v8292 = vpack.c.b16 %v5852, %v5844
    %v8293 = vpack.c.b16 %v5853, %v5845
    %v8294 = vpack.c.b16 %v5854, %v5846
    %v8295 = vpack.c.b16 %v5855, %v5847
    %v8296 = vpack.c.b16 %v5856, %v5848
    %v8297 = vpack.c.b16 %v5865, %v5857
    %v8298 = vpack.c.b16 %v5866, %v5858
    %v8299 = vpack.c.b16 %v5867, %v5859
    %v8300 = vpack.c.b16 %v5868, %v5860
    %v8301 = vpack.c.b16 %v5869, %v5861
    %v8302 = vpack.c.b16 %v5870, %v5862
    %v8303 = vpack.c.b16 %v5871, %v5863
    %v8304 = vpack.c.b16 %v5872, %v5864
    %v8305 = vpack.c.b16 %v5881, %v5873
    %v8306 = vpack.c.b16 %v5882, %v5874
    %v8307 = vpack.c.b16 %v5883, %v5875
    %v8308 = vpack.c.b16 %v5884, %v5876
    %v8309 = vpack.c.b16 %v5885, %v5877
    %v8310 = vpack.c.b16 %v5886, %v5878
    %v8311 = vpack.c.b16 %v5887, %v5879
    %v8312 = vpack.c.b16 %v5888, %v5880
    %v8313 = vpack.c.b16 %v5897, %v5889
    %v8314 = vpack.c.b16 %v5898, %v5890
    %v8315 = vpack.c.b16 %v5899, %v5891
    %v8316 = vpack.c.b16 %v5900, %v5892
    %v8317 = vpack.c.b16 %v5901, %v5893
    %v8318 = vpack.c.b16 %v5902, %v5894
    %v8319 = vpack.c.b16 %v5903, %v5895
    %v8320 = vpack.c.b16 %v5904, %v5896
    %v8321 = vpack.c.b16 %v5913, %v5905
    %v8322 = vpack.c.b16 %v5914, %v5906
    %v8323 = vpack.c.b16 %v5915, %v5907
    %v8324 = vpack.c.b16 %v5916, %v5908
    %v8325 = vpack.c.b16 %v5917, %v5909
    %v8326 = vpack.c.b16 %v5918, %v5910
    %v8327 = vpack.c.b16 %v5919, %v5911
    %v8328 = vpack.c.b16 %v5920, %v5912
    %v8329 = vpack.c.b16 %v5929, %v5921
    %v8330 = vpack.c.b16 %v5930, %v5922
    %v8331 = vpack.c.b16 %v5931, %v5923
    %v8332 = vpack.c.b16 %v5932, %v5924
    %v8333 = vpack.c.b16 %v5933, %v5925
    %v8334 = vpack.c.b16 %v5934, %v5926
    %v8335 = vpack.c.b16 %v5935, %v5927
    %v8336 = vpack.c.b16 %v5936, %v5928
    %v8337 = vpack.c.b16 %v5945, %v5937
    %v8338 = vpack.c.b16 %v5946, %v5938
    %v8339 = vpack.c.b16 %v5947, %v5939
    %v8340 = vpack.c.b16 %v5948, %v5940
    %v8341 = vpack.c.b16 %v5949, %v5941
    %v8342 = vpack.c.b16 %v5950, %v5942
    %v8343 = vpack.c.b16 %v5951, %v5943
    %v8344 = vpack.c.b16 %v5952, %v5944
    %v8345 = vpack.c.b16 %v5961, %v5953
    %v8346 = vpack.c.b16 %v5962, %v5954
    %v8347 = vpack.c.b16 %v5963, %v5955
    %v8348 = vpack.c.b16 %v5964, %v5956
    %v8349 = vpack.c.b16 %v5965, %v5957
    %v8350 = vpack.c.b16 %v5966, %v5958
    %v8351 = vpack.c.b16 %v5967, %v5959
    %v8352 = vpack.c.b16 %v5968, %v5960
    %v8353 = vpack.c.b16 %v5977, %v5969
    %v8354 = vpack.c.b16 %v5978, %v5970
    %v8355 = vpack.c.b16 %v5979, %v5971
    %v8356 = vpack.c.b16 %v5980, %v5972
    %v8357 = vpack.c.b16 %v5981, %v5973
    %v8358 = vpack.c.b16 %v5982, %v5974
    %v8359 = vpack.c.b16 %v5983, %v5975
    %v8360 = vpack.c.b16 %v5984, %v5976
    %v8361 = vpack.c.b16 %v5993, %v5985
    %v8362 = vpack.c.b16 %v5994, %v5986
    %v8363 = vpack.c.b16 %v5995, %v5987
    %v8364 = vpack.c.b16 %v5996, %v5988
    %v8365 = vpack.c.b16 %v5997, %v5989
    %v8366 = vpack.c.b16 %v5998, %v5990
    %v8367 = vpack.c.b16 %v5999, %v5991
    %v8368 = vpack.c.b16 %v6000, %v5992
    %v8369 = vpack.c.b16 %v6009, %v6001
    %v8370 = vpack.c.b16 %v6010, %v6002
    %v8371 = vpack.c.b16 %v6011, %v6003
    %v8372 = vpack.c.b16 %v6012, %v6004
    %v8373 = vpack.c.b16 %v6013, %v6005
    %v8374 = vpack.c.b16 %v6014, %v6006
    %v8375 = vpack.c.b16 %v6015, %v6007
    %v8376 = vpack.c.b16 %v6016, %v6008
    %v8377 = vpack.c.b16 %v6025, %v6017
    %v8378 = vpack.c.b16 %v6026, %v6018
    %v8379 = vpack.c.b16 %v6027, %v6019
    %v8380 = vpack.c.b16 %v6028, %v6020
    %v8381 = vpack.c.b16 %v6029, %v6021
    %v8382 = vpack.c.b16 %v6030, %v6022
    %v8383 = vpack.c.b16 %v6031, %v6023
    %v8384 = vpack.c.b16 %v6032, %v6024
    %v8385 = vpack.c.b16 %v6041, %v6033
    %v8386 = vpack.c.b16 %v6042, %v6034
    %v8387 = vpack.c.b16 %v6043, %v6035
    %v8388 = vpack.c.b16 %v6044, %v6036
    %v8389 = vpack.c.b16 %v6045, %v6037
    %v8390 = vpack.c.b16 %v6046, %v6038
    %v8391 = vpack.c.b16 %v6047, %v6039
    %v8392 = vpack.c.b16 %v6048, %v6040
    %v8393 = vpack.c.b16 %v6057, %v6049
    %v8394 = vpack.c.b16 %v6058, %v6050
    %v8395 = vpack.c.b16 %v6059, %v6051
    %v8396 = vpack.c.b16 %v6060, %v6052
    %v8397 = vpack.c.b16 %v6061, %v6053
    %v8398 = vpack.c.b16 %v6062, %v6054
    %v8399 = vpack.c.b16 %v6063, %v6055
    %v8400 = vpack.c.b16 %v6064, %v6056
    %v8401 = vpack.c.b16 %v6073, %v6065
    %v8402 = vpack.c.b16 %v6074, %v6066
    %v8403 = vpack.c.b16 %v6075, %v6067
    %v8404 = vpack.c.b16 %v6076, %v6068
    %v8405 = vpack.c.b16 %v6077, %v6069
    %v8406 = vpack.c.b16 %v6078, %v6070
    %v8407 = vpack.c.b16 %v6079, %v6071
    %v8408 = vpack.c.b16 %v6080, %v6072
    %v8409 = vpack.c.b16 %v6089, %v6081
    %v8410 = vpack.c.b16 %v6090, %v6082
    %v8411 = vpack.c.b16 %v6091, %v6083
    %v8412 = vpack.c.b16 %v6092, %v6084
    %v8413 = vpack.c.b16 %v6093, %v6085
    %v8414 = vpack.c.b16 %v6094, %v6086
    %v8415 = vpack.c.b16 %v6095, %v6087
    %v8416 = vpack.c.b16 %v6096, %v6088
    %v8417 = vpack.c.b16 %v6105, %v6097
    %v8418 = vpack.c.b16 %v6106, %v6098
    %v8419 = vpack.c.b16 %v6107, %v6099
    %v8420 = vpack.c.b16 %v6108, %v6100
    %v8421 = vpack.c.b16 %v6109, %v6101
    %v8422 = vpack.c.b16 %v6110, %v6102
    %v8423 = vpack.c.b16 %v6111, %v6103
    %v8424 = vpack.c.b16 %v6112, %v6104
    %v8425 = vpack.c.b16 %v6121, %v6113
    %v8426 = vpack.c.b16 %v6122, %v6114
    %v8427 = vpack.c.b16 %v6123, %v6115
    %v8428 = vpack.c.b16 %v6124, %v6116
    %v8429 = vpack.c.b16 %v6125, %v6117
    %v8430 = vpack.c.b16 %v6126, %v6118
    %v8431 = vpack.c.b16 %v6127, %v6119
    %v8432 = vpack.c.b16 %v6128, %v6120
    %v8433 = vpack.c.b16 %v6137, %v6129
    %v8434 = vpack.c.b16 %v6138, %v6130
    %v8435 = vpack.c.b16 %v6139, %v6131
    %v8436 = vpack.c.b16 %v6140, %v6132
    %v8437 = vpack.c.b16 %v6141, %v6133
    %v8438 = vpack.c.b16 %v6142, %v6134
    %v8439 = vpack.c.b16 %v6143, %v6135
    %v8440 = vpack.c.b16 %v6144, %v6136
    %v8441 = vpack.c.b16 %v6153, %v6145
    %v8442 = vpack.c.b16 %v6154, %v6146
    %v8443 = vpack.c.b16 %v6155, %v6147
    %v8444 = vpack.c.b16 %v6156, %v6148
    %v8445 = vpack.c.b16 %v6157, %v6149
    %v8446 = vpack.c.b16 %v6158, %v6150
    %v8447 = vpack.c.b16 %v6159, %v6151
    %v8448 = vpack.c.b16 %v6160, %v6152
    %v8449 = vpack.c.b16 %v6169, %v6161
    %v8450 = vpack.c.b16 %v6170, %v6162
    %v8451 = vpack.c.b16 %v6171, %v6163
    %v8452 = vpack.c.b16 %v6172, %v6164
    %v8453 = vpack.c.b16 %v6173, %v6165
    %v8454 = vpack.c.b16 %v6174, %v6166
    %v8455 = vpack.c.b16 %v6175, %v6167
    %v8456 = vpack.c.b16 %v6176, %v6168
    %v8457 = vpack.c.b16 %v6185, %v6177
    %v8458 = vpack.c.b16 %v6186, %v6178
    %v8459 = vpack.c.b16 %v6187, %v6179
    %v8460 = vpack.c.b16 %v6188, %v6180
    %v8461 = vpack.c.b16 %v6189, %v6181
    %v8462 = vpack.c.b16 %v6190, %v6182
    %v8463 = vpack.c.b16 %v6191, %v6183
    %v8464 = vpack.c.b16 %v6192, %v6184
    %v8465 = vpack.c.b16 %v6201, %v6193
    %v8466 = vpack.c.b16 %v6202, %v6194
    %v8467 = vpack.c.b16 %v6203, %v6195
    %v8468 = vpack.c.b16 %v6204, %v6196
    %v8469 = vpack.c.b16 %v6205, %v6197
    %v8470 = vpack.c.b16 %v6206, %v6198
    %v8471 = vpack.c.b16 %v6207, %v6199
    %v8472 = vpack.c.b16 %v6208, %v6200
    %v8473 = vpack.c.b16 %v6217, %v6209
    %v8474 = vpack.c.b16 %v6218, %v6210
    %v8475 = vpack.c.b16 %v6219, %v6211
    %v8476 = vpack.c.b16 %v6220, %v6212
    %v8477 = vpack.c.b16 %v6221, %v6213
    %v8478 = vpack.c.b16 %v6222, %v6214
    %v8479 = vpack.c.b16 %v6223, %v6215
    %v8480 = vpack.c.b16 %v6224, %v6216
    %v8481 = vpack.c.b16 %v6233, %v6225
    %v8482 = vpack.c.b16 %v6234, %v6226
    %v8483 = vpack.c.b16 %v6235, %v6227
    %v8484 = vpack.c.b16 %v6236, %v6228
    %v8485 = vpack.c.b16 %v6237, %v6229
    %v8486 = vpack.c.b16 %v6238, %v6230
    %v8487 = vpack.c.b16 %v6239, %v6231
    %v8488 = vpack.c.b16 %v6240, %v6232
    %v8489 = vpack.c.b16 %v6249, %v6241
    %v8490 = vpack.c.b16 %v6250, %v6242
    %v8491 = vpack.c.b16 %v6251, %v6243
    %v8492 = vpack.c.b16 %v6252, %v6244
    %v8493 = vpack.c.b16 %v6253, %v6245
    %v8494 = vpack.c.b16 %v6254, %v6246
    %v8495 = vpack.c.b16 %v6255, %v6247
    %v8496 = vpack.c.b16 %v6256, %v6248
    %v8497 = vpack.c.b16 %v6265, %v6257
    %v8498 = vpack.c.b16 %v6266, %v6258
    %v8499 = vpack.c.b16 %v6267, %v6259
    %v8500 = vpack.c.b16 %v6268, %v6260
    %v8501 = vpack.c.b16 %v6269, %v6261
    %v8502 = vpack.c.b16 %v6270, %v6262
    %v8503 = vpack.c.b16 %v6271, %v6263
    %v8504 = vpack.c.b16 %v6272, %v6264
    %v8505 = vpack.c.b16 %v6281, %v6273
    %v8506 = vpack.c.b16 %v6282, %v6274
    %v8507 = vpack.c.b16 %v6283, %v6275
    %v8508 = vpack.c.b16 %v6284, %v6276
    %v8509 = vpack.c.b16 %v6285, %v6277
    %v8510 = vpack.c.b16 %v6286, %v6278
    %v8511 = vpack.c.b16 %v6287, %v6279
    %v8512 = vpack.c.b16 %v6288, %v6280
    %v8513 = vpack.c.b16 %v6297, %v6289
    %v8514 = vpack.c.b16 %v6298, %v6290
    %v8515 = vpack.c.b16 %v6299, %v6291
    %v8516 = vpack.c.b16 %v6300, %v6292
    %v8517 = vpack.c.b16 %v6301, %v6293
    %v8518 = vpack.c.b16 %v6302, %v6294
    %v8519 = vpack.c.b16 %v6303, %v6295
    %v8520 = vpack.c.b16 %v6304, %v6296
    %v8521 = vpack.c.b16 %v6313, %v6305
    %v8522 = vpack.c.b16 %v6314, %v6306
    %v8523 = vpack.c.b16 %v6315, %v6307
    %v8524 = vpack.c.b16 %v6316, %v6308
    %v8525 = vpack.c.b16 %v6317, %v6309
    %v8526 = vpack.c.b16 %v6318, %v6310
    %v8527 = vpack.c.b16 %v6319, %v6311
    %v8528 = vpack.c.b16 %v6320, %v6312
    %v8529 = vpack.c.b16 %v6329, %v6321
    %v8530 = vpack.c.b16 %v6330, %v6322
    %v8531 = vpack.c.b16 %v6331, %v6323
    %v8532 = vpack.c.b16 %v6332, %v6324
    %v8533 = vpack.c.b16 %v6333, %v6325
    %v8534 = vpack.c.b16 %v6334, %v6326
    %v8535 = vpack.c.b16 %v6335, %v6327
    %v8536 = vpack.c.b16 %v6336, %v6328
    %v8537 = vpack.c.b16 %v6345, %v6337
    %v8538 = vpack.c.b16 %v6346, %v6338
    %v8539 = vpack.c.b16 %v6347, %v6339
    %v8540 = vpack.c.b16 %v6348, %v6340
    %v8541 = vpack.c.b16 %v6349, %v6341
    %v8542 = vpack.c.b16 %v6350, %v6342
    %v8543 = vpack.c.b16 %v6351, %v6343
    %v8544 = vpack.c.b16 %v6352, %v6344
    %v8545 = vpack.c.b16 %v6361, %v6353
    %v8546 = vpack.c.b16 %v6362, %v6354
    %v8547 = vpack.c.b16 %v6363, %v6355
    %v8548 = vpack.c.b16 %v6364, %v6356
    %v8549 = vpack.c.b16 %v6365, %v6357
    %v8550 = vpack.c.b16 %v6366, %v6358
    %v8551 = vpack.c.b16 %v6367, %v6359
    %v8552 = vpack.c.b16 %v6368, %v6360
    %v8553 = vpack.c.b16 %v6377, %v6369
    %v8554 = vpack.c.b16 %v6378, %v6370
    %v8555 = vpack.c.b16 %v6379, %v6371
    %v8556 = vpack.c.b16 %v6380, %v6372
    %v8557 = vpack.c.b16 %v6381, %v6373
    %v8558 = vpack.c.b16 %v6382, %v6374
    %v8559 = vpack.c.b16 %v6383, %v6375
    %v8560 = vpack.c.b16 %v6384, %v6376
    %v8561 = vpack.c.b16 %v6393, %v6385
    %v8562 = vpack.c.b16 %v6394, %v6386
    %v8563 = vpack.c.b16 %v6395, %v6387
    %v8564 = vpack.c.b16 %v6396, %v6388
    %v8565 = vpack.c.b16 %v6397, %v6389
    %v8566 = vpack.c.b16 %v6398, %v6390
    %v8567 = vpack.c.b16 %v6399, %v6391
    %v8568 = vpack.c.b16 %v6400, %v6392
    %v8569 = vpack.c.b16 %v6409, %v6401
    %v8570 = vpack.c.b16 %v6410, %v6402
    %v8571 = vpack.c.b16 %v6411, %v6403
    %v8572 = vpack.c.b16 %v6412, %v6404
    %v8573 = vpack.c.b16 %v6413, %v6405
    %v8574 = vpack.c.b16 %v6414, %v6406
    %v8575 = vpack.c.b16 %v6415, %v6407
    %v8576 = vpack.c.b16 %v6416, %v6408
    %v8577 = vpack.c.b16 %v6425, %v6417
    %v8578 = vpack.c.b16 %v6426, %v6418
    %v8579 = vpack.c.b16 %v6427, %v6419
    %v8580 = vpack.c.b16 %v6428, %v6420
    %v8581 = vpack.c.b16 %v6429, %v6421
    %v8582 = vpack.c.b16 %v6430, %v6422
    %v8583 = vpack.c.b16 %v6431, %v6423
    %v8584 = vpack.c.b16 %v6432, %v6424
    %v8585 = vpack.c.b16 %v6441, %v6433
    %v8586 = vpack.c.b16 %v6442, %v6434
    %v8587 = vpack.c.b16 %v6443, %v6435
    %v8588 = vpack.c.b16 %v6444, %v6436
    %v8589 = vpack.c.b16 %v6445, %v6437
    %v8590 = vpack.c.b16 %v6446, %v6438
    %v8591 = vpack.c.b16 %v6447, %v6439
    %v8592 = vpack.c.b16 %v6448, %v6440
    %v8593 = vpack.c.b16 %v6457, %v6449
    %v8594 = vpack.c.b16 %v6458, %v6450
    %v8595 = vpack.c.b16 %v6459, %v6451
    %v8596 = vpack.c.b16 %v6460, %v6452
    %v8597 = vpack.c.b16 %v6461, %v6453
    %v8598 = vpack.c.b16 %v6462, %v6454
    %v8599 = vpack.c.b16 %v6463, %v6455
    %v8600 = vpack.c.b16 %v6464, %v6456
    %v8601 = vpack.c.b16 %v6473, %v6465
    %v8602 = vpack.c.b16 %v6474, %v6466
    %v8603 = vpack.c.b16 %v6475, %v6467
    %v8604 = vpack.c.b16 %v6476, %v6468
    %v8605 = vpack.c.b16 %v6477, %v6469
    %v8606 = vpack.c.b16 %v6478, %v6470
    %v8607 = vpack.c.b16 %v6479, %v6471
    %v8608 = vpack.c.b16 %v6480, %v6472
    %v8609 = vpack.c.b16 %v6489, %v6481
    %v8610 = vpack.c.b16 %v6490, %v6482
    %v8611 = vpack.c.b16 %v6491, %v6483
    %v8612 = vpack.c.b16 %v6492, %v6484
    %v8613 = vpack.c.b16 %v6493, %v6485
    %v8614 = vpack.c.b16 %v6494, %v6486
    %v8615 = vpack.c.b16 %v6495, %v6487
    %v8616 = vpack.c.b16 %v6496, %v6488
    %v8617 = vpack.c.b16 %v6505, %v6497
    %v8618 = vpack.c.b16 %v6506, %v6498
    %v8619 = vpack.c.b16 %v6507, %v6499
    %v8620 = vpack.c.b16 %v6508, %v6500
    %v8621 = vpack.c.b16 %v6509, %v6501
    %v8622 = vpack.c.b16 %v6510, %v6502
    %v8623 = vpack.c.b16 %v6511, %v6503
    %v8624 = vpack.c.b16 %v6512, %v6504
    %v8625 = vpack.c.b16 %v6521, %v6513
    %v8626 = vpack.c.b16 %v6522, %v6514
    %v8627 = vpack.c.b16 %v6523, %v6515
    %v8628 = vpack.c.b16 %v6524, %v6516
    %v8629 = vpack.c.b16 %v6525, %v6517
    %v8630 = vpack.c.b16 %v6526, %v6518
    %v8631 = vpack.c.b16 %v6527, %v6519
    %v8632 = vpack.c.b16 %v6528, %v6520
    %v8633 = vpack.c.b16 %v6537, %v6529
    %v8634 = vpack.c.b16 %v6538, %v6530
    %v8635 = vpack.c.b16 %v6539, %v6531
    %v8636 = vpack.c.b16 %v6540, %v6532
    %v8637 = vpack.c.b16 %v6541, %v6533
    %v8638 = vpack.c.b16 %v6542, %v6534
    %v8639 = vpack.c.b16 %v6543, %v6535
    %v8640 = vpack.c.b16 %v6544, %v6536
    %v8641 = vpack.c.b16 %v6553, %v6545
    %v8642 = vpack.c.b16 %v6554, %v6546
    %v8643 = vpack.c.b16 %v6555, %v6547
    %v8644 = vpack.c.b16 %v6556, %v6548
    %v8645 = vpack.c.b16 %v6557, %v6549
    %v8646 = vpack.c.b16 %v6558, %v6550
    %v8647 = vpack.c.b16 %v6559, %v6551
    %v8648 = vpack.c.b16 %v6560, %v6552
    %v8649 = vpack.c.b16 %v6569, %v6561
    %v8650 = vpack.c.b16 %v6570, %v6562
    %v8651 = vpack.c.b16 %v6571, %v6563
    %v8652 = vpack.c.b16 %v6572, %v6564
    %v8653 = vpack.c.b16 %v6573, %v6565
    %v8654 = vpack.c.b16 %v6574, %v6566
    %v8655 = vpack.c.b16 %v6575, %v6567
    %v8656 = vpack.c.b16 %v6576, %v6568
    %v8657 = vpack.c.b16 %v6585, %v6577
    %v8658 = vpack.c.b16 %v6586, %v6578
    %v8659 = vpack.c.b16 %v6587, %v6579
    %v8660 = vpack.c.b16 %v6588, %v6580
    %v8661 = vpack.c.b16 %v6589, %v6581
    %v8662 = vpack.c.b16 %v6590, %v6582
    %v8663 = vpack.c.b16 %v6591, %v6583
    %v8664 = vpack.c.b16 %v6592, %v6584
    %v8665 = vpack.c.b16 %v6601, %v6593
    %v8666 = vpack.c.b16 %v6602, %v6594
    %v8667 = vpack.c.b16 %v6603, %v6595
    %v8668 = vpack.c.b16 %v6604, %v6596
    %v8669 = vpack.c.b16 %v6605, %v6597
    %v8670 = vpack.c.b16 %v6606, %v6598
    %v8671 = vpack.c.b16 %v6607, %v6599
    %v8672 = vpack.c.b16 %v6608, %v6600
    %v8673 = vpack.c.b16 %v6617, %v6609
    %v8674 = vpack.c.b16 %v6618, %v6610
    %v8675 = vpack.c.b16 %v6619, %v6611
    %v8676 = vpack.c.b16 %v6620, %v6612
    %v8677 = vpack.c.b16 %v6621, %v6613
    %v8678 = vpack.c.b16 %v6622, %v6614
    %v8679 = vpack.c.b16 %v6623, %v6615
    %v8680 = vpack.c.b16 %v6624, %v6616
    %v8681 = vpack.c.b16 %v6633, %v6625
    %v8682 = vpack.c.b16 %v6634, %v6626
    %v8683 = vpack.c.b16 %v6635, %v6627
    %v8684 = vpack.c.b16 %v6636, %v6628
    %v8685 = vpack.c.b16 %v6637, %v6629
    %v8686 = vpack.c.b16 %v6638, %v6630
    %v8687 = vpack.c.b16 %v6639, %v6631
    %v8688 = vpack.c.b16 %v6640, %v6632
    %v8689 = vpack.c.b16 %v6649, %v6641
    %v8690 = vpack.c.b16 %v6650, %v6642
    %v8691 = vpack.c.b16 %v6651, %v6643
    %v8692 = vpack.c.b16 %v6652, %v6644
    %v8693 = vpack.c.b16 %v6653, %v6645
    %v8694 = vpack.c.b16 %v6654, %v6646
    %v8695 = vpack.c.b16 %v6655, %v6647
    %v8696 = vpack.c.b16 %v6656, %v6648
    %v8697 = vpack.c.b16 %v6665, %v6657
    %v8698 = vpack.c.b16 %v6666, %v6658
    %v8699 = vpack.c.b16 %v6667, %v6659
    %v8700 = vpack.c.b16 %v6668, %v6660
    %v8701 = vpack.c.b16 %v6669, %v6661
    %v8702 = vpack.c.b16 %v6670, %v6662
    %v8703 = vpack.c.b16 %v6671, %v6663
    %v8704 = vpack.c.b16 %v6672, %v6664
    %v8705 = vpack.c.b16 %v6681, %v6673
    %v8706 = vpack.c.b16 %v6682, %v6674
    %v8707 = vpack.c.b16 %v6683, %v6675
    %v8708 = vpack.c.b16 %v6684, %v6676
    %v8709 = vpack.c.b16 %v6685, %v6677
    %v8710 = vpack.c.b16 %v6686, %v6678
    %v8711 = vpack.c.b16 %v6687, %v6679
    %v8712 = vpack.c.b16 %v6688, %v6680
    %v8713 = vpack.c.b16 %v6697, %v6689
    %v8714 = vpack.c.b16 %v6698, %v6690
    %v8715 = vpack.c.b16 %v6699, %v6691
    %v8716 = vpack.c.b16 %v6700, %v6692
    %v8717 = vpack.c.b16 %v6701, %v6693
    %v8718 = vpack.c.b16 %v6702, %v6694
    %v8719 = vpack.c.b16 %v6703, %v6695
    %v8720 = vpack.c.b16 %v6704, %v6696
    %v8721 = vpack.c.b16 %v6713, %v6705
    %v8722 = vpack.c.b16 %v6714, %v6706
    %v8723 = vpack.c.b16 %v6715, %v6707
    %v8724 = vpack.c.b16 %v6716, %v6708
    %v8725 = vpack.c.b16 %v6717, %v6709
    %v8726 = vpack.c.b16 %v6718, %v6710
    %v8727 = vpack.c.b16 %v6719, %v6711
    %v8728 = vpack.c.b16 %v6720, %v6712
    %v8729 = vpack.c.b16 %v6729, %v6721
    %v8730 = vpack.c.b16 %v6730, %v6722
    %v8731 = vpack.c.b16 %v6731, %v6723
    %v8732 = vpack.c.b16 %v6732, %v6724
    %v8733 = vpack.c.b16 %v6733, %v6725
    %v8734 = vpack.c.b16 %v6734, %v6726
    %v8735 = vpack.c.b16 %v6735, %v6727
    %v8736 = vpack.c.b16 %v6736, %v6728
    %v8737 = vpack.c.b16 %v6745, %v6737
    %v8738 = vpack.c.b16 %v6746, %v6738
    %v8739 = vpack.c.b16 %v6747, %v6739
    %v8740 = vpack.c.b16 %v6748, %v6740
    %v8741 = vpack.c.b16 %v6749, %v6741
    %v8742 = vpack.c.b16 %v6750, %v6742
    %v8743 = vpack.c.b16 %v6751, %v6743
    %v8744 = vpack.c.b16 %v6752, %v6744
    %v8745 = vpack.c.b16 %v6761, %v6753
    %v8746 = vpack.c.b16 %v6762, %v6754
    %v8747 = vpack.c.b16 %v6763, %v6755
    %v8748 = vpack.c.b16 %v6764, %v6756
    %v8749 = vpack.c.b16 %v6765, %v6757
    %v8750 = vpack.c.b16 %v6766, %v6758
    %v8751 = vpack.c.b16 %v6767, %v6759
    %v8752 = vpack.c.b16 %v6768, %v6760
    %v8753 = vpack.c.b16 %v6777, %v6769
    %v8754 = vpack.c.b16 %v6778, %v6770
    %v8755 = vpack.c.b16 %v6779, %v6771
    %v8756 = vpack.c.b16 %v6780, %v6772
    %v8757 = vpack.c.b16 %v6781, %v6773
    %v8758 = vpack.c.b16 %v6782, %v6774
    %v8759 = vpack.c.b16 %v6783, %v6775
    %v8760 = vpack.c.b16 %v6784, %v6776
    %v8761 = vpack.c.b16 %v6793, %v6785
    %v8762 = vpack.c.b16 %v6794, %v6786
    %v8763 = vpack.c.b16 %v6795, %v6787
    %v8764 = vpack.c.b16 %v6796, %v6788
    %v8765 = vpack.c.b16 %v6797, %v6789
    %v8766 = vpack.c.b16 %v6798, %v6790
    %v8767 = vpack.c.b16 %v6799, %v6791
    %v8768 = vpack.c.b16 %v6800, %v6792
    %v8769 = vpack.c.b16 %v6809, %v6801
    %v8770 = vpack.c.b16 %v6810, %v6802
    %v8771 = vpack.c.b16 %v6811, %v6803
    %v8772 = vpack.c.b16 %v6812, %v6804
    %v8773 = vpack.c.b16 %v6813, %v6805
    %v8774 = vpack.c.b16 %v6814, %v6806
    %v8775 = vpack.c.b16 %v6815, %v6807
    %v8776 = vpack.c.b16 %v6816, %v6808
    %v8777 = vpack.c.b16 %v6825, %v6817
    %v8778 = vpack.c.b16 %v6826, %v6818
    %v8779 = vpack.c.b16 %v6827, %v6819
    %v8780 = vpack.c.b16 %v6828, %v6820
    %v8781 = vpack.c.b16 %v6829, %v6821
    %v8782 = vpack.c.b16 %v6830, %v6822
    %v8783 = vpack.c.b16 %v6831, %v6823
    %v8784 = vpack.c.b16 %v6832, %v6824
    %v8785 = vpack.c.b16 %v6841, %v6833
    %v8786 = vpack.c.b16 %v6842, %v6834
    %v8787 = vpack.c.b16 %v6843, %v6835
    %v8788 = vpack.c.b16 %v6844, %v6836
    %v8789 = vpack.c.b16 %v6845, %v6837
    %v8790 = vpack.c.b16 %v6846, %v6838
    %v8791 = vpack.c.b16 %v6847, %v6839
    %v8792 = vpack.c.b16 %v6848, %v6840
    %v8793 = vpack.c.b16 %v6857, %v6849
    %v8794 = vpack.c.b16 %v6858, %v6850
    %v8795 = vpack.c.b16 %v6859, %v6851
    %v8796 = vpack.c.b16 %v6860, %v6852
    %v8797 = vpack.c.b16 %v6861, %v6853
    %v8798 = vpack.c.b16 %v6862, %v6854
    %v8799 = vpack.c.b16 %v6863, %v6855
    %v8800 = vpack.c.b16 %v6864, %v6856
    %v8801 = vpack.c.b16 %v6873, %v6865
    %v8802 = vpack.c.b16 %v6874, %v6866
    %v8803 = vpack.c.b16 %v6875, %v6867
    %v8804 = vpack.c.b16 %v6876, %v6868
    %v8805 = vpack.c.b16 %v6877, %v6869
    %v8806 = vpack.c.b16 %v6878, %v6870
    %v8807 = vpack.c.b16 %v6879, %v6871
    %v8808 = vpack.c.b16 %v6880, %v6872
    %v8809 = vpack.c.b16 %v6889, %v6881
    %v8810 = vpack.c.b16 %v6890, %v6882
    %v8811 = vpack.c.b16 %v6891, %v6883
    %v8812 = vpack.c.b16 %v6892, %v6884
    %v8813 = vpack.c.b16 %v6893, %v6885
    %v8814 = vpack.c.b16 %v6894, %v6886
    %v8815 = vpack.c.b16 %v6895, %v6887
    %v8816 = vpack.c.b16 %v6896, %v6888
    %v8817 = vpack.c.b16 %v6905, %v6897
    %v8818 = vpack.c.b16 %v6906, %v6898
    %v8819 = vpack.c.b16 %v6907, %v6899
    %v8820 = vpack.c.b16 %v6908, %v6900
    %v8821 = vpack.c.b16 %v6909, %v6901
    %v8822 = vpack.c.b16 %v6910, %v6902
    %v8823 = vpack.c.b16 %v6911, %v6903
    %v8824 = vpack.c.b16 %v6912, %v6904
    %v8825 = vpack.c.b16 %v6921, %v6913
    %v8826 = vpack.c.b16 %v6922, %v6914
    %v8827 = vpack.c.b16 %v6923, %v6915
    %v8828 = vpack.c.b16 %v6924, %v6916
    %v8829 = vpack.c.b16 %v6925, %v6917
    %v8830 = vpack.c.b16 %v6926, %v6918
    %v8831 = vpack.c.b16 %v6927, %v6919
    %v8832 = vpack.c.b16 %v6928, %v6920
    %v8833 = vpack.c.b16 %v6937, %v6929
    %v8834 = vpack.c.b16 %v6938, %v6930
    %v8835 = vpack.c.b16 %v6939, %v6931
    %v8836 = vpack.c.b16 %v6940, %v6932
    %v8837 = vpack.c.b16 %v6941, %v6933
    %v8838 = vpack.c.b16 %v6942, %v6934
    %v8839 = vpack.c.b16 %v6943, %v6935
    %v8840 = vpack.c.b16 %v6944, %v6936
    %v8841 = vpack.c.b16 %v6953, %v6945
    %v8842 = vpack.c.b16 %v6954, %v6946
    %v8843 = vpack.c.b16 %v6955, %v6947
    %v8844 = vpack.c.b16 %v6956, %v6948
    %v8845 = vpack.c.b16 %v6957, %v6949
    %v8846 = vpack.c.b16 %v6958, %v6950
    %v8847 = vpack.c.b16 %v6959, %v6951
    %v8848 = vpack.c.b16 %v6960, %v6952
    %v8849 = vpack.c.b16 %v6969, %v6961
    %v8850 = vpack.c.b16 %v6970, %v6962
    %v8851 = vpack.c.b16 %v6971, %v6963
    %v8852 = vpack.c.b16 %v6972, %v6964
    %v8853 = vpack.c.b16 %v6973, %v6965
    %v8854 = vpack.c.b16 %v6974, %v6966
    %v8855 = vpack.c.b16 %v6975, %v6967
    %v8856 = vpack.c.b16 %v6976, %v6968
    %v8857 = vpack.c.b16 %v6985, %v6977
    %v8858 = vpack.c.b16 %v6986, %v6978
    %v8859 = vpack.c.b16 %v6987, %v6979
    %v8860 = vpack.c.b16 %v6988, %v6980
    %v8861 = vpack.c.b16 %v6989, %v6981
    %v8862 = vpack.c.b16 %v6990, %v6982
    %v8863 = vpack.c.b16 %v6991, %v6983
    %v8864 = vpack.c.b16 %v6992, %v6984
    %v8865 = vpack.c.b16 %v7001, %v6993
    %v8866 = vpack.c.b16 %v7002, %v6994
    %v8867 = vpack.c.b16 %v7003, %v6995
    %v8868 = vpack.c.b16 %v7004, %v6996
    %v8869 = vpack.c.b16 %v7005, %v6997
    %v8870 = vpack.c.b16 %v7006, %v6998
    %v8871 = vpack.c.b16 %v7007, %v6999
    %v8872 = vpack.c.b16 %v7008, %v7000
    %v8873 = vpack.c.b16 %v7017, %v7009
    %v8874 = vpack.c.b16 %v7018, %v7010
    %v8875 = vpack.c.b16 %v7019, %v7011
    %v8876 = vpack.c.b16 %v7020, %v7012
    %v8877 = vpack.c.b16 %v7021, %v7013
    %v8878 = vpack.c.b16 %v7022, %v7014
    %v8879 = vpack.c.b16 %v7023, %v7015
    %v8880 = vpack.c.b16 %v7024, %v7016
    %v8881 = vpack.c.b16 %v7033, %v7025
    %v8882 = vpack.c.b16 %v7034, %v7026
    %v8883 = vpack.c.b16 %v7035, %v7027
    %v8884 = vpack.c.b16 %v7036, %v7028
    %v8885 = vpack.c.b16 %v7037, %v7029
    %v8886 = vpack.c.b16 %v7038, %v7030
    %v8887 = vpack.c.b16 %v7039, %v7031
    %v8888 = vpack.c.b16 %v7040, %v7032
    %v8889 = vpack.c.b16 %v7049, %v7041
    %v8890 = vpack.c.b16 %v7050, %v7042
    %v8891 = vpack.c.b16 %v7051, %v7043
    %v8892 = vpack.c.b16 %v7052, %v7044
    %v8893 = vpack.c.b16 %v7053, %v7045
    %v8894 = vpack.c.b16 %v7054, %v7046
    %v8895 = vpack.c.b16 %v7055, %v7047
    %v8896 = vpack.c.b16 %v7056, %v7048
    %v8897 = vpack.c.b16 %v7065, %v7057
    %v8898 = vpack.c.b16 %v7066, %v7058
    %v8899 = vpack.c.b16 %v7067, %v7059
    %v8900 = vpack.c.b16 %v7068, %v7060
    %v8901 = vpack.c.b16 %v7069, %v7061
    %v8902 = vpack.c.b16 %v7070, %v7062
    %v8903 = vpack.c.b16 %v7071, %v7063
    %v8904 = vpack.c.b16 %v7072, %v7064
    %v8905 = vpack.c.b16 %v7081, %v7073
    %v8906 = vpack.c.b16 %v7082, %v7074
    %v8907 = vpack.c.b16 %v7083, %v7075
    %v8908 = vpack.c.b16 %v7084, %v7076
    %v8909 = vpack.c.b16 %v7085, %v7077
    %v8910 = vpack.c.b16 %v7086, %v7078
    %v8911 = vpack.c.b16 %v7087, %v7079
    %v8912 = vpack.c.b16 %v7088, %v7080
    %v8913 = vpack.c.b16 %v7097, %v7089
    %v8914 = vpack.c.b16 %v7098, %v7090
    %v8915 = vpack.c.b16 %v7099, %v7091
    %v8916 = vpack.c.b16 %v7100, %v7092
    %v8917 = vpack.c.b16 %v7101, %v7093
    %v8918 = vpack.c.b16 %v7102, %v7094
    %v8919 = vpack.c.b16 %v7103, %v7095
    %v8920 = vpack.c.b16 %v7104, %v7096
    %v8921 = vpack.c.b16 %v7113, %v7105
    %v8922 = vpack.c.b16 %v7114, %v7106
    %v8923 = vpack.c.b16 %v7115, %v7107
    %v8924 = vpack.c.b16 %v7116, %v7108
    %v8925 = vpack.c.b16 %v7117, %v7109
    %v8926 = vpack.c.b16 %v7118, %v7110
    %v8927 = vpack.c.b16 %v7119, %v7111
    %v8928 = vpack.c.b16 %v7120, %v7112
    %v8929 = vpack.c.b16 %v7129, %v7121
    %v8930 = vpack.c.b16 %v7130, %v7122
    %v8931 = vpack.c.b16 %v7131, %v7123
    %v8932 = vpack.c.b16 %v7132, %v7124
    %v8933 = vpack.c.b16 %v7133, %v7125
    %v8934 = vpack.c.b16 %v7134, %v7126
    %v8935 = vpack.c.b16 %v7135, %v7127
    %v8936 = vpack.c.b16 %v7136, %v7128
    %v8937 = vpack.c.b16 %v7145, %v7137
    %v8938 = vpack.c.b16 %v7146, %v7138
    %v8939 = vpack.c.b16 %v7147, %v7139
    %v8940 = vpack.c.b16 %v7148, %v7140
    %v8941 = vpack.c.b16 %v7149, %v7141
    %v8942 = vpack.c.b16 %v7150, %v7142
    %v8943 = vpack.c.b16 %v7151, %v7143
    %v8944 = vpack.c.b16 %v7152, %v7144
    %v8945 = vpack.c.b16 %v7161, %v7153
    %v8946 = vpack.c.b16 %v7162, %v7154
    %v8947 = vpack.c.b16 %v7163, %v7155
    %v8948 = vpack.c.b16 %v7164, %v7156
    %v8949 = vpack.c.b16 %v7165, %v7157
    %v8950 = vpack.c.b16 %v7166, %v7158
    %v8951 = vpack.c.b16 %v7167, %v7159
    %v8952 = vpack.c.b16 %v7168, %v7160
    %v8953 = vpack.c.b16 %v7177, %v7169
    %v8954 = vpack.c.b16 %v7178, %v7170
    %v8955 = vpack.c.b16 %v7179, %v7171
    %v8956 = vpack.c.b16 %v7180, %v7172
    %v8957 = vpack.c.b16 %v7181, %v7173
    %v8958 = vpack.c.b16 %v7182, %v7174
    %v8959 = vpack.c.b16 %v7183, %v7175
    %v8960 = vpack.c.b16 %v7184, %v7176
    %v8961 = vpack.c.b16 %v7193, %v7185
    %v8962 = vpack.c.b16 %v7194, %v7186
    %v8963 = vpack.c.b16 %v7195, %v7187
    %v8964 = vpack.c.b16 %v7196, %v7188
    %v8965 = vpack.c.b16 %v7197, %v7189
    %v8966 = vpack.c.b16 %v7198, %v7190
    %v8967 = vpack.c.b16 %v7199, %v7191
    %v8968 = vpack.c.b16 %v7200, %v7192
    %v8969 = vpack.c.b16 %v7209, %v7201
    %v8970 = vpack.c.b16 %v7210, %v7202
    %v8971 = vpack.c.b16 %v7211, %v7203
    %v8972 = vpack.c.b16 %v7212, %v7204
    %v8973 = vpack.c.b16 %v7213, %v7205
    %v8974 = vpack.c.b16 %v7214, %v7206
    %v8975 = vpack.c.b16 %v7215, %v7207
    %v8976 = vpack.c.b16 %v7216, %v7208
    %v8977 = vpack.c.b16 %v7225, %v7217
    %v8978 = vpack.c.b16 %v7226, %v7218
    %v8979 = vpack.c.b16 %v7227, %v7219
    %v8980 = vpack.c.b16 %v7228, %v7220
    %v8981 = vpack.c.b16 %v7229, %v7221
    %v8982 = vpack.c.b16 %v7230, %v7222
    %v8983 = vpack.c.b16 %v7231, %v7223
    %v8984 = vpack.c.b16 %v7232, %v7224
    %v8985 = vpack.c.b16 %v7241, %v7233
    %v8986 = vpack.c.b16 %v7242, %v7234
    %v8987 = vpack.c.b16 %v7243, %v7235
    %v8988 = vpack.c.b16 %v7244, %v7236
    %v8989 = vpack.c.b16 %v7245, %v7237
    %v8990 = vpack.c.b16 %v7246, %v7238
    %v8991 = vpack.c.b16 %v7247, %v7239
    %v8992 = vpack.c.b16 %v7248, %v7240
    %v8993 = vpack.c.b16 %v7257, %v7249
    %v8994 = vpack.c.b16 %v7258, %v7250
    %v8995 = vpack.c.b16 %v7259, %v7251
    %v8996 = vpack.c.b16 %v7260, %v7252
    %v8997 = vpack.c.b16 %v7261, %v7253
    %v8998 = vpack.c.b16 %v7262, %v7254
    %v8999 = vpack.c.b16 %v7263, %v7255
    %v9000 = vpack.c.b16 %v7264, %v7256
    %v9001 = vpack.c.b16 %v7273, %v7265
    %v9002 = vpack.c.b16 %v7274, %v7266
    %v9003 = vpack.c.b16 %v7275, %v7267
    %v9004 = vpack.c.b16 %v7276, %v7268
    %v9005 = vpack.c.b16 %v7277, %v7269
    %v9006 = vpack.c.b16 %v7278, %v7270
    %v9007 = vpack.c.b16 %v7279, %v7271
    %v9008 = vpack.c.b16 %v7280, %v7272
    %v9009 = vpack.c.b16 %v7289, %v7281
    %v9010 = vpack.c.b16 %v7290, %v7282
    %v9011 = vpack.c.b16 %v7291, %v7283
    %v9012 = vpack.c.b16 %v7292, %v7284
    %v9013 = vpack.c.b16 %v7293, %v7285
    %v9014 = vpack.c.b16 %v7294, %v7286
    %v9015 = vpack.c.b16 %v7295, %v7287
    %v9016 = vpack.c.b16 %v7296, %v7288
    %v9017 = vpack.c.b16 %v7305, %v7297
    %v9018 = vpack.c.b16 %v7306, %v7298
    %v9019 = vpack.c.b16 %v7307, %v7299
    %v9020 = vpack.c.b16 %v7308, %v7300
    %v9021 = vpack.c.b16 %v7309, %v7301
    %v9022 = vpack.c.b16 %v7310, %v7302
    %v9023 = vpack.c.b16 %v7311, %v7303
    %v9024 = vpack.c.b16 %v7312, %v7304
    %v9025 = vpack.c.b16 %v7321, %v7313
    %v9026 = vpack.c.b16 %v7322, %v7314
    %v9027 = vpack.c.b16 %v7323, %v7315
    %v9028 = vpack.c.b16 %v7324, %v7316
    %v9029 = vpack.c.b16 %v7325, %v7317
    %v9030 = vpack.c.b16 %v7326, %v7318
    %v9031 = vpack.c.b16 %v7327, %v7319
    %v9032 = vpack.c.b16 %v7328, %v7320
    %v9033 = vpack.c.b16 %v7337, %v7329
    %v9034 = vpack.c.b16 %v7338, %v7330
    %v9035 = vpack.c.b16 %v7339, %v7331
    %v9036 = vpack.c.b16 %v7340, %v7332
    %v9037 = vpack.c.b16 %v7341, %v7333
    %v9038 = vpack.c.b16 %v7342, %v7334
    %v9039 = vpack.c.b16 %v7343, %v7335
    %v9040 = vpack.c.b16 %v7344, %v7336
    %v9041 = vpack.c.b16 %v7353, %v7345
    %v9042 = vpack.c.b16 %v7354, %v7346
    %v9043 = vpack.c.b16 %v7355, %v7347
    %v9044 = vpack.c.b16 %v7356, %v7348
    %v9045 = vpack.c.b16 %v7357, %v7349
    %v9046 = vpack.c.b16 %v7358, %v7350
    %v9047 = vpack.c.b16 %v7359, %v7351
    %v9048 = vpack.c.b16 %v7360, %v7352
    %v9049 = vpack.c.b16 %v7369, %v7361
    %v9050 = vpack.c.b16 %v7370, %v7362
    %v9051 = vpack.c.b16 %v7371, %v7363
    %v9052 = vpack.c.b16 %v7372, %v7364
    %v9053 = vpack.c.b16 %v7373, %v7365
    %v9054 = vpack.c.b16 %v7374, %v7366
    %v9055 = vpack.c.b16 %v7375, %v7367
    %v9056 = vpack.c.b16 %v7376, %v7368
    %v9057 = vpack.c.b16 %v7385, %v7377
    %v9058 = vpack.c.b16 %v7386, %v7378
    %v9059 = vpack.c.b16 %v7387, %v7379
    %v9060 = vpack.c.b16 %v7388, %v7380
    %v9061 = vpack.c.b16 %v7389, %v7381
    %v9062 = vpack.c.b16 %v7390, %v7382
    %v9063 = vpack.c.b16 %v7391, %v7383
    %v9064 = vpack.c.b16 %v7392, %v7384
    %v9065 = vpack.c.b16 %v7401, %v7393
    %v9066 = vpack.c.b16 %v7402, %v7394
    %v9067 = vpack.c.b16 %v7403, %v7395
    %v9068 = vpack.c.b16 %v7404, %v7396
    %v9069 = vpack.c.b16 %v7405, %v7397
    %v9070 = vpack.c.b16 %v7406, %v7398
    %v9071 = vpack.c.b16 %v7407, %v7399
    %v9072 = vpack.c.b16 %v7408, %v7400
    %v9073 = vpack.c.b16 %v7417, %v7409
    %v9074 = vpack.c.b16 %v7418, %v7410
    %v9075 = vpack.c.b16 %v7419, %v7411
    %v9076 = vpack.c.b16 %v7420, %v7412
    %v9077 = vpack.c.b16 %v7421, %v7413
    %v9078 = vpack.c.b16 %v7422, %v7414
    %v9079 = vpack.c.b16 %v7423, %v7415
    %v9080 = vpack.c.b16 %v7424, %v7416
    %v9081 = vpack.c.b16 %v7433, %v7425
    %v9082 = vpack.c.b16 %v7434, %v7426
    %v9083 = vpack.c.b16 %v7435, %v7427
    %v9084 = vpack.c.b16 %v7436, %v7428
    %v9085 = vpack.c.b16 %v7437, %v7429
    %v9086 = vpack.c.b16 %v7438, %v7430
    %v9087 = vpack.c.b16 %v7439, %v7431
    %v9088 = vpack.c.b16 %v7440, %v7432
    %v9089 = vpack.c.b16 %v7449, %v7441
    %v9090 = vpack.c.b16 %v7450, %v7442
    %v9091 = vpack.c.b16 %v7451, %v7443
    %v9092 = vpack.c.b16 %v7452, %v7444
    %v9093 = vpack.c.b16 %v7453, %v7445
    %v9094 = vpack.c.b16 %v7454, %v7446
    %v9095 = vpack.c.b16 %v7455, %v7447
    %v9096 = vpack.c.b16 %v7456, %v7448
    %v9097 = vpack.c.b16 %v7465, %v7457
    %v9098 = vpack.c.b16 %v7466, %v7458
    %v9099 = vpack.c.b16 %v7467, %v7459
    %v9100 = vpack.c.b16 %v7468, %v7460
    %v9101 = vpack.c.b16 %v7469, %v7461
    %v9102 = vpack.c.b16 %v7470, %v7462
    %v9103 = vpack.c.b16 %v7471, %v7463
    %v9104 = vpack.c.b16 %v7472, %v7464
    %v9105 = vpack.c.b16 %v7481, %v7473
    %v9106 = vpack.c.b16 %v7482, %v7474
    %v9107 = vpack.c.b16 %v7483, %v7475
    %v9108 = vpack.c.b16 %v7484, %v7476
    %v9109 = vpack.c.b16 %v7485, %v7477
    %v9110 = vpack.c.b16 %v7486, %v7478
    %v9111 = vpack.c.b16 %v7487, %v7479
    %v9112 = vpack.c.b16 %v7488, %v7480
    %v9113 = vpack.c.b16 %v7497, %v7489
    %v9114 = vpack.c.b16 %v7498, %v7490
    %v9115 = vpack.c.b16 %v7499, %v7491
    %v9116 = vpack.c.b16 %v7500, %v7492
    %v9117 = vpack.c.b16 %v7501, %v7493
    %v9118 = vpack.c.b16 %v7502, %v7494
    %v9119 = vpack.c.b16 %v7503, %v7495
    %v9120 = vpack.c.b16 %v7504, %v7496
    %v9121 = vpack.c.b16 %v7513, %v7505
    %v9122 = vpack.c.b16 %v7514, %v7506
    %v9123 = vpack.c.b16 %v7515, %v7507
    %v9124 = vpack.c.b16 %v7516, %v7508
    %v9125 = vpack.c.b16 %v7517, %v7509
    %v9126 = vpack.c.b16 %v7518, %v7510
    %v9127 = vpack.c.b16 %v7519, %v7511
    %v9128 = vpack.c.b16 %v7520, %v7512
    %v9129 = vpack.c.b16 %v7529, %v7521
    %v9130 = vpack.c.b16 %v7530, %v7522
    %v9131 = vpack.c.b16 %v7531, %v7523
    %v9132 = vpack.c.b16 %v7532, %v7524
    %v9133 = vpack.c.b16 %v7533, %v7525
    %v9134 = vpack.c.b16 %v7534, %v7526
    %v9135 = vpack.c.b16 %v7535, %v7527
    %v9136 = vpack.c.b16 %v7536, %v7528
    %v9137 = vpack.c.b16 %v7545, %v7537
    %v9138 = vpack.c.b16 %v7546, %v7538
    %v9139 = vpack.c.b16 %v7547, %v7539
    %v9140 = vpack.c.b16 %v7548, %v7540
    %v9141 = vpack.c.b16 %v7549, %v7541
    %v9142 = vpack.c.b16 %v7550, %v7542
    %v9143 = vpack.c.b16 %v7551, %v7543
    %v9144 = vpack.c.b16 %v7552, %v7544
    %v9145 = vpack.c.b16 %v7561, %v7553
    %v9146 = vpack.c.b16 %v7562, %v7554
    %v9147 = vpack.c.b16 %v7563, %v7555
    %v9148 = vpack.c.b16 %v7564, %v7556
    %v9149 = vpack.c.b16 %v7565, %v7557
    %v9150 = vpack.c.b16 %v7566, %v7558
    %v9151 = vpack.c.b16 %v7567, %v7559
    %v9152 = vpack.c.b16 %v7568, %v7560
    %v9153 = vpack.c.b16 %v7577, %v7569
    %v9154 = vpack.c.b16 %v7578, %v7570
    %v9155 = vpack.c.b16 %v7579, %v7571
    %v9156 = vpack.c.b16 %v7580, %v7572
    %v9157 = vpack.c.b16 %v7581, %v7573
    %v9158 = vpack.c.b16 %v7582, %v7574
    %v9159 = vpack.c.b16 %v7583, %v7575
    %v9160 = vpack.c.b16 %v7584, %v7576
    %v9161 = vpack.c.b16 %v7593, %v7585
    %v9162 = vpack.c.b16 %v7594, %v7586
    %v9163 = vpack.c.b16 %v7595, %v7587
    %v9164 = vpack.c.b16 %v7596, %v7588
    %v9165 = vpack.c.b16 %v7597, %v7589
    %v9166 = vpack.c.b16 %v7598, %v7590
    %v9167 = vpack.c.b16 %v7599, %v7591
    %v9168 = vpack.c.b16 %v7600, %v7592
    %v9169 = vpack.c.b16 %v7609, %v7601
    %v9170 = vpack.c.b16 %v7610, %v7602
    %v9171 = vpack.c.b16 %v7611, %v7603
    %v9172 = vpack.c.b16 %v7612, %v7604
    %v9173 = vpack.c.b16 %v7613, %v7605
    %v9174 = vpack.c.b16 %v7614, %v7606
    %v9175 = vpack.c.b16 %v7615, %v7607
    %v9176 = vpack.c.b16 %v7616, %v7608
    %v9177 = vpack.c.b16 %v7625, %v7617
    %v9178 = vpack.c.b16 %v7626, %v7618
    %v9179 = vpack.c.b16 %v7627, %v7619
    %v9180 = vpack.c.b16 %v7628, %v7620
    %v9181 = vpack.c.b16 %v7629, %v7621
    %v9182 = vpack.c.b16 %v7630, %v7622
    %v9183 = vpack.c.b16 %v7631, %v7623
    %v9184 = vpack.c.b16 %v7632, %v7624
    %v9185 = vpack.c.b16 %v7641, %v7633
    %v9186 = vpack.c.b16 %v7642, %v7634
    %v9187 = vpack.c.b16 %v7643, %v7635
    %v9188 = vpack.c.b16 %v7644, %v7636
    %v9189 = vpack.c.b16 %v7645, %v7637
    %v9190 = vpack.c.b16 %v7646, %v7638
    %v9191 = vpack.c.b16 %v7647, %v7639
    %v9192 = vpack.c.b16 %v7648, %v7640
    %v9193 = vpack.c.b16 %v7657, %v7649
    %v9194 = vpack.c.b16 %v7658, %v7650
    %v9195 = vpack.c.b16 %v7659, %v7651
    %v9196 = vpack.c.b16 %v7660, %v7652
    %v9197 = vpack.c.b16 %v7661, %v7653
    %v9198 = vpack.c.b16 %v7662, %v7654
    %v9199 = vpack.c.b16 %v7663, %v7655
    %v9200 = vpack.c.b16 %v7664, %v7656
    %v9201 = vpack.c.b16 %v7673, %v7665
    %v9202 = vpack.c.b16 %v7674, %v7666
    %v9203 = vpack.c.b16 %v7675, %v7667
    %v9204 = vpack.c.b16 %v7676, %v7668
    %v9205 = vpack.c.b16 %v7677, %v7669
    %v9206 = vpack.c.b16 %v7678, %v7670
    %v9207 = vpack.c.b16 %v7679, %v7671
    %v9208 = vpack.c.b16 %v7680, %v7672
    %v9209 = vpack.c.b16 %v7689, %v7681
    %v9210 = vpack.c.b16 %v7690, %v7682
    %v9211 = vpack.c.b16 %v7691, %v7683
    %v9212 = vpack.c.b16 %v7692, %v7684
    %v9213 = vpack.c.b16 %v7693, %v7685
    %v9214 = vpack.c.b16 %v7694, %v7686
    %v9215 = vpack.c.b16 %v7695, %v7687
    %v9216 = vpack.c.b16 %v7696, %v7688
    %v9217 = vpack.c.b16 %v7705, %v7697
    %v9218 = vpack.c.b16 %v7706, %v7698
    %v9219 = vpack.c.b16 %v7707, %v7699
    %v9220 = vpack.c.b16 %v7708, %v7700
    %v9221 = vpack.c.b16 %v7709, %v7701
    %v9222 = vpack.c.b16 %v7710, %v7702
    %v9223 = vpack.c.b16 %v7711, %v7703
    %v9224 = vpack.c.b16 %v7712, %v7704
    %v9225 = vpack.c.b16 %v7721, %v7713
    %v9226 = vpack.c.b16 %v7722, %v7714
    %v9227 = vpack.c.b16 %v7723, %v7715
    %v9228 = vpack.c.b16 %v7724, %v7716
    %v9229 = vpack.c.b16 %v7725, %v7717
    %v9230 = vpack.c.b16 %v7726, %v7718
    %v9231 = vpack.c.b16 %v7727, %v7719
    %v9232 = vpack.c.b16 %v7728, %v7720
    %v9233 = vpack.c.b16 %v7737, %v7729
    %v9234 = vpack.c.b16 %v7738, %v7730
    %v9235 = vpack.c.b16 %v7739, %v7731
    %v9236 = vpack.c.b16 %v7740, %v7732
    %v9237 = vpack.c.b16 %v7741, %v7733
    %v9238 = vpack.c.b16 %v7742, %v7734
    %v9239 = vpack.c.b16 %v7743, %v7735
    %v9240 = vpack.c.b16 %v7744, %v7736
    %v9241 = vpack.c.b16 %v7753, %v7745
    %v9242 = vpack.c.b16 %v7754, %v7746
    %v9243 = vpack.c.b16 %v7755, %v7747
    %v9244 = vpack.c.b16 %v7756, %v7748
    %v9245 = vpack.c.b16 %v7757, %v7749
    %v9246 = vpack.c.b16 %v7758, %v7750
    %v9247 = vpack.c.b16 %v7759, %v7751
    %v9248 = vpack.c.b16 %v7760, %v7752
    %v9249 = vpack.c.b16 %v7769, %v7761
    %v9250 = vpack.c.b16 %v7770, %v7762
    %v9251 = vpack.c.b16 %v7771, %v7763
    %v9252 = vpack.c.b16 %v7772, %v7764
    %v9253 = vpack.c.b16 %v7773, %v7765
    %v9254 = vpack.c.b16 %v7774, %v7766
    %v9255 = vpack.c.b16 %v7775, %v7767
    %v9256 = vpack.c.b16 %v7776, %v7768
    %v9257 = vpack.c.b16 %v7785, %v7777
    %v9258 = vpack.c.b16 %v7786, %v7778
    %v9259 = vpack.c.b16 %v7787, %v7779
    %v9260 = vpack.c.b16 %v7788, %v7780
    %v9261 = vpack.c.b16 %v7789, %v7781
    %v9262 = vpack.c.b16 %v7790, %v7782
    %v9263 = vpack.c.b16 %v7791, %v7783
    %v9264 = vpack.c.b16 %v7792, %v7784
    %v9265 = vpack.c.b16 %v7801, %v7793
    %v9266 = vpack.c.b16 %v7802, %v7794
    %v9267 = vpack.c.b16 %v7803, %v7795
    %v9268 = vpack.c.b16 %v7804, %v7796
    %v9269 = vpack.c.b16 %v7805, %v7797
    %v9270 = vpack.c.b16 %v7806, %v7798
    %v9271 = vpack.c.b16 %v7807, %v7799
    %v9272 = vpack.c.b16 %v7808, %v7800
    %v9273 = vpack.c.b16 %v7817, %v7809
    %v9274 = vpack.c.b16 %v7818, %v7810
    %v9275 = vpack.c.b16 %v7819, %v7811
    %v9276 = vpack.c.b16 %v7820, %v7812
    %v9277 = vpack.c.b16 %v7821, %v7813
    %v9278 = vpack.c.b16 %v7822, %v7814
    %v9279 = vpack.c.b16 %v7823, %v7815
    %v9280 = vpack.c.b16 %v7824, %v7816
    %v9281 = vpack.c.b16 %v7833, %v7825
    %v9282 = vpack.c.b16 %v7834, %v7826
    %v9283 = vpack.c.b16 %v7835, %v7827
    %v9284 = vpack.c.b16 %v7836, %v7828
    %v9285 = vpack.c.b16 %v7837, %v7829
    %v9286 = vpack.c.b16 %v7838, %v7830
    %v9287 = vpack.c.b16 %v7839, %v7831
    %v9288 = vpack.c.b16 %v7840, %v7832
    %v9289 = vpack.c.b16 %v7849, %v7841
    %v9290 = vpack.c.b16 %v7850, %v7842
    %v9291 = vpack.c.b16 %v7851, %v7843
    %v9292 = vpack.c.b16 %v7852, %v7844
    %v9293 = vpack.c.b16 %v7853, %v7845
    %v9294 = vpack.c.b16 %v7854, %v7846
    %v9295 = vpack.c.b16 %v7855, %v7847
    %v9296 = vpack.c.b16 %v7856, %v7848
    %v9297 = vpack.c.b16 %v7865, %v7857
    %v9298 = vpack.c.b16 %v7866, %v7858
    %v9299 = vpack.c.b16 %v7867, %v7859
    %v9300 = vpack.c.b16 %v7868, %v7860
    %v9301 = vpack.c.b16 %v7869, %v7861
    %v9302 = vpack.c.b16 %v7870, %v7862
    %v9303 = vpack.c.b16 %v7871, %v7863
    %v9304 = vpack.c.b16 %v7872, %v7864
    %v9305 = vpack.c.b16 %v7881, %v7873
    %v9306 = vpack.c.b16 %v7882, %v7874
    %v9307 = vpack.c.b16 %v7883, %v7875
    %v9308 = vpack.c.b16 %v7884, %v7876
    %v9309 = vpack.c.b16 %v7885, %v7877
    %v9310 = vpack.c.b16 %v7886, %v7878
    %v9311 = vpack.c.b16 %v7887, %v7879
    %v9312 = vpack.c.b16 %v7888, %v7880
    %v9313 = vpack.c.b16 %v7897, %v7889
    %v9314 = vpack.c.b16 %v7898, %v7890
    %v9315 = vpack.c.b16 %v7899, %v7891
    %v9316 = vpack.c.b16 %v7900, %v7892
    %v9317 = vpack.c.b16 %v7901, %v7893
    %v9318 = vpack.c.b16 %v7902, %v7894
    %v9319 = vpack.c.b16 %v7903, %v7895
    %v9320 = vpack.c.b16 %v7904, %v7896
    %v9321 = vpack.c.b16 %v7913, %v7905
    %v9322 = vpack.c.b16 %v7914, %v7906
    %v9323 = vpack.c.b16 %v7915, %v7907
    %v9324 = vpack.c.b16 %v7916, %v7908
    %v9325 = vpack.c.b16 %v7917, %v7909
    %v9326 = vpack.c.b16 %v7918, %v7910
    %v9327 = vpack.c.b16 %v7919, %v7911
    %v9328 = vpack.c.b16 %v7920, %v7912
    %10737 = vmatprep.subr.bf16.mxu0 %v7922
    %10738 = vmatpush1.bf16.msra.mxu0 %v7921
    %10739 = vmatprep.subr.bf16.mxu0 %v7930
    %10740 = vmatpush1.bf16.msra.mxu0 %v7929
    %10741 = vmatprep.subr.bf16.mxu0 %v7938
    %10742 = vmatpush1.bf16.msra.mxu0 %v7937
    %10743 = vmatprep.subr.bf16.mxu0 %v7946
    %10744 = vmatpush1.bf16.msra.mxu0 %v7945
    %10745 = vmatprep.subr.bf16.mxu0 %v7954
    %10746 = vmatpush1.bf16.msra.mxu0 %v7953
    %10747 = vmatprep.subr.bf16.mxu0 %v7962
    %10748 = vmatpush1.bf16.msra.mxu0 %v7961
    %10749 = vmatprep.subr.bf16.mxu0 %v7970
    %10750 = vmatpush1.bf16.msra.mxu0 %v7969
    %10751 = vmatprep.subr.bf16.mxu0 %v7978
    %10752 = vmatpush1.bf16.msra.mxu0 %v7977
    %10753 = vmatprep.subr.bf16.mxu0 %v7986
    %10754 = vmatpush1.bf16.msra.mxu0 %v7985
    %10755 = vmatprep.subr.bf16.mxu0 %v7994
    %10756 = vmatpush1.bf16.msra.mxu0 %v7993
    %10757 = vmatprep.subr.bf16.mxu0 %v8002
    %10758 = vmatpush1.bf16.msra.mxu0 %v8001
    %10759 = vmatprep.subr.bf16.mxu0 %v8010
    %10760 = vmatpush1.bf16.msra.mxu0 %v8009
    %10761 = vmatprep.subr.bf16.mxu0 %v8018
    %10762 = vmatpush1.bf16.msra.mxu0 %v8017
    %10763 = vmatprep.subr.bf16.mxu0 %v8026
    %10764 = vmatpush1.bf16.msra.mxu0 %v8025
    %10765 = vmatprep.subr.bf16.mxu0 %v8034
    %10766 = vmatpush1.bf16.msra.mxu0 %v8033
    %10767 = vmatprep.subr.bf16.mxu0 %v8042
    %10768 = vmatpush1.bf16.msra.mxu0 %v8041
    %10769 = vmatprep.mubr.bf16.mxu0 %v2226
    %10770 = vmatmul.mubr.bf16.gmra.mrb[0].mxu0 %v2225
    %v10771 = vpop.f32.mrb[0].mxu0
    %v10772 = vadd.f32 %v3660, %v10771
    %v10773 = vpop.f32.mrb[0].mxu0
    %v10774 = vadd.f32 %v3664, %v10773
    %v10775 = vpop.f32.mrb[0].mxu0
    %v10776 = vpop.f32.mrb[0].mxu0
    %10777 = vdwg.mxu0
    %10778 = vmatprep.subr.bf16.mxu0 %v8050
    %10779 = vmatpush1.bf16.msra.mxu0 %v8049
    %10780 = vmatprep.subr.bf16.mxu0 %v8058
    %10781 = vmatpush1.bf16.msra.mxu0 %v8057
    %10782 = vmatprep.subr.bf16.mxu0 %v8066
    %10783 = vmatpush1.bf16.msra.mxu0 %v8065
    %10784 = vmatprep.subr.bf16.mxu0 %v8074
    %10785 = vmatpush1.bf16.msra.mxu0 %v8073
    %10786 = vmatprep.subr.bf16.mxu0 %v8082
    %10787 = vmatpush1.bf16.msra.mxu0 %v8081
    %10788 = vmatprep.subr.bf16.mxu0 %v8090
    %10789 = vmatpush1.bf16.msra.mxu0 %v8089
    %10790 = vmatprep.subr.bf16.mxu0 %v8098
    %10791 = vmatpush1.bf16.msra.mxu0 %v8097
    %10792 = vmatprep.subr.bf16.mxu0 %v8106
    %10793 = vmatpush1.bf16.msra.mxu0 %v8105
    %10794 = vmatprep.subr.bf16.mxu0 %v8114
    %10795 = vmatpush1.bf16.msra.mxu0 %v8113
    %10796 = vmatprep.subr.bf16.mxu0 %v8122
    %10797 = vmatpush1.bf16.msra.mxu0 %v8121
    %10798 = vmatprep.subr.bf16.mxu0 %v8130
    %10799 = vmatpush1.bf16.msra.mxu0 %v8129
    %10800 = vmatprep.subr.bf16.mxu0 %v8138
    %10801 = vmatpush1.bf16.msra.mxu0 %v8137
    %10802 = vmatprep.subr.bf16.mxu0 %v8146
    %10803 = vmatpush1.bf16.msra.mxu0 %v8145
    %10804 = vmatprep.subr.bf16.mxu0 %v8154
    %10805 = vmatpush1.bf16.msra.mxu0 %v8153
    %10806 = vmatprep.subr.bf16.mxu0 %v8162
    %10807 = vmatpush1.bf16.msra.mxu0 %v8161
    %10808 = vmatprep.subr.bf16.mxu0 %v8170
    %10809 = vmatpush1.bf16.msra.mxu0 %v8169
    %10810 = vmatprep.mubr.bf16.mxu0 %v2228
    %10811 = vmatmul.mubr.bf16.gmra.mrb[0].mxu0 %v2227
    %v10812 = vpop.f32.mrb[0].mxu0
    %v10813 = vadd.f32 %v10772, %v10812
    %v10814 = vpop.f32.mrb[0].mxu0
    %v10815 = vadd.f32 %v10774, %v10814
    %v10816 = vpop.f32.mrb[0].mxu0
    %v10817 = vpop.f32.mrb[0].mxu0
    %10818 = vdwg.mxu0
    %10819 = vmatprep.subr.bf16.mxu0 %v8178
    %10820 = vmatpush1.bf16.msra.mxu0 %v8177
    %10821 = vmatprep.subr.bf16.mxu0 %v8186
    %10822 = vmatpush1.bf16.msra.mxu0 %v8185
    %10823 = vmatprep.subr.bf16.mxu0 %v8194
    %10824 = vmatpush1.bf16.msra.mxu0 %v8193
    %10825 = vmatprep.subr.bf16.mxu0 %v8202
    %10826 = vmatpush1.bf16.msra.mxu0 %v8201
    %10827 = vmatprep.subr.bf16.mxu0 %v8210
    %10828 = vmatpush1.bf16.msra.mxu0 %v8209
    %10829 = vmatprep.subr.bf16.mxu0 %v8218
    %10830 = vmatpush1.bf16.msra.mxu0 %v8217
    %10831 = vmatprep.subr.bf16.mxu0 %v8226
    %10832 = vmatpush1.bf16.msra.mxu0 %v8225
    %10833 = vmatprep.subr.bf16.mxu0 %v8234
    %10834 = vmatpush1.bf16.msra.mxu0 %v8233
    %10835 = vmatprep.subr.bf16.mxu0 %v8242
    %10836 = vmatpush1.bf16.msra.mxu0 %v8241
    %10837 = vmatprep.subr.bf16.mxu0 %v8250
    %10838 = vmatpush1.bf16.msra.mxu0 %v8249
    %10839 = vmatprep.subr.bf16.mxu0 %v8258
    %10840 = vmatpush1.bf16.msra.mxu0 %v8257
    %10841 = vmatprep.subr.bf16.mxu0 %v8266
    %10842 = vmatpush1.bf16.msra.mxu0 %v8265
    %10843 = vmatprep.subr.bf16.mxu0 %v8274
    %10844 = vmatpush1.bf16.msra.mxu0 %v8273
    %10845 = vmatprep.subr.bf16.mxu0 %v8282
    %10846 = vmatpush1.bf16.msra.mxu0 %v8281
    %10847 = vmatprep.subr.bf16.mxu0 %v8290
    %10848 = vmatpush1.bf16.msra.mxu0 %v8289
    %10849 = vmatprep.subr.bf16.mxu0 %v8298
    %10850 = vmatpush1.bf16.msra.mxu0 %v8297
    %10851 = vmatprep.mubr.bf16.mxu0 %v2230
    %10852 = vmatmul.mubr.bf16.gmra.mrb[0].mxu0 %v2229
    %v10853 = vpop.f32.mrb[0].mxu0
    %v10854 = vadd.f32 %v10813, %v10853
    %v10855 = vpop.f32.mrb[0].mxu0
    %v10856 = vadd.f32 %v10815, %v10855
    %v10857 = vpop.f32.mrb[0].mxu0
    %v10858 = vpop.f32.mrb[0].mxu0
    %10859 = vdwg.mxu0
    %10860 = vmatprep.subr.bf16.mxu0 %v8306
    %10861 = vmatpush1.bf16.msra.mxu0 %v8305
    %10862 = vmatprep.subr.bf16.mxu0 %v8314
    %10863 = vmatpush1.bf16.msra.mxu0 %v8313
    %10864 = vmatprep.subr.bf16.mxu0 %v8322
    %10865 = vmatpush1.bf16.msra.mxu0 %v8321
    %10866 = vmatprep.subr.bf16.mxu0 %v8330
    %10867 = vmatpush1.bf16.msra.mxu0 %v8329
    %10868 = vmatprep.subr.bf16.mxu0 %v8338
    %10869 = vmatpush1.bf16.msra.mxu0 %v8337
    %10870 = vmatprep.subr.bf16.mxu0 %v8346
    %10871 = vmatpush1.bf16.msra.mxu0 %v8345
    %10872 = vmatprep.subr.bf16.mxu0 %v8354
    %10873 = vmatpush1.bf16.msra.mxu0 %v8353
    %10874 = vmatprep.subr.bf16.mxu0 %v8362
    %10875 = vmatpush1.bf16.msra.mxu0 %v8361
    %10876 = vmatprep.subr.bf16.mxu0 %v8370
    %10877 = vmatpush1.bf16.msra.mxu0 %v8369
    %10878 = vmatprep.subr.bf16.mxu0 %v8378
    %10879 = vmatpush1.bf16.msra.mxu0 %v8377
    %10880 = vmatprep.subr.bf16.mxu0 %v8386
    %10881 = vmatpush1.bf16.msra.mxu0 %v8385
    %10882 = vmatprep.subr.bf16.mxu0 %v8394
    %10883 = vmatpush1.bf16.msra.mxu0 %v8393
    %10884 = vmatprep.subr.bf16.mxu0 %v8402
    %10885 = vmatpush1.bf16.msra.mxu0 %v8401
    %10886 = vmatprep.subr.bf16.mxu0 %v8410
    %10887 = vmatpush1.bf16.msra.mxu0 %v8409
    %10888 = vmatprep.subr.bf16.mxu0 %v8418
    %10889 = vmatpush1.bf16.msra.mxu0 %v8417
    %10890 = vmatprep.subr.bf16.mxu0 %v8426
    %10891 = vmatpush1.bf16.msra.mxu0 %v8425
    %10892 = vmatprep.mubr.bf16.mxu0 %v2232
    %10893 = vmatmul.mubr.bf16.gmra.mrb[0].mxu0 %v2231
    %v10894 = vpop.f32.mrb[0].mxu0
    %v10895 = vadd.f32 %v10854, %v10894
    %v10896 = vpop.f32.mrb[0].mxu0
    %v10897 = vadd.f32 %v10856, %v10896
    %v10898 = vpop.f32.mrb[0].mxu0
    %v10899 = vpop.f32.mrb[0].mxu0
    %10900 = vdwg.mxu0
    %10901 = vmatprep.subr.bf16.mxu0 %v8434
    %10902 = vmatpush1.bf16.msra.mxu0 %v8433
    %10903 = vmatprep.subr.bf16.mxu0 %v8442
    %10904 = vmatpush1.bf16.msra.mxu0 %v8441
    %10905 = vmatprep.subr.bf16.mxu0 %v8450
    %10906 = vmatpush1.bf16.msra.mxu0 %v8449
    %10907 = vmatprep.subr.bf16.mxu0 %v8458
    %10908 = vmatpush1.bf16.msra.mxu0 %v8457
    %10909 = vmatprep.subr.bf16.mxu0 %v8466
    %10910 = vmatpush1.bf16.msra.mxu0 %v8465
    %10911 = vmatprep.subr.bf16.mxu0 %v8474
    %10912 = vmatpush1.bf16.msra.mxu0 %v8473
    %10913 = vmatprep.subr.bf16.mxu0 %v8482
    %10914 = vmatpush1.bf16.msra.mxu0 %v8481
    %10915 = vmatprep.subr.bf16.mxu0 %v8490
    %10916 = vmatpush1.bf16.msra.mxu0 %v8489
    %10917 = vmatprep.subr.bf16.mxu0 %v8498
    %10918 = vmatpush1.bf16.msra.mxu0 %v8497
    %10919 = vmatprep.subr.bf16.mxu0 %v8506
    %10920 = vmatpush1.bf16.msra.mxu0 %v8505
    %10921 = vmatprep.subr.bf16.mxu0 %v8514
    %10922 = vmatpush1.bf16.msra.mxu0 %v8513
    %10923 = vmatprep.subr.bf16.mxu0 %v8522
    %10924 = vmatpush1.bf16.msra.mxu0 %v8521
    %10925 = vmatprep.subr.bf16.mxu0 %v8530
    %10926 = vmatpush1.bf16.msra.mxu0 %v8529
    %10927 = vmatprep.subr.bf16.mxu0 %v8538
    %10928 = vmatpush1.bf16.msra.mxu0 %v8537
    %10929 = vmatprep.subr.bf16.mxu0 %v8546
    %10930 = vmatpush1.bf16.msra.mxu0 %v8545
    %10931 = vmatprep.subr.bf16.mxu0 %v8554
    %10932 = vmatpush1.bf16.msra.mxu0 %v8553
    %10933 = vmatprep.mubr.bf16.mxu0 %v2234
    %10934 = vmatmul.mubr.bf16.gmra.mrb[0].mxu0 %v2233
    %v10935 = vpop.f32.mrb[0].mxu0
    %v10936 = vadd.f32 %v10895, %v10935
    %v10937 = vpop.f32.mrb[0].mxu0
    %v10938 = vadd.f32 %v10897, %v10937
    %v10939 = vpop.f32.mrb[0].mxu0
    %v10940 = vpop.f32.mrb[0].mxu0
    %10941 = vdwg.mxu0
    %10942 = vmatprep.subr.bf16.mxu0 %v8562
    %10943 = vmatpush1.bf16.msra.mxu0 %v8561
    %10944 = vmatprep.subr.bf16.mxu0 %v8570
    %10945 = vmatpush1.bf16.msra.mxu0 %v8569
    %10946 = vmatprep.subr.bf16.mxu0 %v8578
    %10947 = vmatpush1.bf16.msra.mxu0 %v8577
    %10948 = vmatprep.subr.bf16.mxu0 %v8586
    %10949 = vmatpush1.bf16.msra.mxu0 %v8585
    %10950 = vmatprep.subr.bf16.mxu0 %v8594
    %10951 = vmatpush1.bf16.msra.mxu0 %v8593
    %10952 = vmatprep.subr.bf16.mxu0 %v8602
    %10953 = vmatpush1.bf16.msra.mxu0 %v8601
    %10954 = vmatprep.subr.bf16.mxu0 %v8610
    %10955 = vmatpush1.bf16.msra.mxu0 %v8609
    %10956 = vmatprep.subr.bf16.mxu0 %v8618
    %10957 = vmatpush1.bf16.msra.mxu0 %v8617
    %10958 = vmatprep.subr.bf16.mxu0 %v8626
    %10959 = vmatpush1.bf16.msra.mxu0 %v8625
    %10960 = vmatprep.subr.bf16.mxu0 %v8634
    %10961 = vmatpush1.bf16.msra.mxu0 %v8633
    %10962 = vmatprep.subr.bf16.mxu0 %v8642
    %10963 = vmatpush1.bf16.msra.mxu0 %v8641
    %10964 = vmatprep.subr.bf16.mxu0 %v8650
    %10965 = vmatpush1.bf16.msra.mxu0 %v8649
    %10966 = vmatprep.subr.bf16.mxu0 %v8658
    %10967 = vmatpush1.bf16.msra.mxu0 %v8657
    %10968 = vmatprep.subr.bf16.mxu0 %v8666
    %10969 = vmatpush1.bf16.msra.mxu0 %v8665
    %10970 = vmatprep.subr.bf16.mxu0 %v8674
    %10971 = vmatpush1.bf16.msra.mxu0 %v8673
    %10972 = vmatprep.subr.bf16.mxu0 %v8682
    %10973 = vmatpush1.bf16.msra.mxu0 %v8681
    %10974 = vmatprep.mubr.bf16.mxu0 %v2236
    %10975 = vmatmul.mubr.bf16.gmra.mrb[0].mxu0 %v2235
    %v10976 = vpop.f32.mrb[0].mxu0
    %v10977 = vadd.f32 %v10936, %v10976
    %v10978 = vpop.f32.mrb[0].mxu0
    %v10979 = vadd.f32 %v10938, %v10978
    %v10980 = vpop.f32.mrb[0].mxu0
    %v10981 = vpop.f32.mrb[0].mxu0
    %10982 = vdwg.mxu0
    %10983 = vmatprep.subr.bf16.mxu0 %v8690
    %10984 = vmatpush1.bf16.msra.mxu0 %v8689
    %10985 = vmatprep.subr.bf16.mxu0 %v8698
    %10986 = vmatpush1.bf16.msra.mxu0 %v8697
    %10987 = vmatprep.subr.bf16.mxu0 %v8706
    %10988 = vmatpush1.bf16.msra.mxu0 %v8705
    %10989 = vmatprep.subr.bf16.mxu0 %v8714
    %10990 = vmatpush1.bf16.msra.mxu0 %v8713
    %10991 = vmatprep.subr.bf16.mxu0 %v8722
    %10992 = vmatpush1.bf16.msra.mxu0 %v8721
    %10993 = vmatprep.subr.bf16.mxu0 %v8730
    %10994 = vmatpush1.bf16.msra.mxu0 %v8729
    %10995 = vmatprep.subr.bf16.mxu0 %v8738
    %10996 = vmatpush1.bf16.msra.mxu0 %v8737
    %10997 = vmatprep.subr.bf16.mxu0 %v8746
    %10998 = vmatpush1.bf16.msra.mxu0 %v8745
    %10999 = vmatprep.subr.bf16.mxu0 %v8754
    %11000 = vmatpush1.bf16.msra.mxu0 %v8753
    %11001 = vmatprep.subr.bf16.mxu0 %v8762
    %11002 = vmatpush1.bf16.msra.mxu0 %v8761
    %11003 = vmatprep.subr.bf16.mxu0 %v8770
    %11004 = vmatpush1.bf16.msra.mxu0 %v8769
    %11005 = vmatprep.subr.bf16.mxu0 %v8778
    %11006 = vmatpush1.bf16.msra.mxu0 %v8777
    %11007 = vmatprep.subr.bf16.mxu0 %v8786
    %11008 = vmatpush1.bf16.msra.mxu0 %v8785
    %11009 = vmatprep.subr.bf16.mxu0 %v8794
    %11010 = vmatpush1.bf16.msra.mxu0 %v8793
    %11011 = vmatprep.subr.bf16.mxu0 %v8802
    %11012 = vmatpush1.bf16.msra.mxu0 %v8801
    %11013 = vmatprep.subr.bf16.mxu0 %v8810
    %11014 = vmatpush1.bf16.msra.mxu0 %v8809
    %11015 = vmatprep.mubr.bf16.mxu0 %v2238
    %11016 = vmatmul.mubr.bf16.gmra.mrb[0].mxu0 %v2237
    %v11017 = vpop.f32.mrb[0].mxu0
    %v11018 = vadd.f32 %v10977, %v11017
    %v11019 = vpop.f32.mrb[0].mxu0
    %v11020 = vadd.f32 %v10979, %v11019
    %v11021 = vpop.f32.mrb[0].mxu0
    %v11022 = vpop.f32.mrb[0].mxu0
    %11023 = vdwg.mxu0
    %11024 = vmatprep.subr.bf16.mxu0 %v8818
    %11025 = vmatpush1.bf16.msra.mxu0 %v8817
    %11026 = vmatprep.subr.bf16.mxu0 %v8826
    %11027 = vmatpush1.bf16.msra.mxu0 %v8825
    %11028 = vmatprep.subr.bf16.mxu0 %v8834
    %11029 = vmatpush1.bf16.msra.mxu0 %v8833
    %11030 = vmatprep.subr.bf16.mxu0 %v8842
    %11031 = vmatpush1.bf16.msra.mxu0 %v8841
    %11032 = vmatprep.subr.bf16.mxu0 %v8850
    %11033 = vmatpush1.bf16.msra.mxu0 %v8849
    %11034 = vmatprep.subr.bf16.mxu0 %v8858
    %11035 = vmatpush1.bf16.msra.mxu0 %v8857
    %11036 = vmatprep.subr.bf16.mxu0 %v8866
    %11037 = vmatpush1.bf16.msra.mxu0 %v8865
    %11038 = vmatprep.subr.bf16.mxu0 %v8874
    %11039 = vmatpush1.bf16.msra.mxu0 %v8873
    %11040 = vmatprep.subr.bf16.mxu0 %v8882
    %11041 = vmatpush1.bf16.msra.mxu0 %v8881
    %11042 = vmatprep.subr.bf16.mxu0 %v8890
    %11043 = vmatpush1.bf16.msra.mxu0 %v8889
    %11044 = vmatprep.subr.bf16.mxu0 %v8898
    %11045 = vmatpush1.bf16.msra.mxu0 %v8897
    %11046 = vmatprep.subr.bf16.mxu0 %v8906
    %11047 = vmatpush1.bf16.msra.mxu0 %v8905
    %11048 = vmatprep.subr.bf16.mxu0 %v8914
    %11049 = vmatpush1.bf16.msra.mxu0 %v8913
    %11050 = vmatprep.subr.bf16.mxu0 %v8922
    %11051 = vmatpush1.bf16.msra.mxu0 %v8921
    %11052 = vmatprep.subr.bf16.mxu0 %v8930
    %11053 = vmatpush1.bf16.msra.mxu0 %v8929
    %11054 = vmatprep.subr.bf16.mxu0 %v8938
    %11055 = vmatpush1.bf16.msra.mxu0 %v8937
    %11056 = vmatprep.mubr.bf16.mxu0 %v2240
    %11057 = vmatmul.mubr.bf16.gmra.mrb[0].mxu0 %v2239
    %v11058 = vpop.f32.mrb[0].mxu0
    %v11059 = vadd.f32 %v11018, %v11058
    %v11060 = vpop.f32.mrb[0].mxu0
    %v11061 = vadd.f32 %v11020, %v11060
    %v11062 = vpop.f32.mrb[0].mxu0
    %v11063 = vpop.f32.mrb[0].mxu0
    %11064 = vdwg.mxu0
    %11065 = vmatprep.subr.bf16.mxu0 %v8946
    %11066 = vmatpush1.bf16.msra.mxu0 %v8945
    %11067 = vmatprep.subr.bf16.mxu0 %v8954
    %11068 = vmatpush1.bf16.msra.mxu0 %v8953
    %11069 = vmatprep.subr.bf16.mxu0 %v8962
    %11070 = vmatpush1.bf16.msra.mxu0 %v8961
    %11071 = vmatprep.subr.bf16.mxu0 %v8970
    %11072 = vmatpush1.bf16.msra.mxu0 %v8969
    %11073 = vmatprep.subr.bf16.mxu0 %v8978
    %11074 = vmatpush1.bf16.msra.mxu0 %v8977
    %11075 = vmatprep.subr.bf16.mxu0 %v8986
    %11076 = vmatpush1.bf16.msra.mxu0 %v8985
    %11077 = vmatprep.subr.bf16.mxu0 %v8994
    %11078 = vmatpush1.bf16.msra.mxu0 %v8993
    %11079 = vmatprep.subr.bf16.mxu0 %v9002
    %11080 = vmatpush1.bf16.msra.mxu0 %v9001
    %11081 = vmatprep.subr.bf16.mxu0 %v9010
    %11082 = vmatpush1.bf16.msra.mxu0 %v9009
    %11083 = vmatprep.subr.bf16.mxu0 %v9018
    %11084 = vmatpush1.bf16.msra.mxu0 %v9017
    %11085 = vmatprep.subr.bf16.mxu0 %v9026
    %11086 = vmatpush1.bf16.msra.mxu0 %v9025
    %11087 = vmatprep.subr.bf16.mxu0 %v9034
    %11088 = vmatpush1.bf16.msra.mxu0 %v9033
    %11089 = vmatprep.subr.bf16.mxu0 %v9042
    %11090 = vmatpush1.bf16.msra.mxu0 %v9041
    %11091 = vmatprep.subr.bf16.mxu0 %v9050
    %11092 = vmatpush1.bf16.msra.mxu0 %v9049
    %11093 = vmatprep.subr.bf16.mxu0 %v9058
    %11094 = vmatpush1.bf16.msra.mxu0 %v9057
    %11095 = vmatprep.subr.bf16.mxu0 %v9066
    %11096 = vmatpush1.bf16.msra.mxu0 %v9065
    %11097 = vmatprep.mubr.bf16.mxu0 %v2242
    %11098 = vmatmul.mubr.bf16.gmra.mrb[0].mxu0 %v2241
    %v11099 = vpop.f32.mrb[0].mxu0
    %v11100 = vadd.f32 %v11059, %v11099
    %v11101 = vpop.f32.mrb[0].mxu0
    %v11102 = vadd.f32 %v11061, %v11101
    %v11103 = vpop.f32.mrb[0].mxu0
    %v11104 = vpop.f32.mrb[0].mxu0
    %11105 = vdwg.mxu0
    %11106 = vmatprep.subr.bf16.mxu0 %v9074
    %11107 = vmatpush1.bf16.msra.mxu0 %v9073
    %11108 = vmatprep.subr.bf16.mxu0 %v9082
    %11109 = vmatpush1.bf16.msra.mxu0 %v9081
    %11110 = vmatprep.subr.bf16.mxu0 %v9090
    %11111 = vmatpush1.bf16.msra.mxu0 %v9089
    %11112 = vmatprep.subr.bf16.mxu0 %v9098
    %11113 = vmatpush1.bf16.msra.mxu0 %v9097
    %11114 = vmatprep.subr.bf16.mxu0 %v9106
    %11115 = vmatpush1.bf16.msra.mxu0 %v9105
    %11116 = vmatprep.subr.bf16.mxu0 %v9114
    %11117 = vmatpush1.bf16.msra.mxu0 %v9113
    %11118 = vmatprep.subr.bf16.mxu0 %v9122
    %11119 = vmatpush1.bf16.msra.mxu0 %v9121
    %11120 = vmatprep.subr.bf16.mxu0 %v9130
    %11121 = vmatpush1.bf16.msra.mxu0 %v9129
    %11122 = vmatprep.subr.bf16.mxu0 %v9138
    %11123 = vmatpush1.bf16.msra.mxu0 %v9137
    %11124 = vmatprep.subr.bf16.mxu0 %v9146
    %11125 = vmatpush1.bf16.msra.mxu0 %v9145
    %11126 = vmatprep.subr.bf16.mxu0 %v9154
    %11127 = vmatpush1.bf16.msra.mxu0 %v9153
    %11128 = vmatprep.subr.bf16.mxu0 %v9162
    %11129 = vmatpush1.bf16.msra.mxu0 %v9161
    %11130 = vmatprep.subr.bf16.mxu0 %v9170
    %11131 = vmatpush1.bf16.msra.mxu0 %v9169
    %11132 = vmatprep.subr.bf16.mxu0 %v9178
    %11133 = vmatpush1.bf16.msra.mxu0 %v9177
    %11134 = vmatprep.subr.bf16.mxu0 %v9186
    %11135 = vmatpush1.bf16.msra.mxu0 %v9185
    %11136 = vmatprep.subr.bf16.mxu0 %v9194
    %11137 = vmatpush1.bf16.msra.mxu0 %v9193
    %11138 = vmatprep.mubr.bf16.mxu0 %v2244
    %11139 = vmatmul.mubr.bf16.gmra.mrb[0].mxu0 %v2243
    %v11140 = vpop.f32.mrb[0].mxu0
    %v11141 = vadd.f32 %v11100, %v11140
    %v11142 = vpop.f32.mrb[0].mxu0
    %v11143 = vadd.f32 %v11102, %v11142
    %v11144 = vpop.f32.mrb[0].mxu0
    %v11145 = vpop.f32.mrb[0].mxu0
    %11146 = vdwg.mxu0
    %11147 = vmatprep.subr.bf16.mxu0 %v9202
    %11148 = vmatpush1.bf16.msra.mxu0 %v9201
    %11149 = vmatprep.subr.bf16.mxu0 %v9210
    %11150 = vmatpush1.bf16.msra.mxu0 %v9209
    %11151 = vmatprep.subr.bf16.mxu0 %v9218
    %11152 = vmatpush1.bf16.msra.mxu0 %v9217
    %11153 = vmatprep.subr.bf16.mxu0 %v9226
    %11154 = vmatpush1.bf16.msra.mxu0 %v9225
    %11155 = vmatprep.subr.bf16.mxu0 %v9234
    %11156 = vmatpush1.bf16.msra.mxu0 %v9233
    %11157 = vmatprep.subr.bf16.mxu0 %v9242
    %11158 = vmatpush1.bf16.msra.mxu0 %v9241
    %11159 = vmatprep.subr.bf16.mxu0 %v9250
    %11160 = vmatpush1.bf16.msra.mxu0 %v9249
    %11161 = vmatprep.subr.bf16.mxu0 %v9258
    %11162 = vmatpush1.bf16.msra.mxu0 %v9257
    %11163 = vmatprep.subr.bf16.mxu0 %v9266
    %11164 = vmatpush1.bf16.msra.mxu0 %v9265
    %11165 = vmatprep.subr.bf16.mxu0 %v9274
    %11166 = vmatpush1.bf16.msra.mxu0 %v9273
    %11167 = vmatprep.subr.bf16.mxu0 %v9282
    %11168 = vmatpush1.bf16.msra.mxu0 %v9281
    %11169 = vmatprep.subr.bf16.mxu0 %v9290
    %11170 = vmatpush1.bf16.msra.mxu0 %v9289
    %11171 = vmatprep.subr.bf16.mxu0 %v9298
    %11172 = vmatpush1.bf16.msra.mxu0 %v9297
    %11173 = vmatprep.subr.bf16.mxu0 %v9306
    %11174 = vmatpush1.bf16.msra.mxu0 %v9305
    %11175 = vmatprep.subr.bf16.mxu0 %v9314
    %11176 = vmatpush1.bf16.msra.mxu0 %v9313
    %11177 = vmatprep.subr.bf16.mxu0 %v9322
    %11178 = vmatpush1.bf16.msra.mxu0 %v9321
    %11179 = vmatprep.mubr.bf16.mxu0 %v2246
    %11180 = vmatmul.mubr.bf16.gmra.mrb[0].mxu0 %v2245
    %v11181 = vpop.f32.mrb[0].mxu0
    %v11182 = vadd.f32 %v11141, %v11181
    %v11183 = vpop.f32.mrb[0].mxu0
    %v11184 = vadd.f32 %v11143, %v11183
    %v11185 = vpop.f32.mrb[0].mxu0
    %v11186 = vpop.f32.mrb[0].mxu0
    %11187 = vdwg.mxu0
    %11188 = vmatprep.subr.bf16.mxu0 %v7924
    %11189 = vmatpush1.bf16.msra.mxu0 %v7923
    %11190 = vmatprep.subr.bf16.mxu0 %v7932
    %11191 = vmatpush1.bf16.msra.mxu0 %v7931
    %11192 = vmatprep.subr.bf16.mxu0 %v7940
    %11193 = vmatpush1.bf16.msra.mxu0 %v7939
    %11194 = vmatprep.subr.bf16.mxu0 %v7948
    %11195 = vmatpush1.bf16.msra.mxu0 %v7947
    %11196 = vmatprep.subr.bf16.mxu0 %v7956
    %11197 = vmatpush1.bf16.msra.mxu0 %v7955
    %11198 = vmatprep.subr.bf16.mxu0 %v7964
    %11199 = vmatpush1.bf16.msra.mxu0 %v7963
    %11200 = vmatprep.subr.bf16.mxu0 %v7972
    %11201 = vmatpush1.bf16.msra.mxu0 %v7971
    %11202 = vmatprep.subr.bf16.mxu0 %v7980
    %11203 = vmatpush1.bf16.msra.mxu0 %v7979
    %11204 = vmatprep.subr.bf16.mxu0 %v7988
    %11205 = vmatpush1.bf16.msra.mxu0 %v7987
    %11206 = vmatprep.subr.bf16.mxu0 %v7996
    %11207 = vmatpush1.bf16.msra.mxu0 %v7995
    %11208 = vmatprep.subr.bf16.mxu0 %v8004
    %11209 = vmatpush1.bf16.msra.mxu0 %v8003
    %11210 = vmatprep.subr.bf16.mxu0 %v8012
    %11211 = vmatpush1.bf16.msra.mxu0 %v8011
    %11212 = vmatprep.subr.bf16.mxu0 %v8020
    %11213 = vmatpush1.bf16.msra.mxu0 %v8019
    %11214 = vmatprep.subr.bf16.mxu0 %v8028
    %11215 = vmatpush1.bf16.msra.mxu0 %v8027
    %11216 = vmatprep.subr.bf16.mxu0 %v8036
    %11217 = vmatpush1.bf16.msra.mxu0 %v8035
    %11218 = vmatprep.subr.bf16.mxu0 %v8044
    %11219 = vmatpush1.bf16.msra.mxu0 %v8043
    %11220 = vmatprep.mubr.bf16.mxu0 %v2226
    %11221 = vmatmul.mubr.bf16.gmra.mrb[0].mxu0 %v2225
    %v11222 = vpop.f32.mrb[0].mxu0
    %v11223 = vadd.f32 %v3668, %v11222
    %v11224 = vpop.f32.mrb[0].mxu0
    %v11225 = vadd.f32 %v3672, %v11224
    %v11226 = vpop.f32.mrb[0].mxu0
    %v11227 = vpop.f32.mrb[0].mxu0
    %11228 = vdwg.mxu0
    %11229 = vmatprep.subr.bf16.mxu0 %v8052
    %11230 = vmatpush1.bf16.msra.mxu0 %v8051
    %11231 = vmatprep.subr.bf16.mxu0 %v8060
    %11232 = vmatpush1.bf16.msra.mxu0 %v8059
    %11233 = vmatprep.subr.bf16.mxu0 %v8068
    %11234 = vmatpush1.bf16.msra.mxu0 %v8067
    %11235 = vmatprep.subr.bf16.mxu0 %v8076
    %11236 = vmatpush1.bf16.msra.mxu0 %v8075
    %11237 = vmatprep.subr.bf16.mxu0 %v8084
    %11238 = vmatpush1.bf16.msra.mxu0 %v8083
    %11239 = vmatprep.subr.bf16.mxu0 %v8092
    %11240 = vmatpush1.bf16.msra.mxu0 %v8091
    %11241 = vmatprep.subr.bf16.mxu0 %v8100
    %11242 = vmatpush1.bf16.msra.mxu0 %v8099
    %11243 = vmatprep.subr.bf16.mxu0 %v8108
    %11244 = vmatpush1.bf16.msra.mxu0 %v8107
    %11245 = vmatprep.subr.bf16.mxu0 %v8116
    %11246 = vmatpush1.bf16.msra.mxu0 %v8115
    %11247 = vmatprep.subr.bf16.mxu0 %v8124
    %11248 = vmatpush1.bf16.msra.mxu0 %v8123
    %11249 = vmatprep.subr.bf16.mxu0 %v8132
    %11250 = vmatpush1.bf16.msra.mxu0 %v8131
    %11251 = vmatprep.subr.bf16.mxu0 %v8140
    %11252 = vmatpush1.bf16.msra.mxu0 %v8139
    %11253 = vmatprep.subr.bf16.mxu0 %v8148
    %11254 = vmatpush1.bf16.msra.mxu0 %v8147
    %11255 = vmatprep.subr.bf16.mxu0 %v8156
    %11256 = vmatpush1.bf16.msra.mxu0 %v8155
    %11257 = vmatprep.subr.bf16.mxu0 %v8164
    %11258 = vmatpush1.bf16.msra.mxu0 %v8163
    %11259 = vmatprep.subr.bf16.mxu0 %v8172
    %11260 = vmatpush1.bf16.msra.mxu0 %v8171
    %11261 = vmatprep.mubr.bf16.mxu0 %v2228
    %11262 = vmatmul.mubr.bf16.gmra.mrb[0].mxu0 %v2227
    %v11263 = vpop.f32.mrb[0].mxu0
    %v11264 = vadd.f32 %v11223, %v11263
    %v11265 = vpop.f32.mrb[0].mxu0
    %v11266 = vadd.f32 %v11225, %v11265
    %v11267 = vpop.f32.mrb[0].mxu0
    %v11268 = vpop.f32.mrb[0].mxu0
    %11269 = vdwg.mxu0
    %11270 = vmatprep.subr.bf16.mxu0 %v8180
    %11271 = vmatpush1.bf16.msra.mxu0 %v8179
    %11272 = vmatprep.subr.bf16.mxu0 %v8188
    %11273 = vmatpush1.bf16.msra.mxu0 %v8187
    %11274 = vmatprep.subr.bf16.mxu0 %v8196
    %11275 = vmatpush1.bf16.msra.mxu0 %v8195
    %11276 = vmatprep.subr.bf16.mxu0 %v8204
    %11277 = vmatpush1.bf16.msra.mxu0 %v8203
    %11278 = vmatprep.subr.bf16.mxu0 %v8212
    %11279 = vmatpush1.bf16.msra.mxu0 %v8211
    %11280 = vmatprep.subr.bf16.mxu0 %v8220
    %11281 = vmatpush1.bf16.msra.mxu0 %v8219
    %11282 = vmatprep.subr.bf16.mxu0 %v8228
    %11283 = vmatpush1.bf16.msra.mxu0 %v8227
    %11284 = vmatprep.subr.bf16.mxu0 %v8236
    %11285 = vmatpush1.bf16.msra.mxu0 %v8235
    %11286 = vmatprep.subr.bf16.mxu0 %v8244
    %11287 = vmatpush1.bf16.msra.mxu0 %v8243
    %11288 = vmatprep.subr.bf16.mxu0 %v8252
    %11289 = vmatpush1.bf16.msra.mxu0 %v8251
    %11290 = vmatprep.subr.bf16.mxu0 %v8260
    %11291 = vmatpush1.bf16.msra.mxu0 %v8259
    %11292 = vmatprep.subr.bf16.mxu0 %v8268
    %11293 = vmatpush1.bf16.msra.mxu0 %v8267
    %11294 = vmatprep.subr.bf16.mxu0 %v8276
    %11295 = vmatpush1.bf16.msra.mxu0 %v8275
    %11296 = vmatprep.subr.bf16.mxu0 %v8284
    %11297 = vmatpush1.bf16.msra.mxu0 %v8283
    %11298 = vmatprep.subr.bf16.mxu0 %v8292
    %11299 = vmatpush1.bf16.msra.mxu0 %v8291
    %11300 = vmatprep.subr.bf16.mxu0 %v8300
    %11301 = vmatpush1.bf16.msra.mxu0 %v8299
    %11302 = vmatprep.mubr.bf16.mxu0 %v2230
    %11303 = vmatmul.mubr.bf16.gmra.mrb[0].mxu0 %v2229
    %v11304 = vpop.f32.mrb[0].mxu0
    %v11305 = vadd.f32 %v11264, %v11304
    %v11306 = vpop.f32.mrb[0].mxu0
    %v11307 = vadd.f32 %v11266, %v11306
    %v11308 = vpop.f32.mrb[0].mxu0
    %v11309 = vpop.f32.mrb[0].mxu0
    %11310 = vdwg.mxu0
    %11311 = vmatprep.subr.bf16.mxu0 %v8308
    %11312 = vmatpush1.bf16.msra.mxu0 %v8307
    %11313 = vmatprep.subr.bf16.mxu0 %v8316
    %11314 = vmatpush1.bf16.msra.mxu0 %v8315
    %11315 = vmatprep.subr.bf16.mxu0 %v8324
    %11316 = vmatpush1.bf16.msra.mxu0 %v8323
    %11317 = vmatprep.subr.bf16.mxu0 %v8332
    %11318 = vmatpush1.bf16.msra.mxu0 %v8331
    %11319 = vmatprep.subr.bf16.mxu0 %v8340
    %11320 = vmatpush1.bf16.msra.mxu0 %v8339
    %11321 = vmatprep.subr.bf16.mxu0 %v8348
    %11322 = vmatpush1.bf16.msra.mxu0 %v8347
    %11323 = vmatprep.subr.bf16.mxu0 %v8356
    %11324 = vmatpush1.bf16.msra.mxu0 %v8355
    %11325 = vmatprep.subr.bf16.mxu0 %v8364
    %11326 = vmatpush1.bf16.msra.mxu0 %v8363
    %11327 = vmatprep.subr.bf16.mxu0 %v8372
    %11328 = vmatpush1.bf16.msra.mxu0 %v8371
    %11329 = vmatprep.subr.bf16.mxu0 %v8380
    %11330 = vmatpush1.bf16.msra.mxu0 %v8379
    %11331 = vmatprep.subr.bf16.mxu0 %v8388
    %11332 = vmatpush1.bf16.msra.mxu0 %v8387
    %11333 = vmatprep.subr.bf16.mxu0 %v8396
    %11334 = vmatpush1.bf16.msra.mxu0 %v8395
    %11335 = vmatprep.subr.bf16.mxu0 %v8404
    %11336 = vmatpush1.bf16.msra.mxu0 %v8403
    %11337 = vmatprep.subr.bf16.mxu0 %v8412
    %11338 = vmatpush1.bf16.msra.mxu0 %v8411
    %11339 = vmatprep.subr.bf16.mxu0 %v8420
    %11340 = vmatpush1.bf16.msra.mxu0 %v8419
    %11341 = vmatprep.subr.bf16.mxu0 %v8428
    %11342 = vmatpush1.bf16.msra.mxu0 %v8427
    %11343 = vmatprep.mubr.bf16.mxu0 %v2232
    %11344 = vmatmul.mubr.bf16.gmra.mrb[0].mxu0 %v2231
    %v11345 = vpop.f32.mrb[0].mxu0
    %v11346 = vadd.f32 %v11305, %v11345
    %v11347 = vpop.f32.mrb[0].mxu0
    %v11348 = vadd.f32 %v11307, %v11347
    %v11349 = vpop.f32.mrb[0].mxu0
    %v11350 = vpop.f32.mrb[0].mxu0
    %11351 = vdwg.mxu0
    %11352 = vmatprep.subr.bf16.mxu0 %v8436
    %11353 = vmatpush1.bf16.msra.mxu0 %v8435
    %11354 = vmatprep.subr.bf16.mxu0 %v8444
    %11355 = vmatpush1.bf16.msra.mxu0 %v8443
    %11356 = vmatprep.subr.bf16.mxu0 %v8452
    %11357 = vmatpush1.bf16.msra.mxu0 %v8451
    %11358 = vmatprep.subr.bf16.mxu0 %v8460
    %11359 = vmatpush1.bf16.msra.mxu0 %v8459
    %11360 = vmatprep.subr.bf16.mxu0 %v8468
    %11361 = vmatpush1.bf16.msra.mxu0 %v8467
    %11362 = vmatprep.subr.bf16.mxu0 %v8476
    %11363 = vmatpush1.bf16.msra.mxu0 %v8475
    %11364 = vmatprep.subr.bf16.mxu0 %v8484
    %11365 = vmatpush1.bf16.msra.mxu0 %v8483
    %11366 = vmatprep.subr.bf16.mxu0 %v8492
    %11367 = vmatpush1.bf16.msra.mxu0 %v8491
    %11368 = vmatprep.subr.bf16.mxu0 %v8500
    %11369 = vmatpush1.bf16.msra.mxu0 %v8499
    %11370 = vmatprep.subr.bf16.mxu0 %v8508
    %11371 = vmatpush1.bf16.msra.mxu0 %v8507
    %11372 = vmatprep.subr.bf16.mxu0 %v8516
    %11373 = vmatpush1.bf16.msra.mxu0 %v8515
    %11374 = vmatprep.subr.bf16.mxu0 %v8524
    %11375 = vmatpush1.bf16.msra.mxu0 %v8523
    %11376 = vmatprep.subr.bf16.mxu0 %v8532
    %11377 = vmatpush1.bf16.msra.mxu0 %v8531
    %11378 = vmatprep.subr.bf16.mxu0 %v8540
    %11379 = vmatpush1.bf16.msra.mxu0 %v8539
    %11380 = vmatprep.subr.bf16.mxu0 %v8548
    %11381 = vmatpush1.bf16.msra.mxu0 %v8547
    %11382 = vmatprep.subr.bf16.mxu0 %v8556
    %11383 = vmatpush1.bf16.msra.mxu0 %v8555
    %11384 = vmatprep.mubr.bf16.mxu0 %v2234
    %11385 = vmatmul.mubr.bf16.gmra.mrb[0].mxu0 %v2233
    %v11386 = vpop.f32.mrb[0].mxu0
    %v11387 = vadd.f32 %v11346, %v11386
    %v11388 = vpop.f32.mrb[0].mxu0
    %v11389 = vadd.f32 %v11348, %v11388
    %v11390 = vpop.f32.mrb[0].mxu0
    %v11391 = vpop.f32.mrb[0].mxu0
    %11392 = vdwg.mxu0
    %11393 = vmatprep.subr.bf16.mxu0 %v8564
    %11394 = vmatpush1.bf16.msra.mxu0 %v8563
    %11395 = vmatprep.subr.bf16.mxu0 %v8572
    %11396 = vmatpush1.bf16.msra.mxu0 %v8571
    %11397 = vmatprep.subr.bf16.mxu0 %v8580
    %11398 = vmatpush1.bf16.msra.mxu0 %v8579
    %11399 = vmatprep.subr.bf16.mxu0 %v8588
    %11400 = vmatpush1.bf16.msra.mxu0 %v8587
    %11401 = vmatprep.subr.bf16.mxu0 %v8596
    %11402 = vmatpush1.bf16.msra.mxu0 %v8595
    %11403 = vmatprep.subr.bf16.mxu0 %v8604
    %11404 = vmatpush1.bf16.msra.mxu0 %v8603
    %11405 = vmatprep.subr.bf16.mxu0 %v8612
    %11406 = vmatpush1.bf16.msra.mxu0 %v8611
    %11407 = vmatprep.subr.bf16.mxu0 %v8620
    %11408 = vmatpush1.bf16.msra.mxu0 %v8619
    %11409 = vmatprep.subr.bf16.mxu0 %v8628
    %11410 = vmatpush1.bf16.msra.mxu0 %v8627
    %11411 = vmatprep.subr.bf16.mxu0 %v8636
    %11412 = vmatpush1.bf16.msra.mxu0 %v8635
    %11413 = vmatprep.subr.bf16.mxu0 %v8644
    %11414 = vmatpush1.bf16.msra.mxu0 %v8643
    %11415 = vmatprep.subr.bf16.mxu0 %v8652
    %11416 = vmatpush1.bf16.msra.mxu0 %v8651
    %11417 = vmatprep.subr.bf16.mxu0 %v8660
    %11418 = vmatpush1.bf16.msra.mxu0 %v8659
    %11419 = vmatprep.subr.bf16.mxu0 %v8668
    %11420 = vmatpush1.bf16.msra.mxu0 %v8667
    %11421 = vmatprep.subr.bf16.mxu0 %v8676
    %11422 = vmatpush1.bf16.msra.mxu0 %v8675
    %11423 = vmatprep.subr.bf16.mxu0 %v8684
    %11424 = vmatpush1.bf16.msra.mxu0 %v8683
    %11425 = vmatprep.mubr.bf16.mxu0 %v2236
    %11426 = vmatmul.mubr.bf16.gmra.mrb[0].mxu0 %v2235
    %v11427 = vpop.f32.mrb[0].mxu0
    %v11428 = vadd.f32 %v11387, %v11427
    %v11429 = vpop.f32.mrb[0].mxu0
    %v11430 = vadd.f32 %v11389, %v11429
    %v11431 = vpop.f32.mrb[0].mxu0
    %v11432 = vpop.f32.mrb[0].mxu0
    %11433 = vdwg.mxu0
    %11434 = vmatprep.subr.bf16.mxu0 %v8692
    %11435 = vmatpush1.bf16.msra.mxu0 %v8691
    %11436 = vmatprep.subr.bf16.mxu0 %v8700
    %11437 = vmatpush1.bf16.msra.mxu0 %v8699
    %11438 = vmatprep.subr.bf16.mxu0 %v8708
    %11439 = vmatpush1.bf16.msra.mxu0 %v8707
    %11440 = vmatprep.subr.bf16.mxu0 %v8716
    %11441 = vmatpush1.bf16.msra.mxu0 %v8715
    %11442 = vmatprep.subr.bf16.mxu0 %v8724
    %11443 = vmatpush1.bf16.msra.mxu0 %v8723
    %11444 = vmatprep.subr.bf16.mxu0 %v8732
    %11445 = vmatpush1.bf16.msra.mxu0 %v8731
    %11446 = vmatprep.subr.bf16.mxu0 %v8740
    %11447 = vmatpush1.bf16.msra.mxu0 %v8739
    %11448 = vmatprep.subr.bf16.mxu0 %v8748
    %11449 = vmatpush1.bf16.msra.mxu0 %v8747
    %11450 = vmatprep.subr.bf16.mxu0 %v8756
    %11451 = vmatpush1.bf16.msra.mxu0 %v8755
    %11452 = vmatprep.subr.bf16.mxu0 %v8764
    %11453 = vmatpush1.bf16.msra.mxu0 %v8763
    %11454 = vmatprep.subr.bf16.mxu0 %v8772
    %11455 = vmatpush1.bf16.msra.mxu0 %v8771
    %11456 = vmatprep.subr.bf16.mxu0 %v8780
    %11457 = vmatpush1.bf16.msra.mxu0 %v8779
    %11458 = vmatprep.subr.bf16.mxu0 %v8788
    %11459 = vmatpush1.bf16.msra.mxu0 %v8787
    %11460 = vmatprep.subr.bf16.mxu0 %v8796
    %11461 = vmatpush1.bf16.msra.mxu0 %v8795
    %11462 = vmatprep.subr.bf16.mxu0 %v8804
    %11463 = vmatpush1.bf16.msra.mxu0 %v8803
    %11464 = vmatprep.subr.bf16.mxu0 %v8812
    %11465 = vmatpush1.bf16.msra.mxu0 %v8811
    %11466 = vmatprep.mubr.bf16.mxu0 %v2238
    %11467 = vmatmul.mubr.bf16.gmra.mrb[0].mxu0 %v2237
    %v11468 = vpop.f32.mrb[0].mxu0
    %v11469 = vadd.f32 %v11428, %v11468
    %v11470 = vpop.f32.mrb[0].mxu0
    %v11471 = vadd.f32 %v11430, %v11470
    %v11472 = vpop.f32.mrb[0].mxu0
    %v11473 = vpop.f32.mrb[0].mxu0
    %11474 = vdwg.mxu0
    %11475 = vmatprep.subr.bf16.mxu0 %v8820
    %11476 = vmatpush1.bf16.msra.mxu0 %v8819
    %11477 = vmatprep.subr.bf16.mxu0 %v8828
    %11478 = vmatpush1.bf16.msra.mxu0 %v8827
    %11479 = vmatprep.subr.bf16.mxu0 %v8836
    %11480 = vmatpush1.bf16.msra.mxu0 %v8835
    %11481 = vmatprep.subr.bf16.mxu0 %v8844
    %11482 = vmatpush1.bf16.msra.mxu0 %v8843
    %11483 = vmatprep.subr.bf16.mxu0 %v8852
    %11484 = vmatpush1.bf16.msra.mxu0 %v8851
    %11485 = vmatprep.subr.bf16.mxu0 %v8860
    %11486 = vmatpush1.bf16.msra.mxu0 %v8859
    %11487 = vmatprep.subr.bf16.mxu0 %v8868
    %11488 = vmatpush1.bf16.msra.mxu0 %v8867
    %11489 = vmatprep.subr.bf16.mxu0 %v8876
    %11490 = vmatpush1.bf16.msra.mxu0 %v8875
    %11491 = vmatprep.subr.bf16.mxu0 %v8884
    %11492 = vmatpush1.bf16.msra.mxu0 %v8883
    %11493 = vmatprep.subr.bf16.mxu0 %v8892
    %11494 = vmatpush1.bf16.msra.mxu0 %v8891
    %11495 = vmatprep.subr.bf16.mxu0 %v8900
    %11496 = vmatpush1.bf16.msra.mxu0 %v8899
    %11497 = vmatprep.subr.bf16.mxu0 %v8908
    %11498 = vmatpush1.bf16.msra.mxu0 %v8907
    %11499 = vmatprep.subr.bf16.mxu0 %v8916
    %11500 = vmatpush1.bf16.msra.mxu0 %v8915
    %11501 = vmatprep.subr.bf16.mxu0 %v8924
    %11502 = vmatpush1.bf16.msra.mxu0 %v8923
    %11503 = vmatprep.subr.bf16.mxu0 %v8932
    %11504 = vmatpush1.bf16.msra.mxu0 %v8931
    %11505 = vmatprep.subr.bf16.mxu0 %v8940
    %11506 = vmatpush1.bf16.msra.mxu0 %v8939
    %11507 = vmatprep.mubr.bf16.mxu0 %v2240
    %11508 = vmatmul.mubr.bf16.gmra.mrb[0].mxu0 %v2239
    %v11509 = vpop.f32.mrb[0].mxu0
    %v11510 = vadd.f32 %v11469, %v11509
    %v11511 = vpop.f32.mrb[0].mxu0
    %v11512 = vadd.f32 %v11471, %v11511
    %v11513 = vpop.f32.mrb[0].mxu0
    %v11514 = vpop.f32.mrb[0].mxu0
    %11515 = vdwg.mxu0
    %11516 = vmatprep.subr.bf16.mxu0 %v8948
    %11517 = vmatpush1.bf16.msra.mxu0 %v8947
    %11518 = vmatprep.subr.bf16.mxu0 %v8956
    %11519 = vmatpush1.bf16.msra.mxu0 %v8955
    %11520 = vmatprep.subr.bf16.mxu0 %v8964
    %11521 = vmatpush1.bf16.msra.mxu0 %v8963
    %11522 = vmatprep.subr.bf16.mxu0 %v8972
    %11523 = vmatpush1.bf16.msra.mxu0 %v8971
    %11524 = vmatprep.subr.bf16.mxu0 %v8980
    %11525 = vmatpush1.bf16.msra.mxu0 %v8979
    %11526 = vmatprep.subr.bf16.mxu0 %v8988
    %11527 = vmatpush1.bf16.msra.mxu0 %v8987
    %11528 = vmatprep.subr.bf16.mxu0 %v8996
    %11529 = vmatpush1.bf16.msra.mxu0 %v8995
    %11530 = vmatprep.subr.bf16.mxu0 %v9004
    %11531 = vmatpush1.bf16.msra.mxu0 %v9003
    %11532 = vmatprep.subr.bf16.mxu0 %v9012
    %11533 = vmatpush1.bf16.msra.mxu0 %v9011
    %11534 = vmatprep.subr.bf16.mxu0 %v9020
    %11535 = vmatpush1.bf16.msra.mxu0 %v9019
    %11536 = vmatprep.subr.bf16.mxu0 %v9028
    %11537 = vmatpush1.bf16.msra.mxu0 %v9027
    %11538 = vmatprep.subr.bf16.mxu0 %v9036
    %11539 = vmatpush1.bf16.msra.mxu0 %v9035
    %11540 = vmatprep.subr.bf16.mxu0 %v9044
    %11541 = vmatpush1.bf16.msra.mxu0 %v9043
    %11542 = vmatprep.subr.bf16.mxu0 %v9052
    %11543 = vmatpush1.bf16.msra.mxu0 %v9051
    %11544 = vmatprep.subr.bf16.mxu0 %v9060
    %11545 = vmatpush1.bf16.msra.mxu0 %v9059
    %11546 = vmatprep.subr.bf16.mxu0 %v9068
    %11547 = vmatpush1.bf16.msra.mxu0 %v9067
    %11548 = vmatprep.mubr.bf16.mxu0 %v2242
    %11549 = vmatmul.mubr.bf16.gmra.mrb[0].mxu0 %v2241
    %v11550 = vpop.f32.mrb[0].mxu0
    %v11551 = vadd.f32 %v11510, %v11550
    %v11552 = vpop.f32.mrb[0].mxu0
    %v11553 = vadd.f32 %v11512, %v11552
    %v11554 = vpop.f32.mrb[0].mxu0
    %v11555 = vpop.f32.mrb[0].mxu0
    %11556 = vdwg.mxu0
    %11557 = vmatprep.subr.bf16.mxu0 %v9076
    %11558 = vmatpush1.bf16.msra.mxu0 %v9075
    %11559 = vmatprep.subr.bf16.mxu0 %v9084
    %11560 = vmatpush1.bf16.msra.mxu0 %v9083
    %11561 = vmatprep.subr.bf16.mxu0 %v9092
    %11562 = vmatpush1.bf16.msra.mxu0 %v9091
    %11563 = vmatprep.subr.bf16.mxu0 %v9100
    %11564 = vmatpush1.bf16.msra.mxu0 %v9099
    %11565 = vmatprep.subr.bf16.mxu0 %v9108
    %11566 = vmatpush1.bf16.msra.mxu0 %v9107
    %11567 = vmatprep.subr.bf16.mxu0 %v9116
    %11568 = vmatpush1.bf16.msra.mxu0 %v9115
    %11569 = vmatprep.subr.bf16.mxu0 %v9124
    %11570 = vmatpush1.bf16.msra.mxu0 %v9123
    %11571 = vmatprep.subr.bf16.mxu0 %v9132
    %11572 = vmatpush1.bf16.msra.mxu0 %v9131
    %11573 = vmatprep.subr.bf16.mxu0 %v9140
    %11574 = vmatpush1.bf16.msra.mxu0 %v9139
    %11575 = vmatprep.subr.bf16.mxu0 %v9148
    %11576 = vmatpush1.bf16.msra.mxu0 %v9147
    %11577 = vmatprep.subr.bf16.mxu0 %v9156
    %11578 = vmatpush1.bf16.msra.mxu0 %v9155
    %11579 = vmatprep.subr.bf16.mxu0 %v9164
    %11580 = vmatpush1.bf16.msra.mxu0 %v9163
    %11581 = vmatprep.subr.bf16.mxu0 %v9172
    %11582 = vmatpush1.bf16.msra.mxu0 %v9171
    %11583 = vmatprep.subr.bf16.mxu0 %v9180
    %11584 = vmatpush1.bf16.msra.mxu0 %v9179
    %11585 = vmatprep.subr.bf16.mxu0 %v9188
    %11586 = vmatpush1.bf16.msra.mxu0 %v9187
    %11587 = vmatprep.subr.bf16.mxu0 %v9196
    %11588 = vmatpush1.bf16.msra.mxu0 %v9195
    %11589 = vmatprep.mubr.bf16.mxu0 %v2244
    %11590 = vmatmul.mubr.bf16.gmra.mrb[0].mxu0 %v2243
    %v11591 = vpop.f32.mrb[0].mxu0
    %v11592 = vadd.f32 %v11551, %v11591
    %v11593 = vpop.f32.mrb[0].mxu0
    %v11594 = vadd.f32 %v11553, %v11593
    %v11595 = vpop.f32.mrb[0].mxu0
    %v11596 = vpop.f32.mrb[0].mxu0
    %11597 = vdwg.mxu0
    %11598 = vmatprep.subr.bf16.mxu0 %v9204
    %11599 = vmatpush1.bf16.msra.mxu0 %v9203
    %11600 = vmatprep.subr.bf16.mxu0 %v9212
    %11601 = vmatpush1.bf16.msra.mxu0 %v9211
    %11602 = vmatprep.subr.bf16.mxu0 %v9220
    %11603 = vmatpush1.bf16.msra.mxu0 %v9219
    %11604 = vmatprep.subr.bf16.mxu0 %v9228
    %11605 = vmatpush1.bf16.msra.mxu0 %v9227
    %11606 = vmatprep.subr.bf16.mxu0 %v9236
    %11607 = vmatpush1.bf16.msra.mxu0 %v9235
    %11608 = vmatprep.subr.bf16.mxu0 %v9244
    %11609 = vmatpush1.bf16.msra.mxu0 %v9243
    %11610 = vmatprep.subr.bf16.mxu0 %v9252
    %11611 = vmatpush1.bf16.msra.mxu0 %v9251
    %11612 = vmatprep.subr.bf16.mxu0 %v9260
    %11613 = vmatpush1.bf16.msra.mxu0 %v9259
    %11614 = vmatprep.subr.bf16.mxu0 %v9268
    %11615 = vmatpush1.bf16.msra.mxu0 %v9267
    %11616 = vmatprep.subr.bf16.mxu0 %v9276
    %11617 = vmatpush1.bf16.msra.mxu0 %v9275
    %11618 = vmatprep.subr.bf16.mxu0 %v9284
    %11619 = vmatpush1.bf16.msra.mxu0 %v9283
    %11620 = vmatprep.subr.bf16.mxu0 %v9292
    %11621 = vmatpush1.bf16.msra.mxu0 %v9291
    %11622 = vmatprep.subr.bf16.mxu0 %v9300
    %11623 = vmatpush1.bf16.msra.mxu0 %v9299
    %11624 = vmatprep.subr.bf16.mxu0 %v9308
    %11625 = vmatpush1.bf16.msra.mxu0 %v9307
    %11626 = vmatprep.subr.bf16.mxu0 %v9316
    %11627 = vmatpush1.bf16.msra.mxu0 %v9315
    %11628 = vmatprep.subr.bf16.mxu0 %v9324
    %11629 = vmatpush1.bf16.msra.mxu0 %v9323
    %11630 = vmatprep.mubr.bf16.mxu0 %v2246
    %11631 = vmatmul.mubr.bf16.gmra.mrb[0].mxu0 %v2245
    %v11632 = vpop.f32.mrb[0].mxu0
    %v11633 = vadd.f32 %v11592, %v11632
    %v11634 = vpop.f32.mrb[0].mxu0
    %v11635 = vadd.f32 %v11594, %v11634
    %v11636 = vpop.f32.mrb[0].mxu0
    %v11637 = vpop.f32.mrb[0].mxu0
    %11638 = vdwg.mxu0
    %11639 = vmatprep.subr.bf16.mxu0 %v7926
    %11640 = vmatpush1.bf16.msra.mxu0 %v7925
    %11641 = vmatprep.subr.bf16.mxu0 %v7934
    %11642 = vmatpush1.bf16.msra.mxu0 %v7933
    %11643 = vmatprep.subr.bf16.mxu0 %v7942
    %11644 = vmatpush1.bf16.msra.mxu0 %v7941
    %11645 = vmatprep.subr.bf16.mxu0 %v7950
    %11646 = vmatpush1.bf16.msra.mxu0 %v7949
    %11647 = vmatprep.subr.bf16.mxu0 %v7958
    %11648 = vmatpush1.bf16.msra.mxu0 %v7957
    %11649 = vmatprep.subr.bf16.mxu0 %v7966
    %11650 = vmatpush1.bf16.msra.mxu0 %v7965
    %11651 = vmatprep.subr.bf16.mxu0 %v7974
    %11652 = vmatpush1.bf16.msra.mxu0 %v7973
    %11653 = vmatprep.subr.bf16.mxu0 %v7982
    %11654 = vmatpush1.bf16.msra.mxu0 %v7981
    %11655 = vmatprep.subr.bf16.mxu0 %v7990
    %11656 = vmatpush1.bf16.msra.mxu0 %v7989
    %11657 = vmatprep.subr.bf16.mxu0 %v7998
    %11658 = vmatpush1.bf16.msra.mxu0 %v7997
    %11659 = vmatprep.subr.bf16.mxu0 %v8006
    %11660 = vmatpush1.bf16.msra.mxu0 %v8005
    %11661 = vmatprep.subr.bf16.mxu0 %v8014
    %11662 = vmatpush1.bf16.msra.mxu0 %v8013
    %11663 = vmatprep.subr.bf16.mxu0 %v8022
    %11664 = vmatpush1.bf16.msra.mxu0 %v8021
    %11665 = vmatprep.subr.bf16.mxu0 %v8030
    %11666 = vmatpush1.bf16.msra.mxu0 %v8029
    %11667 = vmatprep.subr.bf16.mxu0 %v8038
    %11668 = vmatpush1.bf16.msra.mxu0 %v8037
    %11669 = vmatprep.subr.bf16.mxu0 %v8046
    %11670 = vmatpush1.bf16.msra.mxu0 %v8045
    %11671 = vmatprep.mubr.bf16.mxu0 %v2226
    %11672 = vmatmul.mubr.bf16.gmra.mrb[0].mxu0 %v2225
    %v11673 = vpop.f32.mrb[0].mxu0
    %v11674 = vadd.f32 %v3676, %v11673
    %v11675 = vpop.f32.mrb[0].mxu0
    %v11676 = vadd.f32 %v3680, %v11675
    %v11677 = vpop.f32.mrb[0].mxu0
    %v11678 = vpop.f32.mrb[0].mxu0
    %11679 = vdwg.mxu0
    %11680 = vmatprep.subr.bf16.mxu0 %v8054
    %11681 = vmatpush1.bf16.msra.mxu0 %v8053
    %11682 = vmatprep.subr.bf16.mxu0 %v8062
    %11683 = vmatpush1.bf16.msra.mxu0 %v8061
    %11684 = vmatprep.subr.bf16.mxu0 %v8070
    %11685 = vmatpush1.bf16.msra.mxu0 %v8069
    %11686 = vmatprep.subr.bf16.mxu0 %v8078
    %11687 = vmatpush1.bf16.msra.mxu0 %v8077
    %11688 = vmatprep.subr.bf16.mxu0 %v8086
    %11689 = vmatpush1.bf16.msra.mxu0 %v8085
    %11690 = vmatprep.subr.bf16.mxu0 %v8094
    %11691 = vmatpush1.bf16.msra.mxu0 %v8093
    %11692 = vmatprep.subr.bf16.mxu0 %v8102
    %11693 = vmatpush1.bf16.msra.mxu0 %v8101
    %11694 = vmatprep.subr.bf16.mxu0 %v8110
    %11695 = vmatpush1.bf16.msra.mxu0 %v8109
    %11696 = vmatprep.subr.bf16.mxu0 %v8118
    %11697 = vmatpush1.bf16.msra.mxu0 %v8117
    %11698 = vmatprep.subr.bf16.mxu0 %v8126
    %11699 = vmatpush1.bf16.msra.mxu0 %v8125
    %11700 = vmatprep.subr.bf16.mxu0 %v8134
    %11701 = vmatpush1.bf16.msra.mxu0 %v8133
    %11702 = vmatprep.subr.bf16.mxu0 %v8142
    %11703 = vmatpush1.bf16.msra.mxu0 %v8141
    %11704 = vmatprep.subr.bf16.mxu0 %v8150
    %11705 = vmatpush1.bf16.msra.mxu0 %v8149
    %11706 = vmatprep.subr.bf16.mxu0 %v8158
    %11707 = vmatpush1.bf16.msra.mxu0 %v8157
    %11708 = vmatprep.subr.bf16.mxu0 %v8166
    %11709 = vmatpush1.bf16.msra.mxu0 %v8165
    %11710 = vmatprep.subr.bf16.mxu0 %v8174
    %11711 = vmatpush1.bf16.msra.mxu0 %v8173
    %11712 = vmatprep.mubr.bf16.mxu0 %v2228
    %11713 = vmatmul.mubr.bf16.gmra.mrb[0].mxu0 %v2227
    %v11714 = vpop.f32.mrb[0].mxu0
    %v11715 = vadd.f32 %v11674, %v11714
    %v11716 = vpop.f32.mrb[0].mxu0
    %v11717 = vadd.f32 %v11676, %v11716
    %v11718 = vpop.f32.mrb[0].mxu0
    %v11719 = vpop.f32.mrb[0].mxu0
    %11720 = vdwg.mxu0
    %11721 = vmatprep.subr.bf16.mxu0 %v8182
    %11722 = vmatpush1.bf16.msra.mxu0 %v8181
    %11723 = vmatprep.subr.bf16.mxu0 %v8190
    %11724 = vmatpush1.bf16.msra.mxu0 %v8189
    %11725 = vmatprep.subr.bf16.mxu0 %v8198
    %11726 = vmatpush1.bf16.msra.mxu0 %v8197
    %11727 = vmatprep.subr.bf16.mxu0 %v8206
    %11728 = vmatpush1.bf16.msra.mxu0 %v8205
    %11729 = vmatprep.subr.bf16.mxu0 %v8214
    %11730 = vmatpush1.bf16.msra.mxu0 %v8213
    %11731 = vmatprep.subr.bf16.mxu0 %v8222
    %11732 = vmatpush1.bf16.msra.mxu0 %v8221
    %11733 = vmatprep.subr.bf16.mxu0 %v8230
    %11734 = vmatpush1.bf16.msra.mxu0 %v8229
    %11735 = vmatprep.subr.bf16.mxu0 %v8238
    %11736 = vmatpush1.bf16.msra.mxu0 %v8237
    %11737 = vmatprep.subr.bf16.mxu0 %v8246
    %11738 = vmatpush1.bf16.msra.mxu0 %v8245
    %11739 = vmatprep.subr.bf16.mxu0 %v8254
    %11740 = vmatpush1.bf16.msra.mxu0 %v8253
    %11741 = vmatprep.subr.bf16.mxu0 %v8262
    %11742 = vmatpush1.bf16.msra.mxu0 %v8261
    %11743 = vmatprep.subr.bf16.mxu0 %v8270
    %11744 = vmatpush1.bf16.msra.mxu0 %v8269
    %11745 = vmatprep.subr.bf16.mxu0 %v8278
    %11746 = vmatpush1.bf16.msra.mxu0 %v8277
    %11747 = vmatprep.subr.bf16.mxu0 %v8286
    %11748 = vmatpush1.bf16.msra.mxu0 %v8285
    %11749 = vmatprep.subr.bf16.mxu0 %v8294
    %11750 = vmatpush1.bf16.msra.mxu0 %v8293
    %11751 = vmatprep.subr.bf16.mxu0 %v8302
    %11752 = vmatpush1.bf16.msra.mxu0 %v8301
    %11753 = vmatprep.mubr.bf16.mxu0 %v2230
    %11754 = vmatmul.mubr.bf16.gmra.mrb[0].mxu0 %v2229
    %v11755 = vpop.f32.mrb[0].mxu0
    %v11756 = vadd.f32 %v11715, %v11755
    %v11757 = vpop.f32.mrb[0].mxu0
    %v11758 = vadd.f32 %v11717, %v11757
    %v11759 = vpop.f32.mrb[0].mxu0
    %v11760 = vpop.f32.mrb[0].mxu0
    %11761 = vdwg.mxu0
    %11762 = vmatprep.subr.bf16.mxu0 %v8310
    %11763 = vmatpush1.bf16.msra.mxu0 %v8309
    %11764 = vmatprep.subr.bf16.mxu0 %v8318
    %11765 = vmatpush1.bf16.msra.mxu0 %v8317
    %11766 = vmatprep.subr.bf16.mxu0 %v8326
    %11767 = vmatpush1.bf16.msra.mxu0 %v8325
    %11768 = vmatprep.subr.bf16.mxu0 %v8334
    %11769 = vmatpush1.bf16.msra.mxu0 %v8333
    %11770 = vmatprep.subr.bf16.mxu0 %v8342
    %11771 = vmatpush1.bf16.msra.mxu0 %v8341
    %11772 = vmatprep.subr.bf16.mxu0 %v8350
    %11773 = vmatpush1.bf16.msra.mxu0 %v8349
    %11774 = vmatprep.subr.bf16.mxu0 %v8358
    %11775 = vmatpush1.bf16.msra.mxu0 %v8357
    %11776 = vmatprep.subr.bf16.mxu0 %v8366
    %11777 = vmatpush1.bf16.msra.mxu0 %v8365
    %11778 = vmatprep.subr.bf16.mxu0 %v8374
    %11779 = vmatpush1.bf16.msra.mxu0 %v8373
    %11780 = vmatprep.subr.bf16.mxu0 %v8382
    %11781 = vmatpush1.bf16.msra.mxu0 %v8381
    %11782 = vmatprep.subr.bf16.mxu0 %v8390
    %11783 = vmatpush1.bf16.msra.mxu0 %v8389
    %11784 = vmatprep.subr.bf16.mxu0 %v8398
    %11785 = vmatpush1.bf16.msra.mxu0 %v8397
    %11786 = vmatprep.subr.bf16.mxu0 %v8406
    %11787 = vmatpush1.bf16.msra.mxu0 %v8405
    %11788 = vmatprep.subr.bf16.mxu0 %v8414
    %11789 = vmatpush1.bf16.msra.mxu0 %v8413
    %11790 = vmatprep.subr.bf16.mxu0 %v8422
    %11791 = vmatpush1.bf16.msra.mxu0 %v8421
    %11792 = vmatprep.subr.bf16.mxu0 %v8430
    %11793 = vmatpush1.bf16.msra.mxu0 %v8429
    %11794 = vmatprep.mubr.bf16.mxu0 %v2232
    %11795 = vmatmul.mubr.bf16.gmra.mrb[0].mxu0 %v2231
    %v11796 = vpop.f32.mrb[0].mxu0
    %v11797 = vadd.f32 %v11756, %v11796
    %v11798 = vpop.f32.mrb[0].mxu0
    %v11799 = vadd.f32 %v11758, %v11798
    %v11800 = vpop.f32.mrb[0].mxu0
    %v11801 = vpop.f32.mrb[0].mxu0
    %11802 = vdwg.mxu0
    %11803 = vmatprep.subr.bf16.mxu0 %v8438
    %11804 = vmatpush1.bf16.msra.mxu0 %v8437
    %11805 = vmatprep.subr.bf16.mxu0 %v8446
    %11806 = vmatpush1.bf16.msra.mxu0 %v8445
    %11807 = vmatprep.subr.bf16.mxu0 %v8454
    %11808 = vmatpush1.bf16.msra.mxu0 %v8453
    %11809 = vmatprep.subr.bf16.mxu0 %v8462
    %11810 = vmatpush1.bf16.msra.mxu0 %v8461
    %11811 = vmatprep.subr.bf16.mxu0 %v8470
    %11812 = vmatpush1.bf16.msra.mxu0 %v8469
    %11813 = vmatprep.subr.bf16.mxu0 %v8478
    %11814 = vmatpush1.bf16.msra.mxu0 %v8477
    %11815 = vmatprep.subr.bf16.mxu0 %v8486
    %11816 = vmatpush1.bf16.msra.mxu0 %v8485
    %11817 = vmatprep.subr.bf16.mxu0 %v8494
    %11818 = vmatpush1.bf16.msra.mxu0 %v8493
    %11819 = vmatprep.subr.bf16.mxu0 %v8502
    %11820 = vmatpush1.bf16.msra.mxu0 %v8501
    %11821 = vmatprep.subr.bf16.mxu0 %v8510
    %11822 = vmatpush1.bf16.msra.mxu0 %v8509
    %11823 = vmatprep.subr.bf16.mxu0 %v8518
    %11824 = vmatpush1.bf16.msra.mxu0 %v8517
    %11825 = vmatprep.subr.bf16.mxu0 %v8526
    %11826 = vmatpush1.bf16.msra.mxu0 %v8525
    %11827 = vmatprep.subr.bf16.mxu0 %v8534
    %11828 = vmatpush1.bf16.msra.mxu0 %v8533
    %11829 = vmatprep.subr.bf16.mxu0 %v8542
    %11830 = vmatpush1.bf16.msra.mxu0 %v8541
    %11831 = vmatprep.subr.bf16.mxu0 %v8550
    %11832 = vmatpush1.bf16.msra.mxu0 %v8549
    %11833 = vmatprep.subr.bf16.mxu0 %v8558
    %11834 = vmatpush1.bf16.msra.mxu0 %v8557
    %11835 = vmatprep.mubr.bf16.mxu0 %v2234
    %11836 = vmatmul.mubr.bf16.gmra.mrb[0].mxu0 %v2233
    %v11837 = vpop.f32.mrb[0].mxu0
    %v11838 = vadd.f32 %v11797, %v11837
    %v11839 = vpop.f32.mrb[0].mxu0
    %v11840 = vadd.f32 %v11799, %v11839
    %v11841 = vpop.f32.mrb[0].mxu0
    %v11842 = vpop.f32.mrb[0].mxu0
    %11843 = vdwg.mxu0
    %11844 = vmatprep.subr.bf16.mxu0 %v8566
    %11845 = vmatpush1.bf16.msra.mxu0 %v8565
    %11846 = vmatprep.subr.bf16.mxu0 %v8574
    %11847 = vmatpush1.bf16.msra.mxu0 %v8573
    %11848 = vmatprep.subr.bf16.mxu0 %v8582
    %11849 = vmatpush1.bf16.msra.mxu0 %v8581
    %11850 = vmatprep.subr.bf16.mxu0 %v8590
    %11851 = vmatpush1.bf16.msra.mxu0 %v8589
    %11852 = vmatprep.subr.bf16.mxu0 %v8598
    %11853 = vmatpush1.bf16.msra.mxu0 %v8597
    %11854 = vmatprep.subr.bf16.mxu0 %v8606
    %11855 = vmatpush1.bf16.msra.mxu0 %v8605
    %11856 = vmatprep.subr.bf16.mxu0 %v8614
    %11857 = vmatpush1.bf16.msra.mxu0 %v8613
    %11858 = vmatprep.subr.bf16.mxu0 %v8622
    %11859 = vmatpush1.bf16.msra.mxu0 %v8621
    %11860 = vmatprep.subr.bf16.mxu0 %v8630
    %11861 = vmatpush1.bf16.msra.mxu0 %v8629
    %11862 = vmatprep.subr.bf16.mxu0 %v8638
    %11863 = vmatpush1.bf16.msra.mxu0 %v8637
    %11864 = vmatprep.subr.bf16.mxu0 %v8646
    %11865 = vmatpush1.bf16.msra.mxu0 %v8645
    %11866 = vmatprep.subr.bf16.mxu0 %v8654
    %11867 = vmatpush1.bf16.msra.mxu0 %v8653
    %11868 = vmatprep.subr.bf16.mxu0 %v8662
    %11869 = vmatpush1.bf16.msra.mxu0 %v8661
    %11870 = vmatprep.subr.bf16.mxu0 %v8670
    %11871 = vmatpush1.bf16.msra.mxu0 %v8669
    %11872 = vmatprep.subr.bf16.mxu0 %v8678
    %11873 = vmatpush1.bf16.msra.mxu0 %v8677
    %11874 = vmatprep.subr.bf16.mxu0 %v8686
    %11875 = vmatpush1.bf16.msra.mxu0 %v8685
    %11876 = vmatprep.mubr.bf16.mxu0 %v2236
    %11877 = vmatmul.mubr.bf16.gmra.mrb[0].mxu0 %v2235
    %v11878 = vpop.f32.mrb[0].mxu0
    %v11879 = vadd.f32 %v11838, %v11878
    %v11880 = vpop.f32.mrb[0].mxu0
    %v11881 = vadd.f32 %v11840, %v11880
    %v11882 = vpop.f32.mrb[0].mxu0
    %v11883 = vpop.f32.mrb[0].mxu0
    %11884 = vdwg.mxu0
    %11885 = vmatprep.subr.bf16.mxu0 %v8694
    %11886 = vmatpush1.bf16.msra.mxu0 %v8693
    %11887 = vmatprep.subr.bf16.mxu0 %v8702
    %11888 = vmatpush1.bf16.msra.mxu0 %v8701
    %11889 = vmatprep.subr.bf16.mxu0 %v8710
    %11890 = vmatpush1.bf16.msra.mxu0 %v8709
    %11891 = vmatprep.subr.bf16.mxu0 %v8718
    %11892 = vmatpush1.bf16.msra.mxu0 %v8717
    %11893 = vmatprep.subr.bf16.mxu0 %v8726
    %11894 = vmatpush1.bf16.msra.mxu0 %v8725
    %11895 = vmatprep.subr.bf16.mxu0 %v8734
    %11896 = vmatpush1.bf16.msra.mxu0 %v8733
    %11897 = vmatprep.subr.bf16.mxu0 %v8742
    %11898 = vmatpush1.bf16.msra.mxu0 %v8741
    %11899 = vmatprep.subr.bf16.mxu0 %v8750
    %11900 = vmatpush1.bf16.msra.mxu0 %v8749
    %11901 = vmatprep.subr.bf16.mxu0 %v8758
    %11902 = vmatpush1.bf16.msra.mxu0 %v8757
    %11903 = vmatprep.subr.bf16.mxu0 %v8766
    %11904 = vmatpush1.bf16.msra.mxu0 %v8765
    %11905 = vmatprep.subr.bf16.mxu0 %v8774
    %11906 = vmatpush1.bf16.msra.mxu0 %v8773
    %11907 = vmatprep.subr.bf16.mxu0 %v8782
    %11908 = vmatpush1.bf16.msra.mxu0 %v8781
    %11909 = vmatprep.subr.bf16.mxu0 %v8790
    %11910 = vmatpush1.bf16.msra.mxu0 %v8789
    %11911 = vmatprep.subr.bf16.mxu0 %v8798
    %11912 = vmatpush1.bf16.msra.mxu0 %v8797
    %11913 = vmatprep.subr.bf16.mxu0 %v8806
    %11914 = vmatpush1.bf16.msra.mxu0 %v8805
    %11915 = vmatprep.subr.bf16.mxu0 %v8814
    %11916 = vmatpush1.bf16.msra.mxu0 %v8813
    %11917 = vmatprep.mubr.bf16.mxu0 %v2238
    %11918 = vmatmul.mubr.bf16.gmra.mrb[0].mxu0 %v2237
    %v11919 = vpop.f32.mrb[0].mxu0
    %v11920 = vadd.f32 %v11879, %v11919
    %v11921 = vpop.f32.mrb[0].mxu0
    %v11922 = vadd.f32 %v11881, %v11921
    %v11923 = vpop.f32.mrb[0].mxu0
    %v11924 = vpop.f32.mrb[0].mxu0
    %11925 = vdwg.mxu0
    %11926 = vmatprep.subr.bf16.mxu0 %v8822
    %11927 = vmatpush1.bf16.msra.mxu0 %v8821
    %11928 = vmatprep.subr.bf16.mxu0 %v8830
    %11929 = vmatpush1.bf16.msra.mxu0 %v8829
    %11930 = vmatprep.subr.bf16.mxu0 %v8838
    %11931 = vmatpush1.bf16.msra.mxu0 %v8837
    %11932 = vmatprep.subr.bf16.mxu0 %v8846
    %11933 = vmatpush1.bf16.msra.mxu0 %v8845
    %11934 = vmatprep.subr.bf16.mxu0 %v8854
    %11935 = vmatpush1.bf16.msra.mxu0 %v8853
    %11936 = vmatprep.subr.bf16.mxu0 %v8862
    %11937 = vmatpush1.bf16.msra.mxu0 %v8861
    %11938 = vmatprep.subr.bf16.mxu0 %v8870
    %11939 = vmatpush1.bf16.msra.mxu0 %v8869
    %11940 = vmatprep.subr.bf16.mxu0 %v8878
    %11941 = vmatpush1.bf16.msra.mxu0 %v8877
    %11942 = vmatprep.subr.bf16.mxu0 %v8886
    %11943 = vmatpush1.bf16.msra.mxu0 %v8885
    %11944 = vmatprep.subr.bf16.mxu0 %v8894
    %11945 = vmatpush1.bf16.msra.mxu0 %v8893
    %11946 = vmatprep.subr.bf16.mxu0 %v8902
    %11947 = vmatpush1.bf16.msra.mxu0 %v8901
    %11948 = vmatprep.subr.bf16.mxu0 %v8910
    %11949 = vmatpush1.bf16.msra.mxu0 %v8909
    %11950 = vmatprep.subr.bf16.mxu0 %v8918
    %11951 = vmatpush1.bf16.msra.mxu0 %v8917
    %11952 = vmatprep.subr.bf16.mxu0 %v8926
    %11953 = vmatpush1.bf16.msra.mxu0 %v8925
    %11954 = vmatprep.subr.bf16.mxu0 %v8934
    %11955 = vmatpush1.bf16.msra.mxu0 %v8933
    %11956 = vmatprep.subr.bf16.mxu0 %v8942
    %11957 = vmatpush1.bf16.msra.mxu0 %v8941
    %11958 = vmatprep.mubr.bf16.mxu0 %v2240
    %11959 = vmatmul.mubr.bf16.gmra.mrb[0].mxu0 %v2239
    %v11960 = vpop.f32.mrb[0].mxu0
    %v11961 = vadd.f32 %v11920, %v11960
    %v11962 = vpop.f32.mrb[0].mxu0
    %v11963 = vadd.f32 %v11922, %v11962
    %v11964 = vpop.f32.mrb[0].mxu0
    %v11965 = vpop.f32.mrb[0].mxu0
    %11966 = vdwg.mxu0
    %11967 = vmatprep.subr.bf16.mxu0 %v8950
    %11968 = vmatpush1.bf16.msra.mxu0 %v8949
    %11969 = vmatprep.subr.bf16.mxu0 %v8958
    %11970 = vmatpush1.bf16.msra.mxu0 %v8957
    %11971 = vmatprep.subr.bf16.mxu0 %v8966
    %11972 = vmatpush1.bf16.msra.mxu0 %v8965
    %11973 = vmatprep.subr.bf16.mxu0 %v8974
    %11974 = vmatpush1.bf16.msra.mxu0 %v8973
    %11975 = vmatprep.subr.bf16.mxu0 %v8982
    %11976 = vmatpush1.bf16.msra.mxu0 %v8981
    %11977 = vmatprep.subr.bf16.mxu0 %v8990
    %11978 = vmatpush1.bf16.msra.mxu0 %v8989
    %11979 = vmatprep.subr.bf16.mxu0 %v8998
    %11980 = vmatpush1.bf16.msra.mxu0 %v8997
    %11981 = vmatprep.subr.bf16.mxu0 %v9006
    %11982 = vmatpush1.bf16.msra.mxu0 %v9005
    %11983 = vmatprep.subr.bf16.mxu0 %v9014
    %11984 = vmatpush1.bf16.msra.mxu0 %v9013
    %11985 = vmatprep.subr.bf16.mxu0 %v9022
    %11986 = vmatpush1.bf16.msra.mxu0 %v9021
    %11987 = vmatprep.subr.bf16.mxu0 %v9030
    %11988 = vmatpush1.bf16.msra.mxu0 %v9029
    %11989 = vmatprep.subr.bf16.mxu0 %v9038
    %11990 = vmatpush1.bf16.msra.mxu0 %v9037
    %11991 = vmatprep.subr.bf16.mxu0 %v9046
    %11992 = vmatpush1.bf16.msra.mxu0 %v9045
    %11993 = vmatprep.subr.bf16.mxu0 %v9054
    %11994 = vmatpush1.bf16.msra.mxu0 %v9053
    %11995 = vmatprep.subr.bf16.mxu0 %v9062
    %11996 = vmatpush1.bf16.msra.mxu0 %v9061
    %11997 = vmatprep.subr.bf16.mxu0 %v9070
    %11998 = vmatpush1.bf16.msra.mxu0 %v9069
    %11999 = vmatprep.mubr.bf16.mxu0 %v2242
    %12000 = vmatmul.mubr.bf16.gmra.mrb[0].mxu0 %v2241
    %v12001 = vpop.f32.mrb[0].mxu0
    %v12002 = vadd.f32 %v11961, %v12001
    %v12003 = vpop.f32.mrb[0].mxu0
    %v12004 = vadd.f32 %v11963, %v12003
    %v12005 = vpop.f32.mrb[0].mxu0
    %v12006 = vpop.f32.mrb[0].mxu0
    %12007 = vdwg.mxu0
    %12008 = vmatprep.subr.bf16.mxu0 %v9078
    %12009 = vmatpush1.bf16.msra.mxu0 %v9077
    %12010 = vmatprep.subr.bf16.mxu0 %v9086
    %12011 = vmatpush1.bf16.msra.mxu0 %v9085
    %12012 = vmatprep.subr.bf16.mxu0 %v9094
    %12013 = vmatpush1.bf16.msra.mxu0 %v9093
    %12014 = vmatprep.subr.bf16.mxu0 %v9102
    %12015 = vmatpush1.bf16.msra.mxu0 %v9101
    %12016 = vmatprep.subr.bf16.mxu0 %v9110
    %12017 = vmatpush1.bf16.msra.mxu0 %v9109
    %12018 = vmatprep.subr.bf16.mxu0 %v9118
    %12019 = vmatpush1.bf16.msra.mxu0 %v9117
    %12020 = vmatprep.subr.bf16.mxu0 %v9126
    %12021 = vmatpush1.bf16.msra.mxu0 %v9125
    %12022 = vmatprep.subr.bf16.mxu0 %v9134
    %12023 = vmatpush1.bf16.msra.mxu0 %v9133
    %12024 = vmatprep.subr.bf16.mxu0 %v9142
    %12025 = vmatpush1.bf16.msra.mxu0 %v9141
    %12026 = vmatprep.subr.bf16.mxu0 %v9150
    %12027 = vmatpush1.bf16.msra.mxu0 %v9149
    %12028 = vmatprep.subr.bf16.mxu0 %v9158
    %12029 = vmatpush1.bf16.msra.mxu0 %v9157
    %12030 = vmatprep.subr.bf16.mxu0 %v9166
    %12031 = vmatpush1.bf16.msra.mxu0 %v9165
    %12032 = vmatprep.subr.bf16.mxu0 %v9174
    %12033 = vmatpush1.bf16.msra.mxu0 %v9173
    %12034 = vmatprep.subr.bf16.mxu0 %v9182
    %12035 = vmatpush1.bf16.msra.mxu0 %v9181
    %12036 = vmatprep.subr.bf16.mxu0 %v9190
    %12037 = vmatpush1.bf16.msra.mxu0 %v9189
    %12038 = vmatprep.subr.bf16.mxu0 %v9198
    %12039 = vmatpush1.bf16.msra.mxu0 %v9197
    %12040 = vmatprep.mubr.bf16.mxu0 %v2244
    %12041 = vmatmul.mubr.bf16.gmra.mrb[0].mxu0 %v2243
    %v12042 = vpop.f32.mrb[0].mxu0
    %v12043 = vadd.f32 %v12002, %v12042
    %v12044 = vpop.f32.mrb[0].mxu0
    %v12045 = vadd.f32 %v12004, %v12044
    %v12046 = vpop.f32.mrb[0].mxu0
    %v12047 = vpop.f32.mrb[0].mxu0
    %12048 = vdwg.mxu0
    %12049 = vmatprep.subr.bf16.mxu0 %v9206
    %12050 = vmatpush1.bf16.msra.mxu0 %v9205
    %12051 = vmatprep.subr.bf16.mxu0 %v9214
    %12052 = vmatpush1.bf16.msra.mxu0 %v9213
    %12053 = vmatprep.subr.bf16.mxu0 %v9222
    %12054 = vmatpush1.bf16.msra.mxu0 %v9221
    %12055 = vmatprep.subr.bf16.mxu0 %v9230
    %12056 = vmatpush1.bf16.msra.mxu0 %v9229
    %12057 = vmatprep.subr.bf16.mxu0 %v9238
    %12058 = vmatpush1.bf16.msra.mxu0 %v9237
    %12059 = vmatprep.subr.bf16.mxu0 %v9246
    %12060 = vmatpush1.bf16.msra.mxu0 %v9245
    %12061 = vmatprep.subr.bf16.mxu0 %v9254
    %12062 = vmatpush1.bf16.msra.mxu0 %v9253
    %12063 = vmatprep.subr.bf16.mxu0 %v9262
    %12064 = vmatpush1.bf16.msra.mxu0 %v9261
    %12065 = vmatprep.subr.bf16.mxu0 %v9270
    %12066 = vmatpush1.bf16.msra.mxu0 %v9269
    %12067 = vmatprep.subr.bf16.mxu0 %v9278
    %12068 = vmatpush1.bf16.msra.mxu0 %v9277
    %12069 = vmatprep.subr.bf16.mxu0 %v9286
    %12070 = vmatpush1.bf16.msra.mxu0 %v9285
    %12071 = vmatprep.subr.bf16.mxu0 %v9294
    %12072 = vmatpush1.bf16.msra.mxu0 %v9293
    %12073 = vmatprep.subr.bf16.mxu0 %v9302
    %12074 = vmatpush1.bf16.msra.mxu0 %v9301
    %12075 = vmatprep.subr.bf16.mxu0 %v9310
    %12076 = vmatpush1.bf16.msra.mxu0 %v9309
    %12077 = vmatprep.subr.bf16.mxu0 %v9318
    %12078 = vmatpush1.bf16.msra.mxu0 %v9317
    %12079 = vmatprep.subr.bf16.mxu0 %v9326
    %12080 = vmatpush1.bf16.msra.mxu0 %v9325
    %12081 = vmatprep.mubr.bf16.mxu0 %v2246
    %12082 = vmatmul.mubr.bf16.gmra.mrb[0].mxu0 %v2245
    %v12083 = vpop.f32.mrb[0].mxu0
    %v12084 = vadd.f32 %v12043, %v12083
    %v12085 = vpop.f32.mrb[0].mxu0
    %v12086 = vadd.f32 %v12045, %v12085
    %v12087 = vpop.f32.mrb[0].mxu0
    %v12088 = vpop.f32.mrb[0].mxu0
    %12089 = vdwg.mxu0
    %12090 = vmatprep.subr.bf16.mxu0 %v7928
    %12091 = vmatpush1.bf16.msra.mxu0 %v7927
    %12092 = vmatprep.subr.bf16.mxu0 %v7936
    %12093 = vmatpush1.bf16.msra.mxu0 %v7935
    %12094 = vmatprep.subr.bf16.mxu0 %v7944
    %12095 = vmatpush1.bf16.msra.mxu0 %v7943
    %12096 = vmatprep.subr.bf16.mxu0 %v7952
    %12097 = vmatpush1.bf16.msra.mxu0 %v7951
    %12098 = vmatprep.subr.bf16.mxu0 %v7960
    %12099 = vmatpush1.bf16.msra.mxu0 %v7959
    %12100 = vmatprep.subr.bf16.mxu0 %v7968
    %12101 = vmatpush1.bf16.msra.mxu0 %v7967
    %12102 = vmatprep.subr.bf16.mxu0 %v7976
    %12103 = vmatpush1.bf16.msra.mxu0 %v7975
    %12104 = vmatprep.subr.bf16.mxu0 %v7984
    %12105 = vmatpush1.bf16.msra.mxu0 %v7983
    %12106 = vmatprep.subr.bf16.mxu0 %v7992
    %12107 = vmatpush1.bf16.msra.mxu0 %v7991
    %12108 = vmatprep.subr.bf16.mxu0 %v8000
    %12109 = vmatpush1.bf16.msra.mxu0 %v7999
    %12110 = vmatprep.subr.bf16.mxu0 %v8008
    %12111 = vmatpush1.bf16.msra.mxu0 %v8007
    %12112 = vmatprep.subr.bf16.mxu0 %v8016
    %12113 = vmatpush1.bf16.msra.mxu0 %v8015
    %12114 = vmatprep.subr.bf16.mxu0 %v8024
    %12115 = vmatpush1.bf16.msra.mxu0 %v8023
    %12116 = vmatprep.subr.bf16.mxu0 %v8032
    %12117 = vmatpush1.bf16.msra.mxu0 %v8031
    %12118 = vmatprep.subr.bf16.mxu0 %v8040
    %12119 = vmatpush1.bf16.msra.mxu0 %v8039
    %12120 = vmatprep.subr.bf16.mxu0 %v8048
    %12121 = vmatpush1.bf16.msra.mxu0 %v8047
    %12122 = vmatprep.mubr.bf16.mxu0 %v2226
    %12123 = vmatmul.mubr.bf16.gmra.mrb[0].mxu0 %v2225
    %v12124 = vpop.f32.mrb[0].mxu0
    %v12125 = vadd.f32 %v3684, %v12124
    %v12126 = vpop.f32.mrb[0].mxu0
    %v12127 = vadd.f32 %v3688, %v12126
    %v12128 = vpop.f32.mrb[0].mxu0
    %v12129 = vpop.f32.mrb[0].mxu0
    %12130 = vdwg.mxu0
    %12131 = vmatprep.subr.bf16.mxu0 %v8056
    %12132 = vmatpush1.bf16.msra.mxu0 %v8055
    %12133 = vmatprep.subr.bf16.mxu0 %v8064
    %12134 = vmatpush1.bf16.msra.mxu0 %v8063
    %12135 = vmatprep.subr.bf16.mxu0 %v8072
    %12136 = vmatpush1.bf16.msra.mxu0 %v8071
    %12137 = vmatprep.subr.bf16.mxu0 %v8080
    %12138 = vmatpush1.bf16.msra.mxu0 %v8079
    %12139 = vmatprep.subr.bf16.mxu0 %v8088
    %12140 = vmatpush1.bf16.msra.mxu0 %v8087
    %12141 = vmatprep.subr.bf16.mxu0 %v8096
    %12142 = vmatpush1.bf16.msra.mxu0 %v8095
    %12143 = vmatprep.subr.bf16.mxu0 %v8104
    %12144 = vmatpush1.bf16.msra.mxu0 %v8103
    %12145 = vmatprep.subr.bf16.mxu0 %v8112
    %12146 = vmatpush1.bf16.msra.mxu0 %v8111
    %12147 = vmatprep.subr.bf16.mxu0 %v8120
    %12148 = vmatpush1.bf16.msra.mxu0 %v8119
    %12149 = vmatprep.subr.bf16.mxu0 %v8128
    %12150 = vmatpush1.bf16.msra.mxu0 %v8127
    %12151 = vmatprep.subr.bf16.mxu0 %v8136
    %12152 = vmatpush1.bf16.msra.mxu0 %v8135
    %12153 = vmatprep.subr.bf16.mxu0 %v8144
    %12154 = vmatpush1.bf16.msra.mxu0 %v8143
    %12155 = vmatprep.subr.bf16.mxu0 %v8152
    %12156 = vmatpush1.bf16.msra.mxu0 %v8151
    %12157 = vmatprep.subr.bf16.mxu0 %v8160
    %12158 = vmatpush1.bf16.msra.mxu0 %v8159
    %12159 = vmatprep.subr.bf16.mxu0 %v8168
    %12160 = vmatpush1.bf16.msra.mxu0 %v8167
    %12161 = vmatprep.subr.bf16.mxu0 %v8176
    %12162 = vmatpush1.bf16.msra.mxu0 %v8175
    %12163 = vmatprep.mubr.bf16.mxu0 %v2228
    %12164 = vmatmul.mubr.bf16.gmra.mrb[0].mxu0 %v2227
    %v12165 = vpop.f32.mrb[0].mxu0
    %v12166 = vadd.f32 %v12125, %v12165
    %v12167 = vpop.f32.mrb[0].mxu0
    %v12168 = vadd.f32 %v12127, %v12167
    %v12169 = vpop.f32.mrb[0].mxu0
    %v12170 = vpop.f32.mrb[0].mxu0
    %12171 = vdwg.mxu0
    %12172 = vmatprep.subr.bf16.mxu0 %v8184
    %12173 = vmatpush1.bf16.msra.mxu0 %v8183
    %12174 = vmatprep.subr.bf16.mxu0 %v8192
    %12175 = vmatpush1.bf16.msra.mxu0 %v8191
    %12176 = vmatprep.subr.bf16.mxu0 %v8200
    %12177 = vmatpush1.bf16.msra.mxu0 %v8199
    %12178 = vmatprep.subr.bf16.mxu0 %v8208
    %12179 = vmatpush1.bf16.msra.mxu0 %v8207
    %12180 = vmatprep.subr.bf16.mxu0 %v8216
    %12181 = vmatpush1.bf16.msra.mxu0 %v8215
    %12182 = vmatprep.subr.bf16.mxu0 %v8224
    %12183 = vmatpush1.bf16.msra.mxu0 %v8223
    %12184 = vmatprep.subr.bf16.mxu0 %v8232
    %12185 = vmatpush1.bf16.msra.mxu0 %v8231
    %12186 = vmatprep.subr.bf16.mxu0 %v8240
    %12187 = vmatpush1.bf16.msra.mxu0 %v8239
    %12188 = vmatprep.subr.bf16.mxu0 %v8248
    %12189 = vmatpush1.bf16.msra.mxu0 %v8247
    %12190 = vmatprep.subr.bf16.mxu0 %v8256
    %12191 = vmatpush1.bf16.msra.mxu0 %v8255
    %12192 = vmatprep.subr.bf16.mxu0 %v8264
    %12193 = vmatpush1.bf16.msra.mxu0 %v8263
    %12194 = vmatprep.subr.bf16.mxu0 %v8272
    %12195 = vmatpush1.bf16.msra.mxu0 %v8271
    %12196 = vmatprep.subr.bf16.mxu0 %v8280
    %12197 = vmatpush1.bf16.msra.mxu0 %v8279
    %12198 = vmatprep.subr.bf16.mxu0 %v8288
    %12199 = vmatpush1.bf16.msra.mxu0 %v8287
    %12200 = vmatprep.subr.bf16.mxu0 %v8296
    %12201 = vmatpush1.bf16.msra.mxu0 %v8295
    %12202 = vmatprep.subr.bf16.mxu0 %v8304
    %12203 = vmatpush1.bf16.msra.mxu0 %v8303
    %12204 = vmatprep.mubr.bf16.mxu0 %v2230
    %12205 = vmatmul.mubr.bf16.gmra.mrb[0].mxu0 %v2229
    %v12206 = vpop.f32.mrb[0].mxu0
    %v12207 = vadd.f32 %v12166, %v12206
    %v12208 = vpop.f32.mrb[0].mxu0
    %v12209 = vadd.f32 %v12168, %v12208
    %v12210 = vpop.f32.mrb[0].mxu0
    %v12211 = vpop.f32.mrb[0].mxu0
    %12212 = vdwg.mxu0
    %12213 = vmatprep.subr.bf16.mxu0 %v8312
    %12214 = vmatpush1.bf16.msra.mxu0 %v8311
    %12215 = vmatprep.subr.bf16.mxu0 %v8320
    %12216 = vmatpush1.bf16.msra.mxu0 %v8319
    %12217 = vmatprep.subr.bf16.mxu0 %v8328
    %12218 = vmatpush1.bf16.msra.mxu0 %v8327
    %12219 = vmatprep.subr.bf16.mxu0 %v8336
    %12220 = vmatpush1.bf16.msra.mxu0 %v8335
    %12221 = vmatprep.subr.bf16.mxu0 %v8344
    %12222 = vmatpush1.bf16.msra.mxu0 %v8343
    %12223 = vmatprep.subr.bf16.mxu0 %v8352
    %12224 = vmatpush1.bf16.msra.mxu0 %v8351
    %12225 = vmatprep.subr.bf16.mxu0 %v8360
    %12226 = vmatpush1.bf16.msra.mxu0 %v8359
    %12227 = vmatprep.subr.bf16.mxu0 %v8368
    %12228 = vmatpush1.bf16.msra.mxu0 %v8367
    %12229 = vmatprep.subr.bf16.mxu0 %v8376
    %12230 = vmatpush1.bf16.msra.mxu0 %v8375
    %12231 = vmatprep.subr.bf16.mxu0 %v8384
    %12232 = vmatpush1.bf16.msra.mxu0 %v8383
    %12233 = vmatprep.subr.bf16.mxu0 %v8392
    %12234 = vmatpush1.bf16.msra.mxu0 %v8391
    %12235 = vmatprep.subr.bf16.mxu0 %v8400
    %12236 = vmatpush1.bf16.msra.mxu0 %v8399
    %12237 = vmatprep.subr.bf16.mxu0 %v8408
    %12238 = vmatpush1.bf16.msra.mxu0 %v8407
    %12239 = vmatprep.subr.bf16.mxu0 %v8416
    %12240 = vmatpush1.bf16.msra.mxu0 %v8415
    %12241 = vmatprep.subr.bf16.mxu0 %v8424
    %12242 = vmatpush1.bf16.msra.mxu0 %v8423
    %12243 = vmatprep.subr.bf16.mxu0 %v8432
    %12244 = vmatpush1.bf16.msra.mxu0 %v8431
    %12245 = vmatprep.mubr.bf16.mxu0 %v2232
    %12246 = vmatmul.mubr.bf16.gmra.mrb[0].mxu0 %v2231
    %v12247 = vpop.f32.mrb[0].mxu0
    %v12248 = vadd.f32 %v12207, %v12247
    %v12249 = vpop.f32.mrb[0].mxu0
    %v12250 = vadd.f32 %v12209, %v12249
    %v12251 = vpop.f32.mrb[0].mxu0
    %v12252 = vpop.f32.mrb[0].mxu0
    %12253 = vdwg.mxu0
    %12254 = vmatprep.subr.bf16.mxu0 %v8440
    %12255 = vmatpush1.bf16.msra.mxu0 %v8439
    %12256 = vmatprep.subr.bf16.mxu0 %v8448
    %12257 = vmatpush1.bf16.msra.mxu0 %v8447
    %12258 = vmatprep.subr.bf16.mxu0 %v8456
    %12259 = vmatpush1.bf16.msra.mxu0 %v8455
    %12260 = vmatprep.subr.bf16.mxu0 %v8464
    %12261 = vmatpush1.bf16.msra.mxu0 %v8463
    %12262 = vmatprep.subr.bf16.mxu0 %v8472
    %12263 = vmatpush1.bf16.msra.mxu0 %v8471
    %12264 = vmatprep.subr.bf16.mxu0 %v8480
    %12265 = vmatpush1.bf16.msra.mxu0 %v8479
    %12266 = vmatprep.subr.bf16.mxu0 %v8488
    %12267 = vmatpush1.bf16.msra.mxu0 %v8487
    %12268 = vmatprep.subr.bf16.mxu0 %v8496
    %12269 = vmatpush1.bf16.msra.mxu0 %v8495
    %12270 = vmatprep.subr.bf16.mxu0 %v8504
    %12271 = vmatpush1.bf16.msra.mxu0 %v8503
    %12272 = vmatprep.subr.bf16.mxu0 %v8512
    %12273 = vmatpush1.bf16.msra.mxu0 %v8511
    %12274 = vmatprep.subr.bf16.mxu0 %v8520
    %12275 = vmatpush1.bf16.msra.mxu0 %v8519
    %12276 = vmatprep.subr.bf16.mxu0 %v8528
    %12277 = vmatpush1.bf16.msra.mxu0 %v8527
    %12278 = vmatprep.subr.bf16.mxu0 %v8536
    %12279 = vmatpush1.bf16.msra.mxu0 %v8535
    %12280 = vmatprep.subr.bf16.mxu0 %v8544
    %12281 = vmatpush1.bf16.msra.mxu0 %v8543
    %12282 = vmatprep.subr.bf16.mxu0 %v8552
    %12283 = vmatpush1.bf16.msra.mxu0 %v8551
    %12284 = vmatprep.subr.bf16.mxu0 %v8560
    %12285 = vmatpush1.bf16.msra.mxu0 %v8559
    %12286 = vmatprep.mubr.bf16.mxu0 %v2234
    %12287 = vmatmul.mubr.bf16.gmra.mrb[0].mxu0 %v2233
    %v12288 = vpop.f32.mrb[0].mxu0
    %v12289 = vadd.f32 %v12248, %v12288
    %v12290 = vpop.f32.mrb[0].mxu0
    %v12291 = vadd.f32 %v12250, %v12290
    %v12292 = vpop.f32.mrb[0].mxu0
    %v12293 = vpop.f32.mrb[0].mxu0
    %12294 = vdwg.mxu0
    %12295 = vmatprep.subr.bf16.mxu0 %v8568
    %12296 = vmatpush1.bf16.msra.mxu0 %v8567
    %12297 = vmatprep.subr.bf16.mxu0 %v8576
    %12298 = vmatpush1.bf16.msra.mxu0 %v8575
    %12299 = vmatprep.subr.bf16.mxu0 %v8584
    %12300 = vmatpush1.bf16.msra.mxu0 %v8583
    %12301 = vmatprep.subr.bf16.mxu0 %v8592
    %12302 = vmatpush1.bf16.msra.mxu0 %v8591
    %12303 = vmatprep.subr.bf16.mxu0 %v8600
    %12304 = vmatpush1.bf16.msra.mxu0 %v8599
    %12305 = vmatprep.subr.bf16.mxu0 %v8608
    %12306 = vmatpush1.bf16.msra.mxu0 %v8607
    %12307 = vmatprep.subr.bf16.mxu0 %v8616
    %12308 = vmatpush1.bf16.msra.mxu0 %v8615
    %12309 = vmatprep.subr.bf16.mxu0 %v8624
    %12310 = vmatpush1.bf16.msra.mxu0 %v8623
    %12311 = vmatprep.subr.bf16.mxu0 %v8632
    %12312 = vmatpush1.bf16.msra.mxu0 %v8631
    %12313 = vmatprep.subr.bf16.mxu0 %v8640
    %12314 = vmatpush1.bf16.msra.mxu0 %v8639
    %12315 = vmatprep.subr.bf16.mxu0 %v8648
    %12316 = vmatpush1.bf16.msra.mxu0 %v8647
    %12317 = vmatprep.subr.bf16.mxu0 %v8656
    %12318 = vmatpush1.bf16.msra.mxu0 %v8655
    %12319 = vmatprep.subr.bf16.mxu0 %v8664
    %12320 = vmatpush1.bf16.msra.mxu0 %v8663
    %12321 = vmatprep.subr.bf16.mxu0 %v8672
    %12322 = vmatpush1.bf16.msra.mxu0 %v8671
    %12323 = vmatprep.subr.bf16.mxu0 %v8680
    %12324 = vmatpush1.bf16.msra.mxu0 %v8679
    %12325 = vmatprep.subr.bf16.mxu0 %v8688
    %12326 = vmatpush1.bf16.msra.mxu0 %v8687
    %12327 = vmatprep.mubr.bf16.mxu0 %v2236
    %12328 = vmatmul.mubr.bf16.gmra.mrb[0].mxu0 %v2235
    %v12329 = vpop.f32.mrb[0].mxu0
    %v12330 = vadd.f32 %v12289, %v12329
    %v12331 = vpop.f32.mrb[0].mxu0
    %v12332 = vadd.f32 %v12291, %v12331
    %v12333 = vpop.f32.mrb[0].mxu0
    %v12334 = vpop.f32.mrb[0].mxu0
    %12335 = vdwg.mxu0
    %12336 = vmatprep.subr.bf16.mxu0 %v8696
    %12337 = vmatpush1.bf16.msra.mxu0 %v8695
    %12338 = vmatprep.subr.bf16.mxu0 %v8704
    %12339 = vmatpush1.bf16.msra.mxu0 %v8703
    %12340 = vmatprep.subr.bf16.mxu0 %v8712
    %12341 = vmatpush1.bf16.msra.mxu0 %v8711
    %12342 = vmatprep.subr.bf16.mxu0 %v8720
    %12343 = vmatpush1.bf16.msra.mxu0 %v8719
    %12344 = vmatprep.subr.bf16.mxu0 %v8728
    %12345 = vmatpush1.bf16.msra.mxu0 %v8727
    %12346 = vmatprep.subr.bf16.mxu0 %v8736
    %12347 = vmatpush1.bf16.msra.mxu0 %v8735
    %12348 = vmatprep.subr.bf16.mxu0 %v8744
    %12349 = vmatpush1.bf16.msra.mxu0 %v8743
    %12350 = vmatprep.subr.bf16.mxu0 %v8752
    %12351 = vmatpush1.bf16.msra.mxu0 %v8751
    %12352 = vmatprep.subr.bf16.mxu0 %v8760
    %12353 = vmatpush1.bf16.msra.mxu0 %v8759
    %12354 = vmatprep.subr.bf16.mxu0 %v8768
    %12355 = vmatpush1.bf16.msra.mxu0 %v8767
    %12356 = vmatprep.subr.bf16.mxu0 %v8776
    %12357 = vmatpush1.bf16.msra.mxu0 %v8775
    %12358 = vmatprep.subr.bf16.mxu0 %v8784
    %12359 = vmatpush1.bf16.msra.mxu0 %v8783
    %12360 = vmatprep.subr.bf16.mxu0 %v8792
    %12361 = vmatpush1.bf16.msra.mxu0 %v8791
    %12362 = vmatprep.subr.bf16.mxu0 %v8800
    %12363 = vmatpush1.bf16.msra.mxu0 %v8799
    %12364 = vmatprep.subr.bf16.mxu0 %v8808
    %12365 = vmatpush1.bf16.msra.mxu0 %v8807
    %12366 = vmatprep.subr.bf16.mxu0 %v8816
    %12367 = vmatpush1.bf16.msra.mxu0 %v8815
    %12368 = vmatprep.mubr.bf16.mxu0 %v2238
    %12369 = vmatmul.mubr.bf16.gmra.mrb[0].mxu0 %v2237
    %v12370 = vpop.f32.mrb[0].mxu0
    %v12371 = vadd.f32 %v12330, %v12370
    %v12372 = vpop.f32.mrb[0].mxu0
    %v12373 = vadd.f32 %v12332, %v12372
    %v12374 = vpop.f32.mrb[0].mxu0
    %v12375 = vpop.f32.mrb[0].mxu0
    %12376 = vdwg.mxu0
    %12377 = vmatprep.subr.bf16.mxu0 %v8824
    %12378 = vmatpush1.bf16.msra.mxu0 %v8823
    %12379 = vmatprep.subr.bf16.mxu0 %v8832
    %12380 = vmatpush1.bf16.msra.mxu0 %v8831
    %12381 = vmatprep.subr.bf16.mxu0 %v8840
    %12382 = vmatpush1.bf16.msra.mxu0 %v8839
    %12383 = vmatprep.subr.bf16.mxu0 %v8848
    %12384 = vmatpush1.bf16.msra.mxu0 %v8847
    %12385 = vmatprep.subr.bf16.mxu0 %v8856
    %12386 = vmatpush1.bf16.msra.mxu0 %v8855
    %12387 = vmatprep.subr.bf16.mxu0 %v8864
    %12388 = vmatpush1.bf16.msra.mxu0 %v8863
    %12389 = vmatprep.subr.bf16.mxu0 %v8872
    %12390 = vmatpush1.bf16.msra.mxu0 %v8871
    %12391 = vmatprep.subr.bf16.mxu0 %v8880
    %12392 = vmatpush1.bf16.msra.mxu0 %v8879
    %12393 = vmatprep.subr.bf16.mxu0 %v8888
    %12394 = vmatpush1.bf16.msra.mxu0 %v8887
    %12395 = vmatprep.subr.bf16.mxu0 %v8896
    %12396 = vmatpush1.bf16.msra.mxu0 %v8895
    %12397 = vmatprep.subr.bf16.mxu0 %v8904
    %12398 = vmatpush1.bf16.msra.mxu0 %v8903
    %12399 = vmatprep.subr.bf16.mxu0 %v8912
    %12400 = vmatpush1.bf16.msra.mxu0 %v8911
    %12401 = vmatprep.subr.bf16.mxu0 %v8920
    %12402 = vmatpush1.bf16.msra.mxu0 %v8919
    %12403 = vmatprep.subr.bf16.mxu0 %v8928
    %12404 = vmatpush1.bf16.msra.mxu0 %v8927
    %12405 = vmatprep.subr.bf16.mxu0 %v8936
    %12406 = vmatpush1.bf16.msra.mxu0 %v8935
    %12407 = vmatprep.subr.bf16.mxu0 %v8944
    %12408 = vmatpush1.bf16.msra.mxu0 %v8943
    %12409 = vmatprep.mubr.bf16.mxu0 %v2240
    %12410 = vmatmul.mubr.bf16.gmra.mrb[0].mxu0 %v2239
    %v12411 = vpop.f32.mrb[0].mxu0
    %v12412 = vadd.f32 %v12371, %v12411
    %v12413 = vpop.f32.mrb[0].mxu0
    %v12414 = vadd.f32 %v12373, %v12413
    %v12415 = vpop.f32.mrb[0].mxu0
    %v12416 = vpop.f32.mrb[0].mxu0
    %12417 = vdwg.mxu0
    %12418 = vmatprep.subr.bf16.mxu0 %v8952
    %12419 = vmatpush1.bf16.msra.mxu0 %v8951
    %12420 = vmatprep.subr.bf16.mxu0 %v8960
    %12421 = vmatpush1.bf16.msra.mxu0 %v8959
    %12422 = vmatprep.subr.bf16.mxu0 %v8968
    %12423 = vmatpush1.bf16.msra.mxu0 %v8967
    %12424 = vmatprep.subr.bf16.mxu0 %v8976
    %12425 = vmatpush1.bf16.msra.mxu0 %v8975
    %12426 = vmatprep.subr.bf16.mxu0 %v8984
    %12427 = vmatpush1.bf16.msra.mxu0 %v8983
    %12428 = vmatprep.subr.bf16.mxu0 %v8992
    %12429 = vmatpush1.bf16.msra.mxu0 %v8991
    %12430 = vmatprep.subr.bf16.mxu0 %v9000
    %12431 = vmatpush1.bf16.msra.mxu0 %v8999
    %12432 = vmatprep.subr.bf16.mxu0 %v9008
    %12433 = vmatpush1.bf16.msra.mxu0 %v9007
    %12434 = vmatprep.subr.bf16.mxu0 %v9016
    %12435 = vmatpush1.bf16.msra.mxu0 %v9015
    %12436 = vmatprep.subr.bf16.mxu0 %v9024
    %12437 = vmatpush1.bf16.msra.mxu0 %v9023
    %12438 = vmatprep.subr.bf16.mxu0 %v9032
    %12439 = vmatpush1.bf16.msra.mxu0 %v9031
    %12440 = vmatprep.subr.bf16.mxu0 %v9040
    %12441 = vmatpush1.bf16.msra.mxu0 %v9039
    %12442 = vmatprep.subr.bf16.mxu0 %v9048
    %12443 = vmatpush1.bf16.msra.mxu0 %v9047
    %12444 = vmatprep.subr.bf16.mxu0 %v9056
    %12445 = vmatpush1.bf16.msra.mxu0 %v9055
    %12446 = vmatprep.subr.bf16.mxu0 %v9064
    %12447 = vmatpush1.bf16.msra.mxu0 %v9063
    %12448 = vmatprep.subr.bf16.mxu0 %v9072
    %12449 = vmatpush1.bf16.msra.mxu0 %v9071
    %12450 = vmatprep.mubr.bf16.mxu0 %v2242
    %12451 = vmatmul.mubr.bf16.gmra.mrb[0].mxu0 %v2241
    %v12452 = vpop.f32.mrb[0].mxu0
    %v12453 = vadd.f32 %v12412, %v12452
    %v12454 = vpop.f32.mrb[0].mxu0
    %v12455 = vadd.f32 %v12414, %v12454
    %v12456 = vpop.f32.mrb[0].mxu0
    %v12457 = vpop.f32.mrb[0].mxu0
    %12458 = vdwg.mxu0
    %12459 = vmatprep.subr.bf16.mxu0 %v9080
    %12460 = vmatpush1.bf16.msra.mxu0 %v9079
    %12461 = vmatprep.subr.bf16.mxu0 %v9088
    %12462 = vmatpush1.bf16.msra.mxu0 %v9087
    %12463 = vmatprep.subr.bf16.mxu0 %v9096
    %12464 = vmatpush1.bf16.msra.mxu0 %v9095
    %12465 = vmatprep.subr.bf16.mxu0 %v9104
    %12466 = vmatpush1.bf16.msra.mxu0 %v9103
    %12467 = vmatprep.subr.bf16.mxu0 %v9112
    %12468 = vmatpush1.bf16.msra.mxu0 %v9111
    %12469 = vmatprep.subr.bf16.mxu0 %v9120
    %12470 = vmatpush1.bf16.msra.mxu0 %v9119
    %12471 = vmatprep.subr.bf16.mxu0 %v9128
    %12472 = vmatpush1.bf16.msra.mxu0 %v9127
    %12473 = vmatprep.subr.bf16.mxu0 %v9136
    %12474 = vmatpush1.bf16.msra.mxu0 %v9135
    %12475 = vmatprep.subr.bf16.mxu0 %v9144
    %12476 = vmatpush1.bf16.msra.mxu0 %v9143
    %12477 = vmatprep.subr.bf16.mxu0 %v9152
    %12478 = vmatpush1.bf16.msra.mxu0 %v9151
    %12479 = vmatprep.subr.bf16.mxu0 %v9160
    %12480 = vmatpush1.bf16.msra.mxu0 %v9159
    %12481 = vmatprep.subr.bf16.mxu0 %v9168
    %12482 = vmatpush1.bf16.msra.mxu0 %v9167
    %12483 = vmatprep.subr.bf16.mxu0 %v9176
    %12484 = vmatpush1.bf16.msra.mxu0 %v9175
    %12485 = vmatprep.subr.bf16.mxu0 %v9184
    %12486 = vmatpush1.bf16.msra.mxu0 %v9183
    %12487 = vmatprep.subr.bf16.mxu0 %v9192
    %12488 = vmatpush1.bf16.msra.mxu0 %v9191
    %12489 = vmatprep.subr.bf16.mxu0 %v9200
    %12490 = vmatpush1.bf16.msra.mxu0 %v9199
    %12491 = vmatprep.mubr.bf16.mxu0 %v2244
    %12492 = vmatmul.mubr.bf16.gmra.mrb[0].mxu0 %v2243
    %v12493 = vpop.f32.mrb[0].mxu0
    %v12494 = vadd.f32 %v12453, %v12493
    %v12495 = vpop.f32.mrb[0].mxu0
    %v12496 = vadd.f32 %v12455, %v12495
    %v12497 = vpop.f32.mrb[0].mxu0
    %v12498 = vpop.f32.mrb[0].mxu0
    %12499 = vdwg.mxu0
    %12500 = vmatprep.subr.bf16.mxu0 %v9208
    %12501 = vmatpush1.bf16.msra.mxu0 %v9207
    %12502 = vmatprep.subr.bf16.mxu0 %v9216
    %12503 = vmatpush1.bf16.msra.mxu0 %v9215
    %12504 = vmatprep.subr.bf16.mxu0 %v9224
    %12505 = vmatpush1.bf16.msra.mxu0 %v9223
    %12506 = vmatprep.subr.bf16.mxu0 %v9232
    %12507 = vmatpush1.bf16.msra.mxu0 %v9231
    %12508 = vmatprep.subr.bf16.mxu0 %v9240
    %12509 = vmatpush1.bf16.msra.mxu0 %v9239
    %12510 = vmatprep.subr.bf16.mxu0 %v9248
    %12511 = vmatpush1.bf16.msra.mxu0 %v9247
    %12512 = vmatprep.subr.bf16.mxu0 %v9256
    %12513 = vmatpush1.bf16.msra.mxu0 %v9255
    %12514 = vmatprep.subr.bf16.mxu0 %v9264
    %12515 = vmatpush1.bf16.msra.mxu0 %v9263
    %12516 = vmatprep.subr.bf16.mxu0 %v9272
    %12517 = vmatpush1.bf16.msra.mxu0 %v9271
    %12518 = vmatprep.subr.bf16.mxu0 %v9280
    %12519 = vmatpush1.bf16.msra.mxu0 %v9279
    %12520 = vmatprep.subr.bf16.mxu0 %v9288
    %12521 = vmatpush1.bf16.msra.mxu0 %v9287
    %12522 = vmatprep.subr.bf16.mxu0 %v9296
    %12523 = vmatpush1.bf16.msra.mxu0 %v9295
    %12524 = vmatprep.subr.bf16.mxu0 %v9304
    %12525 = vmatpush1.bf16.msra.mxu0 %v9303
    %12526 = vmatprep.subr.bf16.mxu0 %v9312
    %12527 = vmatpush1.bf16.msra.mxu0 %v9311
    %12528 = vmatprep.subr.bf16.mxu0 %v9320
    %12529 = vmatpush1.bf16.msra.mxu0 %v9319
    %12530 = vmatprep.subr.bf16.mxu0 %v9328
    %12531 = vmatpush1.bf16.msra.mxu0 %v9327
    %12532 = vmatprep.mubr.bf16.mxu0 %v2246
    %12533 = vmatmul.mubr.bf16.gmra.mrb[0].mxu0 %v2245
    %v12534 = vpop.f32.mrb[0].mxu0
    %v12535 = vadd.f32 %v12494, %v12534
    %v12536 = vpop.f32.mrb[0].mxu0
    %v12537 = vadd.f32 %v12496, %v12536
    %v12538 = vpop.f32.mrb[0].mxu0
    %v12539 = vpop.f32.mrb[0].mxu0
    %12540 = vdwg.mxu0
    %v12541 = vmax.f32 %v11182, 0.0
    %v12542 = vmax.f32 %v11184, 0.0
    %v12543 = vmax.f32 %v11633, 0.0
    %v12544 = vmax.f32 %v11635, 0.0
    %v12545 = vmax.f32 %v12084, 0.0
    %v12546 = vmax.f32 %v12086, 0.0
    %v12547 = vmax.f32 %v12535, 0.0
    %v12548 = vmax.f32 %v12537, 0.0
    %v12549 = vpack.c.bf16 %v12541, %v12541
    %v12550 = vpack.c.bf16 %v12542, %v12542
    %v12551 = vpack.c.bf16 %v12543, %v12543
    %v12552 = vpack.c.bf16 %v12544, %v12544
    %v12553 = vpack.c.bf16 %v12545, %v12545
    %v12554 = vpack.c.bf16 %v12546, %v12546
    %v12555 = vpack.c.bf16 %v12547, %v12547
    %v12556 = vpack.c.bf16 %v12548, %v12548
    %v12557 = vld [vmem:[%s5] sm:$0xff]
    %v12558 = vld [vmem:[%s5 + $0x8] sm:$0xff]
    %v12559 = vld [vmem:[%s5 + $0x10] sm:$0xff]
    %v12560 = vld [vmem:[%s5 + $0x18] sm:$0xff]
    %v12561 = vld [vmem:[%s5 + $0x20] sm:$0xff]
    %v12562 = vld [vmem:[%s5 + $0x28] sm:$0xff]
    %v12563 = vld [vmem:[%s5 + $0x30] sm:$0xff]
    %v12564 = vld [vmem:[%s5 + $0x38] sm:$0xff]
    %v12565 = vld [vmem:[%s5 + $0x40] sm:$0xff]
    %v12566 = vld [vmem:[%s5 + $0x48] sm:$0xff]
    %v12567 = vld [vmem:[%s5 + $0x50] sm:$0xff]
    %v12568 = vld [vmem:[%s5 + $0x58] sm:$0xff]
    %v12569 = vld [vmem:[%s5 + $0x60] sm:$0xff]
    %v12570 = vld [vmem:[%s5 + $0x68] sm:$0xff]
    %v12571 = vld [vmem:[%s5 + $0x70] sm:$0xff]
    %v12572 = vld [vmem:[%s5 + $0x78] sm:$0xff]
    %v12573 = vld [vmem:[%s5 + $0x80] sm:$0xff]
    %v12574 = vld [vmem:[%s5 + $0x88] sm:$0xff]
    %v12575 = vld [vmem:[%s5 + $0x90] sm:$0xff]
    %v12576 = vld [vmem:[%s5 + $0x98] sm:$0xff]
    %v12577 = vld [vmem:[%s5 + $0xa0] sm:$0xff]
    %v12578 = vld [vmem:[%s5 + $0xa8] sm:$0xff]
    %v12579 = vld [vmem:[%s5 + $0xb0] sm:$0xff]
    %v12580 = vld [vmem:[%s5 + $0xb8] sm:$0xff]
    %v12581 = vld [vmem:[%s5 + $0xc0] sm:$0xff]
    %v12582 = vld [vmem:[%s5 + $0xc8] sm:$0xff]
    %v12583 = vld [vmem:[%s5 + $0xd0] sm:$0xff]
    %v12584 = vld [vmem:[%s5 + $0xd8] sm:$0xff]
    %v12585 = vld [vmem:[%s5 + $0xe0] sm:$0xff]
    %v12586 = vld [vmem:[%s5 + $0xe8] sm:$0xff]
    %v12587 = vld [vmem:[%s5 + $0xf0] sm:$0xff]
    %v12588 = vld [vmem:[%s5 + $0xf8] sm:$0xff]
    %v12589 = vld [vmem:[%s5 + $0x100] sm:$0xff]
    %v12590 = vld [vmem:[%s5 + $0x108] sm:$0xff]
    %v12591 = vld [vmem:[%s5 + $0x110] sm:$0xff]
    %v12592 = vld [vmem:[%s5 + $0x118] sm:$0xff]
    %v12593 = vld [vmem:[%s5 + $0x120] sm:$0xff]
    %v12594 = vld [vmem:[%s5 + $0x128] sm:$0xff]
    %v12595 = vld [vmem:[%s5 + $0x130] sm:$0xff]
    %v12596 = vld [vmem:[%s5 + $0x138] sm:$0xff]
    %v12597 = vld [vmem:[%s5 + $0x140] sm:$0xff]
    %v12598 = vld [vmem:[%s5 + $0x148] sm:$0xff]
    %v12599 = vld [vmem:[%s5 + $0x150] sm:$0xff]
    %v12600 = vld [vmem:[%s5 + $0x158] sm:$0xff]
    %v12601 = vld [vmem:[%s5 + $0x160] sm:$0xff]
    %v12602 = vld [vmem:[%s5 + $0x168] sm:$0xff]
    %v12603 = vld [vmem:[%s5 + $0x170] sm:$0xff]
    %v12604 = vld [vmem:[%s5 + $0x178] sm:$0xff]
    %v12605 = vld [vmem:[%s5 + $0x180] sm:$0xff]
    %v12606 = vld [vmem:[%s5 + $0x188] sm:$0xff]
    %v12607 = vld [vmem:[%s5 + $0x190] sm:$0xff]
    %v12608 = vld [vmem:[%s5 + $0x198] sm:$0xff]
    %v12609 = vld [vmem:[%s5 + $0x1a0] sm:$0xff]
    %v12610 = vld [vmem:[%s5 + $0x1a8] sm:$0xff]
    %v12611 = vld [vmem:[%s5 + $0x1b0] sm:$0xff]
    %v12612 = vld [vmem:[%s5 + $0x1b8] sm:$0xff]
    %v12613 = vld [vmem:[%s5 + $0x1c0] sm:$0xff]
    %v12614 = vld [vmem:[%s5 + $0x1c8] sm:$0xff]
    %v12615 = vld [vmem:[%s5 + $0x1d0] sm:$0xff]
    %v12616 = vld [vmem:[%s5 + $0x1d8] sm:$0xff]
    %v12617 = vld [vmem:[%s5 + $0x1e0] sm:$0xff]
    %v12618 = vld [vmem:[%s5 + $0x1e8] sm:$0xff]
    %v12619 = vld [vmem:[%s5 + $0x1f0] sm:$0xff]
    %v12620 = vld [vmem:[%s5 + $0x1f8] sm:$0xff]
    %v12621 = vld [vmem:[%s5 + $0x200] sm:$0xff]
    %v12622 = vld [vmem:[%s5 + $0x208] sm:$0xff]
    %v12623 = vld [vmem:[%s5 + $0x210] sm:$0xff]
    %v12624 = vld [vmem:[%s5 + $0x218] sm:$0xff]
    %v12625 = vld [vmem:[%s5 + $0x220] sm:$0xff]
    %v12626 = vld [vmem:[%s5 + $0x228] sm:$0xff]
    %v12627 = vld [vmem:[%s5 + $0x230] sm:$0xff]
    %v12628 = vld [vmem:[%s5 + $0x238] sm:$0xff]
    %v12629 = vld [vmem:[%s5 + $0x240] sm:$0xff]
    %v12630 = vld [vmem:[%s5 + $0x248] sm:$0xff]
    %v12631 = vld [vmem:[%s5 + $0x250] sm:$0xff]
    %v12632 = vld [vmem:[%s5 + $0x258] sm:$0xff]
    %v12633 = vld [vmem:[%s5 + $0x260] sm:$0xff]
    %v12634 = vld [vmem:[%s5 + $0x268] sm:$0xff]
    %v12635 = vld [vmem:[%s5 + $0x270] sm:$0xff]
    %v12636 = vld [vmem:[%s5 + $0x278] sm:$0xff]
    %v12637 = vld [vmem:[%s5 + $0x280] sm:$0xff]
    %v12638 = vld [vmem:[%s5 + $0x288] sm:$0xff]
    %v12639 = vld [vmem:[%s5 + $0x290] sm:$0xff]
    %v12640 = vld [vmem:[%s5 + $0x298] sm:$0xff]
    %v12641 = vld [vmem:[%s5 + $0x2a0] sm:$0xff]
    %v12642 = vld [vmem:[%s5 + $0x2a8] sm:$0xff]
    %v12643 = vld [vmem:[%s5 + $0x2b0] sm:$0xff]
    %v12644 = vld [vmem:[%s5 + $0x2b8] sm:$0xff]
    %v12645 = vld [vmem:[%s5 + $0x2c0] sm:$0xff]
    %v12646 = vld [vmem:[%s5 + $0x2c8] sm:$0xff]
    %v12647 = vld [vmem:[%s5 + $0x2d0] sm:$0xff]
    %v12648 = vld [vmem:[%s5 + $0x2d8] sm:$0xff]
    %v12649 = vld [vmem:[%s5 + $0x2e0] sm:$0xff]
    %v12650 = vld [vmem:[%s5 + $0x2e8] sm:$0xff]
    %v12651 = vld [vmem:[%s5 + $0x2f0] sm:$0xff]
    %v12652 = vld [vmem:[%s5 + $0x2f8] sm:$0xff]
    %v12653 = vld [vmem:[%s5 + $0x300] sm:$0xff]
    %v12654 = vld [vmem:[%s5 + $0x308] sm:$0xff]
    %v12655 = vld [vmem:[%s5 + $0x310] sm:$0xff]
    %v12656 = vld [vmem:[%s5 + $0x318] sm:$0xff]
    %v12657 = vld [vmem:[%s5 + $0x320] sm:$0xff]
    %v12658 = vld [vmem:[%s5 + $0x328] sm:$0xff]
    %v12659 = vld [vmem:[%s5 + $0x330] sm:$0xff]
    %v12660 = vld [vmem:[%s5 + $0x338] sm:$0xff]
    %v12661 = vld [vmem:[%s5 + $0x340] sm:$0xff]
    %v12662 = vld [vmem:[%s5 + $0x348] sm:$0xff]
    %v12663 = vld [vmem:[%s5 + $0x350] sm:$0xff]
    %v12664 = vld [vmem:[%s5 + $0x358] sm:$0xff]
    %v12665 = vld [vmem:[%s5 + $0x360] sm:$0xff]
    %v12666 = vld [vmem:[%s5 + $0x368] sm:$0xff]
    %v12667 = vld [vmem:[%s5 + $0x370] sm:$0xff]
    %v12668 = vld [vmem:[%s5 + $0x378] sm:$0xff]
    %v12669 = vld [vmem:[%s5 + $0x380] sm:$0xff]
    %v12670 = vld [vmem:[%s5 + $0x388] sm:$0xff]
    %v12671 = vld [vmem:[%s5 + $0x390] sm:$0xff]
    %v12672 = vld [vmem:[%s5 + $0x398] sm:$0xff]
    %v12673 = vld [vmem:[%s5 + $0x3a0] sm:$0xff]
    %v12674 = vld [vmem:[%s5 + $0x3a8] sm:$0xff]
    %v12675 = vld [vmem:[%s5 + $0x3b0] sm:$0xff]
    %v12676 = vld [vmem:[%s5 + $0x3b8] sm:$0xff]
    %v12677 = vld [vmem:[%s5 + $0x3c0] sm:$0xff]
    %v12678 = vld [vmem:[%s5 + $0x3c8] sm:$0xff]
    %v12679 = vld [vmem:[%s5 + $0x3d0] sm:$0xff]
    %v12680 = vld [vmem:[%s5 + $0x3d8] sm:$0xff]
    %v12681 = vld [vmem:[%s5 + $0x3e0] sm:$0xff]
    %v12682 = vld [vmem:[%s5 + $0x3e8] sm:$0xff]
    %v12683 = vld [vmem:[%s5 + $0x3f0] sm:$0xff]
    %v12684 = vld [vmem:[%s5 + $0x3f8] sm:$0xff]
    %v12685 = vld [vmem:[%s6] sm:$0x3]
    %v12687 = vlaneseq
    %v12688 = vshrl.u32 %v12687, 7
    %v12689 = vsub.s32 0, %v12688
    %v12690 = vrot.slane %v12685, %v12689
    %v12691 = vlaneseq
    %v12692 = vshrl.u32 %v12691, 7
    %v12693 = vsub.s32 1, %v12692
    %v12694 = vrot.slane %v12685, %v12693
    %v12825 = vunpack.c.l.b16 %v12557
    %v12826 = vunpack.c.h.b16 %v12557
    %v12827 = vunpack.c.l.b16 %v12558
    %v12828 = vunpack.c.h.b16 %v12558
    %v12829 = vunpack.c.l.b16 %v12559
    %v12830 = vunpack.c.h.b16 %v12559
    %v12831 = vunpack.c.l.b16 %v12560
    %v12832 = vunpack.c.h.b16 %v12560
    %v12833 = vunpack.c.l.b16 %v12561
    %v12834 = vunpack.c.h.b16 %v12561
    %v12835 = vunpack.c.l.b16 %v12562
    %v12836 = vunpack.c.h.b16 %v12562
    %v12837 = vunpack.c.l.b16 %v12563
    %v12838 = vunpack.c.h.b16 %v12563
    %v12839 = vunpack.c.l.b16 %v12564
    %v12840 = vunpack.c.h.b16 %v12564
    %v12841 = vunpack.c.l.b16 %v12565
    %v12842 = vunpack.c.h.b16 %v12565
    %v12843 = vunpack.c.l.b16 %v12566
    %v12844 = vunpack.c.h.b16 %v12566
    %v12845 = vunpack.c.l.b16 %v12567
    %v12846 = vunpack.c.h.b16 %v12567
    %v12847 = vunpack.c.l.b16 %v12568
    %v12848 = vunpack.c.h.b16 %v12568
    %v12849 = vunpack.c.l.b16 %v12569
    %v12850 = vunpack.c.h.b16 %v12569
    %v12851 = vunpack.c.l.b16 %v12570
    %v12852 = vunpack.c.h.b16 %v12570
    %v12853 = vunpack.c.l.b16 %v12571
    %v12854 = vunpack.c.h.b16 %v12571
    %v12855 = vunpack.c.l.b16 %v12572
    %v12856 = vunpack.c.h.b16 %v12572
    %v12857 = vunpack.c.l.b16 %v12573
    %v12858 = vunpack.c.h.b16 %v12573
    %v12859 = vunpack.c.l.b16 %v12574
    %v12860 = vunpack.c.h.b16 %v12574
    %v12861 = vunpack.c.l.b16 %v12575
    %v12862 = vunpack.c.h.b16 %v12575
    %v12863 = vunpack.c.l.b16 %v12576
    %v12864 = vunpack.c.h.b16 %v12576
    %v12865 = vunpack.c.l.b16 %v12577
    %v12866 = vunpack.c.h.b16 %v12577
    %v12867 = vunpack.c.l.b16 %v12578
    %v12868 = vunpack.c.h.b16 %v12578
    %v12869 = vunpack.c.l.b16 %v12579
    %v12870 = vunpack.c.h.b16 %v12579
    %v12871 = vunpack.c.l.b16 %v12580
    %v12872 = vunpack.c.h.b16 %v12580
    %v12873 = vunpack.c.l.b16 %v12581
    %v12874 = vunpack.c.h.b16 %v12581
    %v12875 = vunpack.c.l.b16 %v12582
    %v12876 = vunpack.c.h.b16 %v12582
    %v12877 = vunpack.c.l.b16 %v12583
    %v12878 = vunpack.c.h.b16 %v12583
    %v12879 = vunpack.c.l.b16 %v12584
    %v12880 = vunpack.c.h.b16 %v12584
    %v12881 = vunpack.c.l.b16 %v12585
    %v12882 = vunpack.c.h.b16 %v12585
    %v12883 = vunpack.c.l.b16 %v12586
    %v12884 = vunpack.c.h.b16 %v12586
    %v12885 = vunpack.c.l.b16 %v12587
    %v12886 = vunpack.c.h.b16 %v12587
    %v12887 = vunpack.c.l.b16 %v12588
    %v12888 = vunpack.c.h.b16 %v12588
    %v12889 = vunpack.c.l.b16 %v12589
    %v12890 = vunpack.c.h.b16 %v12589
    %v12891 = vunpack.c.l.b16 %v12590
    %v12892 = vunpack.c.h.b16 %v12590
    %v12893 = vunpack.c.l.b16 %v12591
    %v12894 = vunpack.c.h.b16 %v12591
    %v12895 = vunpack.c.l.b16 %v12592
    %v12896 = vunpack.c.h.b16 %v12592
    %v12897 = vunpack.c.l.b16 %v12593
    %v12898 = vunpack.c.h.b16 %v12593
    %v12899 = vunpack.c.l.b16 %v12594
    %v12900 = vunpack.c.h.b16 %v12594
    %v12901 = vunpack.c.l.b16 %v12595
    %v12902 = vunpack.c.h.b16 %v12595
    %v12903 = vunpack.c.l.b16 %v12596
    %v12904 = vunpack.c.h.b16 %v12596
    %v12905 = vunpack.c.l.b16 %v12597
    %v12906 = vunpack.c.h.b16 %v12597
    %v12907 = vunpack.c.l.b16 %v12598
    %v12908 = vunpack.c.h.b16 %v12598
    %v12909 = vunpack.c.l.b16 %v12599
    %v12910 = vunpack.c.h.b16 %v12599
    %v12911 = vunpack.c.l.b16 %v12600
    %v12912 = vunpack.c.h.b16 %v12600
    %v12913 = vunpack.c.l.b16 %v12601
    %v12914 = vunpack.c.h.b16 %v12601
    %v12915 = vunpack.c.l.b16 %v12602
    %v12916 = vunpack.c.h.b16 %v12602
    %v12917 = vunpack.c.l.b16 %v12603
    %v12918 = vunpack.c.h.b16 %v12603
    %v12919 = vunpack.c.l.b16 %v12604
    %v12920 = vunpack.c.h.b16 %v12604
    %v12921 = vunpack.c.l.b16 %v12605
    %v12922 = vunpack.c.h.b16 %v12605
    %v12923 = vunpack.c.l.b16 %v12606
    %v12924 = vunpack.c.h.b16 %v12606
    %v12925 = vunpack.c.l.b16 %v12607
    %v12926 = vunpack.c.h.b16 %v12607
    %v12927 = vunpack.c.l.b16 %v12608
    %v12928 = vunpack.c.h.b16 %v12608
    %v12929 = vunpack.c.l.b16 %v12609
    %v12930 = vunpack.c.h.b16 %v12609
    %v12931 = vunpack.c.l.b16 %v12610
    %v12932 = vunpack.c.h.b16 %v12610
    %v12933 = vunpack.c.l.b16 %v12611
    %v12934 = vunpack.c.h.b16 %v12611
    %v12935 = vunpack.c.l.b16 %v12612
    %v12936 = vunpack.c.h.b16 %v12612
    %v12937 = vunpack.c.l.b16 %v12613
    %v12938 = vunpack.c.h.b16 %v12613
    %v12939 = vunpack.c.l.b16 %v12614
    %v12940 = vunpack.c.h.b16 %v12614
    %v12941 = vunpack.c.l.b16 %v12615
    %v12942 = vunpack.c.h.b16 %v12615
    %v12943 = vunpack.c.l.b16 %v12616
    %v12944 = vunpack.c.h.b16 %v12616
    %v12945 = vunpack.c.l.b16 %v12617
    %v12946 = vunpack.c.h.b16 %v12617
    %v12947 = vunpack.c.l.b16 %v12618
    %v12948 = vunpack.c.h.b16 %v12618
    %v12949 = vunpack.c.l.b16 %v12619
    %v12950 = vunpack.c.h.b16 %v12619
    %v12951 = vunpack.c.l.b16 %v12620
    %v12952 = vunpack.c.h.b16 %v12620
    %v12953 = vunpack.c.l.b16 %v12621
    %v12954 = vunpack.c.h.b16 %v12621
    %v12955 = vunpack.c.l.b16 %v12622
    %v12956 = vunpack.c.h.b16 %v12622
    %v12957 = vunpack.c.l.b16 %v12623
    %v12958 = vunpack.c.h.b16 %v12623
    %v12959 = vunpack.c.l.b16 %v12624
    %v12960 = vunpack.c.h.b16 %v12624
    %v12961 = vunpack.c.l.b16 %v12625
    %v12962 = vunpack.c.h.b16 %v12625
    %v12963 = vunpack.c.l.b16 %v12626
    %v12964 = vunpack.c.h.b16 %v12626
    %v12965 = vunpack.c.l.b16 %v12627
    %v12966 = vunpack.c.h.b16 %v12627
    %v12967 = vunpack.c.l.b16 %v12628
    %v12968 = vunpack.c.h.b16 %v12628
    %v12969 = vunpack.c.l.b16 %v12629
    %v12970 = vunpack.c.h.b16 %v12629
    %v12971 = vunpack.c.l.b16 %v12630
    %v12972 = vunpack.c.h.b16 %v12630
    %v12973 = vunpack.c.l.b16 %v12631
    %v12974 = vunpack.c.h.b16 %v12631
    %v12975 = vunpack.c.l.b16 %v12632
    %v12976 = vunpack.c.h.b16 %v12632
    %v12977 = vunpack.c.l.b16 %v12633
    %v12978 = vunpack.c.h.b16 %v12633
    %v12979 = vunpack.c.l.b16 %v12634
    %v12980 = vunpack.c.h.b16 %v12634
    %v12981 = vunpack.c.l.b16 %v12635
    %v12982 = vunpack.c.h.b16 %v12635
    %v12983 = vunpack.c.l.b16 %v12636
    %v12984 = vunpack.c.h.b16 %v12636
    %v12985 = vunpack.c.l.b16 %v12637
    %v12986 = vunpack.c.h.b16 %v12637
    %v12987 = vunpack.c.l.b16 %v12638
    %v12988 = vunpack.c.h.b16 %v12638
    %v12989 = vunpack.c.l.b16 %v12639
    %v12990 = vunpack.c.h.b16 %v12639
    %v12991 = vunpack.c.l.b16 %v12640
    %v12992 = vunpack.c.h.b16 %v12640
    %v12993 = vunpack.c.l.b16 %v12641
    %v12994 = vunpack.c.h.b16 %v12641
    %v12995 = vunpack.c.l.b16 %v12642
    %v12996 = vunpack.c.h.b16 %v12642
    %v12997 = vunpack.c.l.b16 %v12643
    %v12998 = vunpack.c.h.b16 %v12643
    %v12999 = vunpack.c.l.b16 %v12644
    %v13000 = vunpack.c.h.b16 %v12644
    %v13001 = vunpack.c.l.b16 %v12645
    %v13002 = vunpack.c.h.b16 %v12645
    %v13003 = vunpack.c.l.b16 %v12646
    %v13004 = vunpack.c.h.b16 %v12646
    %v13005 = vunpack.c.l.b16 %v12647
    %v13006 = vunpack.c.h.b16 %v12647
    %v13007 = vunpack.c.l.b16 %v12648
    %v13008 = vunpack.c.h.b16 %v12648
    %v13009 = vunpack.c.l.b16 %v12649
    %v13010 = vunpack.c.h.b16 %v12649
    %v13011 = vunpack.c.l.b16 %v12650
    %v13012 = vunpack.c.h.b16 %v12650
    %v13013 = vunpack.c.l.b16 %v12651
    %v13014 = vunpack.c.h.b16 %v12651
    %v13015 = vunpack.c.l.b16 %v12652
    %v13016 = vunpack.c.h.b16 %v12652
    %v13017 = vunpack.c.l.b16 %v12653
    %v13018 = vunpack.c.h.b16 %v12653
    %v13019 = vunpack.c.l.b16 %v12654
    %v13020 = vunpack.c.h.b16 %v12654
    %v13021 = vunpack.c.l.b16 %v12655
    %v13022 = vunpack.c.h.b16 %v12655
    %v13023 = vunpack.c.l.b16 %v12656
    %v13024 = vunpack.c.h.b16 %v12656
    %v13025 = vunpack.c.l.b16 %v12657
    %v13026 = vunpack.c.h.b16 %v12657
    %v13027 = vunpack.c.l.b16 %v12658
    %v13028 = vunpack.c.h.b16 %v12658
    %v13029 = vunpack.c.l.b16 %v12659
    %v13030 = vunpack.c.h.b16 %v12659
    %v13031 = vunpack.c.l.b16 %v12660
    %v13032 = vunpack.c.h.b16 %v12660
    %v13033 = vunpack.c.l.b16 %v12661
    %v13034 = vunpack.c.h.b16 %v12661
    %v13035 = vunpack.c.l.b16 %v12662
    %v13036 = vunpack.c.h.b16 %v12662
    %v13037 = vunpack.c.l.b16 %v12663
    %v13038 = vunpack.c.h.b16 %v12663
    %v13039 = vunpack.c.l.b16 %v12664
    %v13040 = vunpack.c.h.b16 %v12664
    %v13041 = vunpack.c.l.b16 %v12665
    %v13042 = vunpack.c.h.b16 %v12665
    %v13043 = vunpack.c.l.b16 %v12666
    %v13044 = vunpack.c.h.b16 %v12666
    %v13045 = vunpack.c.l.b16 %v12667
    %v13046 = vunpack.c.h.b16 %v12667
    %v13047 = vunpack.c.l.b16 %v12668
    %v13048 = vunpack.c.h.b16 %v12668
    %v13049 = vunpack.c.l.b16 %v12669
    %v13050 = vunpack.c.h.b16 %v12669
    %v13051 = vunpack.c.l.b16 %v12670
    %v13052 = vunpack.c.h.b16 %v12670
    %v13053 = vunpack.c.l.b16 %v12671
    %v13054 = vunpack.c.h.b16 %v12671
    %v13055 = vunpack.c.l.b16 %v12672
    %v13056 = vunpack.c.h.b16 %v12672
    %v13057 = vunpack.c.l.b16 %v12673
    %v13058 = vunpack.c.h.b16 %v12673
    %v13059 = vunpack.c.l.b16 %v12674
    %v13060 = vunpack.c.h.b16 %v12674
    %v13061 = vunpack.c.l.b16 %v12675
    %v13062 = vunpack.c.h.b16 %v12675
    %v13063 = vunpack.c.l.b16 %v12676
    %v13064 = vunpack.c.h.b16 %v12676
    %v13065 = vunpack.c.l.b16 %v12677
    %v13066 = vunpack.c.h.b16 %v12677
    %v13067 = vunpack.c.l.b16 %v12678
    %v13068 = vunpack.c.h.b16 %v12678
    %v13069 = vunpack.c.l.b16 %v12679
    %v13070 = vunpack.c.h.b16 %v12679
    %v13071 = vunpack.c.l.b16 %v12680
    %v13072 = vunpack.c.h.b16 %v12680
    %v13073 = vunpack.c.l.b16 %v12681
    %v13074 = vunpack.c.h.b16 %v12681
    %v13075 = vunpack.c.l.b16 %v12682
    %v13076 = vunpack.c.h.b16 %v12682
    %v13077 = vunpack.c.l.b16 %v12683
    %v13078 = vunpack.c.h.b16 %v12683
    %v13079 = vunpack.c.l.b16 %v12684
    %v13080 = vunpack.c.h.b16 %v12684
    %v13081 = vpack.c.b16 %v12827, %v12825
    %v13082 = vpack.c.b16 %v12828, %v12826
    %v13083 = vpack.c.b16 %v12831, %v12829
    %v13084 = vpack.c.b16 %v12832, %v12830
    %v13085 = vpack.c.b16 %v12835, %v12833
    %v13086 = vpack.c.b16 %v12836, %v12834
    %v13087 = vpack.c.b16 %v12839, %v12837
    %v13088 = vpack.c.b16 %v12840, %v12838
    %v13089 = vpack.c.b16 %v12843, %v12841
    %v13090 = vpack.c.b16 %v12844, %v12842
    %v13091 = vpack.c.b16 %v12847, %v12845
    %v13092 = vpack.c.b16 %v12848, %v12846
    %v13093 = vpack.c.b16 %v12851, %v12849
    %v13094 = vpack.c.b16 %v12852, %v12850
    %v13095 = vpack.c.b16 %v12855, %v12853
    %v13096 = vpack.c.b16 %v12856, %v12854
    %v13097 = vpack.c.b16 %v12859, %v12857
    %v13098 = vpack.c.b16 %v12860, %v12858
    %v13099 = vpack.c.b16 %v12863, %v12861
    %v13100 = vpack.c.b16 %v12864, %v12862
    %v13101 = vpack.c.b16 %v12867, %v12865
    %v13102 = vpack.c.b16 %v12868, %v12866
    %v13103 = vpack.c.b16 %v12871, %v12869
    %v13104 = vpack.c.b16 %v12872, %v12870
    %v13105 = vpack.c.b16 %v12875, %v12873
    %v13106 = vpack.c.b16 %v12876, %v12874
    %v13107 = vpack.c.b16 %v12879, %v12877
    %v13108 = vpack.c.b16 %v12880, %v12878
    %v13109 = vpack.c.b16 %v12883, %v12881
    %v13110 = vpack.c.b16 %v12884, %v12882
    %v13111 = vpack.c.b16 %v12887, %v12885
    %v13112 = vpack.c.b16 %v12888, %v12886
    %v13113 = vpack.c.b16 %v12891, %v12889
    %v13114 = vpack.c.b16 %v12892, %v12890
    %v13115 = vpack.c.b16 %v12895, %v12893
    %v13116 = vpack.c.b16 %v12896, %v12894
    %v13117 = vpack.c.b16 %v12899, %v12897
    %v13118 = vpack.c.b16 %v12900, %v12898
    %v13119 = vpack.c.b16 %v12903, %v12901
    %v13120 = vpack.c.b16 %v12904, %v12902
    %v13121 = vpack.c.b16 %v12907, %v12905
    %v13122 = vpack.c.b16 %v12908, %v12906
    %v13123 = vpack.c.b16 %v12911, %v12909
    %v13124 = vpack.c.b16 %v12912, %v12910
    %v13125 = vpack.c.b16 %v12915, %v12913
    %v13126 = vpack.c.b16 %v12916, %v12914
    %v13127 = vpack.c.b16 %v12919, %v12917
    %v13128 = vpack.c.b16 %v12920, %v12918
    %v13129 = vpack.c.b16 %v12923, %v12921
    %v13130 = vpack.c.b16 %v12924, %v12922
    %v13131 = vpack.c.b16 %v12927, %v12925
    %v13132 = vpack.c.b16 %v12928, %v12926
    %v13133 = vpack.c.b16 %v12931, %v12929
    %v13134 = vpack.c.b16 %v12932, %v12930
    %v13135 = vpack.c.b16 %v12935, %v12933
    %v13136 = vpack.c.b16 %v12936, %v12934
    %v13137 = vpack.c.b16 %v12939, %v12937
    %v13138 = vpack.c.b16 %v12940, %v12938
    %v13139 = vpack.c.b16 %v12943, %v12941
    %v13140 = vpack.c.b16 %v12944, %v12942
    %v13141 = vpack.c.b16 %v12947, %v12945
    %v13142 = vpack.c.b16 %v12948, %v12946
    %v13143 = vpack.c.b16 %v12951, %v12949
    %v13144 = vpack.c.b16 %v12952, %v12950
    %v13145 = vpack.c.b16 %v12955, %v12953
    %v13146 = vpack.c.b16 %v12956, %v12954
    %v13147 = vpack.c.b16 %v12959, %v12957
    %v13148 = vpack.c.b16 %v12960, %v12958
    %v13149 = vpack.c.b16 %v12963, %v12961
    %v13150 = vpack.c.b16 %v12964, %v12962
    %v13151 = vpack.c.b16 %v12967, %v12965
    %v13152 = vpack.c.b16 %v12968, %v12966
    %v13153 = vpack.c.b16 %v12971, %v12969
    %v13154 = vpack.c.b16 %v12972, %v12970
    %v13155 = vpack.c.b16 %v12975, %v12973
    %v13156 = vpack.c.b16 %v12976, %v12974
    %v13157 = vpack.c.b16 %v12979, %v12977
    %v13158 = vpack.c.b16 %v12980, %v12978
    %v13159 = vpack.c.b16 %v12983, %v12981
    %v13160 = vpack.c.b16 %v12984, %v12982
    %v13161 = vpack.c.b16 %v12987, %v12985
    %v13162 = vpack.c.b16 %v12988, %v12986
    %v13163 = vpack.c.b16 %v12991, %v12989
    %v13164 = vpack.c.b16 %v12992, %v12990
    %v13165 = vpack.c.b16 %v12995, %v12993
    %v13166 = vpack.c.b16 %v12996, %v12994
    %v13167 = vpack.c.b16 %v12999, %v12997
    %v13168 = vpack.c.b16 %v13000, %v12998
    %v13169 = vpack.c.b16 %v13003, %v13001
    %v13170 = vpack.c.b16 %v13004, %v13002
    %v13171 = vpack.c.b16 %v13007, %v13005
    %v13172 = vpack.c.b16 %v13008, %v13006
    %v13173 = vpack.c.b16 %v13011, %v13009
    %v13174 = vpack.c.b16 %v13012, %v13010
    %v13175 = vpack.c.b16 %v13015, %v13013
    %v13176 = vpack.c.b16 %v13016, %v13014
    %v13177 = vpack.c.b16 %v13019, %v13017
    %v13178 = vpack.c.b16 %v13020, %v13018
    %v13179 = vpack.c.b16 %v13023, %v13021
    %v13180 = vpack.c.b16 %v13024, %v13022
    %v13181 = vpack.c.b16 %v13027, %v13025
    %v13182 = vpack.c.b16 %v13028, %v13026
    %v13183 = vpack.c.b16 %v13031, %v13029
    %v13184 = vpack.c.b16 %v13032, %v13030
    %v13185 = vpack.c.b16 %v13035, %v13033
    %v13186 = vpack.c.b16 %v13036, %v13034
    %v13187 = vpack.c.b16 %v13039, %v13037
    %v13188 = vpack.c.b16 %v13040, %v13038
    %v13189 = vpack.c.b16 %v13043, %v13041
    %v13190 = vpack.c.b16 %v13044, %v13042
    %v13191 = vpack.c.b16 %v13047, %v13045
    %v13192 = vpack.c.b16 %v13048, %v13046
    %v13193 = vpack.c.b16 %v13051, %v13049
    %v13194 = vpack.c.b16 %v13052, %v13050
    %v13195 = vpack.c.b16 %v13055, %v13053
    %v13196 = vpack.c.b16 %v13056, %v13054
    %v13197 = vpack.c.b16 %v13059, %v13057
    %v13198 = vpack.c.b16 %v13060, %v13058
    %v13199 = vpack.c.b16 %v13063, %v13061
    %v13200 = vpack.c.b16 %v13064, %v13062
    %v13201 = vpack.c.b16 %v13067, %v13065
    %v13202 = vpack.c.b16 %v13068, %v13066
    %v13203 = vpack.c.b16 %v13071, %v13069
    %v13204 = vpack.c.b16 %v13072, %v13070
    %v13205 = vpack.c.b16 %v13075, %v13073
    %v13206 = vpack.c.b16 %v13076, %v13074
    %v13207 = vpack.c.b16 %v13079, %v13077
    %v13208 = vpack.c.b16 %v13080, %v13078
    %13337 = vmatprep.subr.bf16.mxu0 %v13082
    %13338 = vmatpush1.bf16.msra.mxu0 %v13081
    %13339 = vmatprep.subr.bf16.mxu0 %v13084
    %13340 = vmatpush1.bf16.msra.mxu0 %v13083
    %13341 = vmatprep.subr.bf16.mxu0 %v13086
    %13342 = vmatpush1.bf16.msra.mxu0 %v13085
    %13343 = vmatprep.subr.bf16.mxu0 %v13088
    %13344 = vmatpush1.bf16.msra.mxu0 %v13087
    %13345 = vmatprep.subr.bf16.mxu0 %v13090
    %13346 = vmatpush1.bf16.msra.mxu0 %v13089
    %13347 = vmatprep.subr.bf16.mxu0 %v13092
    %13348 = vmatpush1.bf16.msra.mxu0 %v13091
    %13349 = vmatprep.subr.bf16.mxu0 %v13094
    %13350 = vmatpush1.bf16.msra.mxu0 %v13093
    %13351 = vmatprep.subr.bf16.mxu0 %v13096
    %13352 = vmatpush1.bf16.msra.mxu0 %v13095
    %13353 = vmatprep.subr.bf16.mxu0 %v13098
    %13354 = vmatpush1.bf16.msra.mxu0 %v13097
    %13355 = vmatprep.subr.bf16.mxu0 %v13100
    %13356 = vmatpush1.bf16.msra.mxu0 %v13099
    %13357 = vmatprep.subr.bf16.mxu0 %v13102
    %13358 = vmatpush1.bf16.msra.mxu0 %v13101
    %13359 = vmatprep.subr.bf16.mxu0 %v13104
    %13360 = vmatpush1.bf16.msra.mxu0 %v13103
    %13361 = vmatprep.subr.bf16.mxu0 %v13106
    %13362 = vmatpush1.bf16.msra.mxu0 %v13105
    %13363 = vmatprep.subr.bf16.mxu0 %v13108
    %13364 = vmatpush1.bf16.msra.mxu0 %v13107
    %13365 = vmatprep.subr.bf16.mxu0 %v13110
    %13366 = vmatpush1.bf16.msra.mxu0 %v13109
    %13367 = vmatprep.subr.bf16.mxu0 %v13112
    %13368 = vmatpush1.bf16.msra.mxu0 %v13111
    %13369 = vmatprep.mubr.bf16.mxu0 %v12550
    %13370 = vmatmul.mubr.bf16.gmra.mrb[0].mxu0 %v12549
    %v13371 = vpop.f32.mrb[0].mxu0
    %v13372 = vadd.f32 %v12690, %v13371
    %v13373 = vpop.f32.mrb[0].mxu0
    %v13374 = vadd.f32 %v12694, %v13373
    %v13375 = vpop.f32.mrb[0].mxu0
    %v13376 = vpop.f32.mrb[0].mxu0
    %13377 = vdwg.mxu0
    %13378 = vmatprep.subr.bf16.mxu0 %v13114
    %13379 = vmatpush1.bf16.msra.mxu0 %v13113
    %13380 = vmatprep.subr.bf16.mxu0 %v13116
    %13381 = vmatpush1.bf16.msra.mxu0 %v13115
    %13382 = vmatprep.subr.bf16.mxu0 %v13118
    %13383 = vmatpush1.bf16.msra.mxu0 %v13117
    %13384 = vmatprep.subr.bf16.mxu0 %v13120
    %13385 = vmatpush1.bf16.msra.mxu0 %v13119
    %13386 = vmatprep.subr.bf16.mxu0 %v13122
    %13387 = vmatpush1.bf16.msra.mxu0 %v13121
    %13388 = vmatprep.subr.bf16.mxu0 %v13124
    %13389 = vmatpush1.bf16.msra.mxu0 %v13123
    %13390 = vmatprep.subr.bf16.mxu0 %v13126
    %13391 = vmatpush1.bf16.msra.mxu0 %v13125
    %13392 = vmatprep.subr.bf16.mxu0 %v13128
    %13393 = vmatpush1.bf16.msra.mxu0 %v13127
    %13394 = vmatprep.subr.bf16.mxu0 %v13130
    %13395 = vmatpush1.bf16.msra.mxu0 %v13129
    %13396 = vmatprep.subr.bf16.mxu0 %v13132
    %13397 = vmatpush1.bf16.msra.mxu0 %v13131
    %13398 = vmatprep.subr.bf16.mxu0 %v13134
    %13399 = vmatpush1.bf16.msra.mxu0 %v13133
    %13400 = vmatprep.subr.bf16.mxu0 %v13136
    %13401 = vmatpush1.bf16.msra.mxu0 %v13135
    %13402 = vmatprep.subr.bf16.mxu0 %v13138
    %13403 = vmatpush1.bf16.msra.mxu0 %v13137
    %13404 = vmatprep.subr.bf16.mxu0 %v13140
    %13405 = vmatpush1.bf16.msra.mxu0 %v13139
    %13406 = vmatprep.subr.bf16.mxu0 %v13142
    %13407 = vmatpush1.bf16.msra.mxu0 %v13141
    %13408 = vmatprep.subr.bf16.mxu0 %v13144
    %13409 = vmatpush1.bf16.msra.mxu0 %v13143
    %13410 = vmatprep.mubr.bf16.mxu0 %v12552
    %13411 = vmatmul.mubr.bf16.gmra.mrb[0].mxu0 %v12551
    %v13412 = vpop.f32.mrb[0].mxu0
    %v13413 = vadd.f32 %v13372, %v13412
    %v13414 = vpop.f32.mrb[0].mxu0
    %v13415 = vadd.f32 %v13374, %v13414
    %v13416 = vpop.f32.mrb[0].mxu0
    %v13417 = vpop.f32.mrb[0].mxu0
    %13418 = vdwg.mxu0
    %13419 = vmatprep.subr.bf16.mxu0 %v13146
    %13420 = vmatpush1.bf16.msra.mxu0 %v13145
    %13421 = vmatprep.subr.bf16.mxu0 %v13148
    %13422 = vmatpush1.bf16.msra.mxu0 %v13147
    %13423 = vmatprep.subr.bf16.mxu0 %v13150
    %13424 = vmatpush1.bf16.msra.mxu0 %v13149
    %13425 = vmatprep.subr.bf16.mxu0 %v13152
    %13426 = vmatpush1.bf16.msra.mxu0 %v13151
    %13427 = vmatprep.subr.bf16.mxu0 %v13154
    %13428 = vmatpush1.bf16.msra.mxu0 %v13153
    %13429 = vmatprep.subr.bf16.mxu0 %v13156
    %13430 = vmatpush1.bf16.msra.mxu0 %v13155
    %13431 = vmatprep.subr.bf16.mxu0 %v13158
    %13432 = vmatpush1.bf16.msra.mxu0 %v13157
    %13433 = vmatprep.subr.bf16.mxu0 %v13160
    %13434 = vmatpush1.bf16.msra.mxu0 %v13159
    %13435 = vmatprep.subr.bf16.mxu0 %v13162
    %13436 = vmatpush1.bf16.msra.mxu0 %v13161
    %13437 = vmatprep.subr.bf16.mxu0 %v13164
    %13438 = vmatpush1.bf16.msra.mxu0 %v13163
    %13439 = vmatprep.subr.bf16.mxu0 %v13166
    %13440 = vmatpush1.bf16.msra.mxu0 %v13165
    %13441 = vmatprep.subr.bf16.mxu0 %v13168
    %13442 = vmatpush1.bf16.msra.mxu0 %v13167
    %13443 = vmatprep.subr.bf16.mxu0 %v13170
    %13444 = vmatpush1.bf16.msra.mxu0 %v13169
    %13445 = vmatprep.subr.bf16.mxu0 %v13172
    %13446 = vmatpush1.bf16.msra.mxu0 %v13171
    %13447 = vmatprep.subr.bf16.mxu0 %v13174
    %13448 = vmatpush1.bf16.msra.mxu0 %v13173
    %13449 = vmatprep.subr.bf16.mxu0 %v13176
    %13450 = vmatpush1.bf16.msra.mxu0 %v13175
    %13451 = vmatprep.mubr.bf16.mxu0 %v12554
    %13452 = vmatmul.mubr.bf16.gmra.mrb[0].mxu0 %v12553
    %v13453 = vpop.f32.mrb[0].mxu0
    %v13454 = vadd.f32 %v13413, %v13453
    %v13455 = vpop.f32.mrb[0].mxu0
    %v13456 = vadd.f32 %v13415, %v13455
    %v13457 = vpop.f32.mrb[0].mxu0
    %v13458 = vpop.f32.mrb[0].mxu0
    %13459 = vdwg.mxu0
    %13460 = vmatprep.subr.bf16.mxu0 %v13178
    %13461 = vmatpush1.bf16.msra.mxu0 %v13177
    %13462 = vmatprep.subr.bf16.mxu0 %v13180
    %13463 = vmatpush1.bf16.msra.mxu0 %v13179
    %13464 = vmatprep.subr.bf16.mxu0 %v13182
    %13465 = vmatpush1.bf16.msra.mxu0 %v13181
    %13466 = vmatprep.subr.bf16.mxu0 %v13184
    %13467 = vmatpush1.bf16.msra.mxu0 %v13183
    %13468 = vmatprep.subr.bf16.mxu0 %v13186
    %13469 = vmatpush1.bf16.msra.mxu0 %v13185
    %13470 = vmatprep.subr.bf16.mxu0 %v13188
    %13471 = vmatpush1.bf16.msra.mxu0 %v13187
    %13472 = vmatprep.subr.bf16.mxu0 %v13190
    %13473 = vmatpush1.bf16.msra.mxu0 %v13189
    %13474 = vmatprep.subr.bf16.mxu0 %v13192
    %13475 = vmatpush1.bf16.msra.mxu0 %v13191
    %13476 = vmatprep.subr.bf16.mxu0 %v13194
    %13477 = vmatpush1.bf16.msra.mxu0 %v13193
    %13478 = vmatprep.subr.bf16.mxu0 %v13196
    %13479 = vmatpush1.bf16.msra.mxu0 %v13195
    %13480 = vmatprep.subr.bf16.mxu0 %v13198
    %13481 = vmatpush1.bf16.msra.mxu0 %v13197
    %13482 = vmatprep.subr.bf16.mxu0 %v13200
    %13483 = vmatpush1.bf16.msra.mxu0 %v13199
    %13484 = vmatprep.subr.bf16.mxu0 %v13202
    %13485 = vmatpush1.bf16.msra.mxu0 %v13201
    %13486 = vmatprep.subr.bf16.mxu0 %v13204
    %13487 = vmatpush1.bf16.msra.mxu0 %v13203
    %13488 = vmatprep.subr.bf16.mxu0 %v13206
    %13489 = vmatpush1.bf16.msra.mxu0 %v13205
    %13490 = vmatprep.subr.bf16.mxu0 %v13208
    %13491 = vmatpush1.bf16.msra.mxu0 %v13207
    %13492 = vmatprep.mubr.bf16.mxu0 %v12556
    %13493 = vmatmul.mubr.bf16.gmra.mrb[0].mxu0 %v12555
    %v13494 = vpop.f32.mrb[0].mxu0
    %v13495 = vadd.f32 %v13454, %v13494
    %v13496 = vpop.f32.mrb[0].mxu0
    %v13497 = vadd.f32 %v13456, %v13496
    %v13498 = vpop.f32.mrb[0].mxu0
    %v13499 = vpop.f32.mrb[0].mxu0
    %13500 = vdwg.mxu0
    %v13501 = vmax.f32 %v13495, 0.0
    %v13502 = vmax.f32 %v13497, 0.0
    %v13503 = vpack.c.bf16 %v13501, %v13501
    %v13504 = vpack.c.bf16 %v13502, %v13502
    %v13505 = vld [vmem:[%s7] sm:$0xf]
    %v13506 = vld [vmem:[%s7 + $0x4] sm:$0xf]
    %v13507 = vld [vmem:[%s7 + $0x8] sm:$0xf]
    %v13508 = vld [vmem:[%s7 + $0xc] sm:$0xf]
    %v13509 = vld [vmem:[%s7 + $0x10] sm:$0xf]
    %v13510 = vld [vmem:[%s7 + $0x14] sm:$0xf]
    %v13511 = vld [vmem:[%s7 + $0x18] sm:$0xf]
    %v13512 = vld [vmem:[%s7 + $0x1c] sm:$0xf]
    %v13513 = vld [vmem:[%s7 + $0x20] sm:$0xf]
    %v13514 = vld [vmem:[%s7 + $0x24] sm:$0xf]
    %v13515 = vld [vmem:[%s7 + $0x28] sm:$0xf]
    %v13516 = vld [vmem:[%s7 + $0x2c] sm:$0xf]
    %v13517 = vld [vmem:[%s7 + $0x30] sm:$0xf]
    %v13518 = vld [vmem:[%s7 + $0x34] sm:$0xf]
    %v13519 = vld [vmem:[%s7 + $0x38] sm:$0xf]
    %v13520 = vld [vmem:[%s7 + $0x3c] sm:$0xf]
    %v13521 = vld [vmem:[%s7 + $0x40] sm:$0xf]
    %v13522 = vld [vmem:[%s7 + $0x44] sm:$0xf]
    %v13523 = vld [vmem:[%s7 + $0x48] sm:$0xf]
    %v13524 = vld [vmem:[%s7 + $0x4c] sm:$0xf]
    %v13525 = vld [vmem:[%s7 + $0x50] sm:$0xf]
    %v13526 = vld [vmem:[%s7 + $0x54] sm:$0xf]
    %v13527 = vld [vmem:[%s7 + $0x58] sm:$0xf]
    %v13528 = vld [vmem:[%s7 + $0x5c] sm:$0xf]
    %v13529 = vld [vmem:[%s7 + $0x60] sm:$0xf]
    %v13530 = vld [vmem:[%s7 + $0x64] sm:$0xf]
    %v13531 = vld [vmem:[%s7 + $0x68] sm:$0xf]
    %v13532 = vld [vmem:[%s7 + $0x6c] sm:$0xf]
    %v13533 = vld [vmem:[%s7 + $0x70] sm:$0xf]
    %v13534 = vld [vmem:[%s7 + $0x74] sm:$0xf]
    %v13535 = vld [vmem:[%s7 + $0x78] sm:$0xf]
    %v13536 = vld [vmem:[%s7 + $0x7c] sm:$0xf]
    %v13537 = vld [vmem:[%s8] sm:$0x1]
    %v13539 = vlaneseq
    %v13540 = vshrl.u32 %v13539, 7
    %v13541 = vsub.s32 0, %v13540
    %v13542 = vrot.slane %v13537, %v13541
    %v13576 = vunpack.c.l.b16 %v13505
    %v13577 = vunpack.c.l.b16 %v13506
    %v13578 = vunpack.c.l.b16 %v13507
    %v13579 = vunpack.c.l.b16 %v13508
    %v13580 = vunpack.c.l.b16 %v13509
    %v13581 = vunpack.c.l.b16 %v13510
    %v13582 = vunpack.c.l.b16 %v13511
    %v13583 = vunpack.c.l.b16 %v13512
    %v13584 = vunpack.c.l.b16 %v13513
    %v13585 = vunpack.c.l.b16 %v13514
    %v13586 = vunpack.c.l.b16 %v13515
    %v13587 = vunpack.c.l.b16 %v13516
    %v13588 = vunpack.c.l.b16 %v13517
    %v13589 = vunpack.c.l.b16 %v13518
    %v13590 = vunpack.c.l.b16 %v13519
    %v13591 = vunpack.c.l.b16 %v13520
    %v13592 = vunpack.c.l.b16 %v13521
    %v13593 = vunpack.c.l.b16 %v13522
    %v13594 = vunpack.c.l.b16 %v13523
    %v13595 = vunpack.c.l.b16 %v13524
    %v13596 = vunpack.c.l.b16 %v13525
    %v13597 = vunpack.c.l.b16 %v13526
    %v13598 = vunpack.c.l.b16 %v13527
    %v13599 = vunpack.c.l.b16 %v13528
    %v13600 = vunpack.c.l.b16 %v13529
    %v13601 = vunpack.c.l.b16 %v13530
    %v13602 = vunpack.c.l.b16 %v13531
    %v13603 = vunpack.c.l.b16 %v13532
    %v13604 = vunpack.c.l.b16 %v13533
    %v13605 = vunpack.c.l.b16 %v13534
    %v13606 = vunpack.c.l.b16 %v13535
    %v13607 = vunpack.c.l.b16 %v13536
    %v13608 = vpack.c.b16 %v13577, %v13576
    %v13609 = vpack.c.b16 %v13579, %v13578
    %v13610 = vpack.c.b16 %v13581, %v13580
    %v13611 = vpack.c.b16 %v13583, %v13582
    %v13612 = vpack.c.b16 %v13585, %v13584
    %v13613 = vpack.c.b16 %v13587, %v13586
    %v13614 = vpack.c.b16 %v13589, %v13588
    %v13615 = vpack.c.b16 %v13591, %v13590
    %v13616 = vpack.c.b16 %v13593, %v13592
    %v13617 = vpack.c.b16 %v13595, %v13594
    %v13618 = vpack.c.b16 %v13597, %v13596
    %v13619 = vpack.c.b16 %v13599, %v13598
    %v13620 = vpack.c.b16 %v13601, %v13600
    %v13621 = vpack.c.b16 %v13603, %v13602
    %v13622 = vpack.c.b16 %v13605, %v13604
    %v13623 = vpack.c.b16 %v13607, %v13606
    %13640 = vmatprep.subr.bf16.mxu0 0
    %13641 = vmatpush1.bf16.msra.mxu0 %v13608
    %13642 = vmatprep.subr.bf16.mxu0 0
    %13643 = vmatpush1.bf16.msra.mxu0 %v13609
    %13644 = vmatprep.subr.bf16.mxu0 0
    %13645 = vmatpush1.bf16.msra.mxu0 %v13610
    %13646 = vmatprep.subr.bf16.mxu0 0
    %13647 = vmatpush1.bf16.msra.mxu0 %v13611
    %13648 = vmatprep.subr.bf16.mxu0 0
    %13649 = vmatpush1.bf16.msra.mxu0 %v13612
    %13650 = vmatprep.subr.bf16.mxu0 0
    %13651 = vmatpush1.bf16.msra.mxu0 %v13613
    %13652 = vmatprep.subr.bf16.mxu0 0
    %13653 = vmatpush1.bf16.msra.mxu0 %v13614
    %13654 = vmatprep.subr.bf16.mxu0 0
    %13655 = vmatpush1.bf16.msra.mxu0 %v13615
    %13656 = vmatprep.subr.bf16.mxu0 0
    %13657 = vmatpush1.bf16.msra.mxu0 %v13616
    %13658 = vmatprep.subr.bf16.mxu0 0
    %13659 = vmatpush1.bf16.msra.mxu0 %v13617
    %13660 = vmatprep.subr.bf16.mxu0 0
    %13661 = vmatpush1.bf16.msra.mxu0 %v13618
    %13662 = vmatprep.subr.bf16.mxu0 0
    %13663 = vmatpush1.bf16.msra.mxu0 %v13619
    %13664 = vmatprep.subr.bf16.mxu0 0
    %13665 = vmatpush1.bf16.msra.mxu0 %v13620
    %13666 = vmatprep.subr.bf16.mxu0 0
    %13667 = vmatpush1.bf16.msra.mxu0 %v13621
    %13668 = vmatprep.subr.bf16.mxu0 0
    %13669 = vmatpush1.bf16.msra.mxu0 %v13622
    %13670 = vmatprep.subr.bf16.mxu0 0
    %13671 = vmatpush1.bf16.msra.mxu0 %v13623
    %13672 = vmatprep.mubr.bf16.mxu0 %v13504
    %13673 = vmatmul.mubr.bf16.gmra.mrb[0].mxu0 %v13503
    %v13674 = vpop.f32.mrb[0].mxu0
    %v13675 = vadd.f32 %v13542, %v13674
    %v13676 = vpop.f32.mrb[0].mxu0
    %v13677 = vpop.f32.mrb[0].mxu0
    %v13678 = vpop.f32.mrb[0].mxu0
    %13679 = vdwg.mxu0
    %v13680 = vmax.f32 %v13675, 0.0
    %vm13681 = vcmask 25600
    %v13682 = vsel %vm13681, %v13680, -inf
    %13683 = vmax.xlane.f32.xlu0 %v13682
    %v13684 = vpop.xlane.xlu0 %13683
    %v13685 = vsub.f32 %v13680, %v13684
    %v13686 = vmul.f32 %v13685, 1.442695
    %v13687 = vpow.pop %v13686
    %v13688 = vsel %vm13681, %v13687, 0.0
    %13689 = vadd.xlane.f32.xlu0 %v13688
    %v13690 = vpop.xlane.xlu0 %13689
    %v13691 = vrcp.pop %v13690
    %v13692 = vmul.f32 %v13687, %v13691
    %13693 = vst.msk [vmem:[#allocation2] sm:$0x3] %vm13681, %v13692
    // Predicated region
    $region38: #{_lambda_.1} parent=1 // pred_check
      _
    $region39: #{_lambda_.1} parent=1 // pred_check_branch
      %13695 = sbr.rel (0) target = $region41
    $region40: #{_lambda_.1} parent=1 // pred_region
      %s13697 = ssub.s32 32, 32
      %13698 = vsyncadd [#allocation3], %s13697
      %s13700 = sshll.u32 [#allocation2], 4
      %s13701 = int_to_ptr.vmem [resolvable:$true] %s13700
      %13703 = dma.vmem_to_hbm [thread:$0]  %s13701, 32, %s9, [#allocation3]
    $region41: #{_lambda_.1} parent=1 // pred_fallthru
      _
    // Predicated region
    $region42: #{_lambda_.1} parent=1 // pred_check
      _
    $region43: #{_lambda_.1} parent=1 // pred_check_branch
      %13705 = sbr.rel (0) target = $region45
    $region44: #{_lambda_.1} parent=1 // pred_region
      %13706 = dma.done [#allocation3], 32
    $region45: #{_lambda_.1} parent=1 // pred_fallthru
      _
    %13707 = vsyncpa [#allocation3], 1

</llo_original>
